<compile_context>
chip_gen: v5e
topology: v5e:2x2
jax: 0.10.0
libtpu: 0.0.40
codegen_flags: <defaults>
</compile_context>

<pallas_src>
import functools
import numpy as np
import jax
import jax.numpy as jnp
from jax.experimental import pallas as pl
from jax.experimental.pallas import tpu as pltpu


# ----------------------------- constants / glue -----------------------------

_B = 128              # batch tile == lane width of every activation slab
_NPOS = 13 * 13       # pooled conv1 grid (13x13), parity-split position order
_R0 = (0, 7, 1, 8)    # parity-row start of "window" e = di+kh (rows r0..r0+4)


def _parity_to_real(p):
    """Parity-split index (0..12) -> real row/col in the 13x13 pooled grid."""
    return 2 * p if p < 7 else 2 * (p - 7) + 1


@functools.lru_cache(maxsize=None)
def _stage1_indices():
    """Constant (36, 169) gather indices for the stage-1 im2col patches.

    Row   = q1*9 + kh1*3 + kw1   (q1 = conv1 pool offset di1*2+dj1, tap (kh1,kw1))
    Col   = pr*13 + pc           (parity-split pooled conv1 position)
    Value = image pixel index read for that (offset, tap, position).
    """
    idx_h = np.zeros((36, _NPOS), np.int32)
    idx_w = np.zeros((36, _NPOS), np.int32)
    for di in range(2):
        for dj in range(2):
            q = di * 2 + dj
            for kh in range(3):
                for kw in range(3):
                    row = q * 9 + kh * 3 + kw
                    for pr in range(13):
                        for pc in range(13):
                            r = _parity_to_real(pr)
                            c = _parity_to_real(pc)
                            idx_h[row, pr * 13 + pc] = 2 * r + di + kh
                            idx_w[row, pr * 13 + pc] = 2 * c + dj + kw
    return jnp.asarray(idx_h), jnp.asarray(idx_w)


# ------------------------------- fused kernel -------------------------------

def _net_kernel(p_ref, w1_ref, b1_ref, w2_ref, b2_ref, wf_ref, bf_ref, o_ref):
    B = o_ref.shape[1]                       # batch tile (lane dim) = 128

    # ---- stage 1: conv1 + relu + 2x2 maxpool ------------------------------
    # Block-diagonal lhs folds the 4 pool offsets into M/K: one dot.
    p = p_ref[0]                                                      # (36, 169*B) bf16
    z = jnp.dot(w1_ref[...], p, preferred_element_type=jnp.float32)   # (64, 169*B) f32
    z = jnp.maximum(jnp.maximum(z[0:16], z[16:32]),                   # max over offsets
                    jnp.maximum(z[32:48], z[48:64]))                  # (16, 169*B)
    h1 = jnp.maximum(z + b1_ref[...], 0.0).astype(jnp.bfloat16)       # bias+relu, bf16

    # ---- stage 2: conv2 + relu + 2x2 maxpool, ONE K=256 dot ---------------
    # Assemble (256, 25*B): rows = (window e_r,e_c in 4x4, ci padded to 16),
    # cols = (5x5 pooled pos, batch).  All slices are 128-lane aligned and all
    # sublane blocks are exactly one bf16 tile (16 rows).
    blocks = []
    for er in range(4):
        for ec in range(4):
            runs = []
            for ph in range(5):
                start = ((_R0[er] + ph) * 13 + _R0[ec]) * B
                runs.append(h1[:, start:start + 5 * B])               # (16, 5*B)
            blocks.append(jnp.concatenate(runs, axis=1))              # (16, 25*B)
    hm = jnp.concatenate(blocks, axis=0)                              # (256, 25*B) bf16

    s2 = jnp.dot(w2_ref[...], hm, preferred_element_type=jnp.float32)  # (96, 25*B) f32
    s2 = jnp.maximum(jnp.maximum(s2[0:24], s2[24:48]),                # max over offsets
                     jnp.maximum(s2[48:72], s2[72:96]))               # (24, 25*B)
    y2 = jnp.maximum(s2 + b2_ref[...], 0.0).astype(jnp.bfloat16)      # bias+relu, bf16

    # ---- stage 3: fc1 + relu + log_softmax --------------------------------
    # 25 independent lane-dense (10,24)@(24,B) dots, tree-summed (no long
    # dependence chain on the MXU result path).
    parts = [jnp.dot(wf_ref[wp], y2[:, wp * B:(wp + 1) * B],
                     preferred_element_type=jnp.float32)
             for wp in range(25)]                                     # each (10, B)
    while len(parts) > 1:
        nxt = [parts[i] + parts[i + 1] for i in range(0, len(parts) - 1, 2)]
        if len(parts) % 2:
            nxt.append(parts[-1])
        parts = nxt
    zf = jnp.maximum(parts[0] + bf_ref[...], 0.0)                     # (10, B) f32
    m = jnp.max(zf, axis=0, keepdims=True)
    e = jnp.exp(zf - m)
    o_ref[...] = (zf - m) - jnp.log(jnp.sum(e, axis=0, keepdims=True))


# ------------------------------ host-side glue -------------------------------

def init_params(key):
    ks = jax.random.split(key, 6)
    s = 0.1
    return dict(
        w1=s * jax.random.normal(ks[0], (10, 1, 3, 3), jnp.float32),
        b1=s * jax.random.normal(ks[1], (10,), jnp.float32),
        w2=s * jax.random.normal(ks[2], (20, 10, 3, 3), jnp.float32),
        b2=s * jax.random.normal(ks[3], (10 * 2,), jnp.float32),
        wf=s * jax.random.normal(ks[4], (10, 500), jnp.float32),
        bf=s * jax.random.normal(ks[5], (10,), jnp.float32),
    )


def prepare_params(params):
    """One-time weight prep into the matmul-friendly, lane-dense layouts."""
    # Stage 1: block-diagonal over the 4 pool offsets, channels padded 10->16.
    w1 = np.asarray(params["w1"], np.float32).reshape(10, 9)           # (ci, tap)
    w1bd = np.zeros((64, 36), np.float32)
    for q in range(4):
        w1bd[q * 16:q * 16 + 10, q * 9:(q + 1) * 9] = w1
    b1p = np.zeros((16, 1), np.float32)
    b1p[:10, 0] = np.asarray(params["b1"], np.float32)

    # Stage 2: (96, 256) lhs over (q2-offset x co[pad 24], window x ci[pad 16]).
    w2 = np.asarray(params["w2"], np.float32)                          # (20, 10, 3, 3)
    l2 = np.zeros((96, 256), np.float32)
    for di in range(2):
        for dj in range(2):
            q = di * 2 + dj
            for er in range(4):
                for ec in range(4):
                    kh, kw = er - di, ec - dj
                    if 0 <= kh < 3 and 0 <= kw < 3:
                        w = er * 4 + ec
                        l2[q * 24:q * 24 + 20, w * 16:w * 16 + 10] = w2[:, :, kh, kw]
    b2p = np.zeros((24, 1), np.float32)
    b2p[:20, 0] = np.asarray(params["b2"], np.float32)

    # Stage 3: per-spatial-position (10, 24) weights (torch NCHW flatten order).
    wf = np.asarray(params["wf"], np.float32).reshape(10, 20, 25)      # (j, co, pos)
    wfp = np.zeros((25, 10, 24), np.float32)
    wfp[:, :, :20] = np.transpose(wf, (2, 0, 1))
    bfp = np.asarray(params["bf"], np.float32).reshape(10, 1)

    return dict(
        w1=jnp.asarray(w1bd, jnp.bfloat16), b1=jnp.asarray(b1p, jnp.float32),
        w2=jnp.asarray(l2, jnp.bfloat16), b2=jnp.asarray(b2p, jnp.float32),
        wf=jnp.asarray(wfp, jnp.bfloat16), bf=jnp.asarray(bfp, jnp.float32),
    )


def net_forward(prepped, x):
    """x: (N, 1, 28, 28) float32 NCHW -> (N, 10) log-probabilities."""
    N = x.shape[0]
    Np = max(_B, ((N + _B - 1) // _B) * _B)      # pad batch to a multiple of 128
    T = Np // _B

    # Stage-1 im2col patches (single XLA gather on the tiny raw input),
    # produced lane-dense: (tile, 36 rows = offset*tap, 169 positions * B).
    x2 = jnp.pad(x[:, 0], ((0, Np - N), (0, 0), (0, 0)))               # (Np, 28, 28)
    idx_h, idx_w = _stage1_indices()
    patches = x2[:, idx_h, idx_w]                                      # (Np, 36, 169)
    p1 = patches.reshape(T, _B, 36, _NPOS).transpose(0, 2, 3, 1)
    p1 = p1.reshape(T, 36, _NPOS * _B).astype(jnp.bfloat16)

    out = pl.pallas_call(
        _net_kernel,
        out_shape=jax.ShapeDtypeStruct((10, Np), jnp.float32),         # lane-dense out
        grid=(T,),
        in_specs=[
            pl.BlockSpec((1, 36, _NPOS * _B), lambda i: (i, 0, 0)),    # patches (tiled)
            pl.BlockSpec((64, 36), lambda i: (0, 0)),                  # conv1 block-diag
            pl.BlockSpec((16, 1), lambda i: (0, 0)),                   # b1 (padded)
            pl.BlockSpec((96, 256), lambda i: (0, 0)),                 # conv2 fused lhs
            pl.BlockSpec((24, 1), lambda i: (0, 0)),                   # b2 (padded)
            pl.BlockSpec((25, 10, 24), lambda i: (0, 0, 0)),           # fc per-position
            pl.BlockSpec((10, 1), lambda i: (0, 0)),                   # fc bias
        ],
        out_specs=pl.BlockSpec((10, _B), lambda i: (0, i)),
        compiler_params=pltpu.CompilerParams(
            dimension_semantics=("parallel",),
            vmem_limit_bytes=48 * 1024 * 1024),
        cost_estimate=pl.CostEstimate(
            flops=int(Np * 1_500_000),
            transcendentals=int(Np * 11),
            bytes_accessed=int(p1.size * 2 + Np * 10 * 4 + 70_000)),
    )(p1, prepped["w1"], prepped["b1"], prepped["w2"], prepped["b2"],
      prepped["wf"], prepped["bf"])
    return out.T[:N]


# --------------------------- plain-JAX reference ----------------------------

def _reference(params, x):
    def conv(x, w, b):
        y = jax.lax.conv_general_dilated(
            x, w, window_strides=(1, 1), padding="VALID",
            dimension_numbers=("NCHW", "OIHW", "NCHW"),
            precision=jax.lax.Precision.HIGHEST)
        return y + b[None, :, None, None]

    def pool(x):
        return jax.lax.reduce_window(x, -jnp.inf, jax.lax.max,
                                     (1, 1, 2, 2), (1, 1, 2, 2), "VALID")

    h = pool(jax.nn.relu(conv(x, params["w1"], params["b1"])))
    h = pool(jax.nn.relu(conv(h, params["w2"], params["b2"])))
    h = h.reshape(x.shape[0], -1)
    z = jax.nn.relu(h @ params["wf"].T + params["bf"])
    return jax.nn.log_softmax(z, axis=1)


if __name__ == "__main__":
    key = jax.random.PRNGKey(0)
    kx, kp = jax.random.split(key)
    x = jax.random.normal(kx, (2, 1, 28, 28), jnp.float32)   # NCHW, like torch
    params = init_params(kp)
    prepped = prepare_params(params)

    fwd = jax.jit(net_forward)
    out = jax.block_until_ready(fwd(prepped, x))
    ref = jax.block_until_ready(_reference(params, x))

    assert out.shape == (2, 10) and out.dtype == jnp.float32
    assert bool(jnp.all(jnp.isfinite(out)))
    # bf16 matmul operands (f32 accumulation) => modest tolerance vs f32 ref.
    np.testing.assert_allclose(np.asarray(out), np.asarray(ref),
                               atol=2e-2, rtol=2e-2)
    print("KERNEL_OK")
</pallas_src>

<mosaic_0001>
module attributes {stable_mosaic.version = 11 : i64} {
  func.func @_net_kernel(%arg0: i32, %arg1: memref<1x36x21632xbf16, #tpu.memory_space<vmem>>, %arg2: memref<64x36xbf16, #tpu.memory_space<vmem>>, %arg3: memref<16x1xf32, #tpu.memory_space<vmem>>, %arg4: memref<96x256xbf16, #tpu.memory_space<vmem>>, %arg5: memref<24x1xf32, #tpu.memory_space<vmem>>, %arg6: memref<25x10x24xbf16, #tpu.memory_space<vmem>>, %arg7: memref<10x1xf32, #tpu.memory_space<vmem>>, %arg8: memref<10x128xf32, #tpu.memory_space<vmem>>) attributes {dimension_semantics = [#tpu.dimension_semantics<parallel>], iteration_bounds = array<i64: 1>, scalar_prefetch = 0 : i64, scratch_operands = 0 : i64, tpu.core_type = #tpu.core_type<tc>, window_params = [{transform_indices = @transform_0, window_bounds = array<i64: 1, 36, 21632>}, {pipeline_mode = #tpu.pipeline_mode<synchronous>, transform_indices = @transform_1, window_bounds = array<i64: 64, 36>}, {pipeline_mode = #tpu.pipeline_mode<synchronous>, transform_indices = @transform_2, window_bounds = array<i64: 16, 1>}, {pipeline_mode = #tpu.pipeline_mode<synchronous>, transform_indices = @transform_3, window_bounds = array<i64: 96, 256>}, {pipeline_mode = #tpu.pipeline_mode<synchronous>, transform_indices = @transform_4, window_bounds = array<i64: 24, 1>}, {pipeline_mode = #tpu.pipeline_mode<synchronous>, transform_indices = @transform_5, window_bounds = array<i64: 25, 10, 24>}, {pipeline_mode = #tpu.pipeline_mode<synchronous>, transform_indices = @transform_6, window_bounds = array<i64: 10, 1>}, {transform_indices = @transform_7, window_bounds = array<i64: 10, 128>}]} {
    %c0 = arith.constant 0 : index
    %c0_0 = arith.constant 0 : index
    %c0_1 = arith.constant 0 : index
    %0 = vector.load %arg1[%c0, %c0_0, %c0_1] : memref<1x36x21632xbf16, #tpu.memory_space<vmem>>, vector<1x36x21632xbf16>
    %1 = vector.shape_cast %0 : vector<1x36x21632xbf16> to vector<36x21632xbf16>
    %c0_2 = arith.constant 0 : index
    %c0_3 = arith.constant 0 : index
    %2 = vector.load %arg2[%c0_2, %c0_3] : memref<64x36xbf16, #tpu.memory_space<vmem>>, vector<64x36xbf16>
    %cst = arith.constant dense<0.000000e+00> : vector<64x21632xf32>
    %3 = tpu.matmul %2, %1, %cst {dimension_numbers = #tpu.dot_dimension_numbers<[1], [0], [0], [1], [0, 0, 1, 1], [], []>} : vector<64x36xbf16>, vector<36x21632xbf16>, vector<64x21632xf32> -> vector<64x21632xf32>
    %4 = vector.extract_strided_slice %3 {offsets = [0, 0], sizes = [16, 21632], strides = [1, 1]} : vector<64x21632xf32> to vector<16x21632xf32>
    %5 = vector.extract_strided_slice %3 {offsets = [16, 0], sizes = [16, 21632], strides = [1, 1]} : vector<64x21632xf32> to vector<16x21632xf32>
    %6 = arith.maximumf %4, %5 : vector<16x21632xf32>
    %7 = vector.extract_strided_slice %3 {offsets = [32, 0], sizes = [16, 21632], strides = [1, 1]} : vector<64x21632xf32> to vector<16x21632xf32>
    %8 = vector.extract_strided_slice %3 {offsets = [48, 0], sizes = [16, 21632], strides = [1, 1]} : vector<64x21632xf32> to vector<16x21632xf32>
    %9 = arith.maximumf %7, %8 : vector<16x21632xf32>
    %10 = arith.maximumf %6, %9 : vector<16x21632xf32>
    %c0_4 = arith.constant 0 : index
    %c0_5 = arith.constant 0 : index
    %11 = vector.load %arg3[%c0_4, %c0_5] : memref<16x1xf32, #tpu.memory_space<vmem>>, vector<16x1xf32>
    %12 = vector.broadcast %11 : vector<16x1xf32> to vector<16x21632xf32>
    %13 = arith.addf %10, %12 : vector<16x21632xf32>
    %cst_6 = arith.constant 0.000000e+00 : f32
    %14 = vector.broadcast %cst_6 : f32 to vector<16x21632xf32>
    %15 = arith.maximumf %13, %14 : vector<16x21632xf32>
    %16 = arith.truncf %15 : vector<16x21632xf32> to vector<16x21632xbf16>
    %17 = vector.extract_strided_slice %16 {offsets = [0, 0], sizes = [16, 640], strides = [1, 1]} : vector<16x21632xbf16> to vector<16x640xbf16>
    %18 = vector.extract_strided_slice %16 {offsets = [0, 1664], sizes = [16, 640], strides = [1, 1]} : vector<16x21632xbf16> to vector<16x640xbf16>
    %19 = vector.extract_strided_slice %16 {offsets = [0, 3328], sizes = [16, 640], strides = [1, 1]} : vector<16x21632xbf16> to vector<16x640xbf16>
    %20 = vector.extract_strided_slice %16 {offsets = [0, 4992], sizes = [16, 640], strides = [1, 1]} : vector<16x21632xbf16> to vector<16x640xbf16>
    %21 = vector.extract_strided_slice %16 {offsets = [0, 6656], sizes = [16, 640], strides = [1, 1]} : vector<16x21632xbf16> to vector<16x640xbf16>
    %22 = tpu.concatenate %17, %18, %19, %20, %21 in 1 : vector<16x640xbf16>, vector<16x640xbf16>, vector<16x640xbf16>, vector<16x640xbf16>, vector<16x640xbf16> -> vector<16x3200xbf16>
    %23 = vector.extract_strided_slice %16 {offsets = [0, 896], sizes = [16, 640], strides = [1, 1]} : vector<16x21632xbf16> to vector<16x640xbf16>
    %24 = vector.extract_strided_slice %16 {offsets = [0, 2560], sizes = [16, 640], strides = [1, 1]} : vector<16x21632xbf16> to vector<16x640xbf16>
    %25 = vector.extract_strided_slice %16 {offsets = [0, 4224], sizes = [16, 640], strides = [1, 1]} : vector<16x21632xbf16> to vector<16x640xbf16>
    %26 = vector.extract_strided_slice %16 {offsets = [0, 5888], sizes = [16, 640], strides = [1, 1]} : vector<16x21632xbf16> to vector<16x640xbf16>
    %27 = vector.extract_strided_slice %16 {offsets = [0, 7552], sizes = [16, 640], strides = [1, 1]} : vector<16x21632xbf16> to vector<16x640xbf16>
    %28 = tpu.concatenate %23, %24, %25, %26, %27 in 1 : vector<16x640xbf16>, vector<16x640xbf16>, vector<16x640xbf16>, vector<16x640xbf16>, vector<16x640xbf16> -> vector<16x3200xbf16>
    %29 = vector.extract_strided_slice %16 {offsets = [0, 128], sizes = [16, 640], strides = [1, 1]} : vector<16x21632xbf16> to vector<16x640xbf16>
    %30 = vector.extract_strided_slice %16 {offsets = [0, 1792], sizes = [16, 640], strides = [1, 1]} : vector<16x21632xbf16> to vector<16x640xbf16>
    %31 = vector.extract_strided_slice %16 {offsets = [0, 3456], sizes = [16, 640], strides = [1, 1]} : vector<16x21632xbf16> to vector<16x640xbf16>
    %32 = vector.extract_strided_slice %16 {offsets = [0, 5120], sizes = [16, 640], strides = [1, 1]} : vector<16x21632xbf16> to vector<16x640xbf16>
    %33 = vector.extract_strided_slice %16 {offsets = [0, 6784], sizes = [16, 640], strides = [1, 1]} : vector<16x21632xbf16> to vector<16x640xbf16>
    %34 = tpu.concatenate %29, %30, %31, %32, %33 in 1 : vector<16x640xbf16>, vector<16x640xbf16>, vector<16x640xbf16>, vector<16x640xbf16>, vector<16x640xbf16> -> vector<16x3200xbf16>
    %35 = vector.extract_strided_slice %16 {offsets = [0, 1024], sizes = [16, 640], strides = [1, 1]} : vector<16x21632xbf16> to vector<16x640xbf16>
    %36 = vector.extract_strided_slice %16 {offsets = [0, 2688], sizes = [16, 640], strides = [1, 1]} : vector<16x21632xbf16> to vector<16x640xbf16>
    %37 = vector.extract_strided_slice %16 {offsets = [0, 4352], sizes = [16, 640], strides = [1, 1]} : vector<16x21632xbf16> to vector<16x640xbf16>
    %38 = vector.extract_strided_slice %16 {offsets = [0, 6016], sizes = [16, 640], strides = [1, 1]} : vector<16x21632xbf16> to vector<16x640xbf16>
    %39 = vector.extract_strided_slice %16 {offsets = [0, 7680], sizes = [16, 640], strides = [1, 1]} : vector<16x21632xbf16> to vector<16x640xbf16>
    %40 = tpu.concatenate %35, %36, %37, %38, %39 in 1 : vector<16x640xbf16>, vector<16x640xbf16>, vector<16x640xbf16>, vector<16x640xbf16>, vector<16x640xbf16> -> vector<16x3200xbf16>
    %41 = vector.extract_strided_slice %16 {offsets = [0, 11648], sizes = [16, 640], strides = [1, 1]} : vector<16x21632xbf16> to vector<16x640xbf16>
    %42 = vector.extract_strided_slice %16 {offsets = [0, 13312], sizes = [16, 640], strides = [1, 1]} : vector<16x21632xbf16> to vector<16x640xbf16>
    %43 = vector.extract_strided_slice %16 {offsets = [0, 14976], sizes = [16, 640], strides = [1, 1]} : vector<16x21632xbf16> to vector<16x640xbf16>
    %44 = vector.extract_strided_slice %16 {offsets = [0, 16640], sizes = [16, 640], strides = [1, 1]} : vector<16x21632xbf16> to vector<16x640xbf16>
    %45 = vector.extract_strided_slice %16 {offsets = [0, 18304], sizes = [16, 640], strides = [1, 1]} : vector<16x21632xbf16> to vector<16x640xbf16>
    %46 = tpu.concatenate %41, %42, %43, %44, %45 in 1 : vector<16x640xbf16>, vector<16x640xbf16>, vector<16x640xbf16>, vector<16x640xbf16>, vector<16x640xbf16> -> vector<16x3200xbf16>
    %47 = vector.extract_strided_slice %16 {offsets = [0, 12544], sizes = [16, 640], strides = [1, 1]} : vector<16x21632xbf16> to vector<16x640xbf16>
    %48 = vector.extract_strided_slice %16 {offsets = [0, 14208], sizes = [16, 640], strides = [1, 1]} : vector<16x21632xbf16> to vector<16x640xbf16>
    %49 = vector.extract_strided_slice %16 {offsets = [0, 15872], sizes = [16, 640], strides = [1, 1]} : vector<16x21632xbf16> to vector<16x640xbf16>
    %50 = vector.extract_strided_slice %16 {offsets = [0, 17536], sizes = [16, 640], strides = [1, 1]} : vector<16x21632xbf16> to vector<16x640xbf16>
    %51 = vector.extract_strided_slice %16 {offsets = [0, 19200], sizes = [16, 640], strides = [1, 1]} : vector<16x21632xbf16> to vector<16x640xbf16>
    %52 = tpu.concatenate %47, %48, %49, %50, %51 in 1 : vector<16x640xbf16>, vector<16x640xbf16>, vector<16x640xbf16>, vector<16x640xbf16>, vector<16x640xbf16> -> vector<16x3200xbf16>
    %53 = vector.extract_strided_slice %16 {offsets = [0, 11776], sizes = [16, 640], strides = [1, 1]} : vector<16x21632xbf16> to vector<16x640xbf16>
    %54 = vector.extract_strided_slice %16 {offsets = [0, 13440], sizes = [16, 640], strides = [1, 1]} : vector<16x21632xbf16> to vector<16x640xbf16>
    %55 = vector.extract_strided_slice %16 {offsets = [0, 15104], sizes = [16, 640], strides = [1, 1]} : vector<16x21632xbf16> to vector<16x640xbf16>
    %56 = vector.extract_strided_slice %16 {offsets = [0, 16768], sizes = [16, 640], strides = [1, 1]} : vector<16x21632xbf16> to vector<16x640xbf16>
    %57 = vector.extract_strided_slice %16 {offsets = [0, 18432], sizes = [16, 640], strides = [1, 1]} : vector<16x21632xbf16> to vector<16x640xbf16>
    %58 = tpu.concatenate %53, %54, %55, %56, %57 in 1 : vector<16x640xbf16>, vector<16x640xbf16>, vector<16x640xbf16>, vector<16x640xbf16>, vector<16x640xbf16> -> vector<16x3200xbf16>
    %59 = vector.extract_strided_slice %16 {offsets = [0, 12672], sizes = [16, 640], strides = [1, 1]} : vector<16x21632xbf16> to vector<16x640xbf16>
    %60 = vector.extract_strided_slice %16 {offsets = [0, 14336], sizes = [16, 640], strides = [1, 1]} : vector<16x21632xbf16> to vector<16x640xbf16>
    %61 = vector.extract_strided_slice %16 {offsets = [0, 16000], sizes = [16, 640], strides = [1, 1]} : vector<16x21632xbf16> to vector<16x640xbf16>
    %62 = vector.extract_strided_slice %16 {offsets = [0, 17664], sizes = [16, 640], strides = [1, 1]} : vector<16x21632xbf16> to vector<16x640xbf16>
    %63 = vector.extract_strided_slice %16 {offsets = [0, 19328], sizes = [16, 640], strides = [1, 1]} : vector<16x21632xbf16> to vector<16x640xbf16>
    %64 = tpu.concatenate %59, %60, %61, %62, %63 in 1 : vector<16x640xbf16>, vector<16x640xbf16>, vector<16x640xbf16>, vector<16x640xbf16>, vector<16x640xbf16> -> vector<16x3200xbf16>
    %65 = vector.extract_strided_slice %16 {offsets = [0, 1664], sizes = [16, 640], strides = [1, 1]} : vector<16x21632xbf16> to vector<16x640xbf16>
    %66 = vector.extract_strided_slice %16 {offsets = [0, 3328], sizes = [16, 640], strides = [1, 1]} : vector<16x21632xbf16> to vector<16x640xbf16>
    %67 = vector.extract_strided_slice %16 {offsets = [0, 4992], sizes = [16, 640], strides = [1, 1]} : vector<16x21632xbf16> to vector<16x640xbf16>
    %68 = vector.extract_strided_slice %16 {offsets = [0, 6656], sizes = [16, 640], strides = [1, 1]} : vector<16x21632xbf16> to vector<16x640xbf16>
    %69 = vector.extract_strided_slice %16 {offsets = [0, 8320], sizes = [16, 640], strides = [1, 1]} : vector<16x21632xbf16> to vector<16x640xbf16>
    %70 = tpu.concatenate %65, %66, %67, %68, %69 in 1 : vector<16x640xbf16>, vector<16x640xbf16>, vector<16x640xbf16>, vector<16x640xbf16>, vector<16x640xbf16> -> vector<16x3200xbf16>
    %71 = vector.extract_strided_slice %16 {offsets = [0, 2560], sizes = [16, 640], strides = [1, 1]} : vector<16x21632xbf16> to vector<16x640xbf16>
    %72 = vector.extract_strided_slice %16 {offsets = [0, 4224], sizes = [16, 640], strides = [1, 1]} : vector<16x21632xbf16> to vector<16x640xbf16>
    %73 = vector.extract_strided_slice %16 {offsets = [0, 5888], sizes = [16, 640], strides = [1, 1]} : vector<16x21632xbf16> to vector<16x640xbf16>
    %74 = vector.extract_strided_slice %16 {offsets = [0, 7552], sizes = [16, 640], strides = [1, 1]} : vector<16x21632xbf16> to vector<16x640xbf16>
    %75 = vector.extract_strided_slice %16 {offsets = [0, 9216], sizes = [16, 640], strides = [1, 1]} : vector<16x21632xbf16> to vector<16x640xbf16>
    %76 = tpu.concatenate %71, %72, %73, %74, %75 in 1 : vector<16x640xbf16>, vector<16x640xbf16>, vector<16x640xbf16>, vector<16x640xbf16>, vector<16x640xbf16> -> vector<16x3200xbf16>
    %77 = vector.extract_strided_slice %16 {offsets = [0, 1792], sizes = [16, 640], strides = [1, 1]} : vector<16x21632xbf16> to vector<16x640xbf16>
    %78 = vector.extract_strided_slice %16 {offsets = [0, 3456], sizes = [16, 640], strides = [1, 1]} : vector<16x21632xbf16> to vector<16x640xbf16>
    %79 = vector.extract_strided_slice %16 {offsets = [0, 5120], sizes = [16, 640], strides = [1, 1]} : vector<16x21632xbf16> to vector<16x640xbf16>
    %80 = vector.extract_strided_slice %16 {offsets = [0, 6784], sizes = [16, 640], strides = [1, 1]} : vector<16x21632xbf16> to vector<16x640xbf16>
    %81 = vector.extract_strided_slice %16 {offsets = [0, 8448], sizes = [16, 640], strides = [1, 1]} : vector<16x21632xbf16> to vector<16x640xbf16>
    %82 = tpu.concatenate %77, %78, %79, %80, %81 in 1 : vector<16x640xbf16>, vector<16x640xbf16>, vector<16x640xbf16>, vector<16x640xbf16>, vector<16x640xbf16> -> vector<16x3200xbf16>
    %83 = vector.extract_strided_slice %16 {offsets = [0, 2688], sizes = [16, 640], strides = [1, 1]} : vector<16x21632xbf16> to vector<16x640xbf16>
    %84 = vector.extract_strided_slice %16 {offsets = [0, 4352], sizes = [16, 640], strides = [1, 1]} : vector<16x21632xbf16> to vector<16x640xbf16>
    %85 = vector.extract_strided_slice %16 {offsets = [0, 6016], sizes = [16, 640], strides = [1, 1]} : vector<16x21632xbf16> to vector<16x640xbf16>
    %86 = vector.extract_strided_slice %16 {offsets = [0, 7680], sizes = [16, 640], strides = [1, 1]} : vector<16x21632xbf16> to vector<16x640xbf16>
    %87 = vector.extract_strided_slice %16 {offsets = [0, 9344], sizes = [16, 640], strides = [1, 1]} : vector<16x21632xbf16> to vector<16x640xbf16>
    %88 = tpu.concatenate %83, %84, %85, %86, %87 in 1 : vector<16x640xbf16>, vector<16x640xbf16>, vector<16x640xbf16>, vector<16x640xbf16>, vector<16x640xbf16> -> vector<16x3200xbf16>
    %89 = vector.extract_strided_slice %16 {offsets = [0, 13312], sizes = [16, 640], strides = [1, 1]} : vector<16x21632xbf16> to vector<16x640xbf16>
    %90 = vector.extract_strided_slice %16 {offsets = [0, 14976], sizes = [16, 640], strides = [1, 1]} : vector<16x21632xbf16> to vector<16x640xbf16>
    %91 = vector.extract_strided_slice %16 {offsets = [0, 16640], sizes = [16, 640], strides = [1, 1]} : vector<16x21632xbf16> to vector<16x640xbf16>
    %92 = vector.extract_strided_slice %16 {offsets = [0, 18304], sizes = [16, 640], strides = [1, 1]} : vector<16x21632xbf16> to vector<16x640xbf16>
    %93 = vector.extract_strided_slice %16 {offsets = [0, 19968], sizes = [16, 640], strides = [1, 1]} : vector<16x21632xbf16> to vector<16x640xbf16>
    %94 = tpu.concatenate %89, %90, %91, %92, %93 in 1 : vector<16x640xbf16>, vector<16x640xbf16>, vector<16x640xbf16>, vector<16x640xbf16>, vector<16x640xbf16> -> vector<16x3200xbf16>
    %95 = vector.extract_strided_slice %16 {offsets = [0, 14208], sizes = [16, 640], strides = [1, 1]} : vector<16x21632xbf16> to vector<16x640xbf16>
    %96 = vector.extract_strided_slice %16 {offsets = [0, 15872], sizes = [16, 640], strides = [1, 1]} : vector<16x21632xbf16> to vector<16x640xbf16>
    %97 = vector.extract_strided_slice %16 {offsets = [0, 17536], sizes = [16, 640], strides = [1, 1]} : vector<16x21632xbf16> to vector<16x640xbf16>
    %98 = vector.extract_strided_slice %16 {offsets = [0, 19200], sizes = [16, 640], strides = [1, 1]} : vector<16x21632xbf16> to vector<16x640xbf16>
    %99 = vector.extract_strided_slice %16 {offsets = [0, 20864], sizes = [16, 640], strides = [1, 1]} : vector<16x21632xbf16> to vector<16x640xbf16>
    %100 = tpu.concatenate %95, %96, %97, %98, %99 in 1 : vector<16x640xbf16>, vector<16x640xbf16>, vector<16x640xbf16>, vector<16x640xbf16>, vector<16x640xbf16> -> vector<16x3200xbf16>
    %101 = vector.extract_strided_slice %16 {offsets = [0, 13440], sizes = [16, 640], strides = [1, 1]} : vector<16x21632xbf16> to vector<16x640xbf16>
    %102 = vector.extract_strided_slice %16 {offsets = [0, 15104], sizes = [16, 640], strides = [1, 1]} : vector<16x21632xbf16> to vector<16x640xbf16>
    %103 = vector.extract_strided_slice %16 {offsets = [0, 16768], sizes = [16, 640], strides = [1, 1]} : vector<16x21632xbf16> to vector<16x640xbf16>
    %104 = vector.extract_strided_slice %16 {offsets = [0, 18432], sizes = [16, 640], strides = [1, 1]} : vector<16x21632xbf16> to vector<16x640xbf16>
    %105 = vector.extract_strided_slice %16 {offsets = [0, 20096], sizes = [16, 640], strides = [1, 1]} : vector<16x21632xbf16> to vector<16x640xbf16>
    %106 = tpu.concatenate %101, %102, %103, %104, %105 in 1 : vector<16x640xbf16>, vector<16x640xbf16>, vector<16x640xbf16>, vector<16x640xbf16>, vector<16x640xbf16> -> vector<16x3200xbf16>
    %107 = vector.extract_strided_slice %16 {offsets = [0, 14336], sizes = [16, 640], strides = [1, 1]} : vector<16x21632xbf16> to vector<16x640xbf16>
    %108 = vector.extract_strided_slice %16 {offsets = [0, 16000], sizes = [16, 640], strides = [1, 1]} : vector<16x21632xbf16> to vector<16x640xbf16>
    %109 = vector.extract_strided_slice %16 {offsets = [0, 17664], sizes = [16, 640], strides = [1, 1]} : vector<16x21632xbf16> to vector<16x640xbf16>
    %110 = vector.extract_strided_slice %16 {offsets = [0, 19328], sizes = [16, 640], strides = [1, 1]} : vector<16x21632xbf16> to vector<16x640xbf16>
    %111 = vector.extract_strided_slice %16 {offsets = [0, 20992], sizes = [16, 640], strides = [1, 1]} : vector<16x21632xbf16> to vector<16x640xbf16>
    %112 = tpu.concatenate %107, %108, %109, %110, %111 in 1 : vector<16x640xbf16>, vector<16x640xbf16>, vector<16x640xbf16>, vector<16x640xbf16>, vector<16x640xbf16> -> vector<16x3200xbf16>
    %113 = tpu.concatenate %22, %28, %34, %40, %46, %52, %58, %64, %70, %76, %82, %88, %94, %100, %106, %112 in 0 : vector<16x3200xbf16>, vector<16x3200xbf16>, vector<16x3200xbf16>, vector<16x3200xbf16>, vector<16x3200xbf16>, vector<16x3200xbf16>, vector<16x3200xbf16>, vector<16x3200xbf16>, vector<16x3200xbf16>, vector<16x3200xbf16>, vector<16x3200xbf16>, vector<16x3200xbf16>, vector<16x3200xbf16>, vector<16x3200xbf16>, vector<16x3200xbf16>, vector<16x3200xbf16> -> vector<256x3200xbf16>
    %c0_7 = arith.constant 0 : index
    %c0_8 = arith.constant 0 : index
    %114 = vector.load %arg4[%c0_7, %c0_8] : memref<96x256xbf16, #tpu.memory_space<vmem>>, vector<96x256xbf16>
    %cst_9 = arith.constant dense<0.000000e+00> : vector<96x3200xf32>
    %115 = tpu.matmul %114, %113, %cst_9 {dimension_numbers = #tpu.dot_dimension_numbers<[1], [0], [0], [1], [0, 0, 1, 1], [], []>} : vector<96x256xbf16>, vector<256x3200xbf16>, vector<96x3200xf32> -> vector<96x3200xf32>
    %116 = vector.extract_strided_slice %115 {offsets = [0, 0], sizes = [24, 3200], strides = [1, 1]} : vector<96x3200xf32> to vector<24x3200xf32>
    %117 = vector.extract_strided_slice %115 {offsets = [24, 0], sizes = [24, 3200], strides = [1, 1]} : vector<96x3200xf32> to vector<24x3200xf32>
    %118 = arith.maximumf %116, %117 : vector<24x3200xf32>
    %119 = vector.extract_strided_slice %115 {offsets = [48, 0], sizes = [24, 3200], strides = [1, 1]} : vector<96x3200xf32> to vector<24x3200xf32>
    %120 = vector.extract_strided_slice %115 {offsets = [72, 0], sizes = [24, 3200], strides = [1, 1]} : vector<96x3200xf32> to vector<24x3200xf32>
    %121 = arith.maximumf %119, %120 : vector<24x3200xf32>
    %122 = arith.maximumf %118, %121 : vector<24x3200xf32>
    %c0_10 = arith.constant 0 : index
    %c0_11 = arith.constant 0 : index
    %123 = vector.load %arg5[%c0_10, %c0_11] : memref<24x1xf32, #tpu.memory_space<vmem>>, vector<24x1xf32>
    %124 = vector.broadcast %123 : vector<24x1xf32> to vector<24x3200xf32>
    %125 = arith.addf %122, %124 : vector<24x3200xf32>
    %cst_12 = arith.constant 0.000000e+00 : f32
    %126 = vector.broadcast %cst_12 : f32 to vector<24x3200xf32>
    %127 = arith.maximumf %125, %126 : vector<24x3200xf32>
    %128 = arith.truncf %127 : vector<24x3200xf32> to vector<24x3200xbf16>
    %c0_13 = arith.constant 0 : index
    %c0_14 = arith.constant 0 : index
    %c0_15 = arith.constant 0 : index
    %129 = vector.load %arg6[%c0_13, %c0_14, %c0_15] : memref<25x10x24xbf16, #tpu.memory_space<vmem>>, vector<1x10x24xbf16>
    %130 = vector.shape_cast %129 : vector<1x10x24xbf16> to vector<10x24xbf16>
    %131 = vector.extract_strided_slice %128 {offsets = [0, 0], sizes = [24, 128], strides = [1, 1]} : vector<24x3200xbf16> to vector<24x128xbf16>
    %cst_16 = arith.constant dense<0.000000e+00> : vector<10x128xf32>
    %132 = tpu.matmul %130, %131, %cst_16 {dimension_numbers = #tpu.dot_dimension_numbers<[1], [0], [0], [1], [0, 0, 1, 1], [], []>} : vector<10x24xbf16>, vector<24x128xbf16>, vector<10x128xf32> -> vector<10x128xf32>
    %c1 = arith.constant 1 : index
    %c0_17 = arith.constant 0 : index
    %c0_18 = arith.constant 0 : index
    %133 = vector.load %arg6[%c1, %c0_17, %c0_18] : memref<25x10x24xbf16, #tpu.memory_space<vmem>>, vector<1x10x24xbf16>
    %134 = vector.shape_cast %133 : vector<1x10x24xbf16> to vector<10x24xbf16>
    %135 = vector.extract_strided_slice %128 {offsets = [0, 128], sizes = [24, 128], strides = [1, 1]} : vector<24x3200xbf16> to vector<24x128xbf16>
    %cst_19 = arith.constant dense<0.000000e+00> : vector<10x128xf32>
    %136 = tpu.matmul %134, %135, %cst_19 {dimension_numbers = #tpu.dot_dimension_numbers<[1], [0], [0], [1], [0, 0, 1, 1], [], []>} : vector<10x24xbf16>, vector<24x128xbf16>, vector<10x128xf32> -> vector<10x128xf32>
    %c2 = arith.constant 2 : index
    %c0_20 = arith.constant 0 : index
    %c0_21 = arith.constant 0 : index
    %137 = vector.load %arg6[%c2, %c0_20, %c0_21] : memref<25x10x24xbf16, #tpu.memory_space<vmem>>, vector<1x10x24xbf16>
    %138 = vector.shape_cast %137 : vector<1x10x24xbf16> to vector<10x24xbf16>
    %139 = vector.extract_strided_slice %128 {offsets = [0, 256], sizes = [24, 128], strides = [1, 1]} : vector<24x3200xbf16> to vector<24x128xbf16>
    %cst_22 = arith.constant dense<0.000000e+00> : vector<10x128xf32>
    %140 = tpu.matmul %138, %139, %cst_22 {dimension_numbers = #tpu.dot_dimension_numbers<[1], [0], [0], [1], [0, 0, 1, 1], [], []>} : vector<10x24xbf16>, vector<24x128xbf16>, vector<10x128xf32> -> vector<10x128xf32>
    %c3 = arith.constant 3 : index
    %c0_23 = arith.constant 0 : index
    %c0_24 = arith.constant 0 : index
    %141 = vector.load %arg6[%c3, %c0_23, %c0_24] : memref<25x10x24xbf16, #tpu.memory_space<vmem>>, vector<1x10x24xbf16>
    %142 = vector.shape_cast %141 : vector<1x10x24xbf16> to vector<10x24xbf16>
    %143 = vector.extract_strided_slice %128 {offsets = [0, 384], sizes = [24, 128], strides = [1, 1]} : vector<24x3200xbf16> to vector<24x128xbf16>
    %cst_25 = arith.constant dense<0.000000e+00> : vector<10x128xf32>
    %144 = tpu.matmul %142, %143, %cst_25 {dimension_numbers = #tpu.dot_dimension_numbers<[1], [0], [0], [1], [0, 0, 1, 1], [], []>} : vector<10x24xbf16>, vector<24x128xbf16>, vector<10x128xf32> -> vector<10x128xf32>
    %c4 = arith.constant 4 : index
    %c0_26 = arith.constant 0 : index
    %c0_27 = arith.constant 0 : index
    %145 = vector.load %arg6[%c4, %c0_26, %c0_27] : memref<25x10x24xbf16, #tpu.memory_space<vmem>>, vector<1x10x24xbf16>
    %146 = vector.shape_cast %145 : vector<1x10x24xbf16> to vector<10x24xbf16>
    %147 = vector.extract_strided_slice %128 {offsets = [0, 512], sizes = [24, 128], strides = [1, 1]} : vector<24x3200xbf16> to vector<24x128xbf16>
    %cst_28 = arith.constant dense<0.000000e+00> : vector<10x128xf32>
    %148 = tpu.matmul %146, %147, %cst_28 {dimension_numbers = #tpu.dot_dimension_numbers<[1], [0], [0], [1], [0, 0, 1, 1], [], []>} : vector<10x24xbf16>, vector<24x128xbf16>, vector<10x128xf32> -> vector<10x128xf32>
    %c5 = arith.constant 5 : index
    %c0_29 = arith.constant 0 : index
    %c0_30 = arith.constant 0 : index
    %149 = vector.load %arg6[%c5, %c0_29, %c0_30] : memref<25x10x24xbf16, #tpu.memory_space<vmem>>, vector<1x10x24xbf16>
    %150 = vector.shape_cast %149 : vector<1x10x24xbf16> to vector<10x24xbf16>
    %151 = vector.extract_strided_slice %128 {offsets = [0, 640], sizes = [24, 128], strides = [1, 1]} : vector<24x3200xbf16> to vector<24x128xbf16>
    %cst_31 = arith.constant dense<0.000000e+00> : vector<10x128xf32>
    %152 = tpu.matmul %150, %151, %cst_31 {dimension_numbers = #tpu.dot_dimension_numbers<[1], [0], [0], [1], [0, 0, 1, 1], [], []>} : vector<10x24xbf16>, vector<24x128xbf16>, vector<10x128xf32> -> vector<10x128xf32>
    %c6 = arith.constant 6 : index
    %c0_32 = arith.constant 0 : index
    %c0_33 = arith.constant 0 : index
    %153 = vector.load %arg6[%c6, %c0_32, %c0_33] : memref<25x10x24xbf16, #tpu.memory_space<vmem>>, vector<1x10x24xbf16>
    %154 = vector.shape_cast %153 : vector<1x10x24xbf16> to vector<10x24xbf16>
    %155 = vector.extract_strided_slice %128 {offsets = [0, 768], sizes = [24, 128], strides = [1, 1]} : vector<24x3200xbf16> to vector<24x128xbf16>
    %cst_34 = arith.constant dense<0.000000e+00> : vector<10x128xf32>
    %156 = tpu.matmul %154, %155, %cst_34 {dimension_numbers = #tpu.dot_dimension_numbers<[1], [0], [0], [1], [0, 0, 1, 1], [], []>} : vector<10x24xbf16>, vector<24x128xbf16>, vector<10x128xf32> -> vector<10x128xf32>
    %c7 = arith.constant 7 : index
    %c0_35 = arith.constant 0 : index
    %c0_36 = arith.constant 0 : index
    %157 = vector.load %arg6[%c7, %c0_35, %c0_36] : memref<25x10x24xbf16, #tpu.memory_space<vmem>>, vector<1x10x24xbf16>
    %158 = vector.shape_cast %157 : vector<1x10x24xbf16> to vector<10x24xbf16>
    %159 = vector.extract_strided_slice %128 {offsets = [0, 896], sizes = [24, 128], strides = [1, 1]} : vector<24x3200xbf16> to vector<24x128xbf16>
    %cst_37 = arith.constant dense<0.000000e+00> : vector<10x128xf32>
    %160 = tpu.matmul %158, %159, %cst_37 {dimension_numbers = #tpu.dot_dimension_numbers<[1], [0], [0], [1], [0, 0, 1, 1], [], []>} : vector<10x24xbf16>, vector<24x128xbf16>, vector<10x128xf32> -> vector<10x128xf32>
    %c8 = arith.constant 8 : index
    %c0_38 = arith.constant 0 : index
    %c0_39 = arith.constant 0 : index
    %161 = vector.load %arg6[%c8, %c0_38, %c0_39] : memref<25x10x24xbf16, #tpu.memory_space<vmem>>, vector<1x10x24xbf16>
    %162 = vector.shape_cast %161 : vector<1x10x24xbf16> to vector<10x24xbf16>
    %163 = vector.extract_strided_slice %128 {offsets = [0, 1024], sizes = [24, 128], strides = [1, 1]} : vector<24x3200xbf16> to vector<24x128xbf16>
    %cst_40 = arith.constant dense<0.000000e+00> : vector<10x128xf32>
    %164 = tpu.matmul %162, %163, %cst_40 {dimension_numbers = #tpu.dot_dimension_numbers<[1], [0], [0], [1], [0, 0, 1, 1], [], []>} : vector<10x24xbf16>, vector<24x128xbf16>, vector<10x128xf32> -> vector<10x128xf32>
    %c9 = arith.constant 9 : index
    %c0_41 = arith.constant 0 : index
    %c0_42 = arith.constant 0 : index
    %165 = vector.load %arg6[%c9, %c0_41, %c0_42] : memref<25x10x24xbf16, #tpu.memory_space<vmem>>, vector<1x10x24xbf16>
    %166 = vector.shape_cast %165 : vector<1x10x24xbf16> to vector<10x24xbf16>
    %167 = vector.extract_strided_slice %128 {offsets = [0, 1152], sizes = [24, 128], strides = [1, 1]} : vector<24x3200xbf16> to vector<24x128xbf16>
    %cst_43 = arith.constant dense<0.000000e+00> : vector<10x128xf32>
    %168 = tpu.matmul %166, %167, %cst_43 {dimension_numbers = #tpu.dot_dimension_numbers<[1], [0], [0], [1], [0, 0, 1, 1], [], []>} : vector<10x24xbf16>, vector<24x128xbf16>, vector<10x128xf32> -> vector<10x128xf32>
    %c10 = arith.constant 10 : index
    %c0_44 = arith.constant 0 : index
    %c0_45 = arith.constant 0 : index
    %169 = vector.load %arg6[%c10, %c0_44, %c0_45] : memref<25x10x24xbf16, #tpu.memory_space<vmem>>, vector<1x10x24xbf16>
    %170 = vector.shape_cast %169 : vector<1x10x24xbf16> to vector<10x24xbf16>
    %171 = vector.extract_strided_slice %128 {offsets = [0, 1280], sizes = [24, 128], strides = [1, 1]} : vector<24x3200xbf16> to vector<24x128xbf16>
    %cst_46 = arith.constant dense<0.000000e+00> : vector<10x128xf32>
    %172 = tpu.matmul %170, %171, %cst_46 {dimension_numbers = #tpu.dot_dimension_numbers<[1], [0], [0], [1], [0, 0, 1, 1], [], []>} : vector<10x24xbf16>, vector<24x128xbf16>, vector<10x128xf32> -> vector<10x128xf32>
    %c11 = arith.constant 11 : index
    %c0_47 = arith.constant 0 : index
    %c0_48 = arith.constant 0 : index
    %173 = vector.load %arg6[%c11, %c0_47, %c0_48] : memref<25x10x24xbf16, #tpu.memory_space<vmem>>, vector<1x10x24xbf16>
    %174 = vector.shape_cast %173 : vector<1x10x24xbf16> to vector<10x24xbf16>
    %175 = vector.extract_strided_slice %128 {offsets = [0, 1408], sizes = [24, 128], strides = [1, 1]} : vector<24x3200xbf16> to vector<24x128xbf16>
    %cst_49 = arith.constant dense<0.000000e+00> : vector<10x128xf32>
    %176 = tpu.matmul %174, %175, %cst_49 {dimension_numbers = #tpu.dot_dimension_numbers<[1], [0], [0], [1], [0, 0, 1, 1], [], []>} : vector<10x24xbf16>, vector<24x128xbf16>, vector<10x128xf32> -> vector<10x128xf32>
    %c12 = arith.constant 12 : index
    %c0_50 = arith.constant 0 : index
    %c0_51 = arith.constant 0 : index
    %177 = vector.load %arg6[%c12, %c0_50, %c0_51] : memref<25x10x24xbf16, #tpu.memory_space<vmem>>, vector<1x10x24xbf16>
    %178 = vector.shape_cast %177 : vector<1x10x24xbf16> to vector<10x24xbf16>
    %179 = vector.extract_strided_slice %128 {offsets = [0, 1536], sizes = [24, 128], strides = [1, 1]} : vector<24x3200xbf16> to vector<24x128xbf16>
    %cst_52 = arith.constant dense<0.000000e+00> : vector<10x128xf32>
    %180 = tpu.matmul %178, %179, %cst_52 {dimension_numbers = #tpu.dot_dimension_numbers<[1], [0], [0], [1], [0, 0, 1, 1], [], []>} : vector<10x24xbf16>, vector<24x128xbf16>, vector<10x128xf32> -> vector<10x128xf32>
    %c13 = arith.constant 13 : index
    %c0_53 = arith.constant 0 : index
    %c0_54 = arith.constant 0 : index
    %181 = vector.load %arg6[%c13, %c0_53, %c0_54] : memref<25x10x24xbf16, #tpu.memory_space<vmem>>, vector<1x10x24xbf16>
    %182 = vector.shape_cast %181 : vector<1x10x24xbf16> to vector<10x24xbf16>
    %183 = vector.extract_strided_slice %128 {offsets = [0, 1664], sizes = [24, 128], strides = [1, 1]} : vector<24x3200xbf16> to vector<24x128xbf16>
    %cst_55 = arith.constant dense<0.000000e+00> : vector<10x128xf32>
    %184 = tpu.matmul %182, %183, %cst_55 {dimension_numbers = #tpu.dot_dimension_numbers<[1], [0], [0], [1], [0, 0, 1, 1], [], []>} : vector<10x24xbf16>, vector<24x128xbf16>, vector<10x128xf32> -> vector<10x128xf32>
    %c14 = arith.constant 14 : index
    %c0_56 = arith.constant 0 : index
    %c0_57 = arith.constant 0 : index
    %185 = vector.load %arg6[%c14, %c0_56, %c0_57] : memref<25x10x24xbf16, #tpu.memory_space<vmem>>, vector<1x10x24xbf16>
    %186 = vector.shape_cast %185 : vector<1x10x24xbf16> to vector<10x24xbf16>
    %187 = vector.extract_strided_slice %128 {offsets = [0, 1792], sizes = [24, 128], strides = [1, 1]} : vector<24x3200xbf16> to vector<24x128xbf16>
    %cst_58 = arith.constant dense<0.000000e+00> : vector<10x128xf32>
    %188 = tpu.matmul %186, %187, %cst_58 {dimension_numbers = #tpu.dot_dimension_numbers<[1], [0], [0], [1], [0, 0, 1, 1], [], []>} : vector<10x24xbf16>, vector<24x128xbf16>, vector<10x128xf32> -> vector<10x128xf32>
    %c15 = arith.constant 15 : index
    %c0_59 = arith.constant 0 : index
    %c0_60 = arith.constant 0 : index
    %189 = vector.load %arg6[%c15, %c0_59, %c0_60] : memref<25x10x24xbf16, #tpu.memory_space<vmem>>, vector<1x10x24xbf16>
    %190 = vector.shape_cast %189 : vector<1x10x24xbf16> to vector<10x24xbf16>
    %191 = vector.extract_strided_slice %128 {offsets = [0, 1920], sizes = [24, 128], strides = [1, 1]} : vector<24x3200xbf16> to vector<24x128xbf16>
    %cst_61 = arith.constant dense<0.000000e+00> : vector<10x128xf32>
    %192 = tpu.matmul %190, %191, %cst_61 {dimension_numbers = #tpu.dot_dimension_numbers<[1], [0], [0], [1], [0, 0, 1, 1], [], []>} : vector<10x24xbf16>, vector<24x128xbf16>, vector<10x128xf32> -> vector<10x128xf32>
    %c16 = arith.constant 16 : index
    %c0_62 = arith.constant 0 : index
    %c0_63 = arith.constant 0 : index
    %193 = vector.load %arg6[%c16, %c0_62, %c0_63] : memref<25x10x24xbf16, #tpu.memory_space<vmem>>, vector<1x10x24xbf16>
    %194 = vector.shape_cast %193 : vector<1x10x24xbf16> to vector<10x24xbf16>
    %195 = vector.extract_strided_slice %128 {offsets = [0, 2048], sizes = [24, 128], strides = [1, 1]} : vector<24x3200xbf16> to vector<24x128xbf16>
    %cst_64 = arith.constant dense<0.000000e+00> : vector<10x128xf32>
    %196 = tpu.matmul %194, %195, %cst_64 {dimension_numbers = #tpu.dot_dimension_numbers<[1], [0], [0], [1], [0, 0, 1, 1], [], []>} : vector<10x24xbf16>, vector<24x128xbf16>, vector<10x128xf32> -> vector<10x128xf32>
    %c17 = arith.constant 17 : index
    %c0_65 = arith.constant 0 : index
    %c0_66 = arith.constant 0 : index
    %197 = vector.load %arg6[%c17, %c0_65, %c0_66] : memref<25x10x24xbf16, #tpu.memory_space<vmem>>, vector<1x10x24xbf16>
    %198 = vector.shape_cast %197 : vector<1x10x24xbf16> to vector<10x24xbf16>
    %199 = vector.extract_strided_slice %128 {offsets = [0, 2176], sizes = [24, 128], strides = [1, 1]} : vector<24x3200xbf16> to vector<24x128xbf16>
    %cst_67 = arith.constant dense<0.000000e+00> : vector<10x128xf32>
    %200 = tpu.matmul %198, %199, %cst_67 {dimension_numbers = #tpu.dot_dimension_numbers<[1], [0], [0], [1], [0, 0, 1, 1], [], []>} : vector<10x24xbf16>, vector<24x128xbf16>, vector<10x128xf32> -> vector<10x128xf32>
    %c18 = arith.constant 18 : index
    %c0_68 = arith.constant 0 : index
    %c0_69 = arith.constant 0 : index
    %201 = vector.load %arg6[%c18, %c0_68, %c0_69] : memref<25x10x24xbf16, #tpu.memory_space<vmem>>, vector<1x10x24xbf16>
    %202 = vector.shape_cast %201 : vector<1x10x24xbf16> to vector<10x24xbf16>
    %203 = vector.extract_strided_slice %128 {offsets = [0, 2304], sizes = [24, 128], strides = [1, 1]} : vector<24x3200xbf16> to vector<24x128xbf16>
    %cst_70 = arith.constant dense<0.000000e+00> : vector<10x128xf32>
    %204 = tpu.matmul %202, %203, %cst_70 {dimension_numbers = #tpu.dot_dimension_numbers<[1], [0], [0], [1], [0, 0, 1, 1], [], []>} : vector<10x24xbf16>, vector<24x128xbf16>, vector<10x128xf32> -> vector<10x128xf32>
    %c19 = arith.constant 19 : index
    %c0_71 = arith.constant 0 : index
    %c0_72 = arith.constant 0 : index
    %205 = vector.load %arg6[%c19, %c0_71, %c0_72] : memref<25x10x24xbf16, #tpu.memory_space<vmem>>, vector<1x10x24xbf16>
    %206 = vector.shape_cast %205 : vector<1x10x24xbf16> to vector<10x24xbf16>
    %207 = vector.extract_strided_slice %128 {offsets = [0, 2432], sizes = [24, 128], strides = [1, 1]} : vector<24x3200xbf16> to vector<24x128xbf16>
    %cst_73 = arith.constant dense<0.000000e+00> : vector<10x128xf32>
    %208 = tpu.matmul %206, %207, %cst_73 {dimension_numbers = #tpu.dot_dimension_numbers<[1], [0], [0], [1], [0, 0, 1, 1], [], []>} : vector<10x24xbf16>, vector<24x128xbf16>, vector<10x128xf32> -> vector<10x128xf32>
    %c20 = arith.constant 20 : index
    %c0_74 = arith.constant 0 : index
    %c0_75 = arith.constant 0 : index
    %209 = vector.load %arg6[%c20, %c0_74, %c0_75] : memref<25x10x24xbf16, #tpu.memory_space<vmem>>, vector<1x10x24xbf16>
    %210 = vector.shape_cast %209 : vector<1x10x24xbf16> to vector<10x24xbf16>
    %211 = vector.extract_strided_slice %128 {offsets = [0, 2560], sizes = [24, 128], strides = [1, 1]} : vector<24x3200xbf16> to vector<24x128xbf16>
    %cst_76 = arith.constant dense<0.000000e+00> : vector<10x128xf32>
    %212 = tpu.matmul %210, %211, %cst_76 {dimension_numbers = #tpu.dot_dimension_numbers<[1], [0], [0], [1], [0, 0, 1, 1], [], []>} : vector<10x24xbf16>, vector<24x128xbf16>, vector<10x128xf32> -> vector<10x128xf32>
    %c21 = arith.constant 21 : index
    %c0_77 = arith.constant 0 : index
    %c0_78 = arith.constant 0 : index
    %213 = vector.load %arg6[%c21, %c0_77, %c0_78] : memref<25x10x24xbf16, #tpu.memory_space<vmem>>, vector<1x10x24xbf16>
    %214 = vector.shape_cast %213 : vector<1x10x24xbf16> to vector<10x24xbf16>
    %215 = vector.extract_strided_slice %128 {offsets = [0, 2688], sizes = [24, 128], strides = [1, 1]} : vector<24x3200xbf16> to vector<24x128xbf16>
    %cst_79 = arith.constant dense<0.000000e+00> : vector<10x128xf32>
    %216 = tpu.matmul %214, %215, %cst_79 {dimension_numbers = #tpu.dot_dimension_numbers<[1], [0], [0], [1], [0, 0, 1, 1], [], []>} : vector<10x24xbf16>, vector<24x128xbf16>, vector<10x128xf32> -> vector<10x128xf32>
    %c22 = arith.constant 22 : index
    %c0_80 = arith.constant 0 : index
    %c0_81 = arith.constant 0 : index
    %217 = vector.load %arg6[%c22, %c0_80, %c0_81] : memref<25x10x24xbf16, #tpu.memory_space<vmem>>, vector<1x10x24xbf16>
    %218 = vector.shape_cast %217 : vector<1x10x24xbf16> to vector<10x24xbf16>
    %219 = vector.extract_strided_slice %128 {offsets = [0, 2816], sizes = [24, 128], strides = [1, 1]} : vector<24x3200xbf16> to vector<24x128xbf16>
    %cst_82 = arith.constant dense<0.000000e+00> : vector<10x128xf32>
    %220 = tpu.matmul %218, %219, %cst_82 {dimension_numbers = #tpu.dot_dimension_numbers<[1], [0], [0], [1], [0, 0, 1, 1], [], []>} : vector<10x24xbf16>, vector<24x128xbf16>, vector<10x128xf32> -> vector<10x128xf32>
    %c23 = arith.constant 23 : index
    %c0_83 = arith.constant 0 : index
    %c0_84 = arith.constant 0 : index
    %221 = vector.load %arg6[%c23, %c0_83, %c0_84] : memref<25x10x24xbf16, #tpu.memory_space<vmem>>, vector<1x10x24xbf16>
    %222 = vector.shape_cast %221 : vector<1x10x24xbf16> to vector<10x24xbf16>
    %223 = vector.extract_strided_slice %128 {offsets = [0, 2944], sizes = [24, 128], strides = [1, 1]} : vector<24x3200xbf16> to vector<24x128xbf16>
    %cst_85 = arith.constant dense<0.000000e+00> : vector<10x128xf32>
    %224 = tpu.matmul %222, %223, %cst_85 {dimension_numbers = #tpu.dot_dimension_numbers<[1], [0], [0], [1], [0, 0, 1, 1], [], []>} : vector<10x24xbf16>, vector<24x128xbf16>, vector<10x128xf32> -> vector<10x128xf32>
    %c24 = arith.constant 24 : index
    %c0_86 = arith.constant 0 : index
    %c0_87 = arith.constant 0 : index
    %225 = vector.load %arg6[%c24, %c0_86, %c0_87] : memref<25x10x24xbf16, #tpu.memory_space<vmem>>, vector<1x10x24xbf16>
    %226 = vector.shape_cast %225 : vector<1x10x24xbf16> to vector<10x24xbf16>
    %227 = vector.extract_strided_slice %128 {offsets = [0, 3072], sizes = [24, 128], strides = [1, 1]} : vector<24x3200xbf16> to vector<24x128xbf16>
    %cst_88 = arith.constant dense<0.000000e+00> : vector<10x128xf32>
    %228 = tpu.matmul %226, %227, %cst_88 {dimension_numbers = #tpu.dot_dimension_numbers<[1], [0], [0], [1], [0, 0, 1, 1], [], []>} : vector<10x24xbf16>, vector<24x128xbf16>, vector<10x128xf32> -> vector<10x128xf32>
    %229 = arith.addf %132, %136 : vector<10x128xf32>
    %230 = arith.addf %140, %144 : vector<10x128xf32>
    %231 = arith.addf %148, %152 : vector<10x128xf32>
    %232 = arith.addf %156, %160 : vector<10x128xf32>
    %233 = arith.addf %164, %168 : vector<10x128xf32>
    %234 = arith.addf %172, %176 : vector<10x128xf32>
    %235 = arith.addf %180, %184 : vector<10x128xf32>
    %236 = arith.addf %188, %192 : vector<10x128xf32>
    %237 = arith.addf %196, %200 : vector<10x128xf32>
    %238 = arith.addf %204, %208 : vector<10x128xf32>
    %239 = arith.addf %212, %216 : vector<10x128xf32>
    %240 = arith.addf %220, %224 : vector<10x128xf32>
    %241 = arith.addf %229, %230 : vector<10x128xf32>
    %242 = arith.addf %231, %232 : vector<10x128xf32>
    %243 = arith.addf %233, %234 : vector<10x128xf32>
    %244 = arith.addf %235, %236 : vector<10x128xf32>
    %245 = arith.addf %237, %238 : vector<10x128xf32>
    %246 = arith.addf %239, %240 : vector<10x128xf32>
    %247 = arith.addf %241, %242 : vector<10x128xf32>
    %248 = arith.addf %243, %244 : vector<10x128xf32>
    %249 = arith.addf %245, %246 : vector<10x128xf32>
    %250 = arith.addf %247, %248 : vector<10x128xf32>
    %251 = arith.addf %249, %228 : vector<10x128xf32>
    %252 = arith.addf %250, %251 : vector<10x128xf32>
    %c0_89 = arith.constant 0 : index
    %c0_90 = arith.constant 0 : index
    %253 = vector.load %arg7[%c0_89, %c0_90] : memref<10x1xf32, #tpu.memory_space<vmem>>, vector<10x1xf32>
    %254 = vector.broadcast %253 : vector<10x1xf32> to vector<10x128xf32>
    %255 = arith.addf %252, %254 : vector<10x128xf32>
    %cst_91 = arith.constant 0.000000e+00 : f32
    %256 = vector.broadcast %cst_91 : f32 to vector<10x128xf32>
    %257 = arith.maximumf %255, %256 : vector<10x128xf32>
    %cst_92 = arith.constant dense<0xFF800000> : vector<128xf32>
    %258 = vector.multi_reduction <maximumf>, %257, %cst_92 [0] : vector<10x128xf32> to vector<128xf32>
    %259 = vector.shape_cast %258 : vector<128xf32> to vector<1x128xf32>
    %260 = vector.broadcast %259 : vector<1x128xf32> to vector<10x128xf32>
    %261 = arith.subf %257, %260 : vector<10x128xf32>
    %262 = math.exp %261 : vector<10x128xf32>
    %263 = vector.broadcast %259 : vector<1x128xf32> to vector<10x128xf32>
    %264 = arith.subf %257, %263 : vector<10x128xf32>
    %cst_93 = arith.constant dense<0.000000e+00> : vector<128xf32>
    %265 = vector.multi_reduction <add>, %262, %cst_93 [0] : vector<10x128xf32> to vector<128xf32>
    %266 = vector.shape_cast %265 : vector<128xf32> to vector<1x128xf32>
    %267 = math.log %266 : vector<1x128xf32>
    %268 = vector.broadcast %267 : vector<1x128xf32> to vector<10x128xf32>
    %269 = arith.subf %264, %268 : vector<10x128xf32>
    %c0_94 = arith.constant 0 : index
    %c0_95 = arith.constant 0 : index
    %270 = vector.load %arg8[%c0_94, %c0_95] : memref<10x128xf32, #tpu.memory_space<vmem>>, vector<10x128xf32>
    tpu.vector_store %arg8[%c0_94, %c0_95], %269 {strides = array<i32>} : memref<10x128xf32, #tpu.memory_space<vmem>>, vector<10x128xf32>,
    return
  }
  func.func @transform_0(%arg0: i32) -> (i32, i32, i32) {
    %c0_i32 = arith.constant 0 : i32
    %c0_i32_0 = arith.constant 0 : i32
    %c0_i32_1 = arith.constant 0 : i32
    return %arg0, %c0_i32, %c0_i32_0 : i32, i32, i32
  }
  func.func @transform_1(%arg0: i32) -> (i32, i32) {
    %c0_i32 = arith.constant 0 : i32
    %c0_i32_0 = arith.constant 0 : i32
    %c0_i32_1 = arith.constant 0 : i32
    return %c0_i32, %c0_i32_0 : i32, i32
  }
  func.func @transform_2(%arg0: i32) -> (i32, i32) {
    %c0_i32 = arith.constant 0 : i32
    %c0_i32_0 = arith.constant 0 : i32
    %c0_i32_1 = arith.constant 0 : i32
    return %c0_i32, %c0_i32_0 : i32, i32
  }
  func.func @transform_3(%arg0: i32) -> (i32, i32) {
    %c0_i32 = arith.constant 0 : i32
    %c0_i32_0 = arith.constant 0 : i32
    %c0_i32_1 = arith.constant 0 : i32
    return %c0_i32, %c0_i32_0 : i32, i32
  }
  func.func @transform_4(%arg0: i32) -> (i32, i32) {
    %c0_i32 = arith.constant 0 : i32
    %c0_i32_0 = arith.constant 0 : i32
    %c0_i32_1 = arith.constant 0 : i32
    return %c0_i32, %c0_i32_0 : i32, i32
  }
  func.func @transform_5(%arg0: i32) -> (i32, i32, i32) {
    %c0_i32 = arith.constant 0 : i32
    %c0_i32_0 = arith.constant 0 : i32
    %c0_i32_1 = arith.constant 0 : i32
    %c0_i32_2 = arith.constant 0 : i32
    return %c0_i32, %c0_i32_0, %c0_i32_1 : i32, i32, i32
  }
  func.func @transform_6(%arg0: i32) -> (i32, i32) {
    %c0_i32 = arith.constant 0 : i32
    %c0_i32_0 = arith.constant 0 : i32
    %c0_i32_1 = arith.constant 0 : i32
    return %c0_i32, %c0_i32_0 : i32, i32
  }
  func.func @transform_7(%arg0: i32) -> (i32, i32) {
    %c0_i32 = arith.constant 0 : i32
    %c0_i32_0 = arith.constant 0 : i32
    return %c0_i32, %arg0 : i32, i32
  }
}

</mosaic_0001>

<llo_original>
// kernel: net_forward.1
$region0: #{net_forward.1}
  #allocation0 [shape = 'u32[]', space=smem, size = 0x4, offset = 0x4, fixed_abs, tag = 'smem constant byte address 0x4 - core index']
  #allocation1 [shape = 'u32[72,128]{1,0:T(1,128)}', space=vmem, size = 0x9000, scoped, tag = 'internal scratch']
  %s0 = inlined_call_operand.vmem [shape: bf16[1,36,21632], index: 0, kind: input, shape index: {}]
  %s1 = inlined_call_operand.vmem [shape: bf16[64,36], index: 1, kind: input, shape index: {}]
  %s2 = inlined_call_operand.vmem [shape: f32[16,1], index: 2, kind: input, shape index: {}]
  %s3 = inlined_call_operand.vmem [shape: bf16[96,256], index: 3, kind: input, shape index: {}]
  %s4 = inlined_call_operand.vmem [shape: f32[24,1], index: 4, kind: input, shape index: {}]
  %s5 = inlined_call_operand.vmem [shape: bf16[25,10,24], index: 5, kind: input, shape index: {}]
  %s6 = inlined_call_operand.vmem [shape: f32[10,1], index: 6, kind: input, shape index: {}]
  %s7 = inlined_call_operand.vmem [shape: f32[10,128], index: 7, kind: output, shape index: {}]
  %s8 = sld [smem:[#allocation0]]
  $region38: #{net_forward.1} parent=0
    _
  %s10 = ssub.s32 1, %s8
  %s11 = scalar_select 0, %s10, %s8
  // Predicated region
  $region2: #{net_forward.1} parent=0 // pred_check
    _
  $region3: #{net_forward.1} parent=0 // pred_check_branch
    %13 = sbr.rel (0) target = $region5
  $region4: #{net_forward.1} parent=0 // pred_region
    _
  $region5: #{net_forward.1} parent=0 // pred_fallthru
    _
  // Predicated region
  $region6: #{net_forward.1} parent=0 // pred_check
    _
  $region7: #{net_forward.1} parent=0 // pred_check_branch
    %15 = sbr.rel (0) target = $region9
  $region8: #{net_forward.1} parent=0 // pred_region
    _
  $region9: #{net_forward.1} parent=0 // pred_fallthru
    _
  // Predicated region
  $region10: #{net_forward.1} parent=0 // pred_check
    _
  $region11: #{net_forward.1} parent=0 // pred_check_branch
    %17 = sbr.rel (0) target = $region13
  $region12: #{net_forward.1} parent=0 // pred_region
    _
  $region13: #{net_forward.1} parent=0 // pred_fallthru
    _
  // Predicated region
  $region14: #{net_forward.1} parent=0 // pred_check
    _
  $region15: #{net_forward.1} parent=0 // pred_check_branch
    %19 = sbr.rel (0) target = $region17
  $region16: #{net_forward.1} parent=0 // pred_region
    _
  $region17: #{net_forward.1} parent=0 // pred_fallthru
    _
  // Predicated region
  $region18: #{net_forward.1} parent=0 // pred_check
    _
  $region19: #{net_forward.1} parent=0 // pred_check_branch
    %21 = sbr.rel (0) target = $region21
  $region20: #{net_forward.1} parent=0 // pred_region
    _
  $region21: #{net_forward.1} parent=0 // pred_fallthru
    _
  // Predicated region
  $region22: #{net_forward.1} parent=0 // pred_check
    _
  $region23: #{net_forward.1} parent=0 // pred_check_branch
    %23 = sbr.rel (0) target = $region25
  $region24: #{net_forward.1} parent=0 // pred_region
    _
  $region25: #{net_forward.1} parent=0 // pred_fallthru
    _
  // Predicated region
  $region26: #{net_forward.1} parent=0 // pred_check
    _
  $region27: #{net_forward.1} parent=0 // pred_check_branch
    %25 = sbr.rel (0) target = $region29
  $region28: #{net_forward.1} parent=0 // pred_region
    _
  $region29: #{net_forward.1} parent=0 // pred_fallthru
    _
  %v27 = vld [vmem:[%s0] sm:$0xff]
  %v28 = vld [vmem:[%s0 + $0x8] sm:$0xff]
  %v29 = vld [vmem:[%s0 + $0x10] sm:$0xff]
  %v30 = vld [vmem:[%s0 + $0x18] sm:$0xff]
  %v31 = vld [vmem:[%s0 + $0x20] sm:$0xff]
  %v32 = vld [vmem:[%s0 + $0x28] sm:$0xff]
  %v33 = vld [vmem:[%s0 + $0x30] sm:$0xff]
  %v34 = vld [vmem:[%s0 + $0x38] sm:$0xff]
  %v35 = vld [vmem:[%s0 + $0x40] sm:$0xff]
  %v36 = vld [vmem:[%s0 + $0x48] sm:$0xff]
  %v37 = vld [vmem:[%s0 + $0x50] sm:$0xff]
  %v38 = vld [vmem:[%s0 + $0x58] sm:$0xff]
  %v39 = vld [vmem:[%s0 + $0x60] sm:$0xff]
  %v40 = vld [vmem:[%s0 + $0x68] sm:$0xff]
  %v41 = vld [vmem:[%s0 + $0x70] sm:$0xff]
  %v42 = vld [vmem:[%s0 + $0x78] sm:$0xff]
  %v43 = vld [vmem:[%s0 + $0x80] sm:$0xff]
  %v44 = vld [vmem:[%s0 + $0x88] sm:$0xff]
  %v45 = vld [vmem:[%s0 + $0x90] sm:$0xff]
  %v46 = vld [vmem:[%s0 + $0x98] sm:$0xff]
  %v47 = vld [vmem:[%s0 + $0xa0] sm:$0xff]
  %v48 = vld [vmem:[%s0 + $0xa8] sm:$0xff]
  %v49 = vld [vmem:[%s0 + $0xb0] sm:$0xff]
  %v50 = vld [vmem:[%s0 + $0xb8] sm:$0xff]
  %v51 = vld [vmem:[%s0 + $0xc0] sm:$0xff]
  %v52 = vld [vmem:[%s0 + $0xc8] sm:$0xff]
  %v53 = vld [vmem:[%s0 + $0xd0] sm:$0xff]
  %v54 = vld [vmem:[%s0 + $0xd8] sm:$0xff]
  %v55 = vld [vmem:[%s0 + $0xe0] sm:$0xff]
  %v56 = vld [vmem:[%s0 + $0xe8] sm:$0xff]
  %v57 = vld [vmem:[%s0 + $0xf0] sm:$0xff]
  %v58 = vld [vmem:[%s0 + $0xf8] sm:$0xff]
  %v59 = vld [vmem:[%s0 + $0x100] sm:$0xff]
  %v60 = vld [vmem:[%s0 + $0x108] sm:$0xff]
  %v61 = vld [vmem:[%s0 + $0x110] sm:$0xff]
  %v62 = vld [vmem:[%s0 + $0x118] sm:$0xff]
  %v63 = vld [vmem:[%s0 + $0x120] sm:$0xff]
  %v64 = vld [vmem:[%s0 + $0x128] sm:$0xff]
  %v65 = vld [vmem:[%s0 + $0x130] sm:$0xff]
  %v66 = vld [vmem:[%s0 + $0x168] sm:$0xff]
  %v67 = vld [vmem:[%s0 + $0x170] sm:$0xff]
  %v68 = vld [vmem:[%s0 + $0x178] sm:$0xff]
  %v69 = vld [vmem:[%s0 + $0x180] sm:$0xff]
  %v70 = vld [vmem:[%s0 + $0x188] sm:$0xff]
  %v71 = vld [vmem:[%s0 + $0x190] sm:$0xff]
  %v72 = vld [vmem:[%s0 + $0x198] sm:$0xff]
  %v73 = vld [vmem:[%s0 + $0x1a0] sm:$0xff]
  %v74 = vld [vmem:[%s0 + $0x1a8] sm:$0xff]
  %v75 = vld [vmem:[%s0 + $0x1b0] sm:$0xff]
  %v76 = vld [vmem:[%s0 + $0x1b8] sm:$0xff]
  %v77 = vld [vmem:[%s0 + $0x1c0] sm:$0xff]
  %v78 = vld [vmem:[%s0 + $0x1c8] sm:$0xff]
  %v79 = vld [vmem:[%s0 + $0x1d0] sm:$0xff]
  %v80 = vld [vmem:[%s0 + $0x1d8] sm:$0xff]
  %v81 = vld [vmem:[%s0 + $0x1e0] sm:$0xff]
  %v82 = vld [vmem:[%s0 + $0x1e8] sm:$0xff]
  %v83 = vld [vmem:[%s0 + $0x1f0] sm:$0xff]
  %v84 = vld [vmem:[%s0 + $0x1f8] sm:$0xff]
  %v85 = vld [vmem:[%s0 + $0x200] sm:$0xff]
  %v86 = vld [vmem:[%s0 + $0x208] sm:$0xff]
  %v87 = vld [vmem:[%s0 + $0x210] sm:$0xff]
  %v88 = vld [vmem:[%s0 + $0x218] sm:$0xff]
  %v89 = vld [vmem:[%s0 + $0x220] sm:$0xff]
  %v90 = vld [vmem:[%s0 + $0x228] sm:$0xff]
  %v91 = vld [vmem:[%s0 + $0x230] sm:$0xff]
  %v92 = vld [vmem:[%s0 + $0x238] sm:$0xff]
  %v93 = vld [vmem:[%s0 + $0x240] sm:$0xff]
  %v94 = vld [vmem:[%s0 + $0x248] sm:$0xff]
  %v95 = vld [vmem:[%s0 + $0x250] sm:$0xff]
  %v96 = vld [vmem:[%s0 + $0x258] sm:$0xff]
  %v97 = vld [vmem:[%s0 + $0x260] sm:$0xff]
  %v98 = vld [vmem:[%s0 + $0x268] sm:$0xff]
  %v99 = vld [vmem:[%s0 + $0x270] sm:$0xff]
  %v100 = vld [vmem:[%s0 + $0x278] sm:$0xff]
  %v101 = vld [vmem:[%s0 + $0x280] sm:$0xff]
  %v102 = vld [vmem:[%s0 + $0x288] sm:$0xff]
  %v103 = vld [vmem:[%s0 + $0x290] sm:$0xff]
  %v104 = vld [vmem:[%s0 + $0x298] sm:$0xff]
  %v105 = vld [vmem:[%s0 + $0x2a0] sm:$0xf]
  %v106 = vld [vmem:[%s0 + $0x2a4] sm:$0xff]
  %v107 = vld [vmem:[%s0 + $0x2ac] sm:$0xff]
  %v108 = vld [vmem:[%s0 + $0x2b4] sm:$0xff]
  %v109 = vld [vmem:[%s0 + $0x2bc] sm:$0xff]
  %v110 = vld [vmem:[%s0 + $0x2c4] sm:$0xff]
  %v111 = vld [vmem:[%s0 + $0x2cc] sm:$0xff]
  %v112 = vld [vmem:[%s0 + $0x2d4] sm:$0xff]
  %v113 = vld [vmem:[%s0 + $0x2dc] sm:$0xff]
  %v114 = vld [vmem:[%s0 + $0x2e4] sm:$0xff]
  %v115 = vld [vmem:[%s0 + $0x2ec] sm:$0xff]
  %v116 = vld [vmem:[%s0 + $0x2f4] sm:$0xff]
  %v117 = vld [vmem:[%s0 + $0x2fc] sm:$0xff]
  %v118 = vld [vmem:[%s0 + $0x304] sm:$0xff]
  %v119 = vld [vmem:[%s0 + $0x30c] sm:$0xff]
  %v120 = vld [vmem:[%s0 + $0x314] sm:$0xff]
  %v121 = vld [vmem:[%s0 + $0x31c] sm:$0xff]
  %v122 = vld [vmem:[%s0 + $0x324] sm:$0xff]
  %v123 = vld [vmem:[%s0 + $0x32c] sm:$0xff]
  %v124 = vld [vmem:[%s0 + $0x334] sm:$0xff]
  %v125 = vld [vmem:[%s0 + $0x33c] sm:$0xff]
  %v126 = vld [vmem:[%s0 + $0x344] sm:$0xff]
  %v127 = vld [vmem:[%s0 + $0x34c] sm:$0xff]
  %v128 = vld [vmem:[%s0 + $0x354] sm:$0xff]
  %v129 = vld [vmem:[%s0 + $0x35c] sm:$0xff]
  %v130 = vld [vmem:[%s0 + $0x364] sm:$0xff]
  %v131 = vld [vmem:[%s0 + $0x36c] sm:$0xff]
  %v132 = vld [vmem:[%s0 + $0x374] sm:$0xff]
  %v133 = vld [vmem:[%s0 + $0x37c] sm:$0xff]
  %v134 = vld [vmem:[%s0 + $0x384] sm:$0xff]
  %v135 = vld [vmem:[%s0 + $0x38c] sm:$0xff]
  %v136 = vld [vmem:[%s0 + $0x394] sm:$0xff]
  %v137 = vld [vmem:[%s0 + $0x39c] sm:$0xff]
  %v138 = vld [vmem:[%s0 + $0x3a4] sm:$0xff]
  %v139 = vld [vmem:[%s0 + $0x3ac] sm:$0xff]
  %v140 = vld [vmem:[%s0 + $0x3b4] sm:$0xff]
  %v141 = vld [vmem:[%s0 + $0x3bc] sm:$0xff]
  %v142 = vld [vmem:[%s0 + $0x3c4] sm:$0xff]
  %v143 = vld [vmem:[%s0 + $0x3cc] sm:$0xff]
  %v144 = vld [vmem:[%s0 + $0x3d4] sm:$0xff]
  %v145 = vld [vmem:[%s0 + $0x40c] sm:$0xff]
  %v146 = vld [vmem:[%s0 + $0x414] sm:$0xff]
  %v147 = vld [vmem:[%s0 + $0x41c] sm:$0xff]
  %v148 = vld [vmem:[%s0 + $0x424] sm:$0xff]
  %v149 = vld [vmem:[%s0 + $0x42c] sm:$0xff]
  %v150 = vld [vmem:[%s0 + $0x434] sm:$0xff]
  %v151 = vld [vmem:[%s0 + $0x43c] sm:$0xff]
  %v152 = vld [vmem:[%s0 + $0x444] sm:$0xff]
  %v153 = vld [vmem:[%s0 + $0x44c] sm:$0xff]
  %v154 = vld [vmem:[%s0 + $0x454] sm:$0xff]
  %v155 = vld [vmem:[%s0 + $0x45c] sm:$0xff]
  %v156 = vld [vmem:[%s0 + $0x464] sm:$0xff]
  %v157 = vld [vmem:[%s0 + $0x46c] sm:$0xff]
  %v158 = vld [vmem:[%s0 + $0x474] sm:$0xff]
  %v159 = vld [vmem:[%s0 + $0x47c] sm:$0xff]
  %v160 = vld [vmem:[%s0 + $0x484] sm:$0xff]
  %v161 = vld [vmem:[%s0 + $0x48c] sm:$0xff]
  %v162 = vld [vmem:[%s0 + $0x494] sm:$0xff]
  %v163 = vld [vmem:[%s0 + $0x49c] sm:$0xff]
  %v164 = vld [vmem:[%s0 + $0x4a4] sm:$0xff]
  %v165 = vld [vmem:[%s0 + $0x4ac] sm:$0xff]
  %v166 = vld [vmem:[%s0 + $0x4b4] sm:$0xff]
  %v167 = vld [vmem:[%s0 + $0x4bc] sm:$0xff]
  %v168 = vld [vmem:[%s0 + $0x4c4] sm:$0xff]
  %v169 = vld [vmem:[%s0 + $0x4cc] sm:$0xff]
  %v170 = vld [vmem:[%s0 + $0x4d4] sm:$0xff]
  %v171 = vld [vmem:[%s0 + $0x4dc] sm:$0xff]
  %v172 = vld [vmem:[%s0 + $0x4e4] sm:$0xff]
  %v173 = vld [vmem:[%s0 + $0x4ec] sm:$0xff]
  %v174 = vld [vmem:[%s0 + $0x4f4] sm:$0xff]
  %v175 = vld [vmem:[%s0 + $0x4fc] sm:$0xff]
  %v176 = vld [vmem:[%s0 + $0x504] sm:$0xff]
  %v177 = vld [vmem:[%s0 + $0x50c] sm:$0xff]
  %v178 = vld [vmem:[%s0 + $0x514] sm:$0xff]
  %v179 = vld [vmem:[%s0 + $0x51c] sm:$0xff]
  %v180 = vld [vmem:[%s0 + $0x524] sm:$0xff]
  %v181 = vld [vmem:[%s0 + $0x52c] sm:$0xff]
  %v182 = vld [vmem:[%s0 + $0x534] sm:$0xff]
  %v183 = vld [vmem:[%s0 + $0x53c] sm:$0xff]
  %v184 = vld [vmem:[%s0 + $0x544] sm:$0xf]
  %v185 = vld [vmem:[%s0 + $0x548] sm:$0xff]
  %v186 = vld [vmem:[%s0 + $0x550] sm:$0xff]
  %v187 = vld [vmem:[%s0 + $0x558] sm:$0xff]
  %v188 = vld [vmem:[%s0 + $0x560] sm:$0xff]
  %v189 = vld [vmem:[%s0 + $0x568] sm:$0xff]
  %v190 = vld [vmem:[%s0 + $0x570] sm:$0xff]
  %v191 = vld [vmem:[%s0 + $0x578] sm:$0xff]
  %v192 = vld [vmem:[%s0 + $0x580] sm:$0xff]
  %v193 = vld [vmem:[%s0 + $0x588] sm:$0xff]
  %v194 = vld [vmem:[%s0 + $0x590] sm:$0xff]
  %v195 = vld [vmem:[%s0 + $0x598] sm:$0xff]
  %v196 = vld [vmem:[%s0 + $0x5a0] sm:$0xff]
  %v197 = vld [vmem:[%s0 + $0x5a8] sm:$0xff]
  %v198 = vld [vmem:[%s0 + $0x5b0] sm:$0xff]
  %v199 = vld [vmem:[%s0 + $0x5b8] sm:$0xff]
  %v200 = vld [vmem:[%s0 + $0x5c0] sm:$0xff]
  %v201 = vld [vmem:[%s0 + $0x5c8] sm:$0xff]
  %v202 = vld [vmem:[%s0 + $0x5d0] sm:$0xff]
  %v203 = vld [vmem:[%s0 + $0x5d8] sm:$0xff]
  %v204 = vld [vmem:[%s0 + $0x5e0] sm:$0xff]
  %v205 = vld [vmem:[%s0 + $0x5e8] sm:$0xff]
  %v206 = vld [vmem:[%s0 + $0x5f0] sm:$0xff]
  %v207 = vld [vmem:[%s0 + $0x5f8] sm:$0xff]
  %v208 = vld [vmem:[%s0 + $0x600] sm:$0xff]
  %v209 = vld [vmem:[%s0 + $0x608] sm:$0xff]
  %v210 = vld [vmem:[%s0 + $0x610] sm:$0xff]
  %v211 = vld [vmem:[%s0 + $0x618] sm:$0xff]
  %v212 = vld [vmem:[%s0 + $0x620] sm:$0xff]
  %v213 = vld [vmem:[%s0 + $0x628] sm:$0xff]
  %v214 = vld [vmem:[%s0 + $0x630] sm:$0xff]
  %v215 = vld [vmem:[%s0 + $0x638] sm:$0xff]
  %v216 = vld [vmem:[%s0 + $0x640] sm:$0xff]
  %v217 = vld [vmem:[%s0 + $0x648] sm:$0xff]
  %v218 = vld [vmem:[%s0 + $0x650] sm:$0xff]
  %v219 = vld [vmem:[%s0 + $0x658] sm:$0xff]
  %v220 = vld [vmem:[%s0 + $0x660] sm:$0xff]
  %v221 = vld [vmem:[%s0 + $0x668] sm:$0xff]
  %v222 = vld [vmem:[%s0 + $0x670] sm:$0xff]
  %v223 = vld [vmem:[%s0 + $0x678] sm:$0xff]
  %v224 = vld [vmem:[%s0 + $0x6b0] sm:$0xff]
  %v225 = vld [vmem:[%s0 + $0x6b8] sm:$0xff]
  %v226 = vld [vmem:[%s0 + $0x6c0] sm:$0xff]
  %v227 = vld [vmem:[%s0 + $0x6c8] sm:$0xff]
  %v228 = vld [vmem:[%s0 + $0x6d0] sm:$0xff]
  %v229 = vld [vmem:[%s0 + $0x6d8] sm:$0xff]
  %v230 = vld [vmem:[%s0 + $0x6e0] sm:$0xff]
  %v231 = vld [vmem:[%s0 + $0x6e8] sm:$0xff]
  %v232 = vld [vmem:[%s0 + $0x6f0] sm:$0xff]
  %v233 = vld [vmem:[%s0 + $0x6f8] sm:$0xff]
  %v234 = vld [vmem:[%s0 + $0x700] sm:$0xff]
  %v235 = vld [vmem:[%s0 + $0x708] sm:$0xff]
  %v236 = vld [vmem:[%s0 + $0x710] sm:$0xff]
  %v237 = vld [vmem:[%s0 + $0x718] sm:$0xff]
  %v238 = vld [vmem:[%s0 + $0x720] sm:$0xff]
  %v239 = vld [vmem:[%s0 + $0x728] sm:$0xff]
  %v240 = vld [vmem:[%s0 + $0x730] sm:$0xff]
  %v241 = vld [vmem:[%s0 + $0x738] sm:$0xff]
  %v242 = vld [vmem:[%s0 + $0x740] sm:$0xff]
  %v243 = vld [vmem:[%s0 + $0x748] sm:$0xff]
  %v244 = vld [vmem:[%s0 + $0x750] sm:$0xff]
  %v245 = vld [vmem:[%s0 + $0x758] sm:$0xff]
  %v246 = vld [vmem:[%s0 + $0x760] sm:$0xff]
  %v247 = vld [vmem:[%s0 + $0x768] sm:$0xff]
  %v248 = vld [vmem:[%s0 + $0x770] sm:$0xff]
  %v249 = vld [vmem:[%s0 + $0x778] sm:$0xff]
  %v250 = vld [vmem:[%s0 + $0x780] sm:$0xff]
  %v251 = vld [vmem:[%s0 + $0x788] sm:$0xff]
  %v252 = vld [vmem:[%s0 + $0x790] sm:$0xff]
  %v253 = vld [vmem:[%s0 + $0x798] sm:$0xff]
  %v254 = vld [vmem:[%s0 + $0x7a0] sm:$0xff]
  %v255 = vld [vmem:[%s0 + $0x7a8] sm:$0xff]
  %v256 = vld [vmem:[%s0 + $0x7b0] sm:$0xff]
  %v257 = vld [vmem:[%s0 + $0x7b8] sm:$0xff]
  %v258 = vld [vmem:[%s0 + $0x7c0] sm:$0xff]
  %v259 = vld [vmem:[%s0 + $0x7c8] sm:$0xff]
  %v260 = vld [vmem:[%s0 + $0x7d0] sm:$0xff]
  %v261 = vld [vmem:[%s0 + $0x7d8] sm:$0xff]
  %v262 = vld [vmem:[%s0 + $0x7e0] sm:$0xff]
  %v263 = vld [vmem:[%s0 + $0x7e8] sm:$0xf]
  %v264 = vld [vmem:[%s0 + $0x7ec] sm:$0xff]
  %v265 = vld [vmem:[%s0 + $0x7f4] sm:$0xff]
  %v266 = vld [vmem:[%s0 + $0x7fc] sm:$0xff]
  %v267 = vld [vmem:[%s0 + $0x804] sm:$0xff]
  %v268 = vld [vmem:[%s0 + $0x80c] sm:$0xff]
  %v269 = vld [vmem:[%s0 + $0x814] sm:$0xff]
  %v270 = vld [vmem:[%s0 + $0x81c] sm:$0xff]
  %v271 = vld [vmem:[%s0 + $0x824] sm:$0xff]
  %v272 = vld [vmem:[%s0 + $0x82c] sm:$0xff]
  %v273 = vld [vmem:[%s0 + $0x834] sm:$0xff]
  %v274 = vld [vmem:[%s0 + $0x83c] sm:$0xff]
  %v275 = vld [vmem:[%s0 + $0x844] sm:$0xff]
  %v276 = vld [vmem:[%s0 + $0x84c] sm:$0xff]
  %v277 = vld [vmem:[%s0 + $0x854] sm:$0xff]
  %v278 = vld [vmem:[%s0 + $0x85c] sm:$0xff]
  %v279 = vld [vmem:[%s0 + $0x864] sm:$0xff]
  %v280 = vld [vmem:[%s0 + $0x86c] sm:$0xff]
  %v281 = vld [vmem:[%s0 + $0x874] sm:$0xff]
  %v282 = vld [vmem:[%s0 + $0x87c] sm:$0xff]
  %v283 = vld [vmem:[%s0 + $0x884] sm:$0xff]
  %v284 = vld [vmem:[%s0 + $0x88c] sm:$0xff]
  %v285 = vld [vmem:[%s0 + $0x894] sm:$0xff]
  %v286 = vld [vmem:[%s0 + $0x89c] sm:$0xff]
  %v287 = vld [vmem:[%s0 + $0x8a4] sm:$0xff]
  %v288 = vld [vmem:[%s0 + $0x8ac] sm:$0xff]
  %v289 = vld [vmem:[%s0 + $0x8b4] sm:$0xff]
  %v290 = vld [vmem:[%s0 + $0x8bc] sm:$0xff]
  %v291 = vld [vmem:[%s0 + $0x8c4] sm:$0xff]
  %v292 = vld [vmem:[%s0 + $0x8cc] sm:$0xff]
  %v293 = vld [vmem:[%s0 + $0x8d4] sm:$0xff]
  %v294 = vld [vmem:[%s0 + $0x8dc] sm:$0xff]
  %v295 = vld [vmem:[%s0 + $0x8e4] sm:$0xff]
  %v296 = vld [vmem:[%s0 + $0x8ec] sm:$0xff]
  %v297 = vld [vmem:[%s0 + $0x8f4] sm:$0xff]
  %v298 = vld [vmem:[%s0 + $0x8fc] sm:$0xff]
  %v299 = vld [vmem:[%s0 + $0x904] sm:$0xff]
  %v300 = vld [vmem:[%s0 + $0x90c] sm:$0xff]
  %v301 = vld [vmem:[%s0 + $0x914] sm:$0xff]
  %v302 = vld [vmem:[%s0 + $0x91c] sm:$0xff]
  %v303 = vld [vmem:[%s0 + $0x954] sm:$0xff]
  %v304 = vld [vmem:[%s0 + $0x95c] sm:$0xff]
  %v305 = vld [vmem:[%s0 + $0x964] sm:$0xff]
  %v306 = vld [vmem:[%s0 + $0x96c] sm:$0xff]
  %v307 = vld [vmem:[%s0 + $0x974] sm:$0xff]
  %v308 = vld [vmem:[%s0 + $0x97c] sm:$0xff]
  %v309 = vld [vmem:[%s0 + $0x984] sm:$0xff]
  %v310 = vld [vmem:[%s0 + $0x98c] sm:$0xff]
  %v311 = vld [vmem:[%s0 + $0x994] sm:$0xff]
  %v312 = vld [vmem:[%s0 + $0x99c] sm:$0xff]
  %v313 = vld [vmem:[%s0 + $0x9a4] sm:$0xff]
  %v314 = vld [vmem:[%s0 + $0x9ac] sm:$0xff]
  %v315 = vld [vmem:[%s0 + $0x9b4] sm:$0xff]
  %v316 = vld [vmem:[%s0 + $0x9bc] sm:$0xff]
  %v317 = vld [vmem:[%s0 + $0x9c4] sm:$0xff]
  %v318 = vld [vmem:[%s0 + $0x9cc] sm:$0xff]
  %v319 = vld [vmem:[%s0 + $0x9d4] sm:$0xff]
  %v320 = vld [vmem:[%s0 + $0x9dc] sm:$0xff]
  %v321 = vld [vmem:[%s0 + $0x9e4] sm:$0xff]
  %v322 = vld [vmem:[%s0 + $0x9ec] sm:$0xff]
  %v323 = vld [vmem:[%s0 + $0x9f4] sm:$0xff]
  %v324 = vld [vmem:[%s0 + $0x9fc] sm:$0xff]
  %v325 = vld [vmem:[%s0 + $0xa04] sm:$0xff]
  %v326 = vld [vmem:[%s0 + $0xa0c] sm:$0xff]
  %v327 = vld [vmem:[%s0 + $0xa14] sm:$0xff]
  %v328 = vld [vmem:[%s0 + $0xa1c] sm:$0xff]
  %v329 = vld [vmem:[%s0 + $0xa24] sm:$0xff]
  %v330 = vld [vmem:[%s0 + $0xa2c] sm:$0xff]
  %v331 = vld [vmem:[%s0 + $0xa34] sm:$0xff]
  %v332 = vld [vmem:[%s0 + $0xa3c] sm:$0xff]
  %v333 = vld [vmem:[%s0 + $0xa44] sm:$0xff]
  %v334 = vld [vmem:[%s0 + $0xa4c] sm:$0xff]
  %v335 = vld [vmem:[%s0 + $0xa54] sm:$0xff]
  %v336 = vld [vmem:[%s0 + $0xa5c] sm:$0xff]
  %v337 = vld [vmem:[%s0 + $0xa64] sm:$0xff]
  %v338 = vld [vmem:[%s0 + $0xa6c] sm:$0xff]
  %v339 = vld [vmem:[%s0 + $0xa74] sm:$0xff]
  %v340 = vld [vmem:[%s0 + $0xa7c] sm:$0xff]
  %v341 = vld [vmem:[%s0 + $0xa84] sm:$0xff]
  %v342 = vld [vmem:[%s0 + $0xa8c] sm:$0xf]
  %v343 = vld [vmem:[%s0 + $0xa90] sm:$0x33]
  %v344 = vld [vmem:[%s0 + $0xa98] sm:$0x33]
  %v345 = vld [vmem:[%s0 + $0xaa0] sm:$0x33]
  %v346 = vld [vmem:[%s0 + $0xaa8] sm:$0x33]
  %v347 = vld [vmem:[%s0 + $0xab0] sm:$0x33]
  %v348 = vld [vmem:[%s0 + $0xab8] sm:$0x33]
  %v349 = vld [vmem:[%s0 + $0xac0] sm:$0x33]
  %v350 = vld [vmem:[%s0 + $0xac8] sm:$0x33]
  %v351 = vld [vmem:[%s0 + $0xad0] sm:$0x33]
  %v352 = vld [vmem:[%s0 + $0xad8] sm:$0x33]
  %v353 = vld [vmem:[%s0 + $0xae0] sm:$0x33]
  %v354 = vld [vmem:[%s0 + $0xae8] sm:$0x33]
  %v355 = vld [vmem:[%s0 + $0xaf0] sm:$0x33]
  %v356 = vld [vmem:[%s0 + $0xaf8] sm:$0x33]
  %v357 = vld [vmem:[%s0 + $0xb00] sm:$0x33]
  %v358 = vld [vmem:[%s0 + $0xb08] sm:$0x33]
  %v359 = vld [vmem:[%s0 + $0xb10] sm:$0x33]
  %v360 = vld [vmem:[%s0 + $0xb18] sm:$0x33]
  %v361 = vld [vmem:[%s0 + $0xb20] sm:$0x33]
  %v362 = vld [vmem:[%s0 + $0xb28] sm:$0x33]
  %v363 = vld [vmem:[%s0 + $0xb30] sm:$0x33]
  %v364 = vld [vmem:[%s0 + $0xb38] sm:$0x33]
  %v365 = vld [vmem:[%s0 + $0xb40] sm:$0x33]
  %v366 = vld [vmem:[%s0 + $0xb48] sm:$0x33]
  %v367 = vld [vmem:[%s0 + $0xb50] sm:$0x33]
  %v368 = vld [vmem:[%s0 + $0xb58] sm:$0x33]
  %v369 = vld [vmem:[%s0 + $0xb60] sm:$0x33]
  %v370 = vld [vmem:[%s0 + $0xb68] sm:$0x33]
  %v371 = vld [vmem:[%s0 + $0xb70] sm:$0x33]
  %v372 = vld [vmem:[%s0 + $0xb78] sm:$0x33]
  %v373 = vld [vmem:[%s0 + $0xb80] sm:$0x33]
  %v374 = vld [vmem:[%s0 + $0xb88] sm:$0x33]
  %v375 = vld [vmem:[%s0 + $0xb90] sm:$0x33]
  %v376 = vld [vmem:[%s0 + $0xb98] sm:$0x33]
  %v377 = vld [vmem:[%s0 + $0xba0] sm:$0x33]
  %v378 = vld [vmem:[%s0 + $0xba8] sm:$0x33]
  %v379 = vld [vmem:[%s0 + $0xbb0] sm:$0x33]
  %v380 = vld [vmem:[%s0 + $0xbb8] sm:$0x33]
  %v381 = vld [vmem:[%s0 + $0xbc0] sm:$0x33]
  %v382 = vld [vmem:[%s0 + $0xbf8] sm:$0x33]
  %v383 = vld [vmem:[%s0 + $0xc00] sm:$0x33]
  %v384 = vld [vmem:[%s0 + $0xc08] sm:$0x33]
  %v385 = vld [vmem:[%s0 + $0xc10] sm:$0x33]
  %v386 = vld [vmem:[%s0 + $0xc18] sm:$0x33]
  %v387 = vld [vmem:[%s0 + $0xc20] sm:$0x33]
  %v388 = vld [vmem:[%s0 + $0xc28] sm:$0x33]
  %v389 = vld [vmem:[%s0 + $0xc30] sm:$0x33]
  %v390 = vld [vmem:[%s0 + $0xc38] sm:$0x33]
  %v391 = vld [vmem:[%s0 + $0xc40] sm:$0x33]
  %v392 = vld [vmem:[%s0 + $0xc48] sm:$0x33]
  %v393 = vld [vmem:[%s0 + $0xc50] sm:$0x33]
  %v394 = vld [vmem:[%s0 + $0xc58] sm:$0x33]
  %v395 = vld [vmem:[%s0 + $0xc60] sm:$0x33]
  %v396 = vld [vmem:[%s0 + $0xc68] sm:$0x33]
  %v397 = vld [vmem:[%s0 + $0xc70] sm:$0x33]
  %v398 = vld [vmem:[%s0 + $0xc78] sm:$0x33]
  %v399 = vld [vmem:[%s0 + $0xc80] sm:$0x33]
  %v400 = vld [vmem:[%s0 + $0xc88] sm:$0x33]
  %v401 = vld [vmem:[%s0 + $0xc90] sm:$0x33]
  %v402 = vld [vmem:[%s0 + $0xc98] sm:$0x33]
  %v403 = vld [vmem:[%s0 + $0xca0] sm:$0x33]
  %v404 = vld [vmem:[%s0 + $0xca8] sm:$0x33]
  %v405 = vld [vmem:[%s0 + $0xcb0] sm:$0x33]
  %v406 = vld [vmem:[%s0 + $0xcb8] sm:$0x33]
  %v407 = vld [vmem:[%s0 + $0xcc0] sm:$0x33]
  %v408 = vld [vmem:[%s0 + $0xcc8] sm:$0x33]
  %v409 = vld [vmem:[%s0 + $0xcd0] sm:$0x33]
  %v410 = vld [vmem:[%s0 + $0xcd8] sm:$0x33]
  %v411 = vld [vmem:[%s0 + $0xce0] sm:$0x33]
  %v412 = vld [vmem:[%s0 + $0xce8] sm:$0x33]
  %v413 = vld [vmem:[%s0 + $0xcf0] sm:$0x33]
  %v414 = vld [vmem:[%s0 + $0xcf8] sm:$0x33]
  %v415 = vld [vmem:[%s0 + $0xd00] sm:$0x33]
  %v416 = vld [vmem:[%s0 + $0xd08] sm:$0x33]
  %v417 = vld [vmem:[%s0 + $0xd10] sm:$0x33]
  %v418 = vld [vmem:[%s0 + $0xd18] sm:$0x33]
  %v419 = vld [vmem:[%s0 + $0xd20] sm:$0x33]
  %v420 = vld [vmem:[%s0 + $0xd28] sm:$0x33]
  %v421 = vld [vmem:[%s0 + $0xd30] sm:$0x3]
  %v422 = vld [vmem:[%s1] sm:$0xf]
  %v423 = vld [vmem:[%s1 + $0x4] sm:$0xf]
  %v424 = vld [vmem:[%s1 + $0x8] sm:$0xf]
  %v425 = vld [vmem:[%s1 + $0xc] sm:$0xf]
  %v426 = vld [vmem:[%s1 + $0x10] sm:$0xf]
  %v427 = vld [vmem:[%s1 + $0x14] sm:$0xf]
  %v428 = vld [vmem:[%s1 + $0x18] sm:$0xf]
  %v429 = vld [vmem:[%s1 + $0x1c] sm:$0xf]
  %v438 = vunpack.c.l.b16 %v422
  %v439 = vunpack.c.l.b16 %v423
  %v440 = vunpack.c.l.b16 %v424
  %v441 = vunpack.c.l.b16 %v425
  %v442 = vunpack.c.l.b16 %v426
  %v443 = vunpack.c.l.b16 %v427
  %v444 = vunpack.c.l.b16 %v428
  %v445 = vunpack.c.l.b16 %v429
  %v446 = vpack.c.b16 %v439, %v438
  %v447 = vpack.c.b16 %v441, %v440
  %v448 = vpack.c.b16 %v443, %v442
  %v449 = vpack.c.b16 %v445, %v444
  %v845 = vunpack.c.l.b16 %v27
  %v846 = vunpack.c.h.b16 %v27
  %v847 = vunpack.c.l.b16 %v28
  %v848 = vunpack.c.h.b16 %v28
  %v849 = vunpack.c.l.b16 %v29
  %v850 = vunpack.c.h.b16 %v29
  %v851 = vunpack.c.l.b16 %v30
  %v852 = vunpack.c.h.b16 %v30
  %v853 = vunpack.c.l.b16 %v31
  %v854 = vunpack.c.h.b16 %v31
  %v855 = vunpack.c.l.b16 %v32
  %v856 = vunpack.c.h.b16 %v32
  %v857 = vunpack.c.l.b16 %v33
  %v858 = vunpack.c.h.b16 %v33
  %v859 = vunpack.c.l.b16 %v34
  %v860 = vunpack.c.h.b16 %v34
  %v861 = vunpack.c.l.b16 %v35
  %v862 = vunpack.c.h.b16 %v35
  %v863 = vunpack.c.l.b16 %v36
  %v864 = vunpack.c.h.b16 %v36
  %v865 = vunpack.c.l.b16 %v37
  %v866 = vunpack.c.h.b16 %v37
  %v867 = vunpack.c.l.b16 %v38
  %v868 = vunpack.c.h.b16 %v38
  %v869 = vunpack.c.l.b16 %v39
  %v870 = vunpack.c.h.b16 %v39
  %v871 = vunpack.c.l.b16 %v40
  %v872 = vunpack.c.h.b16 %v40
  %v873 = vunpack.c.l.b16 %v41
  %v874 = vunpack.c.h.b16 %v41
  %v875 = vunpack.c.l.b16 %v42
  %v876 = vunpack.c.h.b16 %v42
  %v877 = vunpack.c.l.b16 %v43
  %v878 = vunpack.c.h.b16 %v43
  %v879 = vunpack.c.l.b16 %v44
  %v880 = vunpack.c.h.b16 %v44
  %v881 = vunpack.c.l.b16 %v45
  %v882 = vunpack.c.h.b16 %v45
  %v883 = vunpack.c.l.b16 %v46
  %v884 = vunpack.c.h.b16 %v46
  %v885 = vunpack.c.l.b16 %v47
  %v886 = vunpack.c.h.b16 %v47
  %v887 = vunpack.c.l.b16 %v48
  %v888 = vunpack.c.h.b16 %v48
  %v889 = vunpack.c.l.b16 %v49
  %v890 = vunpack.c.h.b16 %v49
  %v891 = vunpack.c.l.b16 %v50
  %v892 = vunpack.c.h.b16 %v50
  %v893 = vunpack.c.l.b16 %v51
  %v894 = vunpack.c.h.b16 %v51
  %v895 = vunpack.c.l.b16 %v52
  %v896 = vunpack.c.h.b16 %v52
  %v897 = vunpack.c.l.b16 %v53
  %v898 = vunpack.c.h.b16 %v53
  %v899 = vunpack.c.l.b16 %v54
  %v900 = vunpack.c.h.b16 %v54
  %v901 = vunpack.c.l.b16 %v55
  %v902 = vunpack.c.h.b16 %v55
  %v903 = vunpack.c.l.b16 %v56
  %v904 = vunpack.c.h.b16 %v56
  %v905 = vunpack.c.l.b16 %v57
  %v906 = vunpack.c.h.b16 %v57
  %v907 = vunpack.c.l.b16 %v58
  %v908 = vunpack.c.h.b16 %v58
  %v909 = vunpack.c.l.b16 %v59
  %v910 = vunpack.c.h.b16 %v59
  %v911 = vunpack.c.l.b16 %v60
  %v912 = vunpack.c.h.b16 %v60
  %v913 = vunpack.c.l.b16 %v61
  %v914 = vunpack.c.h.b16 %v61
  %v915 = vunpack.c.l.b16 %v62
  %v916 = vunpack.c.h.b16 %v62
  %v917 = vunpack.c.l.b16 %v63
  %v918 = vunpack.c.h.b16 %v63
  %v919 = vunpack.c.l.b16 %v64
  %v920 = vunpack.c.h.b16 %v64
  %v921 = vunpack.c.l.b16 %v65
  %v922 = vunpack.c.h.b16 %v65
  %v923 = vunpack.c.l.b16 %v66
  %v924 = vunpack.c.h.b16 %v66
  %v925 = vunpack.c.l.b16 %v67
  %v926 = vunpack.c.h.b16 %v67
  %v927 = vunpack.c.l.b16 %v68
  %v928 = vunpack.c.h.b16 %v68
  %v929 = vunpack.c.l.b16 %v69
  %v930 = vunpack.c.h.b16 %v69
  %v931 = vunpack.c.l.b16 %v70
  %v932 = vunpack.c.h.b16 %v70
  %v933 = vunpack.c.l.b16 %v71
  %v934 = vunpack.c.h.b16 %v71
  %v935 = vunpack.c.l.b16 %v72
  %v936 = vunpack.c.h.b16 %v72
  %v937 = vunpack.c.l.b16 %v73
  %v938 = vunpack.c.h.b16 %v73
  %v939 = vunpack.c.l.b16 %v74
  %v940 = vunpack.c.h.b16 %v74
  %v941 = vunpack.c.l.b16 %v75
  %v942 = vunpack.c.h.b16 %v75
  %v943 = vunpack.c.l.b16 %v76
  %v944 = vunpack.c.h.b16 %v76
  %v945 = vunpack.c.l.b16 %v77
  %v946 = vunpack.c.h.b16 %v77
  %v947 = vunpack.c.l.b16 %v78
  %v948 = vunpack.c.h.b16 %v78
  %v949 = vunpack.c.l.b16 %v79
  %v950 = vunpack.c.h.b16 %v79
  %v951 = vunpack.c.l.b16 %v80
  %v952 = vunpack.c.h.b16 %v80
  %v953 = vunpack.c.l.b16 %v81
  %v954 = vunpack.c.h.b16 %v81
  %v955 = vunpack.c.l.b16 %v82
  %v956 = vunpack.c.h.b16 %v82
  %v957 = vunpack.c.l.b16 %v83
  %v958 = vunpack.c.h.b16 %v83
  %v959 = vunpack.c.l.b16 %v84
  %v960 = vunpack.c.h.b16 %v84
  %v961 = vunpack.c.l.b16 %v85
  %v962 = vunpack.c.h.b16 %v85
  %v963 = vunpack.c.l.b16 %v86
  %v964 = vunpack.c.h.b16 %v86
  %v965 = vunpack.c.l.b16 %v87
  %v966 = vunpack.c.h.b16 %v87
  %v967 = vunpack.c.l.b16 %v88
  %v968 = vunpack.c.h.b16 %v88
  %v969 = vunpack.c.l.b16 %v89
  %v970 = vunpack.c.h.b16 %v89
  %v971 = vunpack.c.l.b16 %v90
  %v972 = vunpack.c.h.b16 %v90
  %v973 = vunpack.c.l.b16 %v91
  %v974 = vunpack.c.h.b16 %v91
  %v975 = vunpack.c.l.b16 %v92
  %v976 = vunpack.c.h.b16 %v92
  %v977 = vunpack.c.l.b16 %v93
  %v978 = vunpack.c.h.b16 %v93
  %v979 = vunpack.c.l.b16 %v94
  %v980 = vunpack.c.h.b16 %v94
  %v981 = vunpack.c.l.b16 %v95
  %v982 = vunpack.c.h.b16 %v95
  %v983 = vunpack.c.l.b16 %v96
  %v984 = vunpack.c.h.b16 %v96
  %v985 = vunpack.c.l.b16 %v97
  %v986 = vunpack.c.h.b16 %v97
  %v987 = vunpack.c.l.b16 %v98
  %v988 = vunpack.c.h.b16 %v98
  %v989 = vunpack.c.l.b16 %v99
  %v990 = vunpack.c.h.b16 %v99
  %v991 = vunpack.c.l.b16 %v100
  %v992 = vunpack.c.h.b16 %v100
  %v993 = vunpack.c.l.b16 %v101
  %v994 = vunpack.c.h.b16 %v101
  %v995 = vunpack.c.l.b16 %v102
  %v996 = vunpack.c.h.b16 %v102
  %v997 = vunpack.c.l.b16 %v103
  %v998 = vunpack.c.h.b16 %v103
  %v999 = vunpack.c.l.b16 %v104
  %v1000 = vunpack.c.h.b16 %v104
  %v1001 = vunpack.c.l.b16 %v105
  %v1002 = vunpack.c.l.b16 %v106
  %v1003 = vunpack.c.h.b16 %v106
  %v1004 = vunpack.c.l.b16 %v107
  %v1005 = vunpack.c.h.b16 %v107
  %v1006 = vunpack.c.l.b16 %v108
  %v1007 = vunpack.c.h.b16 %v108
  %v1008 = vunpack.c.l.b16 %v109
  %v1009 = vunpack.c.h.b16 %v109
  %v1010 = vunpack.c.l.b16 %v110
  %v1011 = vunpack.c.h.b16 %v110
  %v1012 = vunpack.c.l.b16 %v111
  %v1013 = vunpack.c.h.b16 %v111
  %v1014 = vunpack.c.l.b16 %v112
  %v1015 = vunpack.c.h.b16 %v112
  %v1016 = vunpack.c.l.b16 %v113
  %v1017 = vunpack.c.h.b16 %v113
  %v1018 = vunpack.c.l.b16 %v114
  %v1019 = vunpack.c.h.b16 %v114
  %v1020 = vunpack.c.l.b16 %v115
  %v1021 = vunpack.c.h.b16 %v115
  %v1022 = vunpack.c.l.b16 %v116
  %v1023 = vunpack.c.h.b16 %v116
  %v1024 = vunpack.c.l.b16 %v117
  %v1025 = vunpack.c.h.b16 %v117
  %v1026 = vunpack.c.l.b16 %v118
  %v1027 = vunpack.c.h.b16 %v118
  %v1028 = vunpack.c.l.b16 %v119
  %v1029 = vunpack.c.h.b16 %v119
  %v1030 = vunpack.c.l.b16 %v120
  %v1031 = vunpack.c.h.b16 %v120
  %v1032 = vunpack.c.l.b16 %v121
  %v1033 = vunpack.c.h.b16 %v121
  %v1034 = vunpack.c.l.b16 %v122
  %v1035 = vunpack.c.h.b16 %v122
  %v1036 = vunpack.c.l.b16 %v123
  %v1037 = vunpack.c.h.b16 %v123
  %v1038 = vunpack.c.l.b16 %v124
  %v1039 = vunpack.c.h.b16 %v124
  %v1040 = vunpack.c.l.b16 %v125
  %v1041 = vunpack.c.h.b16 %v125
  %v1042 = vunpack.c.l.b16 %v126
  %v1043 = vunpack.c.h.b16 %v126
  %v1044 = vunpack.c.l.b16 %v127
  %v1045 = vunpack.c.h.b16 %v127
  %v1046 = vunpack.c.l.b16 %v128
  %v1047 = vunpack.c.h.b16 %v128
  %v1048 = vunpack.c.l.b16 %v129
  %v1049 = vunpack.c.h.b16 %v129
  %v1050 = vunpack.c.l.b16 %v130
  %v1051 = vunpack.c.h.b16 %v130
  %v1052 = vunpack.c.l.b16 %v131
  %v1053 = vunpack.c.h.b16 %v131
  %v1054 = vunpack.c.l.b16 %v132
  %v1055 = vunpack.c.h.b16 %v132
  %v1056 = vunpack.c.l.b16 %v133
  %v1057 = vunpack.c.h.b16 %v133
  %v1058 = vunpack.c.l.b16 %v134
  %v1059 = vunpack.c.h.b16 %v134
  %v1060 = vunpack.c.l.b16 %v135
  %v1061 = vunpack.c.h.b16 %v135
  %v1062 = vunpack.c.l.b16 %v136
  %v1063 = vunpack.c.h.b16 %v136
  %v1064 = vunpack.c.l.b16 %v137
  %v1065 = vunpack.c.h.b16 %v137
  %v1066 = vunpack.c.l.b16 %v138
  %v1067 = vunpack.c.h.b16 %v138
  %v1068 = vunpack.c.l.b16 %v139
  %v1069 = vunpack.c.h.b16 %v139
  %v1070 = vunpack.c.l.b16 %v140
  %v1071 = vunpack.c.h.b16 %v140
  %v1072 = vunpack.c.l.b16 %v141
  %v1073 = vunpack.c.h.b16 %v141
  %v1074 = vunpack.c.l.b16 %v142
  %v1075 = vunpack.c.h.b16 %v142
  %v1076 = vunpack.c.l.b16 %v143
  %v1077 = vunpack.c.h.b16 %v143
  %v1078 = vunpack.c.l.b16 %v144
  %v1079 = vunpack.c.h.b16 %v144
  %v1080 = vunpack.c.l.b16 %v145
  %v1081 = vunpack.c.h.b16 %v145
  %v1082 = vunpack.c.l.b16 %v146
  %v1083 = vunpack.c.h.b16 %v146
  %v1084 = vunpack.c.l.b16 %v147
  %v1085 = vunpack.c.h.b16 %v147
  %v1086 = vunpack.c.l.b16 %v148
  %v1087 = vunpack.c.h.b16 %v148
  %v1088 = vunpack.c.l.b16 %v149
  %v1089 = vunpack.c.h.b16 %v149
  %v1090 = vunpack.c.l.b16 %v150
  %v1091 = vunpack.c.h.b16 %v150
  %v1092 = vunpack.c.l.b16 %v151
  %v1093 = vunpack.c.h.b16 %v151
  %v1094 = vunpack.c.l.b16 %v152
  %v1095 = vunpack.c.h.b16 %v152
  %v1096 = vunpack.c.l.b16 %v153
  %v1097 = vunpack.c.h.b16 %v153
  %v1098 = vunpack.c.l.b16 %v154
  %v1099 = vunpack.c.h.b16 %v154
  %v1100 = vunpack.c.l.b16 %v155
  %v1101 = vunpack.c.h.b16 %v155
  %v1102 = vunpack.c.l.b16 %v156
  %v1103 = vunpack.c.h.b16 %v156
  %v1104 = vunpack.c.l.b16 %v157
  %v1105 = vunpack.c.h.b16 %v157
  %v1106 = vunpack.c.l.b16 %v158
  %v1107 = vunpack.c.h.b16 %v158
  %v1108 = vunpack.c.l.b16 %v159
  %v1109 = vunpack.c.h.b16 %v159
  %v1110 = vunpack.c.l.b16 %v160
  %v1111 = vunpack.c.h.b16 %v160
  %v1112 = vunpack.c.l.b16 %v161
  %v1113 = vunpack.c.h.b16 %v161
  %v1114 = vunpack.c.l.b16 %v162
  %v1115 = vunpack.c.h.b16 %v162
  %v1116 = vunpack.c.l.b16 %v163
  %v1117 = vunpack.c.h.b16 %v163
  %v1118 = vunpack.c.l.b16 %v164
  %v1119 = vunpack.c.h.b16 %v164
  %v1120 = vunpack.c.l.b16 %v165
  %v1121 = vunpack.c.h.b16 %v165
  %v1122 = vunpack.c.l.b16 %v166
  %v1123 = vunpack.c.h.b16 %v166
  %v1124 = vunpack.c.l.b16 %v167
  %v1125 = vunpack.c.h.b16 %v167
  %v1126 = vunpack.c.l.b16 %v168
  %v1127 = vunpack.c.h.b16 %v168
  %v1128 = vunpack.c.l.b16 %v169
  %v1129 = vunpack.c.h.b16 %v169
  %v1130 = vunpack.c.l.b16 %v170
  %v1131 = vunpack.c.h.b16 %v170
  %v1132 = vunpack.c.l.b16 %v171
  %v1133 = vunpack.c.h.b16 %v171
  %v1134 = vunpack.c.l.b16 %v172
  %v1135 = vunpack.c.h.b16 %v172
  %v1136 = vunpack.c.l.b16 %v173
  %v1137 = vunpack.c.h.b16 %v173
  %v1138 = vunpack.c.l.b16 %v174
  %v1139 = vunpack.c.h.b16 %v174
  %v1140 = vunpack.c.l.b16 %v175
  %v1141 = vunpack.c.h.b16 %v175
  %v1142 = vunpack.c.l.b16 %v176
  %v1143 = vunpack.c.h.b16 %v176
  %v1144 = vunpack.c.l.b16 %v177
  %v1145 = vunpack.c.h.b16 %v177
  %v1146 = vunpack.c.l.b16 %v178
  %v1147 = vunpack.c.h.b16 %v178
  %v1148 = vunpack.c.l.b16 %v179
  %v1149 = vunpack.c.h.b16 %v179
  %v1150 = vunpack.c.l.b16 %v180
  %v1151 = vunpack.c.h.b16 %v180
  %v1152 = vunpack.c.l.b16 %v181
  %v1153 = vunpack.c.h.b16 %v181
  %v1154 = vunpack.c.l.b16 %v182
  %v1155 = vunpack.c.h.b16 %v182
  %v1156 = vunpack.c.l.b16 %v183
  %v1157 = vunpack.c.h.b16 %v183
  %v1158 = vunpack.c.l.b16 %v184
  %v1159 = vunpack.c.l.b16 %v185
  %v1160 = vunpack.c.h.b16 %v185
  %v1161 = vunpack.c.l.b16 %v186
  %v1162 = vunpack.c.h.b16 %v186
  %v1163 = vunpack.c.l.b16 %v187
  %v1164 = vunpack.c.h.b16 %v187
  %v1165 = vunpack.c.l.b16 %v188
  %v1166 = vunpack.c.h.b16 %v188
  %v1167 = vunpack.c.l.b16 %v189
  %v1168 = vunpack.c.h.b16 %v189
  %v1169 = vunpack.c.l.b16 %v190
  %v1170 = vunpack.c.h.b16 %v190
  %v1171 = vunpack.c.l.b16 %v191
  %v1172 = vunpack.c.h.b16 %v191
  %v1173 = vunpack.c.l.b16 %v192
  %v1174 = vunpack.c.h.b16 %v192
  %v1175 = vunpack.c.l.b16 %v193
  %v1176 = vunpack.c.h.b16 %v193
  %v1177 = vunpack.c.l.b16 %v194
  %v1178 = vunpack.c.h.b16 %v194
  %v1179 = vunpack.c.l.b16 %v195
  %v1180 = vunpack.c.h.b16 %v195
  %v1181 = vunpack.c.l.b16 %v196
  %v1182 = vunpack.c.h.b16 %v196
  %v1183 = vunpack.c.l.b16 %v197
  %v1184 = vunpack.c.h.b16 %v197
  %v1185 = vunpack.c.l.b16 %v198
  %v1186 = vunpack.c.h.b16 %v198
  %v1187 = vunpack.c.l.b16 %v199
  %v1188 = vunpack.c.h.b16 %v199
  %v1189 = vunpack.c.l.b16 %v200
  %v1190 = vunpack.c.h.b16 %v200
  %v1191 = vunpack.c.l.b16 %v201
  %v1192 = vunpack.c.h.b16 %v201
  %v1193 = vunpack.c.l.b16 %v202
  %v1194 = vunpack.c.h.b16 %v202
  %v1195 = vunpack.c.l.b16 %v203
  %v1196 = vunpack.c.h.b16 %v203
  %v1197 = vunpack.c.l.b16 %v204
  %v1198 = vunpack.c.h.b16 %v204
  %v1199 = vunpack.c.l.b16 %v205
  %v1200 = vunpack.c.h.b16 %v205
  %v1201 = vunpack.c.l.b16 %v206
  %v1202 = vunpack.c.h.b16 %v206
  %v1203 = vunpack.c.l.b16 %v207
  %v1204 = vunpack.c.h.b16 %v207
  %v1205 = vunpack.c.l.b16 %v208
  %v1206 = vunpack.c.h.b16 %v208
  %v1207 = vunpack.c.l.b16 %v209
  %v1208 = vunpack.c.h.b16 %v209
  %v1209 = vunpack.c.l.b16 %v210
  %v1210 = vunpack.c.h.b16 %v210
  %v1211 = vunpack.c.l.b16 %v211
  %v1212 = vunpack.c.h.b16 %v211
  %v1213 = vunpack.c.l.b16 %v212
  %v1214 = vunpack.c.h.b16 %v212
  %v1215 = vunpack.c.l.b16 %v213
  %v1216 = vunpack.c.h.b16 %v213
  %v1217 = vunpack.c.l.b16 %v214
  %v1218 = vunpack.c.h.b16 %v214
  %v1219 = vunpack.c.l.b16 %v215
  %v1220 = vunpack.c.h.b16 %v215
  %v1221 = vunpack.c.l.b16 %v216
  %v1222 = vunpack.c.h.b16 %v216
  %v1223 = vunpack.c.l.b16 %v217
  %v1224 = vunpack.c.h.b16 %v217
  %v1225 = vunpack.c.l.b16 %v218
  %v1226 = vunpack.c.h.b16 %v218
  %v1227 = vunpack.c.l.b16 %v219
  %v1228 = vunpack.c.h.b16 %v219
  %v1229 = vunpack.c.l.b16 %v220
  %v1230 = vunpack.c.h.b16 %v220
  %v1231 = vunpack.c.l.b16 %v221
  %v1232 = vunpack.c.h.b16 %v221
  %v1233 = vunpack.c.l.b16 %v222
  %v1234 = vunpack.c.h.b16 %v222
  %v1235 = vunpack.c.l.b16 %v223
  %v1236 = vunpack.c.h.b16 %v223
  %v1237 = vunpack.c.l.b16 %v224
  %v1238 = vunpack.c.h.b16 %v224
  %v1239 = vunpack.c.l.b16 %v225
  %v1240 = vunpack.c.h.b16 %v225
  %v1241 = vunpack.c.l.b16 %v226
  %v1242 = vunpack.c.h.b16 %v226
  %v1243 = vunpack.c.l.b16 %v227
  %v1244 = vunpack.c.h.b16 %v227
  %v1245 = vunpack.c.l.b16 %v228
  %v1246 = vunpack.c.h.b16 %v228
  %v1247 = vunpack.c.l.b16 %v229
  %v1248 = vunpack.c.h.b16 %v229
  %v1249 = vunpack.c.l.b16 %v230
  %v1250 = vunpack.c.h.b16 %v230
  %v1251 = vunpack.c.l.b16 %v231
  %v1252 = vunpack.c.h.b16 %v231
  %v1253 = vunpack.c.l.b16 %v232
  %v1254 = vunpack.c.h.b16 %v232
  %v1255 = vunpack.c.l.b16 %v233
  %v1256 = vunpack.c.h.b16 %v233
  %v1257 = vunpack.c.l.b16 %v234
  %v1258 = vunpack.c.h.b16 %v234
  %v1259 = vunpack.c.l.b16 %v235
  %v1260 = vunpack.c.h.b16 %v235
  %v1261 = vunpack.c.l.b16 %v236
  %v1262 = vunpack.c.h.b16 %v236
  %v1263 = vunpack.c.l.b16 %v237
  %v1264 = vunpack.c.h.b16 %v237
  %v1265 = vunpack.c.l.b16 %v238
  %v1266 = vunpack.c.h.b16 %v238
  %v1267 = vunpack.c.l.b16 %v239
  %v1268 = vunpack.c.h.b16 %v239
  %v1269 = vunpack.c.l.b16 %v240
  %v1270 = vunpack.c.h.b16 %v240
  %v1271 = vunpack.c.l.b16 %v241
  %v1272 = vunpack.c.h.b16 %v241
  %v1273 = vunpack.c.l.b16 %v242
  %v1274 = vunpack.c.h.b16 %v242
  %v1275 = vunpack.c.l.b16 %v243
  %v1276 = vunpack.c.h.b16 %v243
  %v1277 = vunpack.c.l.b16 %v244
  %v1278 = vunpack.c.h.b16 %v244
  %v1279 = vunpack.c.l.b16 %v245
  %v1280 = vunpack.c.h.b16 %v245
  %v1281 = vunpack.c.l.b16 %v246
  %v1282 = vunpack.c.h.b16 %v246
  %v1283 = vunpack.c.l.b16 %v247
  %v1284 = vunpack.c.h.b16 %v247
  %v1285 = vunpack.c.l.b16 %v248
  %v1286 = vunpack.c.h.b16 %v248
  %v1287 = vunpack.c.l.b16 %v249
  %v1288 = vunpack.c.h.b16 %v249
  %v1289 = vunpack.c.l.b16 %v250
  %v1290 = vunpack.c.h.b16 %v250
  %v1291 = vunpack.c.l.b16 %v251
  %v1292 = vunpack.c.h.b16 %v251
  %v1293 = vunpack.c.l.b16 %v252
  %v1294 = vunpack.c.h.b16 %v252
  %v1295 = vunpack.c.l.b16 %v253
  %v1296 = vunpack.c.h.b16 %v253
  %v1297 = vunpack.c.l.b16 %v254
  %v1298 = vunpack.c.h.b16 %v254
  %v1299 = vunpack.c.l.b16 %v255
  %v1300 = vunpack.c.h.b16 %v255
  %v1301 = vunpack.c.l.b16 %v256
  %v1302 = vunpack.c.h.b16 %v256
  %v1303 = vunpack.c.l.b16 %v257
  %v1304 = vunpack.c.h.b16 %v257
  %v1305 = vunpack.c.l.b16 %v258
  %v1306 = vunpack.c.h.b16 %v258
  %v1307 = vunpack.c.l.b16 %v259
  %v1308 = vunpack.c.h.b16 %v259
  %v1309 = vunpack.c.l.b16 %v260
  %v1310 = vunpack.c.h.b16 %v260
  %v1311 = vunpack.c.l.b16 %v261
  %v1312 = vunpack.c.h.b16 %v261
  %v1313 = vunpack.c.l.b16 %v262
  %v1314 = vunpack.c.h.b16 %v262
  %v1315 = vunpack.c.l.b16 %v263
  %v1316 = vunpack.c.l.b16 %v264
  %v1317 = vunpack.c.h.b16 %v264
  %v1318 = vunpack.c.l.b16 %v265
  %v1319 = vunpack.c.h.b16 %v265
  %v1320 = vunpack.c.l.b16 %v266
  %v1321 = vunpack.c.h.b16 %v266
  %v1322 = vunpack.c.l.b16 %v267
  %v1323 = vunpack.c.h.b16 %v267
  %v1324 = vunpack.c.l.b16 %v268
  %v1325 = vunpack.c.h.b16 %v268
  %v1326 = vunpack.c.l.b16 %v269
  %v1327 = vunpack.c.h.b16 %v269
  %v1328 = vunpack.c.l.b16 %v270
  %v1329 = vunpack.c.h.b16 %v270
  %v1330 = vunpack.c.l.b16 %v271
  %v1331 = vunpack.c.h.b16 %v271
  %v1332 = vunpack.c.l.b16 %v272
  %v1333 = vunpack.c.h.b16 %v272
  %v1334 = vunpack.c.l.b16 %v273
  %v1335 = vunpack.c.h.b16 %v273
  %v1336 = vunpack.c.l.b16 %v274
  %v1337 = vunpack.c.h.b16 %v274
  %v1338 = vunpack.c.l.b16 %v275
  %v1339 = vunpack.c.h.b16 %v275
  %v1340 = vunpack.c.l.b16 %v276
  %v1341 = vunpack.c.h.b16 %v276
  %v1342 = vunpack.c.l.b16 %v277
  %v1343 = vunpack.c.h.b16 %v277
  %v1344 = vunpack.c.l.b16 %v278
  %v1345 = vunpack.c.h.b16 %v278
  %v1346 = vunpack.c.l.b16 %v279
  %v1347 = vunpack.c.h.b16 %v279
  %v1348 = vunpack.c.l.b16 %v280
  %v1349 = vunpack.c.h.b16 %v280
  %v1350 = vunpack.c.l.b16 %v281
  %v1351 = vunpack.c.h.b16 %v281
  %v1352 = vunpack.c.l.b16 %v282
  %v1353 = vunpack.c.h.b16 %v282
  %v1354 = vunpack.c.l.b16 %v283
  %v1355 = vunpack.c.h.b16 %v283
  %v1356 = vunpack.c.l.b16 %v284
  %v1357 = vunpack.c.h.b16 %v284
  %v1358 = vunpack.c.l.b16 %v285
  %v1359 = vunpack.c.h.b16 %v285
  %v1360 = vunpack.c.l.b16 %v286
  %v1361 = vunpack.c.h.b16 %v286
  %v1362 = vunpack.c.l.b16 %v287
  %v1363 = vunpack.c.h.b16 %v287
  %v1364 = vunpack.c.l.b16 %v288
  %v1365 = vunpack.c.h.b16 %v288
  %v1366 = vunpack.c.l.b16 %v289
  %v1367 = vunpack.c.h.b16 %v289
  %v1368 = vunpack.c.l.b16 %v290
  %v1369 = vunpack.c.h.b16 %v290
  %v1370 = vunpack.c.l.b16 %v291
  %v1371 = vunpack.c.h.b16 %v291
  %v1372 = vunpack.c.l.b16 %v292
  %v1373 = vunpack.c.h.b16 %v292
  %v1374 = vunpack.c.l.b16 %v293
  %v1375 = vunpack.c.h.b16 %v293
  %v1376 = vunpack.c.l.b16 %v294
  %v1377 = vunpack.c.h.b16 %v294
  %v1378 = vunpack.c.l.b16 %v295
  %v1379 = vunpack.c.h.b16 %v295
  %v1380 = vunpack.c.l.b16 %v296
  %v1381 = vunpack.c.h.b16 %v296
  %v1382 = vunpack.c.l.b16 %v297
  %v1383 = vunpack.c.h.b16 %v297
  %v1384 = vunpack.c.l.b16 %v298
  %v1385 = vunpack.c.h.b16 %v298
  %v1386 = vunpack.c.l.b16 %v299
  %v1387 = vunpack.c.h.b16 %v299
  %v1388 = vunpack.c.l.b16 %v300
  %v1389 = vunpack.c.h.b16 %v300
  %v1390 = vunpack.c.l.b16 %v301
  %v1391 = vunpack.c.h.b16 %v301
  %v1392 = vunpack.c.l.b16 %v302
  %v1393 = vunpack.c.h.b16 %v302
  %v1394 = vunpack.c.l.b16 %v303
  %v1395 = vunpack.c.h.b16 %v303
  %v1396 = vunpack.c.l.b16 %v304
  %v1397 = vunpack.c.h.b16 %v304
  %v1398 = vunpack.c.l.b16 %v305
  %v1399 = vunpack.c.h.b16 %v305
  %v1400 = vunpack.c.l.b16 %v306
  %v1401 = vunpack.c.h.b16 %v306
  %v1402 = vunpack.c.l.b16 %v307
  %v1403 = vunpack.c.h.b16 %v307
  %v1404 = vunpack.c.l.b16 %v308
  %v1405 = vunpack.c.h.b16 %v308
  %v1406 = vunpack.c.l.b16 %v309
  %v1407 = vunpack.c.h.b16 %v309
  %v1408 = vunpack.c.l.b16 %v310
  %v1409 = vunpack.c.h.b16 %v310
  %v1410 = vunpack.c.l.b16 %v311
  %v1411 = vunpack.c.h.b16 %v311
  %v1412 = vunpack.c.l.b16 %v312
  %v1413 = vunpack.c.h.b16 %v312
  %v1414 = vunpack.c.l.b16 %v313
  %v1415 = vunpack.c.h.b16 %v313
  %v1416 = vunpack.c.l.b16 %v314
  %v1417 = vunpack.c.h.b16 %v314
  %v1418 = vunpack.c.l.b16 %v315
  %v1419 = vunpack.c.h.b16 %v315
  %v1420 = vunpack.c.l.b16 %v316
  %v1421 = vunpack.c.h.b16 %v316
  %v1422 = vunpack.c.l.b16 %v317
  %v1423 = vunpack.c.h.b16 %v317
  %v1424 = vunpack.c.l.b16 %v318
  %v1425 = vunpack.c.h.b16 %v318
  %v1426 = vunpack.c.l.b16 %v319
  %v1427 = vunpack.c.h.b16 %v319
  %v1428 = vunpack.c.l.b16 %v320
  %v1429 = vunpack.c.h.b16 %v320
  %v1430 = vunpack.c.l.b16 %v321
  %v1431 = vunpack.c.h.b16 %v321
  %v1432 = vunpack.c.l.b16 %v322
  %v1433 = vunpack.c.h.b16 %v322
  %v1434 = vunpack.c.l.b16 %v323
  %v1435 = vunpack.c.h.b16 %v323
  %v1436 = vunpack.c.l.b16 %v324
  %v1437 = vunpack.c.h.b16 %v324
  %v1438 = vunpack.c.l.b16 %v325
  %v1439 = vunpack.c.h.b16 %v325
  %v1440 = vunpack.c.l.b16 %v326
  %v1441 = vunpack.c.h.b16 %v326
  %v1442 = vunpack.c.l.b16 %v327
  %v1443 = vunpack.c.h.b16 %v327
  %v1444 = vunpack.c.l.b16 %v328
  %v1445 = vunpack.c.h.b16 %v328
  %v1446 = vunpack.c.l.b16 %v329
  %v1447 = vunpack.c.h.b16 %v329
  %v1448 = vunpack.c.l.b16 %v330
  %v1449 = vunpack.c.h.b16 %v330
  %v1450 = vunpack.c.l.b16 %v331
  %v1451 = vunpack.c.h.b16 %v331
  %v1452 = vunpack.c.l.b16 %v332
  %v1453 = vunpack.c.h.b16 %v332
  %v1454 = vunpack.c.l.b16 %v333
  %v1455 = vunpack.c.h.b16 %v333
  %v1456 = vunpack.c.l.b16 %v334
  %v1457 = vunpack.c.h.b16 %v334
  %v1458 = vunpack.c.l.b16 %v335
  %v1459 = vunpack.c.h.b16 %v335
  %v1460 = vunpack.c.l.b16 %v336
  %v1461 = vunpack.c.h.b16 %v336
  %v1462 = vunpack.c.l.b16 %v337
  %v1463 = vunpack.c.h.b16 %v337
  %v1464 = vunpack.c.l.b16 %v338
  %v1465 = vunpack.c.h.b16 %v338
  %v1466 = vunpack.c.l.b16 %v339
  %v1467 = vunpack.c.h.b16 %v339
  %v1468 = vunpack.c.l.b16 %v340
  %v1469 = vunpack.c.h.b16 %v340
  %v1470 = vunpack.c.l.b16 %v341
  %v1471 = vunpack.c.h.b16 %v341
  %v1472 = vunpack.c.l.b16 %v342
  %v1473 = vunpack.c.l.b16 %v343
  %v1474 = vunpack.c.h.b16 %v343
  %v1475 = vunpack.c.l.b16 %v344
  %v1476 = vunpack.c.h.b16 %v344
  %v1477 = vunpack.c.l.b16 %v345
  %v1478 = vunpack.c.h.b16 %v345
  %v1479 = vunpack.c.l.b16 %v346
  %v1480 = vunpack.c.h.b16 %v346
  %v1481 = vunpack.c.l.b16 %v347
  %v1482 = vunpack.c.h.b16 %v347
  %v1483 = vunpack.c.l.b16 %v348
  %v1484 = vunpack.c.h.b16 %v348
  %v1485 = vunpack.c.l.b16 %v349
  %v1486 = vunpack.c.h.b16 %v349
  %v1487 = vunpack.c.l.b16 %v350
  %v1488 = vunpack.c.h.b16 %v350
  %v1489 = vunpack.c.l.b16 %v351
  %v1490 = vunpack.c.h.b16 %v351
  %v1491 = vunpack.c.l.b16 %v352
  %v1492 = vunpack.c.h.b16 %v352
  %v1493 = vunpack.c.l.b16 %v353
  %v1494 = vunpack.c.h.b16 %v353
  %v1495 = vunpack.c.l.b16 %v354
  %v1496 = vunpack.c.h.b16 %v354
  %v1497 = vunpack.c.l.b16 %v355
  %v1498 = vunpack.c.h.b16 %v355
  %v1499 = vunpack.c.l.b16 %v356
  %v1500 = vunpack.c.h.b16 %v356
  %v1501 = vunpack.c.l.b16 %v357
  %v1502 = vunpack.c.h.b16 %v357
  %v1503 = vunpack.c.l.b16 %v358
  %v1504 = vunpack.c.h.b16 %v358
  %v1505 = vunpack.c.l.b16 %v359
  %v1506 = vunpack.c.h.b16 %v359
  %v1507 = vunpack.c.l.b16 %v360
  %v1508 = vunpack.c.h.b16 %v360
  %v1509 = vunpack.c.l.b16 %v361
  %v1510 = vunpack.c.h.b16 %v361
  %v1511 = vunpack.c.l.b16 %v362
  %v1512 = vunpack.c.h.b16 %v362
  %v1513 = vunpack.c.l.b16 %v363
  %v1514 = vunpack.c.h.b16 %v363
  %v1515 = vunpack.c.l.b16 %v364
  %v1516 = vunpack.c.h.b16 %v364
  %v1517 = vunpack.c.l.b16 %v365
  %v1518 = vunpack.c.h.b16 %v365
  %v1519 = vunpack.c.l.b16 %v366
  %v1520 = vunpack.c.h.b16 %v366
  %v1521 = vunpack.c.l.b16 %v367
  %v1522 = vunpack.c.h.b16 %v367
  %v1523 = vunpack.c.l.b16 %v368
  %v1524 = vunpack.c.h.b16 %v368
  %v1525 = vunpack.c.l.b16 %v369
  %v1526 = vunpack.c.h.b16 %v369
  %v1527 = vunpack.c.l.b16 %v370
  %v1528 = vunpack.c.h.b16 %v370
  %v1529 = vunpack.c.l.b16 %v371
  %v1530 = vunpack.c.h.b16 %v371
  %v1531 = vunpack.c.l.b16 %v372
  %v1532 = vunpack.c.h.b16 %v372
  %v1533 = vunpack.c.l.b16 %v373
  %v1534 = vunpack.c.h.b16 %v373
  %v1535 = vunpack.c.l.b16 %v374
  %v1536 = vunpack.c.h.b16 %v374
  %v1537 = vunpack.c.l.b16 %v375
  %v1538 = vunpack.c.h.b16 %v375
  %v1539 = vunpack.c.l.b16 %v376
  %v1540 = vunpack.c.h.b16 %v376
  %v1541 = vunpack.c.l.b16 %v377
  %v1542 = vunpack.c.h.b16 %v377
  %v1543 = vunpack.c.l.b16 %v378
  %v1544 = vunpack.c.h.b16 %v378
  %v1545 = vunpack.c.l.b16 %v379
  %v1546 = vunpack.c.h.b16 %v379
  %v1547 = vunpack.c.l.b16 %v380
  %v1548 = vunpack.c.h.b16 %v380
  %v1549 = vunpack.c.l.b16 %v381
  %v1550 = vunpack.c.h.b16 %v381
  %v1551 = vunpack.c.l.b16 %v382
  %v1552 = vunpack.c.h.b16 %v382
  %v1553 = vunpack.c.l.b16 %v383
  %v1554 = vunpack.c.h.b16 %v383
  %v1555 = vunpack.c.l.b16 %v384
  %v1556 = vunpack.c.h.b16 %v384
  %v1557 = vunpack.c.l.b16 %v385
  %v1558 = vunpack.c.h.b16 %v385
  %v1559 = vunpack.c.l.b16 %v386
  %v1560 = vunpack.c.h.b16 %v386
  %v1561 = vunpack.c.l.b16 %v387
  %v1562 = vunpack.c.h.b16 %v387
  %v1563 = vunpack.c.l.b16 %v388
  %v1564 = vunpack.c.h.b16 %v388
  %v1565 = vunpack.c.l.b16 %v389
  %v1566 = vunpack.c.h.b16 %v389
  %v1567 = vunpack.c.l.b16 %v390
  %v1568 = vunpack.c.h.b16 %v390
  %v1569 = vunpack.c.l.b16 %v391
  %v1570 = vunpack.c.h.b16 %v391
  %v1571 = vunpack.c.l.b16 %v392
  %v1572 = vunpack.c.h.b16 %v392
  %v1573 = vunpack.c.l.b16 %v393
  %v1574 = vunpack.c.h.b16 %v393
  %v1575 = vunpack.c.l.b16 %v394
  %v1576 = vunpack.c.h.b16 %v394
  %v1577 = vunpack.c.l.b16 %v395
  %v1578 = vunpack.c.h.b16 %v395
  %v1579 = vunpack.c.l.b16 %v396
  %v1580 = vunpack.c.h.b16 %v396
  %v1581 = vunpack.c.l.b16 %v397
  %v1582 = vunpack.c.h.b16 %v397
  %v1583 = vunpack.c.l.b16 %v398
  %v1584 = vunpack.c.h.b16 %v398
  %v1585 = vunpack.c.l.b16 %v399
  %v1586 = vunpack.c.h.b16 %v399
  %v1587 = vunpack.c.l.b16 %v400
  %v1588 = vunpack.c.h.b16 %v400
  %v1589 = vunpack.c.l.b16 %v401
  %v1590 = vunpack.c.h.b16 %v401
  %v1591 = vunpack.c.l.b16 %v402
  %v1592 = vunpack.c.h.b16 %v402
  %v1593 = vunpack.c.l.b16 %v403
  %v1594 = vunpack.c.h.b16 %v403
  %v1595 = vunpack.c.l.b16 %v404
  %v1596 = vunpack.c.h.b16 %v404
  %v1597 = vunpack.c.l.b16 %v405
  %v1598 = vunpack.c.h.b16 %v405
  %v1599 = vunpack.c.l.b16 %v406
  %v1600 = vunpack.c.h.b16 %v406
  %v1601 = vunpack.c.l.b16 %v407
  %v1602 = vunpack.c.h.b16 %v407
  %v1603 = vunpack.c.l.b16 %v408
  %v1604 = vunpack.c.h.b16 %v408
  %v1605 = vunpack.c.l.b16 %v409
  %v1606 = vunpack.c.h.b16 %v409
  %v1607 = vunpack.c.l.b16 %v410
  %v1608 = vunpack.c.h.b16 %v410
  %v1609 = vunpack.c.l.b16 %v411
  %v1610 = vunpack.c.h.b16 %v411
  %v1611 = vunpack.c.l.b16 %v412
  %v1612 = vunpack.c.h.b16 %v412
  %v1613 = vunpack.c.l.b16 %v413
  %v1614 = vunpack.c.h.b16 %v413
  %v1615 = vunpack.c.l.b16 %v414
  %v1616 = vunpack.c.h.b16 %v414
  %v1617 = vunpack.c.l.b16 %v415
  %v1618 = vunpack.c.h.b16 %v415
  %v1619 = vunpack.c.l.b16 %v416
  %v1620 = vunpack.c.h.b16 %v416
  %v1621 = vunpack.c.l.b16 %v417
  %v1622 = vunpack.c.h.b16 %v417
  %v1623 = vunpack.c.l.b16 %v418
  %v1624 = vunpack.c.h.b16 %v418
  %v1625 = vunpack.c.l.b16 %v419
  %v1626 = vunpack.c.h.b16 %v419
  %v1627 = vunpack.c.l.b16 %v420
  %v1628 = vunpack.c.h.b16 %v420
  %v1629 = vunpack.c.l.b16 %v421
  %v1630 = vpack.c.b16 %v1002, %v845
  %v1631 = vpack.c.b16 %v1003, %v846
  %v1632 = vpack.c.b16 %v1004, %v847
  %v1633 = vpack.c.b16 %v1005, %v848
  %v1634 = vpack.c.b16 %v1006, %v849
  %v1635 = vpack.c.b16 %v1007, %v850
  %v1636 = vpack.c.b16 %v1008, %v851
  %v1637 = vpack.c.b16 %v1009, %v852
  %v1638 = vpack.c.b16 %v1010, %v853
  %v1639 = vpack.c.b16 %v1011, %v854
  %v1640 = vpack.c.b16 %v1012, %v855
  %v1641 = vpack.c.b16 %v1013, %v856
  %v1642 = vpack.c.b16 %v1014, %v857
  %v1643 = vpack.c.b16 %v1015, %v858
  %v1644 = vpack.c.b16 %v1016, %v859
  %v1645 = vpack.c.b16 %v1017, %v860
  %v1646 = vpack.c.b16 %v1018, %v861
  %v1647 = vpack.c.b16 %v1019, %v862
  %v1648 = vpack.c.b16 %v1020, %v863
  %v1649 = vpack.c.b16 %v1021, %v864
  %v1650 = vpack.c.b16 %v1022, %v865
  %v1651 = vpack.c.b16 %v1023, %v866
  %v1652 = vpack.c.b16 %v1024, %v867
  %v1653 = vpack.c.b16 %v1025, %v868
  %v1654 = vpack.c.b16 %v1026, %v869
  %v1655 = vpack.c.b16 %v1027, %v870
  %v1656 = vpack.c.b16 %v1028, %v871
  %v1657 = vpack.c.b16 %v1029, %v872
  %v1658 = vpack.c.b16 %v1030, %v873
  %v1659 = vpack.c.b16 %v1031, %v874
  %v1660 = vpack.c.b16 %v1032, %v875
  %v1661 = vpack.c.b16 %v1033, %v876
  %v1662 = vpack.c.b16 %v1034, %v877
  %v1663 = vpack.c.b16 %v1035, %v878
  %v1664 = vpack.c.b16 %v1036, %v879
  %v1665 = vpack.c.b16 %v1037, %v880
  %v1666 = vpack.c.b16 %v1038, %v881
  %v1667 = vpack.c.b16 %v1039, %v882
  %v1668 = vpack.c.b16 %v1040, %v883
  %v1669 = vpack.c.b16 %v1041, %v884
  %v1670 = vpack.c.b16 %v1042, %v885
  %v1671 = vpack.c.b16 %v1043, %v886
  %v1672 = vpack.c.b16 %v1044, %v887
  %v1673 = vpack.c.b16 %v1045, %v888
  %v1674 = vpack.c.b16 %v1046, %v889
  %v1675 = vpack.c.b16 %v1047, %v890
  %v1676 = vpack.c.b16 %v1048, %v891
  %v1677 = vpack.c.b16 %v1049, %v892
  %v1678 = vpack.c.b16 %v1050, %v893
  %v1679 = vpack.c.b16 %v1051, %v894
  %v1680 = vpack.c.b16 %v1052, %v895
  %v1681 = vpack.c.b16 %v1053, %v896
  %v1682 = vpack.c.b16 %v1054, %v897
  %v1683 = vpack.c.b16 %v1055, %v898
  %v1684 = vpack.c.b16 %v1056, %v899
  %v1685 = vpack.c.b16 %v1057, %v900
  %v1686 = vpack.c.b16 %v1058, %v901
  %v1687 = vpack.c.b16 %v1059, %v902
  %v1688 = vpack.c.b16 %v1060, %v903
  %v1689 = vpack.c.b16 %v1061, %v904
  %v1690 = vpack.c.b16 %v1062, %v905
  %v1691 = vpack.c.b16 %v1063, %v906
  %v1692 = vpack.c.b16 %v1064, %v907
  %v1693 = vpack.c.b16 %v1065, %v908
  %v1694 = vpack.c.b16 %v1066, %v909
  %v1695 = vpack.c.b16 %v1067, %v910
  %v1696 = vpack.c.b16 %v1068, %v911
  %v1697 = vpack.c.b16 %v1069, %v912
  %v1698 = vpack.c.b16 %v1070, %v913
  %v1699 = vpack.c.b16 %v1071, %v914
  %v1700 = vpack.c.b16 %v1072, %v915
  %v1701 = vpack.c.b16 %v1073, %v916
  %v1702 = vpack.c.b16 %v1074, %v917
  %v1703 = vpack.c.b16 %v1075, %v918
  %v1704 = vpack.c.b16 %v1076, %v919
  %v1705 = vpack.c.b16 %v1077, %v920
  %v1706 = vpack.c.b16 %v1078, %v921
  %v1707 = vpack.c.b16 %v1079, %v922
  %v1708 = vpack.c.b16 %v1080, %v923
  %v1709 = vpack.c.b16 %v1081, %v924
  %v1710 = vpack.c.b16 %v1082, %v925
  %v1711 = vpack.c.b16 %v1083, %v926
  %v1712 = vpack.c.b16 %v1084, %v927
  %v1713 = vpack.c.b16 %v1085, %v928
  %v1714 = vpack.c.b16 %v1086, %v929
  %v1715 = vpack.c.b16 %v1087, %v930
  %v1716 = vpack.c.b16 %v1088, %v931
  %v1717 = vpack.c.b16 %v1089, %v932
  %v1718 = vpack.c.b16 %v1090, %v933
  %v1719 = vpack.c.b16 %v1091, %v934
  %v1720 = vpack.c.b16 %v1092, %v935
  %v1721 = vpack.c.b16 %v1093, %v936
  %v1722 = vpack.c.b16 %v1094, %v937
  %v1723 = vpack.c.b16 %v1095, %v938
  %v1724 = vpack.c.b16 %v1096, %v939
  %v1725 = vpack.c.b16 %v1097, %v940
  %v1726 = vpack.c.b16 %v1098, %v941
  %v1727 = vpack.c.b16 %v1099, %v942
  %v1728 = vpack.c.b16 %v1100, %v943
  %v1729 = vpack.c.b16 %v1101, %v944
  %v1730 = vpack.c.b16 %v1102, %v945
  %v1731 = vpack.c.b16 %v1103, %v946
  %v1732 = vpack.c.b16 %v1104, %v947
  %v1733 = vpack.c.b16 %v1105, %v948
  %v1734 = vpack.c.b16 %v1106, %v949
  %v1735 = vpack.c.b16 %v1107, %v950
  %v1736 = vpack.c.b16 %v1108, %v951
  %v1737 = vpack.c.b16 %v1109, %v952
  %v1738 = vpack.c.b16 %v1110, %v953
  %v1739 = vpack.c.b16 %v1111, %v954
  %v1740 = vpack.c.b16 %v1112, %v955
  %v1741 = vpack.c.b16 %v1113, %v956
  %v1742 = vpack.c.b16 %v1114, %v957
  %v1743 = vpack.c.b16 %v1115, %v958
  %v1744 = vpack.c.b16 %v1116, %v959
  %v1745 = vpack.c.b16 %v1117, %v960
  %v1746 = vpack.c.b16 %v1118, %v961
  %v1747 = vpack.c.b16 %v1119, %v962
  %v1748 = vpack.c.b16 %v1120, %v963
  %v1749 = vpack.c.b16 %v1121, %v964
  %v1750 = vpack.c.b16 %v1122, %v965
  %v1751 = vpack.c.b16 %v1123, %v966
  %v1752 = vpack.c.b16 %v1124, %v967
  %v1753 = vpack.c.b16 %v1125, %v968
  %v1754 = vpack.c.b16 %v1126, %v969
  %v1755 = vpack.c.b16 %v1127, %v970
  %v1756 = vpack.c.b16 %v1128, %v971
  %v1757 = vpack.c.b16 %v1129, %v972
  %v1758 = vpack.c.b16 %v1130, %v973
  %v1759 = vpack.c.b16 %v1131, %v974
  %v1760 = vpack.c.b16 %v1132, %v975
  %v1761 = vpack.c.b16 %v1133, %v976
  %v1762 = vpack.c.b16 %v1134, %v977
  %v1763 = vpack.c.b16 %v1135, %v978
  %v1764 = vpack.c.b16 %v1136, %v979
  %v1765 = vpack.c.b16 %v1137, %v980
  %v1766 = vpack.c.b16 %v1138, %v981
  %v1767 = vpack.c.b16 %v1139, %v982
  %v1768 = vpack.c.b16 %v1140, %v983
  %v1769 = vpack.c.b16 %v1141, %v984
  %v1770 = vpack.c.b16 %v1142, %v985
  %v1771 = vpack.c.b16 %v1143, %v986
  %v1772 = vpack.c.b16 %v1144, %v987
  %v1773 = vpack.c.b16 %v1145, %v988
  %v1774 = vpack.c.b16 %v1146, %v989
  %v1775 = vpack.c.b16 %v1147, %v990
  %v1776 = vpack.c.b16 %v1148, %v991
  %v1777 = vpack.c.b16 %v1149, %v992
  %v1778 = vpack.c.b16 %v1150, %v993
  %v1779 = vpack.c.b16 %v1151, %v994
  %v1780 = vpack.c.b16 %v1152, %v995
  %v1781 = vpack.c.b16 %v1153, %v996
  %v1782 = vpack.c.b16 %v1154, %v997
  %v1783 = vpack.c.b16 %v1155, %v998
  %v1784 = vpack.c.b16 %v1156, %v999
  %v1785 = vpack.c.b16 %v1157, %v1000
  %v1786 = vpack.c.b16 %v1158, %v1001
  %v1787 = vpack.c.b16 %v1316, %v1159
  %v1788 = vpack.c.b16 %v1317, %v1160
  %v1789 = vpack.c.b16 %v1318, %v1161
  %v1790 = vpack.c.b16 %v1319, %v1162
  %v1791 = vpack.c.b16 %v1320, %v1163
  %v1792 = vpack.c.b16 %v1321, %v1164
  %v1793 = vpack.c.b16 %v1322, %v1165
  %v1794 = vpack.c.b16 %v1323, %v1166
  %v1795 = vpack.c.b16 %v1324, %v1167
  %v1796 = vpack.c.b16 %v1325, %v1168
  %v1797 = vpack.c.b16 %v1326, %v1169
  %v1798 = vpack.c.b16 %v1327, %v1170
  %v1799 = vpack.c.b16 %v1328, %v1171
  %v1800 = vpack.c.b16 %v1329, %v1172
  %v1801 = vpack.c.b16 %v1330, %v1173
  %v1802 = vpack.c.b16 %v1331, %v1174
  %v1803 = vpack.c.b16 %v1332, %v1175
  %v1804 = vpack.c.b16 %v1333, %v1176
  %v1805 = vpack.c.b16 %v1334, %v1177
  %v1806 = vpack.c.b16 %v1335, %v1178
  %v1807 = vpack.c.b16 %v1336, %v1179
  %v1808 = vpack.c.b16 %v1337, %v1180
  %v1809 = vpack.c.b16 %v1338, %v1181
  %v1810 = vpack.c.b16 %v1339, %v1182
  %v1811 = vpack.c.b16 %v1340, %v1183
  %v1812 = vpack.c.b16 %v1341, %v1184
  %v1813 = vpack.c.b16 %v1342, %v1185
  %v1814 = vpack.c.b16 %v1343, %v1186
  %v1815 = vpack.c.b16 %v1344, %v1187
  %v1816 = vpack.c.b16 %v1345, %v1188
  %v1817 = vpack.c.b16 %v1346, %v1189
  %v1818 = vpack.c.b16 %v1347, %v1190
  %v1819 = vpack.c.b16 %v1348, %v1191
  %v1820 = vpack.c.b16 %v1349, %v1192
  %v1821 = vpack.c.b16 %v1350, %v1193
  %v1822 = vpack.c.b16 %v1351, %v1194
  %v1823 = vpack.c.b16 %v1352, %v1195
  %v1824 = vpack.c.b16 %v1353, %v1196
  %v1825 = vpack.c.b16 %v1354, %v1197
  %v1826 = vpack.c.b16 %v1355, %v1198
  %v1827 = vpack.c.b16 %v1356, %v1199
  %v1828 = vpack.c.b16 %v1357, %v1200
  %v1829 = vpack.c.b16 %v1358, %v1201
  %v1830 = vpack.c.b16 %v1359, %v1202
  %v1831 = vpack.c.b16 %v1360, %v1203
  %v1832 = vpack.c.b16 %v1361, %v1204
  %v1833 = vpack.c.b16 %v1362, %v1205
  %v1834 = vpack.c.b16 %v1363, %v1206
  %v1835 = vpack.c.b16 %v1364, %v1207
  %v1836 = vpack.c.b16 %v1365, %v1208
  %v1837 = vpack.c.b16 %v1366, %v1209
  %v1838 = vpack.c.b16 %v1367, %v1210
  %v1839 = vpack.c.b16 %v1368, %v1211
  %v1840 = vpack.c.b16 %v1369, %v1212
  %v1841 = vpack.c.b16 %v1370, %v1213
  %v1842 = vpack.c.b16 %v1371, %v1214
  %v1843 = vpack.c.b16 %v1372, %v1215
  %v1844 = vpack.c.b16 %v1373, %v1216
  %v1845 = vpack.c.b16 %v1374, %v1217
  %v1846 = vpack.c.b16 %v1375, %v1218
  %v1847 = vpack.c.b16 %v1376, %v1219
  %v1848 = vpack.c.b16 %v1377, %v1220
  %v1849 = vpack.c.b16 %v1378, %v1221
  %v1850 = vpack.c.b16 %v1379, %v1222
  %v1851 = vpack.c.b16 %v1380, %v1223
  %v1852 = vpack.c.b16 %v1381, %v1224
  %v1853 = vpack.c.b16 %v1382, %v1225
  %v1854 = vpack.c.b16 %v1383, %v1226
  %v1855 = vpack.c.b16 %v1384, %v1227
  %v1856 = vpack.c.b16 %v1385, %v1228
  %v1857 = vpack.c.b16 %v1386, %v1229
  %v1858 = vpack.c.b16 %v1387, %v1230
  %v1859 = vpack.c.b16 %v1388, %v1231
  %v1860 = vpack.c.b16 %v1389, %v1232
  %v1861 = vpack.c.b16 %v1390, %v1233
  %v1862 = vpack.c.b16 %v1391, %v1234
  %v1863 = vpack.c.b16 %v1392, %v1235
  %v1864 = vpack.c.b16 %v1393, %v1236
  %v1865 = vpack.c.b16 %v1394, %v1237
  %v1866 = vpack.c.b16 %v1395, %v1238
  %v1867 = vpack.c.b16 %v1396, %v1239
  %v1868 = vpack.c.b16 %v1397, %v1240
  %v1869 = vpack.c.b16 %v1398, %v1241
  %v1870 = vpack.c.b16 %v1399, %v1242
  %v1871 = vpack.c.b16 %v1400, %v1243
  %v1872 = vpack.c.b16 %v1401, %v1244
  %v1873 = vpack.c.b16 %v1402, %v1245
  %v1874 = vpack.c.b16 %v1403, %v1246
  %v1875 = vpack.c.b16 %v1404, %v1247
  %v1876 = vpack.c.b16 %v1405, %v1248
  %v1877 = vpack.c.b16 %v1406, %v1249
  %v1878 = vpack.c.b16 %v1407, %v1250
  %v1879 = vpack.c.b16 %v1408, %v1251
  %v1880 = vpack.c.b16 %v1409, %v1252
  %v1881 = vpack.c.b16 %v1410, %v1253
  %v1882 = vpack.c.b16 %v1411, %v1254
  %v1883 = vpack.c.b16 %v1412, %v1255
  %v1884 = vpack.c.b16 %v1413, %v1256
  %v1885 = vpack.c.b16 %v1414, %v1257
  %v1886 = vpack.c.b16 %v1415, %v1258
  %v1887 = vpack.c.b16 %v1416, %v1259
  %v1888 = vpack.c.b16 %v1417, %v1260
  %v1889 = vpack.c.b16 %v1418, %v1261
  %v1890 = vpack.c.b16 %v1419, %v1262
  %v1891 = vpack.c.b16 %v1420, %v1263
  %v1892 = vpack.c.b16 %v1421, %v1264
  %v1893 = vpack.c.b16 %v1422, %v1265
  %v1894 = vpack.c.b16 %v1423, %v1266
  %v1895 = vpack.c.b16 %v1424, %v1267
  %v1896 = vpack.c.b16 %v1425, %v1268
  %v1897 = vpack.c.b16 %v1426, %v1269
  %v1898 = vpack.c.b16 %v1427, %v1270
  %v1899 = vpack.c.b16 %v1428, %v1271
  %v1900 = vpack.c.b16 %v1429, %v1272
  %v1901 = vpack.c.b16 %v1430, %v1273
  %v1902 = vpack.c.b16 %v1431, %v1274
  %v1903 = vpack.c.b16 %v1432, %v1275
  %v1904 = vpack.c.b16 %v1433, %v1276
  %v1905 = vpack.c.b16 %v1434, %v1277
  %v1906 = vpack.c.b16 %v1435, %v1278
  %v1907 = vpack.c.b16 %v1436, %v1279
  %v1908 = vpack.c.b16 %v1437, %v1280
  %v1909 = vpack.c.b16 %v1438, %v1281
  %v1910 = vpack.c.b16 %v1439, %v1282
  %v1911 = vpack.c.b16 %v1440, %v1283
  %v1912 = vpack.c.b16 %v1441, %v1284
  %v1913 = vpack.c.b16 %v1442, %v1285
  %v1914 = vpack.c.b16 %v1443, %v1286
  %v1915 = vpack.c.b16 %v1444, %v1287
  %v1916 = vpack.c.b16 %v1445, %v1288
  %v1917 = vpack.c.b16 %v1446, %v1289
  %v1918 = vpack.c.b16 %v1447, %v1290
  %v1919 = vpack.c.b16 %v1448, %v1291
  %v1920 = vpack.c.b16 %v1449, %v1292
  %v1921 = vpack.c.b16 %v1450, %v1293
  %v1922 = vpack.c.b16 %v1451, %v1294
  %v1923 = vpack.c.b16 %v1452, %v1295
  %v1924 = vpack.c.b16 %v1453, %v1296
  %v1925 = vpack.c.b16 %v1454, %v1297
  %v1926 = vpack.c.b16 %v1455, %v1298
  %v1927 = vpack.c.b16 %v1456, %v1299
  %v1928 = vpack.c.b16 %v1457, %v1300
  %v1929 = vpack.c.b16 %v1458, %v1301
  %v1930 = vpack.c.b16 %v1459, %v1302
  %v1931 = vpack.c.b16 %v1460, %v1303
  %v1932 = vpack.c.b16 %v1461, %v1304
  %v1933 = vpack.c.b16 %v1462, %v1305
  %v1934 = vpack.c.b16 %v1463, %v1306
  %v1935 = vpack.c.b16 %v1464, %v1307
  %v1936 = vpack.c.b16 %v1465, %v1308
  %v1937 = vpack.c.b16 %v1466, %v1309
  %v1938 = vpack.c.b16 %v1467, %v1310
  %v1939 = vpack.c.b16 %v1468, %v1311
  %v1940 = vpack.c.b16 %v1469, %v1312
  %v1941 = vpack.c.b16 %v1470, %v1313
  %v1942 = vpack.c.b16 %v1471, %v1314
  %v1943 = vpack.c.b16 %v1472, %v1315
  %v1944 = vpack.c.b16 %v1473, %v1473
  %v1945 = vpack.c.b16 %v1474, %v1474
  %v1946 = vpack.c.b16 %v1475, %v1475
  %v1947 = vpack.c.b16 %v1476, %v1476
  %v1948 = vpack.c.b16 %v1477, %v1477
  %v1949 = vpack.c.b16 %v1478, %v1478
  %v1950 = vpack.c.b16 %v1479, %v1479
  %v1951 = vpack.c.b16 %v1480, %v1480
  %v1952 = vpack.c.b16 %v1481, %v1481
  %v1953 = vpack.c.b16 %v1482, %v1482
  %v1954 = vpack.c.b16 %v1483, %v1483
  %v1955 = vpack.c.b16 %v1484, %v1484
  %v1956 = vpack.c.b16 %v1485, %v1485
  %v1957 = vpack.c.b16 %v1486, %v1486
  %v1958 = vpack.c.b16 %v1487, %v1487
  %v1959 = vpack.c.b16 %v1488, %v1488
  %v1960 = vpack.c.b16 %v1489, %v1489
  %v1961 = vpack.c.b16 %v1490, %v1490
  %v1962 = vpack.c.b16 %v1491, %v1491
  %v1963 = vpack.c.b16 %v1492, %v1492
  %v1964 = vpack.c.b16 %v1493, %v1493
  %v1965 = vpack.c.b16 %v1494, %v1494
  %v1966 = vpack.c.b16 %v1495, %v1495
  %v1967 = vpack.c.b16 %v1496, %v1496
  %v1968 = vpack.c.b16 %v1497, %v1497
  %v1969 = vpack.c.b16 %v1498, %v1498
  %v1970 = vpack.c.b16 %v1499, %v1499
  %v1971 = vpack.c.b16 %v1500, %v1500
  %v1972 = vpack.c.b16 %v1501, %v1501
  %v1973 = vpack.c.b16 %v1502, %v1502
  %v1974 = vpack.c.b16 %v1503, %v1503
  %v1975 = vpack.c.b16 %v1504, %v1504
  %v1976 = vpack.c.b16 %v1505, %v1505
  %v1977 = vpack.c.b16 %v1506, %v1506
  %v1978 = vpack.c.b16 %v1507, %v1507
  %v1979 = vpack.c.b16 %v1508, %v1508
  %v1980 = vpack.c.b16 %v1509, %v1509
  %v1981 = vpack.c.b16 %v1510, %v1510
  %v1982 = vpack.c.b16 %v1511, %v1511
  %v1983 = vpack.c.b16 %v1512, %v1512
  %v1984 = vpack.c.b16 %v1513, %v1513
  %v1985 = vpack.c.b16 %v1514, %v1514
  %v1986 = vpack.c.b16 %v1515, %v1515
  %v1987 = vpack.c.b16 %v1516, %v1516
  %v1988 = vpack.c.b16 %v1517, %v1517
  %v1989 = vpack.c.b16 %v1518, %v1518
  %v1990 = vpack.c.b16 %v1519, %v1519
  %v1991 = vpack.c.b16 %v1520, %v1520
  %v1992 = vpack.c.b16 %v1521, %v1521
  %v1993 = vpack.c.b16 %v1522, %v1522
  %v1994 = vpack.c.b16 %v1523, %v1523
  %v1995 = vpack.c.b16 %v1524, %v1524
  %v1996 = vpack.c.b16 %v1525, %v1525
  %v1997 = vpack.c.b16 %v1526, %v1526
  %v1998 = vpack.c.b16 %v1527, %v1527
  %v1999 = vpack.c.b16 %v1528, %v1528
  %v2000 = vpack.c.b16 %v1529, %v1529
  %v2001 = vpack.c.b16 %v1530, %v1530
  %v2002 = vpack.c.b16 %v1531, %v1531
  %v2003 = vpack.c.b16 %v1532, %v1532
  %v2004 = vpack.c.b16 %v1533, %v1533
  %v2005 = vpack.c.b16 %v1534, %v1534
  %v2006 = vpack.c.b16 %v1535, %v1535
  %v2007 = vpack.c.b16 %v1536, %v1536
  %v2008 = vpack.c.b16 %v1537, %v1537
  %v2009 = vpack.c.b16 %v1538, %v1538
  %v2010 = vpack.c.b16 %v1539, %v1539
  %v2011 = vpack.c.b16 %v1540, %v1540
  %v2012 = vpack.c.b16 %v1541, %v1541
  %v2013 = vpack.c.b16 %v1542, %v1542
  %v2014 = vpack.c.b16 %v1543, %v1543
  %v2015 = vpack.c.b16 %v1544, %v1544
  %v2016 = vpack.c.b16 %v1545, %v1545
  %v2017 = vpack.c.b16 %v1546, %v1546
  %v2018 = vpack.c.b16 %v1547, %v1547
  %v2019 = vpack.c.b16 %v1548, %v1548
  %v2020 = vpack.c.b16 %v1549, %v1549
  %v2021 = vpack.c.b16 %v1550, %v1550
  %v2022 = vpack.c.b16 %v1551, %v1551
  %v2023 = vpack.c.b16 %v1552, %v1552
  %v2024 = vpack.c.b16 %v1553, %v1553
  %v2025 = vpack.c.b16 %v1554, %v1554
  %v2026 = vpack.c.b16 %v1555, %v1555
  %v2027 = vpack.c.b16 %v1556, %v1556
  %v2028 = vpack.c.b16 %v1557, %v1557
  %v2029 = vpack.c.b16 %v1558, %v1558
  %v2030 = vpack.c.b16 %v1559, %v1559
  %v2031 = vpack.c.b16 %v1560, %v1560
  %v2032 = vpack.c.b16 %v1561, %v1561
  %v2033 = vpack.c.b16 %v1562, %v1562
  %v2034 = vpack.c.b16 %v1563, %v1563
  %v2035 = vpack.c.b16 %v1564, %v1564
  %v2036 = vpack.c.b16 %v1565, %v1565
  %v2037 = vpack.c.b16 %v1566, %v1566
  %v2038 = vpack.c.b16 %v1567, %v1567
  %v2039 = vpack.c.b16 %v1568, %v1568
  %v2040 = vpack.c.b16 %v1569, %v1569
  %v2041 = vpack.c.b16 %v1570, %v1570
  %v2042 = vpack.c.b16 %v1571, %v1571
  %v2043 = vpack.c.b16 %v1572, %v1572
  %v2044 = vpack.c.b16 %v1573, %v1573
  %v2045 = vpack.c.b16 %v1574, %v1574
  %v2046 = vpack.c.b16 %v1575, %v1575
  %v2047 = vpack.c.b16 %v1576, %v1576
  %v2048 = vpack.c.b16 %v1577, %v1577
  %v2049 = vpack.c.b16 %v1578, %v1578
  %v2050 = vpack.c.b16 %v1579, %v1579
  %v2051 = vpack.c.b16 %v1580, %v1580
  %v2052 = vpack.c.b16 %v1581, %v1581
  %v2053 = vpack.c.b16 %v1582, %v1582
  %v2054 = vpack.c.b16 %v1583, %v1583
  %v2055 = vpack.c.b16 %v1584, %v1584
  %v2056 = vpack.c.b16 %v1585, %v1585
  %v2057 = vpack.c.b16 %v1586, %v1586
  %v2058 = vpack.c.b16 %v1587, %v1587
  %v2059 = vpack.c.b16 %v1588, %v1588
  %v2060 = vpack.c.b16 %v1589, %v1589
  %v2061 = vpack.c.b16 %v1590, %v1590
  %v2062 = vpack.c.b16 %v1591, %v1591
  %v2063 = vpack.c.b16 %v1592, %v1592
  %v2064 = vpack.c.b16 %v1593, %v1593
  %v2065 = vpack.c.b16 %v1594, %v1594
  %v2066 = vpack.c.b16 %v1595, %v1595
  %v2067 = vpack.c.b16 %v1596, %v1596
  %v2068 = vpack.c.b16 %v1597, %v1597
  %v2069 = vpack.c.b16 %v1598, %v1598
  %v2070 = vpack.c.b16 %v1599, %v1599
  %v2071 = vpack.c.b16 %v1600, %v1600
  %v2072 = vpack.c.b16 %v1601, %v1601
  %v2073 = vpack.c.b16 %v1602, %v1602
  %v2074 = vpack.c.b16 %v1603, %v1603
  %v2075 = vpack.c.b16 %v1604, %v1604
  %v2076 = vpack.c.b16 %v1605, %v1605
  %v2077 = vpack.c.b16 %v1606, %v1606
  %v2078 = vpack.c.b16 %v1607, %v1607
  %v2079 = vpack.c.b16 %v1608, %v1608
  %v2080 = vpack.c.b16 %v1609, %v1609
  %v2081 = vpack.c.b16 %v1610, %v1610
  %v2082 = vpack.c.b16 %v1611, %v1611
  %v2083 = vpack.c.b16 %v1612, %v1612
  %v2084 = vpack.c.b16 %v1613, %v1613
  %v2085 = vpack.c.b16 %v1614, %v1614
  %v2086 = vpack.c.b16 %v1615, %v1615
  %v2087 = vpack.c.b16 %v1616, %v1616
  %v2088 = vpack.c.b16 %v1617, %v1617
  %v2089 = vpack.c.b16 %v1618, %v1618
  %v2090 = vpack.c.b16 %v1619, %v1619
  %v2091 = vpack.c.b16 %v1620, %v1620
  %v2092 = vpack.c.b16 %v1621, %v1621
  %v2093 = vpack.c.b16 %v1622, %v1622
  %v2094 = vpack.c.b16 %v1623, %v1623
  %v2095 = vpack.c.b16 %v1624, %v1624
  %v2096 = vpack.c.b16 %v1625, %v1625
  %v2097 = vpack.c.b16 %v1626, %v1626
  %v2098 = vpack.c.b16 %v1627, %v1627
  %v2099 = vpack.c.b16 %v1628, %v1628
  %v2100 = vpack.c.b16 %v1629, %v1629
  %vm2415 = vcmask 293888
  %v2417 = vsel %vm2415, %v446, 0
  %v2420 = vsel %vm2415, %v447, 0
  %v2423 = vsel %vm2415, %v448, 0
  %v2426 = vsel %vm2415, %v449, 0
  %vm2428 = vcmask 1041408
  %v2430 = vsel %vm2428, %v1944, 0
  %v2433 = vsel %vm2428, %v1945, 0
  %v2436 = vsel %vm2428, %v1946, 0
  %v2439 = vsel %vm2428, %v1947, 0
  %v2442 = vsel %vm2428, %v1948, 0
  %v2445 = vsel %vm2428, %v1949, 0
  %v2448 = vsel %vm2428, %v1950, 0
  %v2451 = vsel %vm2428, %v1951, 0
  %v2454 = vsel %vm2428, %v1952, 0
  %v2457 = vsel %vm2428, %v1953, 0
  %v2460 = vsel %vm2428, %v1954, 0
  %v2463 = vsel %vm2428, %v1955, 0
  %v2466 = vsel %vm2428, %v1956, 0
  %v2469 = vsel %vm2428, %v1957, 0
  %v2472 = vsel %vm2428, %v1958, 0
  %v2475 = vsel %vm2428, %v1959, 0
  %v2478 = vsel %vm2428, %v1960, 0
  %v2481 = vsel %vm2428, %v1961, 0
  %v2484 = vsel %vm2428, %v1962, 0
  %v2487 = vsel %vm2428, %v1963, 0
  %v2490 = vsel %vm2428, %v1964, 0
  %v2493 = vsel %vm2428, %v1965, 0
  %v2496 = vsel %vm2428, %v1966, 0
  %v2499 = vsel %vm2428, %v1967, 0
  %v2502 = vsel %vm2428, %v1968, 0
  %v2505 = vsel %vm2428, %v1969, 0
  %v2508 = vsel %vm2428, %v1970, 0
  %v2511 = vsel %vm2428, %v1971, 0
  %v2514 = vsel %vm2428, %v1972, 0
  %v2517 = vsel %vm2428, %v1973, 0
  %v2520 = vsel %vm2428, %v1974, 0
  %v2523 = vsel %vm2428, %v1975, 0
  %v2526 = vsel %vm2428, %v1976, 0
  %v2529 = vsel %vm2428, %v1977, 0
  %v2532 = vsel %vm2428, %v1978, 0
  %v2535 = vsel %vm2428, %v1979, 0
  %v2538 = vsel %vm2428, %v1980, 0
  %v2541 = vsel %vm2428, %v1981, 0
  %v2544 = vsel %vm2428, %v1982, 0
  %v2547 = vsel %vm2428, %v1983, 0
  %v2550 = vsel %vm2428, %v1984, 0
  %v2553 = vsel %vm2428, %v1985, 0
  %v2556 = vsel %vm2428, %v1986, 0
  %v2559 = vsel %vm2428, %v1987, 0
  %v2562 = vsel %vm2428, %v1988, 0
  %v2565 = vsel %vm2428, %v1989, 0
  %v2568 = vsel %vm2428, %v1990, 0
  %v2571 = vsel %vm2428, %v1991, 0
  %v2574 = vsel %vm2428, %v1992, 0
  %v2577 = vsel %vm2428, %v1993, 0
  %v2580 = vsel %vm2428, %v1994, 0
  %v2583 = vsel %vm2428, %v1995, 0
  %v2586 = vsel %vm2428, %v1996, 0
  %v2589 = vsel %vm2428, %v1997, 0
  %v2592 = vsel %vm2428, %v1998, 0
  %v2595 = vsel %vm2428, %v1999, 0
  %v2598 = vsel %vm2428, %v2000, 0
  %v2601 = vsel %vm2428, %v2001, 0
  %v2604 = vsel %vm2428, %v2002, 0
  %v2607 = vsel %vm2428, %v2003, 0
  %v2610 = vsel %vm2428, %v2004, 0
  %v2613 = vsel %vm2428, %v2005, 0
  %v2616 = vsel %vm2428, %v2006, 0
  %v2619 = vsel %vm2428, %v2007, 0
  %v2622 = vsel %vm2428, %v2008, 0
  %v2625 = vsel %vm2428, %v2009, 0
  %v2628 = vsel %vm2428, %v2010, 0
  %v2631 = vsel %vm2428, %v2011, 0
  %v2634 = vsel %vm2428, %v2012, 0
  %v2637 = vsel %vm2428, %v2013, 0
  %v2640 = vsel %vm2428, %v2014, 0
  %v2643 = vsel %vm2428, %v2015, 0
  %v2646 = vsel %vm2428, %v2016, 0
  %v2649 = vsel %vm2428, %v2017, 0
  %v2652 = vsel %vm2428, %v2018, 0
  %v2655 = vsel %vm2428, %v2019, 0
  %v2658 = vsel %vm2428, %v2020, 0
  %v2661 = vsel %vm2428, %v2021, 0
  %v2664 = vsel %vm2428, %v2022, 0
  %v2667 = vsel %vm2428, %v2023, 0
  %v2670 = vsel %vm2428, %v2024, 0
  %v2673 = vsel %vm2428, %v2025, 0
  %v2676 = vsel %vm2428, %v2026, 0
  %v2679 = vsel %vm2428, %v2027, 0
  %v2682 = vsel %vm2428, %v2028, 0
  %v2685 = vsel %vm2428, %v2029, 0
  %v2688 = vsel %vm2428, %v2030, 0
  %v2691 = vsel %vm2428, %v2031, 0
  %v2694 = vsel %vm2428, %v2032, 0
  %v2697 = vsel %vm2428, %v2033, 0
  %v2700 = vsel %vm2428, %v2034, 0
  %v2703 = vsel %vm2428, %v2035, 0
  %v2706 = vsel %vm2428, %v2036, 0
  %v2709 = vsel %vm2428, %v2037, 0
  %v2712 = vsel %vm2428, %v2038, 0
  %v2715 = vsel %vm2428, %v2039, 0
  %v2718 = vsel %vm2428, %v2040, 0
  %v2721 = vsel %vm2428, %v2041, 0
  %v2724 = vsel %vm2428, %v2042, 0
  %v2727 = vsel %vm2428, %v2043, 0
  %v2730 = vsel %vm2428, %v2044, 0
  %v2733 = vsel %vm2428, %v2045, 0
  %v2736 = vsel %vm2428, %v2046, 0
  %v2739 = vsel %vm2428, %v2047, 0
  %v2742 = vsel %vm2428, %v2048, 0
  %v2745 = vsel %vm2428, %v2049, 0
  %v2748 = vsel %vm2428, %v2050, 0
  %v2751 = vsel %vm2428, %v2051, 0
  %v2754 = vsel %vm2428, %v2052, 0
  %v2757 = vsel %vm2428, %v2053, 0
  %v2760 = vsel %vm2428, %v2054, 0
  %v2763 = vsel %vm2428, %v2055, 0
  %v2766 = vsel %vm2428, %v2056, 0
  %v2769 = vsel %vm2428, %v2057, 0
  %v2772 = vsel %vm2428, %v2058, 0
  %v2775 = vsel %vm2428, %v2059, 0
  %v2778 = vsel %vm2428, %v2060, 0
  %v2781 = vsel %vm2428, %v2061, 0
  %v2784 = vsel %vm2428, %v2062, 0
  %v2787 = vsel %vm2428, %v2063, 0
  %v2790 = vsel %vm2428, %v2064, 0
  %v2793 = vsel %vm2428, %v2065, 0
  %v2796 = vsel %vm2428, %v2066, 0
  %v2799 = vsel %vm2428, %v2067, 0
  %v2802 = vsel %vm2428, %v2068, 0
  %v2805 = vsel %vm2428, %v2069, 0
  %v2808 = vsel %vm2428, %v2070, 0
  %v2811 = vsel %vm2428, %v2071, 0
  %v2814 = vsel %vm2428, %v2072, 0
  %v2817 = vsel %vm2428, %v2073, 0
  %v2820 = vsel %vm2428, %v2074, 0
  %v2823 = vsel %vm2428, %v2075, 0
  %v2826 = vsel %vm2428, %v2076, 0
  %v2829 = vsel %vm2428, %v2077, 0
  %v2832 = vsel %vm2428, %v2078, 0
  %v2835 = vsel %vm2428, %v2079, 0
  %v2838 = vsel %vm2428, %v2080, 0
  %v2841 = vsel %vm2428, %v2081, 0
  %v2844 = vsel %vm2428, %v2082, 0
  %v2847 = vsel %vm2428, %v2083, 0
  %v2850 = vsel %vm2428, %v2084, 0
  %v2853 = vsel %vm2428, %v2085, 0
  %v2856 = vsel %vm2428, %v2086, 0
  %v2859 = vsel %vm2428, %v2087, 0
  %v2862 = vsel %vm2428, %v2088, 0
  %v2865 = vsel %vm2428, %v2089, 0
  %v2868 = vsel %vm2428, %v2090, 0
  %v2871 = vsel %vm2428, %v2091, 0
  %v2874 = vsel %vm2428, %v2092, 0
  %v2877 = vsel %vm2428, %v2093, 0
  %v2880 = vsel %vm2428, %v2094, 0
  %v2883 = vsel %vm2428, %v2095, 0
  %v2886 = vsel %vm2428, %v2096, 0
  %v2889 = vsel %vm2428, %v2097, 0
  %v2892 = vsel %vm2428, %v2098, 0
  %v2895 = vsel %vm2428, %v2099, 0
  %v2898 = vsel %vm2428, %v2100, 0
  %2900 = vmatpush.bf16.msra.mxu0 0
  %2901 = vmatpush.bf16.msra.mxu0 0
  %2902 = vmatpush.bf16.msra.mxu0 0
  %2903 = vmatpush.bf16.msra.mxu0 0
  %2904 = vmatpush.bf16.msra.mxu0 0
  %2905 = vmatpush.bf16.msra.mxu0 %v2430
  %2906 = vmatpush.bf16.msra.mxu0 %v1787
  %2907 = vmatpush.bf16.msra.mxu0 %v1630
  %2908 = vmatmul.bf16.gmra.mxu0 %v2417
  %v2909 = vpop.f32.mrf.mxu0
  %v2910 = vadd.f32 0.0, %v2909
  %v2911 = vpop.f32.mrf.mxu0
  %v2912 = vadd.f32 0.0, %v2911
  %2913 = vmatmul.bf16.gmra.mxu0 %v2420
  %v2914 = vpop.f32.mrf.mxu0
  %v2915 = vadd.f32 0.0, %v2914
  %v2916 = vpop.f32.mrf.mxu0
  %v2917 = vadd.f32 0.0, %v2916
  %2918 = vmatmul.bf16.gmra.mxu0 %v2423
  %v2919 = vpop.f32.mrf.mxu0
  %v2920 = vadd.f32 0.0, %v2919
  %v2921 = vpop.f32.mrf.mxu0
  %v2922 = vadd.f32 0.0, %v2921
  %2923 = vmatmul.bf16.gmra.mxu0 %v2426
  %v2924 = vpop.f32.mrf.mxu0
  %v2925 = vadd.f32 0.0, %v2924
  %v2926 = vpop.f32.mrf.mxu0
  %v2927 = vadd.f32 0.0, %v2926
  %2928 = vdwg.mxu0
  %2929 = vmatpush.bf16.msra.mxu0 0
  %2930 = vmatpush.bf16.msra.mxu0 0
  %2931 = vmatpush.bf16.msra.mxu0 0
  %2932 = vmatpush.bf16.msra.mxu0 0
  %2933 = vmatpush.bf16.msra.mxu0 0
  %2934 = vmatpush.bf16.msra.mxu0 %v2433
  %2935 = vmatpush.bf16.msra.mxu0 %v1788
  %2936 = vmatpush.bf16.msra.mxu0 %v1631
  %2937 = vmatmul.bf16.gmra.mxu0 %v2417
  %v2938 = vpop.f32.mrf.mxu0
  %v2939 = vadd.f32 0.0, %v2938
  %v2940 = vpop.f32.mrf.mxu0
  %v2941 = vadd.f32 0.0, %v2940
  %2942 = vmatmul.bf16.gmra.mxu0 %v2420
  %v2943 = vpop.f32.mrf.mxu0
  %v2944 = vadd.f32 0.0, %v2943
  %v2945 = vpop.f32.mrf.mxu0
  %v2946 = vadd.f32 0.0, %v2945
  %2947 = vmatmul.bf16.gmra.mxu0 %v2423
  %v2948 = vpop.f32.mrf.mxu0
  %v2949 = vadd.f32 0.0, %v2948
  %v2950 = vpop.f32.mrf.mxu0
  %v2951 = vadd.f32 0.0, %v2950
  %2952 = vmatmul.bf16.gmra.mxu0 %v2426
  %v2953 = vpop.f32.mrf.mxu0
  %v2954 = vadd.f32 0.0, %v2953
  %v2955 = vpop.f32.mrf.mxu0
  %v2956 = vadd.f32 0.0, %v2955
  %2957 = vdwg.mxu0
  %2958 = vmatpush.bf16.msra.mxu0 0
  %2959 = vmatpush.bf16.msra.mxu0 0
  %2960 = vmatpush.bf16.msra.mxu0 0
  %2961 = vmatpush.bf16.msra.mxu0 0
  %2962 = vmatpush.bf16.msra.mxu0 0
  %2963 = vmatpush.bf16.msra.mxu0 %v2436
  %2964 = vmatpush.bf16.msra.mxu0 %v1789
  %2965 = vmatpush.bf16.msra.mxu0 %v1632
  %2966 = vmatmul.bf16.gmra.mxu0 %v2417
  %v2967 = vpop.f32.mrf.mxu0
  %v2968 = vadd.f32 0.0, %v2967
  %v2969 = vpop.f32.mrf.mxu0
  %v2970 = vadd.f32 0.0, %v2969
  %2971 = vmatmul.bf16.gmra.mxu0 %v2420
  %v2972 = vpop.f32.mrf.mxu0
  %v2973 = vadd.f32 0.0, %v2972
  %v2974 = vpop.f32.mrf.mxu0
  %v2975 = vadd.f32 0.0, %v2974
  %2976 = vmatmul.bf16.gmra.mxu0 %v2423
  %v2977 = vpop.f32.mrf.mxu0
  %v2978 = vadd.f32 0.0, %v2977
  %v2979 = vpop.f32.mrf.mxu0
  %v2980 = vadd.f32 0.0, %v2979
  %2981 = vmatmul.bf16.gmra.mxu0 %v2426
  %v2982 = vpop.f32.mrf.mxu0
  %v2983 = vadd.f32 0.0, %v2982
  %v2984 = vpop.f32.mrf.mxu0
  %v2985 = vadd.f32 0.0, %v2984
  %2986 = vdwg.mxu0
  %2987 = vmatpush.bf16.msra.mxu0 0
  %2988 = vmatpush.bf16.msra.mxu0 0
  %2989 = vmatpush.bf16.msra.mxu0 0
  %2990 = vmatpush.bf16.msra.mxu0 0
  %2991 = vmatpush.bf16.msra.mxu0 0
  %2992 = vmatpush.bf16.msra.mxu0 %v2439
  %2993 = vmatpush.bf16.msra.mxu0 %v1790
  %2994 = vmatpush.bf16.msra.mxu0 %v1633
  %2995 = vmatmul.bf16.gmra.mxu0 %v2417
  %v2996 = vpop.f32.mrf.mxu0
  %v2997 = vadd.f32 0.0, %v2996
  %v2998 = vpop.f32.mrf.mxu0
  %v2999 = vadd.f32 0.0, %v2998
  %3000 = vmatmul.bf16.gmra.mxu0 %v2420
  %v3001 = vpop.f32.mrf.mxu0
  %v3002 = vadd.f32 0.0, %v3001
  %v3003 = vpop.f32.mrf.mxu0
  %v3004 = vadd.f32 0.0, %v3003
  %3005 = vmatmul.bf16.gmra.mxu0 %v2423
  %v3006 = vpop.f32.mrf.mxu0
  %v3007 = vadd.f32 0.0, %v3006
  %v3008 = vpop.f32.mrf.mxu0
  %v3009 = vadd.f32 0.0, %v3008
  %3010 = vmatmul.bf16.gmra.mxu0 %v2426
  %v3011 = vpop.f32.mrf.mxu0
  %v3012 = vadd.f32 0.0, %v3011
  %v3013 = vpop.f32.mrf.mxu0
  %v3014 = vadd.f32 0.0, %v3013
  %3015 = vdwg.mxu0
  %3016 = vmatpush.bf16.msra.mxu0 0
  %3017 = vmatpush.bf16.msra.mxu0 0
  %3018 = vmatpush.bf16.msra.mxu0 0
  %3019 = vmatpush.bf16.msra.mxu0 0
  %3020 = vmatpush.bf16.msra.mxu0 0
  %3021 = vmatpush.bf16.msra.mxu0 %v2442
  %3022 = vmatpush.bf16.msra.mxu0 %v1791
  %3023 = vmatpush.bf16.msra.mxu0 %v1634
  %3024 = vmatmul.bf16.gmra.mxu0 %v2417
  %v3025 = vpop.f32.mrf.mxu0
  %v3026 = vadd.f32 0.0, %v3025
  %v3027 = vpop.f32.mrf.mxu0
  %v3028 = vadd.f32 0.0, %v3027
  %3029 = vmatmul.bf16.gmra.mxu0 %v2420
  %v3030 = vpop.f32.mrf.mxu0
  %v3031 = vadd.f32 0.0, %v3030
  %v3032 = vpop.f32.mrf.mxu0
  %v3033 = vadd.f32 0.0, %v3032
  %3034 = vmatmul.bf16.gmra.mxu0 %v2423
  %v3035 = vpop.f32.mrf.mxu0
  %v3036 = vadd.f32 0.0, %v3035
  %v3037 = vpop.f32.mrf.mxu0
  %v3038 = vadd.f32 0.0, %v3037
  %3039 = vmatmul.bf16.gmra.mxu0 %v2426
  %v3040 = vpop.f32.mrf.mxu0
  %v3041 = vadd.f32 0.0, %v3040
  %v3042 = vpop.f32.mrf.mxu0
  %v3043 = vadd.f32 0.0, %v3042
  %3044 = vdwg.mxu0
  %3045 = vmatpush.bf16.msra.mxu0 0
  %3046 = vmatpush.bf16.msra.mxu0 0
  %3047 = vmatpush.bf16.msra.mxu0 0
  %3048 = vmatpush.bf16.msra.mxu0 0
  %3049 = vmatpush.bf16.msra.mxu0 0
  %3050 = vmatpush.bf16.msra.mxu0 %v2445
  %3051 = vmatpush.bf16.msra.mxu0 %v1792
  %3052 = vmatpush.bf16.msra.mxu0 %v1635
  %3053 = vmatmul.bf16.gmra.mxu0 %v2417
  %v3054 = vpop.f32.mrf.mxu0
  %v3055 = vadd.f32 0.0, %v3054
  %v3056 = vpop.f32.mrf.mxu0
  %v3057 = vadd.f32 0.0, %v3056
  %3058 = vmatmul.bf16.gmra.mxu0 %v2420
  %v3059 = vpop.f32.mrf.mxu0
  %v3060 = vadd.f32 0.0, %v3059
  %v3061 = vpop.f32.mrf.mxu0
  %v3062 = vadd.f32 0.0, %v3061
  %3063 = vmatmul.bf16.gmra.mxu0 %v2423
  %v3064 = vpop.f32.mrf.mxu0
  %v3065 = vadd.f32 0.0, %v3064
  %v3066 = vpop.f32.mrf.mxu0
  %v3067 = vadd.f32 0.0, %v3066
  %3068 = vmatmul.bf16.gmra.mxu0 %v2426
  %v3069 = vpop.f32.mrf.mxu0
  %v3070 = vadd.f32 0.0, %v3069
  %v3071 = vpop.f32.mrf.mxu0
  %v3072 = vadd.f32 0.0, %v3071
  %3073 = vdwg.mxu0
  %3074 = vmatpush.bf16.msra.mxu0 0
  %3075 = vmatpush.bf16.msra.mxu0 0
  %3076 = vmatpush.bf16.msra.mxu0 0
  %3077 = vmatpush.bf16.msra.mxu0 0
  %3078 = vmatpush.bf16.msra.mxu0 0
  %3079 = vmatpush.bf16.msra.mxu0 %v2448
  %3080 = vmatpush.bf16.msra.mxu0 %v1793
  %3081 = vmatpush.bf16.msra.mxu0 %v1636
  %3082 = vmatmul.bf16.gmra.mxu0 %v2417
  %v3083 = vpop.f32.mrf.mxu0
  %v3084 = vadd.f32 0.0, %v3083
  %v3085 = vpop.f32.mrf.mxu0
  %v3086 = vadd.f32 0.0, %v3085
  %3087 = vmatmul.bf16.gmra.mxu0 %v2420
  %v3088 = vpop.f32.mrf.mxu0
  %v3089 = vadd.f32 0.0, %v3088
  %v3090 = vpop.f32.mrf.mxu0
  %v3091 = vadd.f32 0.0, %v3090
  %3092 = vmatmul.bf16.gmra.mxu0 %v2423
  %v3093 = vpop.f32.mrf.mxu0
  %v3094 = vadd.f32 0.0, %v3093
  %v3095 = vpop.f32.mrf.mxu0
  %v3096 = vadd.f32 0.0, %v3095
  %3097 = vmatmul.bf16.gmra.mxu0 %v2426
  %v3098 = vpop.f32.mrf.mxu0
  %v3099 = vadd.f32 0.0, %v3098
  %v3100 = vpop.f32.mrf.mxu0
  %v3101 = vadd.f32 0.0, %v3100
  %3102 = vdwg.mxu0
  %3103 = vmatpush.bf16.msra.mxu0 0
  %3104 = vmatpush.bf16.msra.mxu0 0
  %3105 = vmatpush.bf16.msra.mxu0 0
  %3106 = vmatpush.bf16.msra.mxu0 0
  %3107 = vmatpush.bf16.msra.mxu0 0
  %3108 = vmatpush.bf16.msra.mxu0 %v2451
  %3109 = vmatpush.bf16.msra.mxu0 %v1794
  %3110 = vmatpush.bf16.msra.mxu0 %v1637
  %3111 = vmatmul.bf16.gmra.mxu0 %v2417
  %v3112 = vpop.f32.mrf.mxu0
  %v3113 = vadd.f32 0.0, %v3112
  %v3114 = vpop.f32.mrf.mxu0
  %v3115 = vadd.f32 0.0, %v3114
  %3116 = vmatmul.bf16.gmra.mxu0 %v2420
  %v3117 = vpop.f32.mrf.mxu0
  %v3118 = vadd.f32 0.0, %v3117
  %v3119 = vpop.f32.mrf.mxu0
  %v3120 = vadd.f32 0.0, %v3119
  %3121 = vmatmul.bf16.gmra.mxu0 %v2423
  %v3122 = vpop.f32.mrf.mxu0
  %v3123 = vadd.f32 0.0, %v3122
  %v3124 = vpop.f32.mrf.mxu0
  %v3125 = vadd.f32 0.0, %v3124
  %3126 = vmatmul.bf16.gmra.mxu0 %v2426
  %v3127 = vpop.f32.mrf.mxu0
  %v3128 = vadd.f32 0.0, %v3127
  %v3129 = vpop.f32.mrf.mxu0
  %v3130 = vadd.f32 0.0, %v3129
  %3131 = vdwg.mxu0
  %3132 = vmatpush.bf16.msra.mxu0 0
  %3133 = vmatpush.bf16.msra.mxu0 0
  %3134 = vmatpush.bf16.msra.mxu0 0
  %3135 = vmatpush.bf16.msra.mxu0 0
  %3136 = vmatpush.bf16.msra.mxu0 0
  %3137 = vmatpush.bf16.msra.mxu0 %v2454
  %3138 = vmatpush.bf16.msra.mxu0 %v1795
  %3139 = vmatpush.bf16.msra.mxu0 %v1638
  %3140 = vmatmul.bf16.gmra.mxu0 %v2417
  %v3141 = vpop.f32.mrf.mxu0
  %v3142 = vadd.f32 0.0, %v3141
  %v3143 = vpop.f32.mrf.mxu0
  %v3144 = vadd.f32 0.0, %v3143
  %3145 = vmatmul.bf16.gmra.mxu0 %v2420
  %v3146 = vpop.f32.mrf.mxu0
  %v3147 = vadd.f32 0.0, %v3146
  %v3148 = vpop.f32.mrf.mxu0
  %v3149 = vadd.f32 0.0, %v3148
  %3150 = vmatmul.bf16.gmra.mxu0 %v2423
  %v3151 = vpop.f32.mrf.mxu0
  %v3152 = vadd.f32 0.0, %v3151
  %v3153 = vpop.f32.mrf.mxu0
  %v3154 = vadd.f32 0.0, %v3153
  %3155 = vmatmul.bf16.gmra.mxu0 %v2426
  %v3156 = vpop.f32.mrf.mxu0
  %v3157 = vadd.f32 0.0, %v3156
  %v3158 = vpop.f32.mrf.mxu0
  %v3159 = vadd.f32 0.0, %v3158
  %3160 = vdwg.mxu0
  %3161 = vmatpush.bf16.msra.mxu0 0
  %3162 = vmatpush.bf16.msra.mxu0 0
  %3163 = vmatpush.bf16.msra.mxu0 0
  %3164 = vmatpush.bf16.msra.mxu0 0
  %3165 = vmatpush.bf16.msra.mxu0 0
  %3166 = vmatpush.bf16.msra.mxu0 %v2457
  %3167 = vmatpush.bf16.msra.mxu0 %v1796
  %3168 = vmatpush.bf16.msra.mxu0 %v1639
  %3169 = vmatmul.bf16.gmra.mxu0 %v2417
  %v3170 = vpop.f32.mrf.mxu0
  %v3171 = vadd.f32 0.0, %v3170
  %v3172 = vpop.f32.mrf.mxu0
  %v3173 = vadd.f32 0.0, %v3172
  %3174 = vmatmul.bf16.gmra.mxu0 %v2420
  %v3175 = vpop.f32.mrf.mxu0
  %v3176 = vadd.f32 0.0, %v3175
  %v3177 = vpop.f32.mrf.mxu0
  %v3178 = vadd.f32 0.0, %v3177
  %3179 = vmatmul.bf16.gmra.mxu0 %v2423
  %v3180 = vpop.f32.mrf.mxu0
  %v3181 = vadd.f32 0.0, %v3180
  %v3182 = vpop.f32.mrf.mxu0
  %v3183 = vadd.f32 0.0, %v3182
  %3184 = vmatmul.bf16.gmra.mxu0 %v2426
  %v3185 = vpop.f32.mrf.mxu0
  %v3186 = vadd.f32 0.0, %v3185
  %v3187 = vpop.f32.mrf.mxu0
  %v3188 = vadd.f32 0.0, %v3187
  %3189 = vdwg.mxu0
  %3190 = vmatpush.bf16.msra.mxu0 0
  %3191 = vmatpush.bf16.msra.mxu0 0
  %3192 = vmatpush.bf16.msra.mxu0 0
  %3193 = vmatpush.bf16.msra.mxu0 0
  %3194 = vmatpush.bf16.msra.mxu0 0
  %3195 = vmatpush.bf16.msra.mxu0 %v2460
  %3196 = vmatpush.bf16.msra.mxu0 %v1797
  %3197 = vmatpush.bf16.msra.mxu0 %v1640
  %3198 = vmatmul.bf16.gmra.mxu0 %v2417
  %v3199 = vpop.f32.mrf.mxu0
  %v3200 = vadd.f32 0.0, %v3199
  %v3201 = vpop.f32.mrf.mxu0
  %v3202 = vadd.f32 0.0, %v3201
  %3203 = vmatmul.bf16.gmra.mxu0 %v2420
  %v3204 = vpop.f32.mrf.mxu0
  %v3205 = vadd.f32 0.0, %v3204
  %v3206 = vpop.f32.mrf.mxu0
  %v3207 = vadd.f32 0.0, %v3206
  %3208 = vmatmul.bf16.gmra.mxu0 %v2423
  %v3209 = vpop.f32.mrf.mxu0
  %v3210 = vadd.f32 0.0, %v3209
  %v3211 = vpop.f32.mrf.mxu0
  %v3212 = vadd.f32 0.0, %v3211
  %3213 = vmatmul.bf16.gmra.mxu0 %v2426
  %v3214 = vpop.f32.mrf.mxu0
  %v3215 = vadd.f32 0.0, %v3214
  %v3216 = vpop.f32.mrf.mxu0
  %v3217 = vadd.f32 0.0, %v3216
  %3218 = vdwg.mxu0
  %3219 = vmatpush.bf16.msra.mxu0 0
  %3220 = vmatpush.bf16.msra.mxu0 0
  %3221 = vmatpush.bf16.msra.mxu0 0
  %3222 = vmatpush.bf16.msra.mxu0 0
  %3223 = vmatpush.bf16.msra.mxu0 0
  %3224 = vmatpush.bf16.msra.mxu0 %v2463
  %3225 = vmatpush.bf16.msra.mxu0 %v1798
  %3226 = vmatpush.bf16.msra.mxu0 %v1641
  %3227 = vmatmul.bf16.gmra.mxu0 %v2417
  %v3228 = vpop.f32.mrf.mxu0
  %v3229 = vadd.f32 0.0, %v3228
  %v3230 = vpop.f32.mrf.mxu0
  %v3231 = vadd.f32 0.0, %v3230
  %3232 = vmatmul.bf16.gmra.mxu0 %v2420
  %v3233 = vpop.f32.mrf.mxu0
  %v3234 = vadd.f32 0.0, %v3233
  %v3235 = vpop.f32.mrf.mxu0
  %v3236 = vadd.f32 0.0, %v3235
  %3237 = vmatmul.bf16.gmra.mxu0 %v2423
  %v3238 = vpop.f32.mrf.mxu0
  %v3239 = vadd.f32 0.0, %v3238
  %v3240 = vpop.f32.mrf.mxu0
  %v3241 = vadd.f32 0.0, %v3240
  %3242 = vmatmul.bf16.gmra.mxu0 %v2426
  %v3243 = vpop.f32.mrf.mxu0
  %v3244 = vadd.f32 0.0, %v3243
  %v3245 = vpop.f32.mrf.mxu0
  %v3246 = vadd.f32 0.0, %v3245
  %3247 = vdwg.mxu0
  %3248 = vmatpush.bf16.msra.mxu0 0
  %3249 = vmatpush.bf16.msra.mxu0 0
  %3250 = vmatpush.bf16.msra.mxu0 0
  %3251 = vmatpush.bf16.msra.mxu0 0
  %3252 = vmatpush.bf16.msra.mxu0 0
  %3253 = vmatpush.bf16.msra.mxu0 %v2466
  %3254 = vmatpush.bf16.msra.mxu0 %v1799
  %3255 = vmatpush.bf16.msra.mxu0 %v1642
  %3256 = vmatmul.bf16.gmra.mxu0 %v2417
  %v3257 = vpop.f32.mrf.mxu0
  %v3258 = vadd.f32 0.0, %v3257
  %v3259 = vpop.f32.mrf.mxu0
  %v3260 = vadd.f32 0.0, %v3259
  %3261 = vmatmul.bf16.gmra.mxu0 %v2420
  %v3262 = vpop.f32.mrf.mxu0
  %v3263 = vadd.f32 0.0, %v3262
  %v3264 = vpop.f32.mrf.mxu0
  %v3265 = vadd.f32 0.0, %v3264
  %3266 = vmatmul.bf16.gmra.mxu0 %v2423
  %v3267 = vpop.f32.mrf.mxu0
  %v3268 = vadd.f32 0.0, %v3267
  %v3269 = vpop.f32.mrf.mxu0
  %v3270 = vadd.f32 0.0, %v3269
  %3271 = vmatmul.bf16.gmra.mxu0 %v2426
  %v3272 = vpop.f32.mrf.mxu0
  %v3273 = vadd.f32 0.0, %v3272
  %v3274 = vpop.f32.mrf.mxu0
  %v3275 = vadd.f32 0.0, %v3274
  %3276 = vdwg.mxu0
  %3277 = vmatpush.bf16.msra.mxu0 0
  %3278 = vmatpush.bf16.msra.mxu0 0
  %3279 = vmatpush.bf16.msra.mxu0 0
  %3280 = vmatpush.bf16.msra.mxu0 0
  %3281 = vmatpush.bf16.msra.mxu0 0
  %3282 = vmatpush.bf16.msra.mxu0 %v2469
  %3283 = vmatpush.bf16.msra.mxu0 %v1800
  %3284 = vmatpush.bf16.msra.mxu0 %v1643
  %3285 = vmatmul.bf16.gmra.mxu0 %v2417
  %v3286 = vpop.f32.mrf.mxu0
  %v3287 = vadd.f32 0.0, %v3286
  %v3288 = vpop.f32.mrf.mxu0
  %v3289 = vadd.f32 0.0, %v3288
  %3290 = vmatmul.bf16.gmra.mxu0 %v2420
  %v3291 = vpop.f32.mrf.mxu0
  %v3292 = vadd.f32 0.0, %v3291
  %v3293 = vpop.f32.mrf.mxu0
  %v3294 = vadd.f32 0.0, %v3293
  %3295 = vmatmul.bf16.gmra.mxu0 %v2423
  %v3296 = vpop.f32.mrf.mxu0
  %v3297 = vadd.f32 0.0, %v3296
  %v3298 = vpop.f32.mrf.mxu0
  %v3299 = vadd.f32 0.0, %v3298
  %3300 = vmatmul.bf16.gmra.mxu0 %v2426
  %v3301 = vpop.f32.mrf.mxu0
  %v3302 = vadd.f32 0.0, %v3301
  %v3303 = vpop.f32.mrf.mxu0
  %v3304 = vadd.f32 0.0, %v3303
  %3305 = vdwg.mxu0
  %3306 = vmatpush.bf16.msra.mxu0 0
  %3307 = vmatpush.bf16.msra.mxu0 0
  %3308 = vmatpush.bf16.msra.mxu0 0
  %3309 = vmatpush.bf16.msra.mxu0 0
  %3310 = vmatpush.bf16.msra.mxu0 0
  %3311 = vmatpush.bf16.msra.mxu0 %v2472
  %3312 = vmatpush.bf16.msra.mxu0 %v1801
  %3313 = vmatpush.bf16.msra.mxu0 %v1644
  %3314 = vmatmul.bf16.gmra.mxu0 %v2417
  %v3315 = vpop.f32.mrf.mxu0
  %v3316 = vadd.f32 0.0, %v3315
  %v3317 = vpop.f32.mrf.mxu0
  %v3318 = vadd.f32 0.0, %v3317
  %3319 = vmatmul.bf16.gmra.mxu0 %v2420
  %v3320 = vpop.f32.mrf.mxu0
  %v3321 = vadd.f32 0.0, %v3320
  %v3322 = vpop.f32.mrf.mxu0
  %v3323 = vadd.f32 0.0, %v3322
  %3324 = vmatmul.bf16.gmra.mxu0 %v2423
  %v3325 = vpop.f32.mrf.mxu0
  %v3326 = vadd.f32 0.0, %v3325
  %v3327 = vpop.f32.mrf.mxu0
  %v3328 = vadd.f32 0.0, %v3327
  %3329 = vmatmul.bf16.gmra.mxu0 %v2426
  %v3330 = vpop.f32.mrf.mxu0
  %v3331 = vadd.f32 0.0, %v3330
  %v3332 = vpop.f32.mrf.mxu0
  %v3333 = vadd.f32 0.0, %v3332
  %3334 = vdwg.mxu0
  %3335 = vmatpush.bf16.msra.mxu0 0
  %3336 = vmatpush.bf16.msra.mxu0 0
  %3337 = vmatpush.bf16.msra.mxu0 0
  %3338 = vmatpush.bf16.msra.mxu0 0
  %3339 = vmatpush.bf16.msra.mxu0 0
  %3340 = vmatpush.bf16.msra.mxu0 %v2475
  %3341 = vmatpush.bf16.msra.mxu0 %v1802
  %3342 = vmatpush.bf16.msra.mxu0 %v1645
  %3343 = vmatmul.bf16.gmra.mxu0 %v2417
  %v3344 = vpop.f32.mrf.mxu0
  %v3345 = vadd.f32 0.0, %v3344
  %v3346 = vpop.f32.mrf.mxu0
  %v3347 = vadd.f32 0.0, %v3346
  %3348 = vmatmul.bf16.gmra.mxu0 %v2420
  %v3349 = vpop.f32.mrf.mxu0
  %v3350 = vadd.f32 0.0, %v3349
  %v3351 = vpop.f32.mrf.mxu0
  %v3352 = vadd.f32 0.0, %v3351
  %3353 = vmatmul.bf16.gmra.mxu0 %v2423
  %v3354 = vpop.f32.mrf.mxu0
  %v3355 = vadd.f32 0.0, %v3354
  %v3356 = vpop.f32.mrf.mxu0
  %v3357 = vadd.f32 0.0, %v3356
  %3358 = vmatmul.bf16.gmra.mxu0 %v2426
  %v3359 = vpop.f32.mrf.mxu0
  %v3360 = vadd.f32 0.0, %v3359
  %v3361 = vpop.f32.mrf.mxu0
  %v3362 = vadd.f32 0.0, %v3361
  %3363 = vdwg.mxu0
  %3364 = vmatpush.bf16.msra.mxu0 0
  %3365 = vmatpush.bf16.msra.mxu0 0
  %3366 = vmatpush.bf16.msra.mxu0 0
  %3367 = vmatpush.bf16.msra.mxu0 0
  %3368 = vmatpush.bf16.msra.mxu0 0
  %3369 = vmatpush.bf16.msra.mxu0 %v2478
  %3370 = vmatpush.bf16.msra.mxu0 %v1803
  %3371 = vmatpush.bf16.msra.mxu0 %v1646
  %3372 = vmatmul.bf16.gmra.mxu0 %v2417
  %v3373 = vpop.f32.mrf.mxu0
  %v3374 = vadd.f32 0.0, %v3373
  %v3375 = vpop.f32.mrf.mxu0
  %v3376 = vadd.f32 0.0, %v3375
  %3377 = vmatmul.bf16.gmra.mxu0 %v2420
  %v3378 = vpop.f32.mrf.mxu0
  %v3379 = vadd.f32 0.0, %v3378
  %v3380 = vpop.f32.mrf.mxu0
  %v3381 = vadd.f32 0.0, %v3380
  %3382 = vmatmul.bf16.gmra.mxu0 %v2423
  %v3383 = vpop.f32.mrf.mxu0
  %v3384 = vadd.f32 0.0, %v3383
  %v3385 = vpop.f32.mrf.mxu0
  %v3386 = vadd.f32 0.0, %v3385
  %3387 = vmatmul.bf16.gmra.mxu0 %v2426
  %v3388 = vpop.f32.mrf.mxu0
  %v3389 = vadd.f32 0.0, %v3388
  %v3390 = vpop.f32.mrf.mxu0
  %v3391 = vadd.f32 0.0, %v3390
  %3392 = vdwg.mxu0
  %3393 = vmatpush.bf16.msra.mxu0 0
  %3394 = vmatpush.bf16.msra.mxu0 0
  %3395 = vmatpush.bf16.msra.mxu0 0
  %3396 = vmatpush.bf16.msra.mxu0 0
  %3397 = vmatpush.bf16.msra.mxu0 0
  %3398 = vmatpush.bf16.msra.mxu0 %v2481
  %3399 = vmatpush.bf16.msra.mxu0 %v1804
  %3400 = vmatpush.bf16.msra.mxu0 %v1647
  %3401 = vmatmul.bf16.gmra.mxu0 %v2417
  %v3402 = vpop.f32.mrf.mxu0
  %v3403 = vadd.f32 0.0, %v3402
  %v3404 = vpop.f32.mrf.mxu0
  %v3405 = vadd.f32 0.0, %v3404
  %3406 = vmatmul.bf16.gmra.mxu0 %v2420
  %v3407 = vpop.f32.mrf.mxu0
  %v3408 = vadd.f32 0.0, %v3407
  %v3409 = vpop.f32.mrf.mxu0
  %v3410 = vadd.f32 0.0, %v3409
  %3411 = vmatmul.bf16.gmra.mxu0 %v2423
  %v3412 = vpop.f32.mrf.mxu0
  %v3413 = vadd.f32 0.0, %v3412
  %v3414 = vpop.f32.mrf.mxu0
  %v3415 = vadd.f32 0.0, %v3414
  %3416 = vmatmul.bf16.gmra.mxu0 %v2426
  %v3417 = vpop.f32.mrf.mxu0
  %v3418 = vadd.f32 0.0, %v3417
  %v3419 = vpop.f32.mrf.mxu0
  %v3420 = vadd.f32 0.0, %v3419
  %3421 = vdwg.mxu0
  %3422 = vmatpush.bf16.msra.mxu0 0
  %3423 = vmatpush.bf16.msra.mxu0 0
  %3424 = vmatpush.bf16.msra.mxu0 0
  %3425 = vmatpush.bf16.msra.mxu0 0
  %3426 = vmatpush.bf16.msra.mxu0 0
  %3427 = vmatpush.bf16.msra.mxu0 %v2484
  %3428 = vmatpush.bf16.msra.mxu0 %v1805
  %3429 = vmatpush.bf16.msra.mxu0 %v1648
  %3430 = vmatmul.bf16.gmra.mxu0 %v2417
  %v3431 = vpop.f32.mrf.mxu0
  %v3432 = vadd.f32 0.0, %v3431
  %v3433 = vpop.f32.mrf.mxu0
  %v3434 = vadd.f32 0.0, %v3433
  %3435 = vmatmul.bf16.gmra.mxu0 %v2420
  %v3436 = vpop.f32.mrf.mxu0
  %v3437 = vadd.f32 0.0, %v3436
  %v3438 = vpop.f32.mrf.mxu0
  %v3439 = vadd.f32 0.0, %v3438
  %3440 = vmatmul.bf16.gmra.mxu0 %v2423
  %v3441 = vpop.f32.mrf.mxu0
  %v3442 = vadd.f32 0.0, %v3441
  %v3443 = vpop.f32.mrf.mxu0
  %v3444 = vadd.f32 0.0, %v3443
  %3445 = vmatmul.bf16.gmra.mxu0 %v2426
  %v3446 = vpop.f32.mrf.mxu0
  %v3447 = vadd.f32 0.0, %v3446
  %v3448 = vpop.f32.mrf.mxu0
  %v3449 = vadd.f32 0.0, %v3448
  %3450 = vdwg.mxu0
  %3451 = vmatpush.bf16.msra.mxu0 0
  %3452 = vmatpush.bf16.msra.mxu0 0
  %3453 = vmatpush.bf16.msra.mxu0 0
  %3454 = vmatpush.bf16.msra.mxu0 0
  %3455 = vmatpush.bf16.msra.mxu0 0
  %3456 = vmatpush.bf16.msra.mxu0 %v2487
  %3457 = vmatpush.bf16.msra.mxu0 %v1806
  %3458 = vmatpush.bf16.msra.mxu0 %v1649
  %3459 = vmatmul.bf16.gmra.mxu0 %v2417
  %v3460 = vpop.f32.mrf.mxu0
  %v3461 = vadd.f32 0.0, %v3460
  %v3462 = vpop.f32.mrf.mxu0
  %v3463 = vadd.f32 0.0, %v3462
  %3464 = vmatmul.bf16.gmra.mxu0 %v2420
  %v3465 = vpop.f32.mrf.mxu0
  %v3466 = vadd.f32 0.0, %v3465
  %v3467 = vpop.f32.mrf.mxu0
  %v3468 = vadd.f32 0.0, %v3467
  %3469 = vmatmul.bf16.gmra.mxu0 %v2423
  %v3470 = vpop.f32.mrf.mxu0
  %v3471 = vadd.f32 0.0, %v3470
  %v3472 = vpop.f32.mrf.mxu0
  %v3473 = vadd.f32 0.0, %v3472
  %3474 = vmatmul.bf16.gmra.mxu0 %v2426
  %v3475 = vpop.f32.mrf.mxu0
  %v3476 = vadd.f32 0.0, %v3475
  %v3477 = vpop.f32.mrf.mxu0
  %v3478 = vadd.f32 0.0, %v3477
  %3479 = vdwg.mxu0
  %3480 = vmatpush.bf16.msra.mxu0 0
  %3481 = vmatpush.bf16.msra.mxu0 0
  %3482 = vmatpush.bf16.msra.mxu0 0
  %3483 = vmatpush.bf16.msra.mxu0 0
  %3484 = vmatpush.bf16.msra.mxu0 0
  %3485 = vmatpush.bf16.msra.mxu0 %v2490
  %3486 = vmatpush.bf16.msra.mxu0 %v1807
  %3487 = vmatpush.bf16.msra.mxu0 %v1650
  %3488 = vmatmul.bf16.gmra.mxu0 %v2417
  %v3489 = vpop.f32.mrf.mxu0
  %v3490 = vadd.f32 0.0, %v3489
  %v3491 = vpop.f32.mrf.mxu0
  %v3492 = vadd.f32 0.0, %v3491
  %3493 = vmatmul.bf16.gmra.mxu0 %v2420
  %v3494 = vpop.f32.mrf.mxu0
  %v3495 = vadd.f32 0.0, %v3494
  %v3496 = vpop.f32.mrf.mxu0
  %v3497 = vadd.f32 0.0, %v3496
  %3498 = vmatmul.bf16.gmra.mxu0 %v2423
  %v3499 = vpop.f32.mrf.mxu0
  %v3500 = vadd.f32 0.0, %v3499
  %v3501 = vpop.f32.mrf.mxu0
  %v3502 = vadd.f32 0.0, %v3501
  %3503 = vmatmul.bf16.gmra.mxu0 %v2426
  %v3504 = vpop.f32.mrf.mxu0
  %v3505 = vadd.f32 0.0, %v3504
  %v3506 = vpop.f32.mrf.mxu0
  %v3507 = vadd.f32 0.0, %v3506
  %3508 = vdwg.mxu0
  %3509 = vmatpush.bf16.msra.mxu0 0
  %3510 = vmatpush.bf16.msra.mxu0 0
  %3511 = vmatpush.bf16.msra.mxu0 0
  %3512 = vmatpush.bf16.msra.mxu0 0
  %3513 = vmatpush.bf16.msra.mxu0 0
  %3514 = vmatpush.bf16.msra.mxu0 %v2493
  %3515 = vmatpush.bf16.msra.mxu0 %v1808
  %3516 = vmatpush.bf16.msra.mxu0 %v1651
  %3517 = vmatmul.bf16.gmra.mxu0 %v2417
  %v3518 = vpop.f32.mrf.mxu0
  %v3519 = vadd.f32 0.0, %v3518
  %v3520 = vpop.f32.mrf.mxu0
  %v3521 = vadd.f32 0.0, %v3520
  %3522 = vmatmul.bf16.gmra.mxu0 %v2420
  %v3523 = vpop.f32.mrf.mxu0
  %v3524 = vadd.f32 0.0, %v3523
  %v3525 = vpop.f32.mrf.mxu0
  %v3526 = vadd.f32 0.0, %v3525
  %3527 = vmatmul.bf16.gmra.mxu0 %v2423
  %v3528 = vpop.f32.mrf.mxu0
  %v3529 = vadd.f32 0.0, %v3528
  %v3530 = vpop.f32.mrf.mxu0
  %v3531 = vadd.f32 0.0, %v3530
  %3532 = vmatmul.bf16.gmra.mxu0 %v2426
  %v3533 = vpop.f32.mrf.mxu0
  %v3534 = vadd.f32 0.0, %v3533
  %v3535 = vpop.f32.mrf.mxu0
  %v3536 = vadd.f32 0.0, %v3535
  %3537 = vdwg.mxu0
  %3538 = vmatpush.bf16.msra.mxu0 0
  %3539 = vmatpush.bf16.msra.mxu0 0
  %3540 = vmatpush.bf16.msra.mxu0 0
  %3541 = vmatpush.bf16.msra.mxu0 0
  %3542 = vmatpush.bf16.msra.mxu0 0
  %3543 = vmatpush.bf16.msra.mxu0 %v2496
  %3544 = vmatpush.bf16.msra.mxu0 %v1809
  %3545 = vmatpush.bf16.msra.mxu0 %v1652
  %3546 = vmatmul.bf16.gmra.mxu0 %v2417
  %v3547 = vpop.f32.mrf.mxu0
  %v3548 = vadd.f32 0.0, %v3547
  %v3549 = vpop.f32.mrf.mxu0
  %v3550 = vadd.f32 0.0, %v3549
  %3551 = vmatmul.bf16.gmra.mxu0 %v2420
  %v3552 = vpop.f32.mrf.mxu0
  %v3553 = vadd.f32 0.0, %v3552
  %v3554 = vpop.f32.mrf.mxu0
  %v3555 = vadd.f32 0.0, %v3554
  %3556 = vmatmul.bf16.gmra.mxu0 %v2423
  %v3557 = vpop.f32.mrf.mxu0
  %v3558 = vadd.f32 0.0, %v3557
  %v3559 = vpop.f32.mrf.mxu0
  %v3560 = vadd.f32 0.0, %v3559
  %3561 = vmatmul.bf16.gmra.mxu0 %v2426
  %v3562 = vpop.f32.mrf.mxu0
  %v3563 = vadd.f32 0.0, %v3562
  %v3564 = vpop.f32.mrf.mxu0
  %v3565 = vadd.f32 0.0, %v3564
  %3566 = vdwg.mxu0
  %3567 = vmatpush.bf16.msra.mxu0 0
  %3568 = vmatpush.bf16.msra.mxu0 0
  %3569 = vmatpush.bf16.msra.mxu0 0
  %3570 = vmatpush.bf16.msra.mxu0 0
  %3571 = vmatpush.bf16.msra.mxu0 0
  %3572 = vmatpush.bf16.msra.mxu0 %v2499
  %3573 = vmatpush.bf16.msra.mxu0 %v1810
  %3574 = vmatpush.bf16.msra.mxu0 %v1653
  %3575 = vmatmul.bf16.gmra.mxu0 %v2417
  %v3576 = vpop.f32.mrf.mxu0
  %v3577 = vadd.f32 0.0, %v3576
  %v3578 = vpop.f32.mrf.mxu0
  %v3579 = vadd.f32 0.0, %v3578
  %3580 = vmatmul.bf16.gmra.mxu0 %v2420
  %v3581 = vpop.f32.mrf.mxu0
  %v3582 = vadd.f32 0.0, %v3581
  %v3583 = vpop.f32.mrf.mxu0
  %v3584 = vadd.f32 0.0, %v3583
  %3585 = vmatmul.bf16.gmra.mxu0 %v2423
  %v3586 = vpop.f32.mrf.mxu0
  %v3587 = vadd.f32 0.0, %v3586
  %v3588 = vpop.f32.mrf.mxu0
  %v3589 = vadd.f32 0.0, %v3588
  %3590 = vmatmul.bf16.gmra.mxu0 %v2426
  %v3591 = vpop.f32.mrf.mxu0
  %v3592 = vadd.f32 0.0, %v3591
  %v3593 = vpop.f32.mrf.mxu0
  %v3594 = vadd.f32 0.0, %v3593
  %3595 = vdwg.mxu0
  %3596 = vmatpush.bf16.msra.mxu0 0
  %3597 = vmatpush.bf16.msra.mxu0 0
  %3598 = vmatpush.bf16.msra.mxu0 0
  %3599 = vmatpush.bf16.msra.mxu0 0
  %3600 = vmatpush.bf16.msra.mxu0 0
  %3601 = vmatpush.bf16.msra.mxu0 %v2502
  %3602 = vmatpush.bf16.msra.mxu0 %v1811
  %3603 = vmatpush.bf16.msra.mxu0 %v1654
  %3604 = vmatmul.bf16.gmra.mxu0 %v2417
  %v3605 = vpop.f32.mrf.mxu0
  %v3606 = vadd.f32 0.0, %v3605
  %v3607 = vpop.f32.mrf.mxu0
  %v3608 = vadd.f32 0.0, %v3607
  %3609 = vmatmul.bf16.gmra.mxu0 %v2420
  %v3610 = vpop.f32.mrf.mxu0
  %v3611 = vadd.f32 0.0, %v3610
  %v3612 = vpop.f32.mrf.mxu0
  %v3613 = vadd.f32 0.0, %v3612
  %3614 = vmatmul.bf16.gmra.mxu0 %v2423
  %v3615 = vpop.f32.mrf.mxu0
  %v3616 = vadd.f32 0.0, %v3615
  %v3617 = vpop.f32.mrf.mxu0
  %v3618 = vadd.f32 0.0, %v3617
  %3619 = vmatmul.bf16.gmra.mxu0 %v2426
  %v3620 = vpop.f32.mrf.mxu0
  %v3621 = vadd.f32 0.0, %v3620
  %v3622 = vpop.f32.mrf.mxu0
  %v3623 = vadd.f32 0.0, %v3622
  %3624 = vdwg.mxu0
  %3625 = vmatpush.bf16.msra.mxu0 0
  %3626 = vmatpush.bf16.msra.mxu0 0
  %3627 = vmatpush.bf16.msra.mxu0 0
  %3628 = vmatpush.bf16.msra.mxu0 0
  %3629 = vmatpush.bf16.msra.mxu0 0
  %3630 = vmatpush.bf16.msra.mxu0 %v2505
  %3631 = vmatpush.bf16.msra.mxu0 %v1812
  %3632 = vmatpush.bf16.msra.mxu0 %v1655
  %3633 = vmatmul.bf16.gmra.mxu0 %v2417
  %v3634 = vpop.f32.mrf.mxu0
  %v3635 = vadd.f32 0.0, %v3634
  %v3636 = vpop.f32.mrf.mxu0
  %v3637 = vadd.f32 0.0, %v3636
  %3638 = vmatmul.bf16.gmra.mxu0 %v2420
  %v3639 = vpop.f32.mrf.mxu0
  %v3640 = vadd.f32 0.0, %v3639
  %v3641 = vpop.f32.mrf.mxu0
  %v3642 = vadd.f32 0.0, %v3641
  %3643 = vmatmul.bf16.gmra.mxu0 %v2423
  %v3644 = vpop.f32.mrf.mxu0
  %v3645 = vadd.f32 0.0, %v3644
  %v3646 = vpop.f32.mrf.mxu0
  %v3647 = vadd.f32 0.0, %v3646
  %3648 = vmatmul.bf16.gmra.mxu0 %v2426
  %v3649 = vpop.f32.mrf.mxu0
  %v3650 = vadd.f32 0.0, %v3649
  %v3651 = vpop.f32.mrf.mxu0
  %v3652 = vadd.f32 0.0, %v3651
  %3653 = vdwg.mxu0
  %3654 = vmatpush.bf16.msra.mxu0 0
  %3655 = vmatpush.bf16.msra.mxu0 0
  %3656 = vmatpush.bf16.msra.mxu0 0
  %3657 = vmatpush.bf16.msra.mxu0 0
  %3658 = vmatpush.bf16.msra.mxu0 0
  %3659 = vmatpush.bf16.msra.mxu0 %v2508
  %3660 = vmatpush.bf16.msra.mxu0 %v1813
  %3661 = vmatpush.bf16.msra.mxu0 %v1656
  %3662 = vmatmul.bf16.gmra.mxu0 %v2417
  %v3663 = vpop.f32.mrf.mxu0
  %v3664 = vadd.f32 0.0, %v3663
  %v3665 = vpop.f32.mrf.mxu0
  %v3666 = vadd.f32 0.0, %v3665
  %3667 = vmatmul.bf16.gmra.mxu0 %v2420
  %v3668 = vpop.f32.mrf.mxu0
  %v3669 = vadd.f32 0.0, %v3668
  %v3670 = vpop.f32.mrf.mxu0
  %v3671 = vadd.f32 0.0, %v3670
  %3672 = vmatmul.bf16.gmra.mxu0 %v2423
  %v3673 = vpop.f32.mrf.mxu0
  %v3674 = vadd.f32 0.0, %v3673
  %v3675 = vpop.f32.mrf.mxu0
  %v3676 = vadd.f32 0.0, %v3675
  %3677 = vmatmul.bf16.gmra.mxu0 %v2426
  %v3678 = vpop.f32.mrf.mxu0
  %v3679 = vadd.f32 0.0, %v3678
  %v3680 = vpop.f32.mrf.mxu0
  %v3681 = vadd.f32 0.0, %v3680
  %3682 = vdwg.mxu0
  %3683 = vmatpush.bf16.msra.mxu0 0
  %3684 = vmatpush.bf16.msra.mxu0 0
  %3685 = vmatpush.bf16.msra.mxu0 0
  %3686 = vmatpush.bf16.msra.mxu0 0
  %3687 = vmatpush.bf16.msra.mxu0 0
  %3688 = vmatpush.bf16.msra.mxu0 %v2511
  %3689 = vmatpush.bf16.msra.mxu0 %v1814
  %3690 = vmatpush.bf16.msra.mxu0 %v1657
  %3691 = vmatmul.bf16.gmra.mxu0 %v2417
  %v3692 = vpop.f32.mrf.mxu0
  %v3693 = vadd.f32 0.0, %v3692
  %v3694 = vpop.f32.mrf.mxu0
  %v3695 = vadd.f32 0.0, %v3694
  %3696 = vmatmul.bf16.gmra.mxu0 %v2420
  %v3697 = vpop.f32.mrf.mxu0
  %v3698 = vadd.f32 0.0, %v3697
  %v3699 = vpop.f32.mrf.mxu0
  %v3700 = vadd.f32 0.0, %v3699
  %3701 = vmatmul.bf16.gmra.mxu0 %v2423
  %v3702 = vpop.f32.mrf.mxu0
  %v3703 = vadd.f32 0.0, %v3702
  %v3704 = vpop.f32.mrf.mxu0
  %v3705 = vadd.f32 0.0, %v3704
  %3706 = vmatmul.bf16.gmra.mxu0 %v2426
  %v3707 = vpop.f32.mrf.mxu0
  %v3708 = vadd.f32 0.0, %v3707
  %v3709 = vpop.f32.mrf.mxu0
  %v3710 = vadd.f32 0.0, %v3709
  %3711 = vdwg.mxu0
  %3712 = vmatpush.bf16.msra.mxu0 0
  %3713 = vmatpush.bf16.msra.mxu0 0
  %3714 = vmatpush.bf16.msra.mxu0 0
  %3715 = vmatpush.bf16.msra.mxu0 0
  %3716 = vmatpush.bf16.msra.mxu0 0
  %3717 = vmatpush.bf16.msra.mxu0 %v2514
  %3718 = vmatpush.bf16.msra.mxu0 %v1815
  %3719 = vmatpush.bf16.msra.mxu0 %v1658
  %3720 = vmatmul.bf16.gmra.mxu0 %v2417
  %v3721 = vpop.f32.mrf.mxu0
  %v3722 = vadd.f32 0.0, %v3721
  %v3723 = vpop.f32.mrf.mxu0
  %v3724 = vadd.f32 0.0, %v3723
  %3725 = vmatmul.bf16.gmra.mxu0 %v2420
  %v3726 = vpop.f32.mrf.mxu0
  %v3727 = vadd.f32 0.0, %v3726
  %v3728 = vpop.f32.mrf.mxu0
  %v3729 = vadd.f32 0.0, %v3728
  %3730 = vmatmul.bf16.gmra.mxu0 %v2423
  %v3731 = vpop.f32.mrf.mxu0
  %v3732 = vadd.f32 0.0, %v3731
  %v3733 = vpop.f32.mrf.mxu0
  %v3734 = vadd.f32 0.0, %v3733
  %3735 = vmatmul.bf16.gmra.mxu0 %v2426
  %v3736 = vpop.f32.mrf.mxu0
  %v3737 = vadd.f32 0.0, %v3736
  %v3738 = vpop.f32.mrf.mxu0
  %v3739 = vadd.f32 0.0, %v3738
  %3740 = vdwg.mxu0
  %3741 = vmatpush.bf16.msra.mxu0 0
  %3742 = vmatpush.bf16.msra.mxu0 0
  %3743 = vmatpush.bf16.msra.mxu0 0
  %3744 = vmatpush.bf16.msra.mxu0 0
  %3745 = vmatpush.bf16.msra.mxu0 0
  %3746 = vmatpush.bf16.msra.mxu0 %v2517
  %3747 = vmatpush.bf16.msra.mxu0 %v1816
  %3748 = vmatpush.bf16.msra.mxu0 %v1659
  %3749 = vmatmul.bf16.gmra.mxu0 %v2417
  %v3750 = vpop.f32.mrf.mxu0
  %v3751 = vadd.f32 0.0, %v3750
  %v3752 = vpop.f32.mrf.mxu0
  %v3753 = vadd.f32 0.0, %v3752
  %3754 = vmatmul.bf16.gmra.mxu0 %v2420
  %v3755 = vpop.f32.mrf.mxu0
  %v3756 = vadd.f32 0.0, %v3755
  %v3757 = vpop.f32.mrf.mxu0
  %v3758 = vadd.f32 0.0, %v3757
  %3759 = vmatmul.bf16.gmra.mxu0 %v2423
  %v3760 = vpop.f32.mrf.mxu0
  %v3761 = vadd.f32 0.0, %v3760
  %v3762 = vpop.f32.mrf.mxu0
  %v3763 = vadd.f32 0.0, %v3762
  %3764 = vmatmul.bf16.gmra.mxu0 %v2426
  %v3765 = vpop.f32.mrf.mxu0
  %v3766 = vadd.f32 0.0, %v3765
  %v3767 = vpop.f32.mrf.mxu0
  %v3768 = vadd.f32 0.0, %v3767
  %3769 = vdwg.mxu0
  %3770 = vmatpush.bf16.msra.mxu0 0
  %3771 = vmatpush.bf16.msra.mxu0 0
  %3772 = vmatpush.bf16.msra.mxu0 0
  %3773 = vmatpush.bf16.msra.mxu0 0
  %3774 = vmatpush.bf16.msra.mxu0 0
  %3775 = vmatpush.bf16.msra.mxu0 %v2520
  %3776 = vmatpush.bf16.msra.mxu0 %v1817
  %3777 = vmatpush.bf16.msra.mxu0 %v1660
  %3778 = vmatmul.bf16.gmra.mxu0 %v2417
  %v3779 = vpop.f32.mrf.mxu0
  %v3780 = vadd.f32 0.0, %v3779
  %v3781 = vpop.f32.mrf.mxu0
  %v3782 = vadd.f32 0.0, %v3781
  %3783 = vmatmul.bf16.gmra.mxu0 %v2420
  %v3784 = vpop.f32.mrf.mxu0
  %v3785 = vadd.f32 0.0, %v3784
  %v3786 = vpop.f32.mrf.mxu0
  %v3787 = vadd.f32 0.0, %v3786
  %3788 = vmatmul.bf16.gmra.mxu0 %v2423
  %v3789 = vpop.f32.mrf.mxu0
  %v3790 = vadd.f32 0.0, %v3789
  %v3791 = vpop.f32.mrf.mxu0
  %v3792 = vadd.f32 0.0, %v3791
  %3793 = vmatmul.bf16.gmra.mxu0 %v2426
  %v3794 = vpop.f32.mrf.mxu0
  %v3795 = vadd.f32 0.0, %v3794
  %v3796 = vpop.f32.mrf.mxu0
  %v3797 = vadd.f32 0.0, %v3796
  %3798 = vdwg.mxu0
  %3799 = vmatpush.bf16.msra.mxu0 0
  %3800 = vmatpush.bf16.msra.mxu0 0
  %3801 = vmatpush.bf16.msra.mxu0 0
  %3802 = vmatpush.bf16.msra.mxu0 0
  %3803 = vmatpush.bf16.msra.mxu0 0
  %3804 = vmatpush.bf16.msra.mxu0 %v2523
  %3805 = vmatpush.bf16.msra.mxu0 %v1818
  %3806 = vmatpush.bf16.msra.mxu0 %v1661
  %3807 = vmatmul.bf16.gmra.mxu0 %v2417
  %v3808 = vpop.f32.mrf.mxu0
  %v3809 = vadd.f32 0.0, %v3808
  %v3810 = vpop.f32.mrf.mxu0
  %v3811 = vadd.f32 0.0, %v3810
  %3812 = vmatmul.bf16.gmra.mxu0 %v2420
  %v3813 = vpop.f32.mrf.mxu0
  %v3814 = vadd.f32 0.0, %v3813
  %v3815 = vpop.f32.mrf.mxu0
  %v3816 = vadd.f32 0.0, %v3815
  %3817 = vmatmul.bf16.gmra.mxu0 %v2423
  %v3818 = vpop.f32.mrf.mxu0
  %v3819 = vadd.f32 0.0, %v3818
  %v3820 = vpop.f32.mrf.mxu0
  %v3821 = vadd.f32 0.0, %v3820
  %3822 = vmatmul.bf16.gmra.mxu0 %v2426
  %v3823 = vpop.f32.mrf.mxu0
  %v3824 = vadd.f32 0.0, %v3823
  %v3825 = vpop.f32.mrf.mxu0
  %v3826 = vadd.f32 0.0, %v3825
  %3827 = vdwg.mxu0
  %3828 = vmatpush.bf16.msra.mxu0 0
  %3829 = vmatpush.bf16.msra.mxu0 0
  %3830 = vmatpush.bf16.msra.mxu0 0
  %3831 = vmatpush.bf16.msra.mxu0 0
  %3832 = vmatpush.bf16.msra.mxu0 0
  %3833 = vmatpush.bf16.msra.mxu0 %v2526
  %3834 = vmatpush.bf16.msra.mxu0 %v1819
  %3835 = vmatpush.bf16.msra.mxu0 %v1662
  %3836 = vmatmul.bf16.gmra.mxu0 %v2417
  %v3837 = vpop.f32.mrf.mxu0
  %v3838 = vadd.f32 0.0, %v3837
  %v3839 = vpop.f32.mrf.mxu0
  %v3840 = vadd.f32 0.0, %v3839
  %3841 = vmatmul.bf16.gmra.mxu0 %v2420
  %v3842 = vpop.f32.mrf.mxu0
  %v3843 = vadd.f32 0.0, %v3842
  %v3844 = vpop.f32.mrf.mxu0
  %v3845 = vadd.f32 0.0, %v3844
  %3846 = vmatmul.bf16.gmra.mxu0 %v2423
  %v3847 = vpop.f32.mrf.mxu0
  %v3848 = vadd.f32 0.0, %v3847
  %v3849 = vpop.f32.mrf.mxu0
  %v3850 = vadd.f32 0.0, %v3849
  %3851 = vmatmul.bf16.gmra.mxu0 %v2426
  %v3852 = vpop.f32.mrf.mxu0
  %v3853 = vadd.f32 0.0, %v3852
  %v3854 = vpop.f32.mrf.mxu0
  %v3855 = vadd.f32 0.0, %v3854
  %3856 = vdwg.mxu0
  %3857 = vmatpush.bf16.msra.mxu0 0
  %3858 = vmatpush.bf16.msra.mxu0 0
  %3859 = vmatpush.bf16.msra.mxu0 0
  %3860 = vmatpush.bf16.msra.mxu0 0
  %3861 = vmatpush.bf16.msra.mxu0 0
  %3862 = vmatpush.bf16.msra.mxu0 %v2529
  %3863 = vmatpush.bf16.msra.mxu0 %v1820
  %3864 = vmatpush.bf16.msra.mxu0 %v1663
  %3865 = vmatmul.bf16.gmra.mxu0 %v2417
  %v3866 = vpop.f32.mrf.mxu0
  %v3867 = vadd.f32 0.0, %v3866
  %v3868 = vpop.f32.mrf.mxu0
  %v3869 = vadd.f32 0.0, %v3868
  %3870 = vmatmul.bf16.gmra.mxu0 %v2420
  %v3871 = vpop.f32.mrf.mxu0
  %v3872 = vadd.f32 0.0, %v3871
  %v3873 = vpop.f32.mrf.mxu0
  %v3874 = vadd.f32 0.0, %v3873
  %3875 = vmatmul.bf16.gmra.mxu0 %v2423
  %v3876 = vpop.f32.mrf.mxu0
  %v3877 = vadd.f32 0.0, %v3876
  %v3878 = vpop.f32.mrf.mxu0
  %v3879 = vadd.f32 0.0, %v3878
  %3880 = vmatmul.bf16.gmra.mxu0 %v2426
  %v3881 = vpop.f32.mrf.mxu0
  %v3882 = vadd.f32 0.0, %v3881
  %v3883 = vpop.f32.mrf.mxu0
  %v3884 = vadd.f32 0.0, %v3883
  %3885 = vdwg.mxu0
  %3886 = vmatpush.bf16.msra.mxu0 0
  %3887 = vmatpush.bf16.msra.mxu0 0
  %3888 = vmatpush.bf16.msra.mxu0 0
  %3889 = vmatpush.bf16.msra.mxu0 0
  %3890 = vmatpush.bf16.msra.mxu0 0
  %3891 = vmatpush.bf16.msra.mxu0 %v2532
  %3892 = vmatpush.bf16.msra.mxu0 %v1821
  %3893 = vmatpush.bf16.msra.mxu0 %v1664
  %3894 = vmatmul.bf16.gmra.mxu0 %v2417
  %v3895 = vpop.f32.mrf.mxu0
  %v3896 = vadd.f32 0.0, %v3895
  %v3897 = vpop.f32.mrf.mxu0
  %v3898 = vadd.f32 0.0, %v3897
  %3899 = vmatmul.bf16.gmra.mxu0 %v2420
  %v3900 = vpop.f32.mrf.mxu0
  %v3901 = vadd.f32 0.0, %v3900
  %v3902 = vpop.f32.mrf.mxu0
  %v3903 = vadd.f32 0.0, %v3902
  %3904 = vmatmul.bf16.gmra.mxu0 %v2423
  %v3905 = vpop.f32.mrf.mxu0
  %v3906 = vadd.f32 0.0, %v3905
  %v3907 = vpop.f32.mrf.mxu0
  %v3908 = vadd.f32 0.0, %v3907
  %3909 = vmatmul.bf16.gmra.mxu0 %v2426
  %v3910 = vpop.f32.mrf.mxu0
  %v3911 = vadd.f32 0.0, %v3910
  %v3912 = vpop.f32.mrf.mxu0
  %v3913 = vadd.f32 0.0, %v3912
  %3914 = vdwg.mxu0
  %3915 = vmatpush.bf16.msra.mxu0 0
  %3916 = vmatpush.bf16.msra.mxu0 0
  %3917 = vmatpush.bf16.msra.mxu0 0
  %3918 = vmatpush.bf16.msra.mxu0 0
  %3919 = vmatpush.bf16.msra.mxu0 0
  %3920 = vmatpush.bf16.msra.mxu0 %v2535
  %3921 = vmatpush.bf16.msra.mxu0 %v1822
  %3922 = vmatpush.bf16.msra.mxu0 %v1665
  %3923 = vmatmul.bf16.gmra.mxu0 %v2417
  %v3924 = vpop.f32.mrf.mxu0
  %v3925 = vadd.f32 0.0, %v3924
  %v3926 = vpop.f32.mrf.mxu0
  %v3927 = vadd.f32 0.0, %v3926
  %3928 = vmatmul.bf16.gmra.mxu0 %v2420
  %v3929 = vpop.f32.mrf.mxu0
  %v3930 = vadd.f32 0.0, %v3929
  %v3931 = vpop.f32.mrf.mxu0
  %v3932 = vadd.f32 0.0, %v3931
  %3933 = vmatmul.bf16.gmra.mxu0 %v2423
  %v3934 = vpop.f32.mrf.mxu0
  %v3935 = vadd.f32 0.0, %v3934
  %v3936 = vpop.f32.mrf.mxu0
  %v3937 = vadd.f32 0.0, %v3936
  %3938 = vmatmul.bf16.gmra.mxu0 %v2426
  %v3939 = vpop.f32.mrf.mxu0
  %v3940 = vadd.f32 0.0, %v3939
  %v3941 = vpop.f32.mrf.mxu0
  %v3942 = vadd.f32 0.0, %v3941
  %3943 = vdwg.mxu0
  %3944 = vmatpush.bf16.msra.mxu0 0
  %3945 = vmatpush.bf16.msra.mxu0 0
  %3946 = vmatpush.bf16.msra.mxu0 0
  %3947 = vmatpush.bf16.msra.mxu0 0
  %3948 = vmatpush.bf16.msra.mxu0 0
  %3949 = vmatpush.bf16.msra.mxu0 %v2538
  %3950 = vmatpush.bf16.msra.mxu0 %v1823
  %3951 = vmatpush.bf16.msra.mxu0 %v1666
  %3952 = vmatmul.bf16.gmra.mxu0 %v2417
  %v3953 = vpop.f32.mrf.mxu0
  %v3954 = vadd.f32 0.0, %v3953
  %v3955 = vpop.f32.mrf.mxu0
  %v3956 = vadd.f32 0.0, %v3955
  %3957 = vmatmul.bf16.gmra.mxu0 %v2420
  %v3958 = vpop.f32.mrf.mxu0
  %v3959 = vadd.f32 0.0, %v3958
  %v3960 = vpop.f32.mrf.mxu0
  %v3961 = vadd.f32 0.0, %v3960
  %3962 = vmatmul.bf16.gmra.mxu0 %v2423
  %v3963 = vpop.f32.mrf.mxu0
  %v3964 = vadd.f32 0.0, %v3963
  %v3965 = vpop.f32.mrf.mxu0
  %v3966 = vadd.f32 0.0, %v3965
  %3967 = vmatmul.bf16.gmra.mxu0 %v2426
  %v3968 = vpop.f32.mrf.mxu0
  %v3969 = vadd.f32 0.0, %v3968
  %v3970 = vpop.f32.mrf.mxu0
  %v3971 = vadd.f32 0.0, %v3970
  %3972 = vdwg.mxu0
  %3973 = vmatpush.bf16.msra.mxu0 0
  %3974 = vmatpush.bf16.msra.mxu0 0
  %3975 = vmatpush.bf16.msra.mxu0 0
  %3976 = vmatpush.bf16.msra.mxu0 0
  %3977 = vmatpush.bf16.msra.mxu0 0
  %3978 = vmatpush.bf16.msra.mxu0 %v2541
  %3979 = vmatpush.bf16.msra.mxu0 %v1824
  %3980 = vmatpush.bf16.msra.mxu0 %v1667
  %3981 = vmatmul.bf16.gmra.mxu0 %v2417
  %v3982 = vpop.f32.mrf.mxu0
  %v3983 = vadd.f32 0.0, %v3982
  %v3984 = vpop.f32.mrf.mxu0
  %v3985 = vadd.f32 0.0, %v3984
  %3986 = vmatmul.bf16.gmra.mxu0 %v2420
  %v3987 = vpop.f32.mrf.mxu0
  %v3988 = vadd.f32 0.0, %v3987
  %v3989 = vpop.f32.mrf.mxu0
  %v3990 = vadd.f32 0.0, %v3989
  %3991 = vmatmul.bf16.gmra.mxu0 %v2423
  %v3992 = vpop.f32.mrf.mxu0
  %v3993 = vadd.f32 0.0, %v3992
  %v3994 = vpop.f32.mrf.mxu0
  %v3995 = vadd.f32 0.0, %v3994
  %3996 = vmatmul.bf16.gmra.mxu0 %v2426
  %v3997 = vpop.f32.mrf.mxu0
  %v3998 = vadd.f32 0.0, %v3997
  %v3999 = vpop.f32.mrf.mxu0
  %v4000 = vadd.f32 0.0, %v3999
  %4001 = vdwg.mxu0
  %4002 = vmatpush.bf16.msra.mxu0 0
  %4003 = vmatpush.bf16.msra.mxu0 0
  %4004 = vmatpush.bf16.msra.mxu0 0
  %4005 = vmatpush.bf16.msra.mxu0 0
  %4006 = vmatpush.bf16.msra.mxu0 0
  %4007 = vmatpush.bf16.msra.mxu0 %v2544
  %4008 = vmatpush.bf16.msra.mxu0 %v1825
  %4009 = vmatpush.bf16.msra.mxu0 %v1668
  %4010 = vmatmul.bf16.gmra.mxu0 %v2417
  %v4011 = vpop.f32.mrf.mxu0
  %v4012 = vadd.f32 0.0, %v4011
  %v4013 = vpop.f32.mrf.mxu0
  %v4014 = vadd.f32 0.0, %v4013
  %4015 = vmatmul.bf16.gmra.mxu0 %v2420
  %v4016 = vpop.f32.mrf.mxu0
  %v4017 = vadd.f32 0.0, %v4016
  %v4018 = vpop.f32.mrf.mxu0
  %v4019 = vadd.f32 0.0, %v4018
  %4020 = vmatmul.bf16.gmra.mxu0 %v2423
  %v4021 = vpop.f32.mrf.mxu0
  %v4022 = vadd.f32 0.0, %v4021
  %v4023 = vpop.f32.mrf.mxu0
  %v4024 = vadd.f32 0.0, %v4023
  %4025 = vmatmul.bf16.gmra.mxu0 %v2426
  %v4026 = vpop.f32.mrf.mxu0
  %v4027 = vadd.f32 0.0, %v4026
  %v4028 = vpop.f32.mrf.mxu0
  %v4029 = vadd.f32 0.0, %v4028
  %4030 = vdwg.mxu0
  %4031 = vmatpush.bf16.msra.mxu0 0
  %4032 = vmatpush.bf16.msra.mxu0 0
  %4033 = vmatpush.bf16.msra.mxu0 0
  %4034 = vmatpush.bf16.msra.mxu0 0
  %4035 = vmatpush.bf16.msra.mxu0 0
  %4036 = vmatpush.bf16.msra.mxu0 %v2547
  %4037 = vmatpush.bf16.msra.mxu0 %v1826
  %4038 = vmatpush.bf16.msra.mxu0 %v1669
  %4039 = vmatmul.bf16.gmra.mxu0 %v2417
  %v4040 = vpop.f32.mrf.mxu0
  %v4041 = vadd.f32 0.0, %v4040
  %v4042 = vpop.f32.mrf.mxu0
  %v4043 = vadd.f32 0.0, %v4042
  %4044 = vmatmul.bf16.gmra.mxu0 %v2420
  %v4045 = vpop.f32.mrf.mxu0
  %v4046 = vadd.f32 0.0, %v4045
  %v4047 = vpop.f32.mrf.mxu0
  %v4048 = vadd.f32 0.0, %v4047
  %4049 = vmatmul.bf16.gmra.mxu0 %v2423
  %v4050 = vpop.f32.mrf.mxu0
  %v4051 = vadd.f32 0.0, %v4050
  %v4052 = vpop.f32.mrf.mxu0
  %v4053 = vadd.f32 0.0, %v4052
  %4054 = vmatmul.bf16.gmra.mxu0 %v2426
  %v4055 = vpop.f32.mrf.mxu0
  %v4056 = vadd.f32 0.0, %v4055
  %v4057 = vpop.f32.mrf.mxu0
  %v4058 = vadd.f32 0.0, %v4057
  %4059 = vdwg.mxu0
  %4060 = vmatpush.bf16.msra.mxu0 0
  %4061 = vmatpush.bf16.msra.mxu0 0
  %4062 = vmatpush.bf16.msra.mxu0 0
  %4063 = vmatpush.bf16.msra.mxu0 0
  %4064 = vmatpush.bf16.msra.mxu0 0
  %4065 = vmatpush.bf16.msra.mxu0 %v2550
  %4066 = vmatpush.bf16.msra.mxu0 %v1827
  %4067 = vmatpush.bf16.msra.mxu0 %v1670
  %4068 = vmatmul.bf16.gmra.mxu0 %v2417
  %v4069 = vpop.f32.mrf.mxu0
  %v4070 = vadd.f32 0.0, %v4069
  %v4071 = vpop.f32.mrf.mxu0
  %v4072 = vadd.f32 0.0, %v4071
  %4073 = vmatmul.bf16.gmra.mxu0 %v2420
  %v4074 = vpop.f32.mrf.mxu0
  %v4075 = vadd.f32 0.0, %v4074
  %v4076 = vpop.f32.mrf.mxu0
  %v4077 = vadd.f32 0.0, %v4076
  %4078 = vmatmul.bf16.gmra.mxu0 %v2423
  %v4079 = vpop.f32.mrf.mxu0
  %v4080 = vadd.f32 0.0, %v4079
  %v4081 = vpop.f32.mrf.mxu0
  %v4082 = vadd.f32 0.0, %v4081
  %4083 = vmatmul.bf16.gmra.mxu0 %v2426
  %v4084 = vpop.f32.mrf.mxu0
  %v4085 = vadd.f32 0.0, %v4084
  %v4086 = vpop.f32.mrf.mxu0
  %v4087 = vadd.f32 0.0, %v4086
  %4088 = vdwg.mxu0
  %4089 = vmatpush.bf16.msra.mxu0 0
  %4090 = vmatpush.bf16.msra.mxu0 0
  %4091 = vmatpush.bf16.msra.mxu0 0
  %4092 = vmatpush.bf16.msra.mxu0 0
  %4093 = vmatpush.bf16.msra.mxu0 0
  %4094 = vmatpush.bf16.msra.mxu0 %v2553
  %4095 = vmatpush.bf16.msra.mxu0 %v1828
  %4096 = vmatpush.bf16.msra.mxu0 %v1671
  %4097 = vmatmul.bf16.gmra.mxu0 %v2417
  %v4098 = vpop.f32.mrf.mxu0
  %v4099 = vadd.f32 0.0, %v4098
  %v4100 = vpop.f32.mrf.mxu0
  %v4101 = vadd.f32 0.0, %v4100
  %4102 = vmatmul.bf16.gmra.mxu0 %v2420
  %v4103 = vpop.f32.mrf.mxu0
  %v4104 = vadd.f32 0.0, %v4103
  %v4105 = vpop.f32.mrf.mxu0
  %v4106 = vadd.f32 0.0, %v4105
  %4107 = vmatmul.bf16.gmra.mxu0 %v2423
  %v4108 = vpop.f32.mrf.mxu0
  %v4109 = vadd.f32 0.0, %v4108
  %v4110 = vpop.f32.mrf.mxu0
  %v4111 = vadd.f32 0.0, %v4110
  %4112 = vmatmul.bf16.gmra.mxu0 %v2426
  %v4113 = vpop.f32.mrf.mxu0
  %v4114 = vadd.f32 0.0, %v4113
  %v4115 = vpop.f32.mrf.mxu0
  %v4116 = vadd.f32 0.0, %v4115
  %4117 = vdwg.mxu0
  %4118 = vmatpush.bf16.msra.mxu0 0
  %4119 = vmatpush.bf16.msra.mxu0 0
  %4120 = vmatpush.bf16.msra.mxu0 0
  %4121 = vmatpush.bf16.msra.mxu0 0
  %4122 = vmatpush.bf16.msra.mxu0 0
  %4123 = vmatpush.bf16.msra.mxu0 %v2556
  %4124 = vmatpush.bf16.msra.mxu0 %v1829
  %4125 = vmatpush.bf16.msra.mxu0 %v1672
  %4126 = vmatmul.bf16.gmra.mxu0 %v2417
  %v4127 = vpop.f32.mrf.mxu0
  %v4128 = vadd.f32 0.0, %v4127
  %v4129 = vpop.f32.mrf.mxu0
  %v4130 = vadd.f32 0.0, %v4129
  %4131 = vmatmul.bf16.gmra.mxu0 %v2420
  %v4132 = vpop.f32.mrf.mxu0
  %v4133 = vadd.f32 0.0, %v4132
  %v4134 = vpop.f32.mrf.mxu0
  %v4135 = vadd.f32 0.0, %v4134
  %4136 = vmatmul.bf16.gmra.mxu0 %v2423
  %v4137 = vpop.f32.mrf.mxu0
  %v4138 = vadd.f32 0.0, %v4137
  %v4139 = vpop.f32.mrf.mxu0
  %v4140 = vadd.f32 0.0, %v4139
  %4141 = vmatmul.bf16.gmra.mxu0 %v2426
  %v4142 = vpop.f32.mrf.mxu0
  %v4143 = vadd.f32 0.0, %v4142
  %v4144 = vpop.f32.mrf.mxu0
  %v4145 = vadd.f32 0.0, %v4144
  %4146 = vdwg.mxu0
  %4147 = vmatpush.bf16.msra.mxu0 0
  %4148 = vmatpush.bf16.msra.mxu0 0
  %4149 = vmatpush.bf16.msra.mxu0 0
  %4150 = vmatpush.bf16.msra.mxu0 0
  %4151 = vmatpush.bf16.msra.mxu0 0
  %4152 = vmatpush.bf16.msra.mxu0 %v2559
  %4153 = vmatpush.bf16.msra.mxu0 %v1830
  %4154 = vmatpush.bf16.msra.mxu0 %v1673
  %4155 = vmatmul.bf16.gmra.mxu0 %v2417
  %v4156 = vpop.f32.mrf.mxu0
  %v4157 = vadd.f32 0.0, %v4156
  %v4158 = vpop.f32.mrf.mxu0
  %v4159 = vadd.f32 0.0, %v4158
  %4160 = vmatmul.bf16.gmra.mxu0 %v2420
  %v4161 = vpop.f32.mrf.mxu0
  %v4162 = vadd.f32 0.0, %v4161
  %v4163 = vpop.f32.mrf.mxu0
  %v4164 = vadd.f32 0.0, %v4163
  %4165 = vmatmul.bf16.gmra.mxu0 %v2423
  %v4166 = vpop.f32.mrf.mxu0
  %v4167 = vadd.f32 0.0, %v4166
  %v4168 = vpop.f32.mrf.mxu0
  %v4169 = vadd.f32 0.0, %v4168
  %4170 = vmatmul.bf16.gmra.mxu0 %v2426
  %v4171 = vpop.f32.mrf.mxu0
  %v4172 = vadd.f32 0.0, %v4171
  %v4173 = vpop.f32.mrf.mxu0
  %v4174 = vadd.f32 0.0, %v4173
  %4175 = vdwg.mxu0
  %4176 = vmatpush.bf16.msra.mxu0 0
  %4177 = vmatpush.bf16.msra.mxu0 0
  %4178 = vmatpush.bf16.msra.mxu0 0
  %4179 = vmatpush.bf16.msra.mxu0 0
  %4180 = vmatpush.bf16.msra.mxu0 0
  %4181 = vmatpush.bf16.msra.mxu0 %v2562
  %4182 = vmatpush.bf16.msra.mxu0 %v1831
  %4183 = vmatpush.bf16.msra.mxu0 %v1674
  %4184 = vmatmul.bf16.gmra.mxu0 %v2417
  %v4185 = vpop.f32.mrf.mxu0
  %v4186 = vadd.f32 0.0, %v4185
  %v4187 = vpop.f32.mrf.mxu0
  %v4188 = vadd.f32 0.0, %v4187
  %4189 = vmatmul.bf16.gmra.mxu0 %v2420
  %v4190 = vpop.f32.mrf.mxu0
  %v4191 = vadd.f32 0.0, %v4190
  %v4192 = vpop.f32.mrf.mxu0
  %v4193 = vadd.f32 0.0, %v4192
  %4194 = vmatmul.bf16.gmra.mxu0 %v2423
  %v4195 = vpop.f32.mrf.mxu0
  %v4196 = vadd.f32 0.0, %v4195
  %v4197 = vpop.f32.mrf.mxu0
  %v4198 = vadd.f32 0.0, %v4197
  %4199 = vmatmul.bf16.gmra.mxu0 %v2426
  %v4200 = vpop.f32.mrf.mxu0
  %v4201 = vadd.f32 0.0, %v4200
  %v4202 = vpop.f32.mrf.mxu0
  %v4203 = vadd.f32 0.0, %v4202
  %4204 = vdwg.mxu0
  %4205 = vmatpush.bf16.msra.mxu0 0
  %4206 = vmatpush.bf16.msra.mxu0 0
  %4207 = vmatpush.bf16.msra.mxu0 0
  %4208 = vmatpush.bf16.msra.mxu0 0
  %4209 = vmatpush.bf16.msra.mxu0 0
  %4210 = vmatpush.bf16.msra.mxu0 %v2565
  %4211 = vmatpush.bf16.msra.mxu0 %v1832
  %4212 = vmatpush.bf16.msra.mxu0 %v1675
  %4213 = vmatmul.bf16.gmra.mxu0 %v2417
  %v4214 = vpop.f32.mrf.mxu0
  %v4215 = vadd.f32 0.0, %v4214
  %v4216 = vpop.f32.mrf.mxu0
  %v4217 = vadd.f32 0.0, %v4216
  %4218 = vmatmul.bf16.gmra.mxu0 %v2420
  %v4219 = vpop.f32.mrf.mxu0
  %v4220 = vadd.f32 0.0, %v4219
  %v4221 = vpop.f32.mrf.mxu0
  %v4222 = vadd.f32 0.0, %v4221
  %4223 = vmatmul.bf16.gmra.mxu0 %v2423
  %v4224 = vpop.f32.mrf.mxu0
  %v4225 = vadd.f32 0.0, %v4224
  %v4226 = vpop.f32.mrf.mxu0
  %v4227 = vadd.f32 0.0, %v4226
  %4228 = vmatmul.bf16.gmra.mxu0 %v2426
  %v4229 = vpop.f32.mrf.mxu0
  %v4230 = vadd.f32 0.0, %v4229
  %v4231 = vpop.f32.mrf.mxu0
  %v4232 = vadd.f32 0.0, %v4231
  %4233 = vdwg.mxu0
  %4234 = vmatpush.bf16.msra.mxu0 0
  %4235 = vmatpush.bf16.msra.mxu0 0
  %4236 = vmatpush.bf16.msra.mxu0 0
  %4237 = vmatpush.bf16.msra.mxu0 0
  %4238 = vmatpush.bf16.msra.mxu0 0
  %4239 = vmatpush.bf16.msra.mxu0 %v2568
  %4240 = vmatpush.bf16.msra.mxu0 %v1833
  %4241 = vmatpush.bf16.msra.mxu0 %v1676
  %4242 = vmatmul.bf16.gmra.mxu0 %v2417
  %v4243 = vpop.f32.mrf.mxu0
  %v4244 = vadd.f32 0.0, %v4243
  %v4245 = vpop.f32.mrf.mxu0
  %v4246 = vadd.f32 0.0, %v4245
  %4247 = vmatmul.bf16.gmra.mxu0 %v2420
  %v4248 = vpop.f32.mrf.mxu0
  %v4249 = vadd.f32 0.0, %v4248
  %v4250 = vpop.f32.mrf.mxu0
  %v4251 = vadd.f32 0.0, %v4250
  %4252 = vmatmul.bf16.gmra.mxu0 %v2423
  %v4253 = vpop.f32.mrf.mxu0
  %v4254 = vadd.f32 0.0, %v4253
  %v4255 = vpop.f32.mrf.mxu0
  %v4256 = vadd.f32 0.0, %v4255
  %4257 = vmatmul.bf16.gmra.mxu0 %v2426
  %v4258 = vpop.f32.mrf.mxu0
  %v4259 = vadd.f32 0.0, %v4258
  %v4260 = vpop.f32.mrf.mxu0
  %v4261 = vadd.f32 0.0, %v4260
  %4262 = vdwg.mxu0
  %4263 = vmatpush.bf16.msra.mxu0 0
  %4264 = vmatpush.bf16.msra.mxu0 0
  %4265 = vmatpush.bf16.msra.mxu0 0
  %4266 = vmatpush.bf16.msra.mxu0 0
  %4267 = vmatpush.bf16.msra.mxu0 0
  %4268 = vmatpush.bf16.msra.mxu0 %v2571
  %4269 = vmatpush.bf16.msra.mxu0 %v1834
  %4270 = vmatpush.bf16.msra.mxu0 %v1677
  %4271 = vmatmul.bf16.gmra.mxu0 %v2417
  %v4272 = vpop.f32.mrf.mxu0
  %v4273 = vadd.f32 0.0, %v4272
  %v4274 = vpop.f32.mrf.mxu0
  %v4275 = vadd.f32 0.0, %v4274
  %4276 = vmatmul.bf16.gmra.mxu0 %v2420
  %v4277 = vpop.f32.mrf.mxu0
  %v4278 = vadd.f32 0.0, %v4277
  %v4279 = vpop.f32.mrf.mxu0
  %v4280 = vadd.f32 0.0, %v4279
  %4281 = vmatmul.bf16.gmra.mxu0 %v2423
  %v4282 = vpop.f32.mrf.mxu0
  %v4283 = vadd.f32 0.0, %v4282
  %v4284 = vpop.f32.mrf.mxu0
  %v4285 = vadd.f32 0.0, %v4284
  %4286 = vmatmul.bf16.gmra.mxu0 %v2426
  %v4287 = vpop.f32.mrf.mxu0
  %v4288 = vadd.f32 0.0, %v4287
  %v4289 = vpop.f32.mrf.mxu0
  %v4290 = vadd.f32 0.0, %v4289
  %4291 = vdwg.mxu0
  %4292 = vmatpush.bf16.msra.mxu0 0
  %4293 = vmatpush.bf16.msra.mxu0 0
  %4294 = vmatpush.bf16.msra.mxu0 0
  %4295 = vmatpush.bf16.msra.mxu0 0
  %4296 = vmatpush.bf16.msra.mxu0 0
  %4297 = vmatpush.bf16.msra.mxu0 %v2574
  %4298 = vmatpush.bf16.msra.mxu0 %v1835
  %4299 = vmatpush.bf16.msra.mxu0 %v1678
  %4300 = vmatmul.bf16.gmra.mxu0 %v2417
  %v4301 = vpop.f32.mrf.mxu0
  %v4302 = vadd.f32 0.0, %v4301
  %v4303 = vpop.f32.mrf.mxu0
  %v4304 = vadd.f32 0.0, %v4303
  %4305 = vmatmul.bf16.gmra.mxu0 %v2420
  %v4306 = vpop.f32.mrf.mxu0
  %v4307 = vadd.f32 0.0, %v4306
  %v4308 = vpop.f32.mrf.mxu0
  %v4309 = vadd.f32 0.0, %v4308
  %4310 = vmatmul.bf16.gmra.mxu0 %v2423
  %v4311 = vpop.f32.mrf.mxu0
  %v4312 = vadd.f32 0.0, %v4311
  %v4313 = vpop.f32.mrf.mxu0
  %v4314 = vadd.f32 0.0, %v4313
  %4315 = vmatmul.bf16.gmra.mxu0 %v2426
  %v4316 = vpop.f32.mrf.mxu0
  %v4317 = vadd.f32 0.0, %v4316
  %v4318 = vpop.f32.mrf.mxu0
  %v4319 = vadd.f32 0.0, %v4318
  %4320 = vdwg.mxu0
  %4321 = vmatpush.bf16.msra.mxu0 0
  %4322 = vmatpush.bf16.msra.mxu0 0
  %4323 = vmatpush.bf16.msra.mxu0 0
  %4324 = vmatpush.bf16.msra.mxu0 0
  %4325 = vmatpush.bf16.msra.mxu0 0
  %4326 = vmatpush.bf16.msra.mxu0 %v2577
  %4327 = vmatpush.bf16.msra.mxu0 %v1836
  %4328 = vmatpush.bf16.msra.mxu0 %v1679
  %4329 = vmatmul.bf16.gmra.mxu0 %v2417
  %v4330 = vpop.f32.mrf.mxu0
  %v4331 = vadd.f32 0.0, %v4330
  %v4332 = vpop.f32.mrf.mxu0
  %v4333 = vadd.f32 0.0, %v4332
  %4334 = vmatmul.bf16.gmra.mxu0 %v2420
  %v4335 = vpop.f32.mrf.mxu0
  %v4336 = vadd.f32 0.0, %v4335
  %v4337 = vpop.f32.mrf.mxu0
  %v4338 = vadd.f32 0.0, %v4337
  %4339 = vmatmul.bf16.gmra.mxu0 %v2423
  %v4340 = vpop.f32.mrf.mxu0
  %v4341 = vadd.f32 0.0, %v4340
  %v4342 = vpop.f32.mrf.mxu0
  %v4343 = vadd.f32 0.0, %v4342
  %4344 = vmatmul.bf16.gmra.mxu0 %v2426
  %v4345 = vpop.f32.mrf.mxu0
  %v4346 = vadd.f32 0.0, %v4345
  %v4347 = vpop.f32.mrf.mxu0
  %v4348 = vadd.f32 0.0, %v4347
  %4349 = vdwg.mxu0
  %4350 = vmatpush.bf16.msra.mxu0 0
  %4351 = vmatpush.bf16.msra.mxu0 0
  %4352 = vmatpush.bf16.msra.mxu0 0
  %4353 = vmatpush.bf16.msra.mxu0 0
  %4354 = vmatpush.bf16.msra.mxu0 0
  %4355 = vmatpush.bf16.msra.mxu0 %v2580
  %4356 = vmatpush.bf16.msra.mxu0 %v1837
  %4357 = vmatpush.bf16.msra.mxu0 %v1680
  %4358 = vmatmul.bf16.gmra.mxu0 %v2417
  %v4359 = vpop.f32.mrf.mxu0
  %v4360 = vadd.f32 0.0, %v4359
  %v4361 = vpop.f32.mrf.mxu0
  %v4362 = vadd.f32 0.0, %v4361
  %4363 = vmatmul.bf16.gmra.mxu0 %v2420
  %v4364 = vpop.f32.mrf.mxu0
  %v4365 = vadd.f32 0.0, %v4364
  %v4366 = vpop.f32.mrf.mxu0
  %v4367 = vadd.f32 0.0, %v4366
  %4368 = vmatmul.bf16.gmra.mxu0 %v2423
  %v4369 = vpop.f32.mrf.mxu0
  %v4370 = vadd.f32 0.0, %v4369
  %v4371 = vpop.f32.mrf.mxu0
  %v4372 = vadd.f32 0.0, %v4371
  %4373 = vmatmul.bf16.gmra.mxu0 %v2426
  %v4374 = vpop.f32.mrf.mxu0
  %v4375 = vadd.f32 0.0, %v4374
  %v4376 = vpop.f32.mrf.mxu0
  %v4377 = vadd.f32 0.0, %v4376
  %4378 = vdwg.mxu0
  %4379 = vmatpush.bf16.msra.mxu0 0
  %4380 = vmatpush.bf16.msra.mxu0 0
  %4381 = vmatpush.bf16.msra.mxu0 0
  %4382 = vmatpush.bf16.msra.mxu0 0
  %4383 = vmatpush.bf16.msra.mxu0 0
  %4384 = vmatpush.bf16.msra.mxu0 %v2583
  %4385 = vmatpush.bf16.msra.mxu0 %v1838
  %4386 = vmatpush.bf16.msra.mxu0 %v1681
  %4387 = vmatmul.bf16.gmra.mxu0 %v2417
  %v4388 = vpop.f32.mrf.mxu0
  %v4389 = vadd.f32 0.0, %v4388
  %v4390 = vpop.f32.mrf.mxu0
  %v4391 = vadd.f32 0.0, %v4390
  %4392 = vmatmul.bf16.gmra.mxu0 %v2420
  %v4393 = vpop.f32.mrf.mxu0
  %v4394 = vadd.f32 0.0, %v4393
  %v4395 = vpop.f32.mrf.mxu0
  %v4396 = vadd.f32 0.0, %v4395
  %4397 = vmatmul.bf16.gmra.mxu0 %v2423
  %v4398 = vpop.f32.mrf.mxu0
  %v4399 = vadd.f32 0.0, %v4398
  %v4400 = vpop.f32.mrf.mxu0
  %v4401 = vadd.f32 0.0, %v4400
  %4402 = vmatmul.bf16.gmra.mxu0 %v2426
  %v4403 = vpop.f32.mrf.mxu0
  %v4404 = vadd.f32 0.0, %v4403
  %v4405 = vpop.f32.mrf.mxu0
  %v4406 = vadd.f32 0.0, %v4405
  %4407 = vdwg.mxu0
  %4408 = vmatpush.bf16.msra.mxu0 0
  %4409 = vmatpush.bf16.msra.mxu0 0
  %4410 = vmatpush.bf16.msra.mxu0 0
  %4411 = vmatpush.bf16.msra.mxu0 0
  %4412 = vmatpush.bf16.msra.mxu0 0
  %4413 = vmatpush.bf16.msra.mxu0 %v2586
  %4414 = vmatpush.bf16.msra.mxu0 %v1839
  %4415 = vmatpush.bf16.msra.mxu0 %v1682
  %4416 = vmatmul.bf16.gmra.mxu0 %v2417
  %v4417 = vpop.f32.mrf.mxu0
  %v4418 = vadd.f32 0.0, %v4417
  %v4419 = vpop.f32.mrf.mxu0
  %v4420 = vadd.f32 0.0, %v4419
  %4421 = vmatmul.bf16.gmra.mxu0 %v2420
  %v4422 = vpop.f32.mrf.mxu0
  %v4423 = vadd.f32 0.0, %v4422
  %v4424 = vpop.f32.mrf.mxu0
  %v4425 = vadd.f32 0.0, %v4424
  %4426 = vmatmul.bf16.gmra.mxu0 %v2423
  %v4427 = vpop.f32.mrf.mxu0
  %v4428 = vadd.f32 0.0, %v4427
  %v4429 = vpop.f32.mrf.mxu0
  %v4430 = vadd.f32 0.0, %v4429
  %4431 = vmatmul.bf16.gmra.mxu0 %v2426
  %v4432 = vpop.f32.mrf.mxu0
  %v4433 = vadd.f32 0.0, %v4432
  %v4434 = vpop.f32.mrf.mxu0
  %v4435 = vadd.f32 0.0, %v4434
  %4436 = vdwg.mxu0
  %4437 = vmatpush.bf16.msra.mxu0 0
  %4438 = vmatpush.bf16.msra.mxu0 0
  %4439 = vmatpush.bf16.msra.mxu0 0
  %4440 = vmatpush.bf16.msra.mxu0 0
  %4441 = vmatpush.bf16.msra.mxu0 0
  %4442 = vmatpush.bf16.msra.mxu0 %v2589
  %4443 = vmatpush.bf16.msra.mxu0 %v1840
  %4444 = vmatpush.bf16.msra.mxu0 %v1683
  %4445 = vmatmul.bf16.gmra.mxu0 %v2417
  %v4446 = vpop.f32.mrf.mxu0
  %v4447 = vadd.f32 0.0, %v4446
  %v4448 = vpop.f32.mrf.mxu0
  %v4449 = vadd.f32 0.0, %v4448
  %4450 = vmatmul.bf16.gmra.mxu0 %v2420
  %v4451 = vpop.f32.mrf.mxu0
  %v4452 = vadd.f32 0.0, %v4451
  %v4453 = vpop.f32.mrf.mxu0
  %v4454 = vadd.f32 0.0, %v4453
  %4455 = vmatmul.bf16.gmra.mxu0 %v2423
  %v4456 = vpop.f32.mrf.mxu0
  %v4457 = vadd.f32 0.0, %v4456
  %v4458 = vpop.f32.mrf.mxu0
  %v4459 = vadd.f32 0.0, %v4458
  %4460 = vmatmul.bf16.gmra.mxu0 %v2426
  %v4461 = vpop.f32.mrf.mxu0
  %v4462 = vadd.f32 0.0, %v4461
  %v4463 = vpop.f32.mrf.mxu0
  %v4464 = vadd.f32 0.0, %v4463
  %4465 = vdwg.mxu0
  %4466 = vmatpush.bf16.msra.mxu0 0
  %4467 = vmatpush.bf16.msra.mxu0 0
  %4468 = vmatpush.bf16.msra.mxu0 0
  %4469 = vmatpush.bf16.msra.mxu0 0
  %4470 = vmatpush.bf16.msra.mxu0 0
  %4471 = vmatpush.bf16.msra.mxu0 %v2592
  %4472 = vmatpush.bf16.msra.mxu0 %v1841
  %4473 = vmatpush.bf16.msra.mxu0 %v1684
  %4474 = vmatmul.bf16.gmra.mxu0 %v2417
  %v4475 = vpop.f32.mrf.mxu0
  %v4476 = vadd.f32 0.0, %v4475
  %v4477 = vpop.f32.mrf.mxu0
  %v4478 = vadd.f32 0.0, %v4477
  %4479 = vmatmul.bf16.gmra.mxu0 %v2420
  %v4480 = vpop.f32.mrf.mxu0
  %v4481 = vadd.f32 0.0, %v4480
  %v4482 = vpop.f32.mrf.mxu0
  %v4483 = vadd.f32 0.0, %v4482
  %4484 = vmatmul.bf16.gmra.mxu0 %v2423
  %v4485 = vpop.f32.mrf.mxu0
  %v4486 = vadd.f32 0.0, %v4485
  %v4487 = vpop.f32.mrf.mxu0
  %v4488 = vadd.f32 0.0, %v4487
  %4489 = vmatmul.bf16.gmra.mxu0 %v2426
  %v4490 = vpop.f32.mrf.mxu0
  %v4491 = vadd.f32 0.0, %v4490
  %v4492 = vpop.f32.mrf.mxu0
  %v4493 = vadd.f32 0.0, %v4492
  %4494 = vdwg.mxu0
  %4495 = vmatpush.bf16.msra.mxu0 0
  %4496 = vmatpush.bf16.msra.mxu0 0
  %4497 = vmatpush.bf16.msra.mxu0 0
  %4498 = vmatpush.bf16.msra.mxu0 0
  %4499 = vmatpush.bf16.msra.mxu0 0
  %4500 = vmatpush.bf16.msra.mxu0 %v2595
  %4501 = vmatpush.bf16.msra.mxu0 %v1842
  %4502 = vmatpush.bf16.msra.mxu0 %v1685
  %4503 = vmatmul.bf16.gmra.mxu0 %v2417
  %v4504 = vpop.f32.mrf.mxu0
  %v4505 = vadd.f32 0.0, %v4504
  %v4506 = vpop.f32.mrf.mxu0
  %v4507 = vadd.f32 0.0, %v4506
  %4508 = vmatmul.bf16.gmra.mxu0 %v2420
  %v4509 = vpop.f32.mrf.mxu0
  %v4510 = vadd.f32 0.0, %v4509
  %v4511 = vpop.f32.mrf.mxu0
  %v4512 = vadd.f32 0.0, %v4511
  %4513 = vmatmul.bf16.gmra.mxu0 %v2423
  %v4514 = vpop.f32.mrf.mxu0
  %v4515 = vadd.f32 0.0, %v4514
  %v4516 = vpop.f32.mrf.mxu0
  %v4517 = vadd.f32 0.0, %v4516
  %4518 = vmatmul.bf16.gmra.mxu0 %v2426
  %v4519 = vpop.f32.mrf.mxu0
  %v4520 = vadd.f32 0.0, %v4519
  %v4521 = vpop.f32.mrf.mxu0
  %v4522 = vadd.f32 0.0, %v4521
  %4523 = vdwg.mxu0
  %4524 = vmatpush.bf16.msra.mxu0 0
  %4525 = vmatpush.bf16.msra.mxu0 0
  %4526 = vmatpush.bf16.msra.mxu0 0
  %4527 = vmatpush.bf16.msra.mxu0 0
  %4528 = vmatpush.bf16.msra.mxu0 0
  %4529 = vmatpush.bf16.msra.mxu0 %v2598
  %4530 = vmatpush.bf16.msra.mxu0 %v1843
  %4531 = vmatpush.bf16.msra.mxu0 %v1686
  %4532 = vmatmul.bf16.gmra.mxu0 %v2417
  %v4533 = vpop.f32.mrf.mxu0
  %v4534 = vadd.f32 0.0, %v4533
  %v4535 = vpop.f32.mrf.mxu0
  %v4536 = vadd.f32 0.0, %v4535
  %4537 = vmatmul.bf16.gmra.mxu0 %v2420
  %v4538 = vpop.f32.mrf.mxu0
  %v4539 = vadd.f32 0.0, %v4538
  %v4540 = vpop.f32.mrf.mxu0
  %v4541 = vadd.f32 0.0, %v4540
  %4542 = vmatmul.bf16.gmra.mxu0 %v2423
  %v4543 = vpop.f32.mrf.mxu0
  %v4544 = vadd.f32 0.0, %v4543
  %v4545 = vpop.f32.mrf.mxu0
  %v4546 = vadd.f32 0.0, %v4545
  %4547 = vmatmul.bf16.gmra.mxu0 %v2426
  %v4548 = vpop.f32.mrf.mxu0
  %v4549 = vadd.f32 0.0, %v4548
  %v4550 = vpop.f32.mrf.mxu0
  %v4551 = vadd.f32 0.0, %v4550
  %4552 = vdwg.mxu0
  %4553 = vmatpush.bf16.msra.mxu0 0
  %4554 = vmatpush.bf16.msra.mxu0 0
  %4555 = vmatpush.bf16.msra.mxu0 0
  %4556 = vmatpush.bf16.msra.mxu0 0
  %4557 = vmatpush.bf16.msra.mxu0 0
  %4558 = vmatpush.bf16.msra.mxu0 %v2601
  %4559 = vmatpush.bf16.msra.mxu0 %v1844
  %4560 = vmatpush.bf16.msra.mxu0 %v1687
  %4561 = vmatmul.bf16.gmra.mxu0 %v2417
  %v4562 = vpop.f32.mrf.mxu0
  %v4563 = vadd.f32 0.0, %v4562
  %v4564 = vpop.f32.mrf.mxu0
  %v4565 = vadd.f32 0.0, %v4564
  %4566 = vmatmul.bf16.gmra.mxu0 %v2420
  %v4567 = vpop.f32.mrf.mxu0
  %v4568 = vadd.f32 0.0, %v4567
  %v4569 = vpop.f32.mrf.mxu0
  %v4570 = vadd.f32 0.0, %v4569
  %4571 = vmatmul.bf16.gmra.mxu0 %v2423
  %v4572 = vpop.f32.mrf.mxu0
  %v4573 = vadd.f32 0.0, %v4572
  %v4574 = vpop.f32.mrf.mxu0
  %v4575 = vadd.f32 0.0, %v4574
  %4576 = vmatmul.bf16.gmra.mxu0 %v2426
  %v4577 = vpop.f32.mrf.mxu0
  %v4578 = vadd.f32 0.0, %v4577
  %v4579 = vpop.f32.mrf.mxu0
  %v4580 = vadd.f32 0.0, %v4579
  %4581 = vdwg.mxu0
  %4582 = vmatpush.bf16.msra.mxu0 0
  %4583 = vmatpush.bf16.msra.mxu0 0
  %4584 = vmatpush.bf16.msra.mxu0 0
  %4585 = vmatpush.bf16.msra.mxu0 0
  %4586 = vmatpush.bf16.msra.mxu0 0
  %4587 = vmatpush.bf16.msra.mxu0 %v2604
  %4588 = vmatpush.bf16.msra.mxu0 %v1845
  %4589 = vmatpush.bf16.msra.mxu0 %v1688
  %4590 = vmatmul.bf16.gmra.mxu0 %v2417
  %v4591 = vpop.f32.mrf.mxu0
  %v4592 = vadd.f32 0.0, %v4591
  %v4593 = vpop.f32.mrf.mxu0
  %v4594 = vadd.f32 0.0, %v4593
  %4595 = vmatmul.bf16.gmra.mxu0 %v2420
  %v4596 = vpop.f32.mrf.mxu0
  %v4597 = vadd.f32 0.0, %v4596
  %v4598 = vpop.f32.mrf.mxu0
  %v4599 = vadd.f32 0.0, %v4598
  %4600 = vmatmul.bf16.gmra.mxu0 %v2423
  %v4601 = vpop.f32.mrf.mxu0
  %v4602 = vadd.f32 0.0, %v4601
  %v4603 = vpop.f32.mrf.mxu0
  %v4604 = vadd.f32 0.0, %v4603
  %4605 = vmatmul.bf16.gmra.mxu0 %v2426
  %v4606 = vpop.f32.mrf.mxu0
  %v4607 = vadd.f32 0.0, %v4606
  %v4608 = vpop.f32.mrf.mxu0
  %v4609 = vadd.f32 0.0, %v4608
  %4610 = vdwg.mxu0
  %4611 = vmatpush.bf16.msra.mxu0 0
  %4612 = vmatpush.bf16.msra.mxu0 0
  %4613 = vmatpush.bf16.msra.mxu0 0
  %4614 = vmatpush.bf16.msra.mxu0 0
  %4615 = vmatpush.bf16.msra.mxu0 0
  %4616 = vmatpush.bf16.msra.mxu0 %v2607
  %4617 = vmatpush.bf16.msra.mxu0 %v1846
  %4618 = vmatpush.bf16.msra.mxu0 %v1689
  %4619 = vmatmul.bf16.gmra.mxu0 %v2417
  %v4620 = vpop.f32.mrf.mxu0
  %v4621 = vadd.f32 0.0, %v4620
  %v4622 = vpop.f32.mrf.mxu0
  %v4623 = vadd.f32 0.0, %v4622
  %4624 = vmatmul.bf16.gmra.mxu0 %v2420
  %v4625 = vpop.f32.mrf.mxu0
  %v4626 = vadd.f32 0.0, %v4625
  %v4627 = vpop.f32.mrf.mxu0
  %v4628 = vadd.f32 0.0, %v4627
  %4629 = vmatmul.bf16.gmra.mxu0 %v2423
  %v4630 = vpop.f32.mrf.mxu0
  %v4631 = vadd.f32 0.0, %v4630
  %v4632 = vpop.f32.mrf.mxu0
  %v4633 = vadd.f32 0.0, %v4632
  %4634 = vmatmul.bf16.gmra.mxu0 %v2426
  %v4635 = vpop.f32.mrf.mxu0
  %v4636 = vadd.f32 0.0, %v4635
  %v4637 = vpop.f32.mrf.mxu0
  %v4638 = vadd.f32 0.0, %v4637
  %4639 = vdwg.mxu0
  %4640 = vmatpush.bf16.msra.mxu0 0
  %4641 = vmatpush.bf16.msra.mxu0 0
  %4642 = vmatpush.bf16.msra.mxu0 0
  %4643 = vmatpush.bf16.msra.mxu0 0
  %4644 = vmatpush.bf16.msra.mxu0 0
  %4645 = vmatpush.bf16.msra.mxu0 %v2610
  %4646 = vmatpush.bf16.msra.mxu0 %v1847
  %4647 = vmatpush.bf16.msra.mxu0 %v1690
  %4648 = vmatmul.bf16.gmra.mxu0 %v2417
  %v4649 = vpop.f32.mrf.mxu0
  %v4650 = vadd.f32 0.0, %v4649
  %v4651 = vpop.f32.mrf.mxu0
  %v4652 = vadd.f32 0.0, %v4651
  %4653 = vmatmul.bf16.gmra.mxu0 %v2420
  %v4654 = vpop.f32.mrf.mxu0
  %v4655 = vadd.f32 0.0, %v4654
  %v4656 = vpop.f32.mrf.mxu0
  %v4657 = vadd.f32 0.0, %v4656
  %4658 = vmatmul.bf16.gmra.mxu0 %v2423
  %v4659 = vpop.f32.mrf.mxu0
  %v4660 = vadd.f32 0.0, %v4659
  %v4661 = vpop.f32.mrf.mxu0
  %v4662 = vadd.f32 0.0, %v4661
  %4663 = vmatmul.bf16.gmra.mxu0 %v2426
  %v4664 = vpop.f32.mrf.mxu0
  %v4665 = vadd.f32 0.0, %v4664
  %v4666 = vpop.f32.mrf.mxu0
  %v4667 = vadd.f32 0.0, %v4666
  %4668 = vdwg.mxu0
  %4669 = vmatpush.bf16.msra.mxu0 0
  %4670 = vmatpush.bf16.msra.mxu0 0
  %4671 = vmatpush.bf16.msra.mxu0 0
  %4672 = vmatpush.bf16.msra.mxu0 0
  %4673 = vmatpush.bf16.msra.mxu0 0
  %4674 = vmatpush.bf16.msra.mxu0 %v2613
  %4675 = vmatpush.bf16.msra.mxu0 %v1848
  %4676 = vmatpush.bf16.msra.mxu0 %v1691
  %4677 = vmatmul.bf16.gmra.mxu0 %v2417
  %v4678 = vpop.f32.mrf.mxu0
  %v4679 = vadd.f32 0.0, %v4678
  %v4680 = vpop.f32.mrf.mxu0
  %v4681 = vadd.f32 0.0, %v4680
  %4682 = vmatmul.bf16.gmra.mxu0 %v2420
  %v4683 = vpop.f32.mrf.mxu0
  %v4684 = vadd.f32 0.0, %v4683
  %v4685 = vpop.f32.mrf.mxu0
  %v4686 = vadd.f32 0.0, %v4685
  %4687 = vmatmul.bf16.gmra.mxu0 %v2423
  %v4688 = vpop.f32.mrf.mxu0
  %v4689 = vadd.f32 0.0, %v4688
  %v4690 = vpop.f32.mrf.mxu0
  %v4691 = vadd.f32 0.0, %v4690
  %4692 = vmatmul.bf16.gmra.mxu0 %v2426
  %v4693 = vpop.f32.mrf.mxu0
  %v4694 = vadd.f32 0.0, %v4693
  %v4695 = vpop.f32.mrf.mxu0
  %v4696 = vadd.f32 0.0, %v4695
  %4697 = vdwg.mxu0
  %4698 = vmatpush.bf16.msra.mxu0 0
  %4699 = vmatpush.bf16.msra.mxu0 0
  %4700 = vmatpush.bf16.msra.mxu0 0
  %4701 = vmatpush.bf16.msra.mxu0 0
  %4702 = vmatpush.bf16.msra.mxu0 0
  %4703 = vmatpush.bf16.msra.mxu0 %v2616
  %4704 = vmatpush.bf16.msra.mxu0 %v1849
  %4705 = vmatpush.bf16.msra.mxu0 %v1692
  %4706 = vmatmul.bf16.gmra.mxu0 %v2417
  %v4707 = vpop.f32.mrf.mxu0
  %v4708 = vadd.f32 0.0, %v4707
  %v4709 = vpop.f32.mrf.mxu0
  %v4710 = vadd.f32 0.0, %v4709
  %4711 = vmatmul.bf16.gmra.mxu0 %v2420
  %v4712 = vpop.f32.mrf.mxu0
  %v4713 = vadd.f32 0.0, %v4712
  %v4714 = vpop.f32.mrf.mxu0
  %v4715 = vadd.f32 0.0, %v4714
  %4716 = vmatmul.bf16.gmra.mxu0 %v2423
  %v4717 = vpop.f32.mrf.mxu0
  %v4718 = vadd.f32 0.0, %v4717
  %v4719 = vpop.f32.mrf.mxu0
  %v4720 = vadd.f32 0.0, %v4719
  %4721 = vmatmul.bf16.gmra.mxu0 %v2426
  %v4722 = vpop.f32.mrf.mxu0
  %v4723 = vadd.f32 0.0, %v4722
  %v4724 = vpop.f32.mrf.mxu0
  %v4725 = vadd.f32 0.0, %v4724
  %4726 = vdwg.mxu0
  %4727 = vmatpush.bf16.msra.mxu0 0
  %4728 = vmatpush.bf16.msra.mxu0 0
  %4729 = vmatpush.bf16.msra.mxu0 0
  %4730 = vmatpush.bf16.msra.mxu0 0
  %4731 = vmatpush.bf16.msra.mxu0 0
  %4732 = vmatpush.bf16.msra.mxu0 %v2619
  %4733 = vmatpush.bf16.msra.mxu0 %v1850
  %4734 = vmatpush.bf16.msra.mxu0 %v1693
  %4735 = vmatmul.bf16.gmra.mxu0 %v2417
  %v4736 = vpop.f32.mrf.mxu0
  %v4737 = vadd.f32 0.0, %v4736
  %v4738 = vpop.f32.mrf.mxu0
  %v4739 = vadd.f32 0.0, %v4738
  %4740 = vmatmul.bf16.gmra.mxu0 %v2420
  %v4741 = vpop.f32.mrf.mxu0
  %v4742 = vadd.f32 0.0, %v4741
  %v4743 = vpop.f32.mrf.mxu0
  %v4744 = vadd.f32 0.0, %v4743
  %4745 = vmatmul.bf16.gmra.mxu0 %v2423
  %v4746 = vpop.f32.mrf.mxu0
  %v4747 = vadd.f32 0.0, %v4746
  %v4748 = vpop.f32.mrf.mxu0
  %v4749 = vadd.f32 0.0, %v4748
  %4750 = vmatmul.bf16.gmra.mxu0 %v2426
  %v4751 = vpop.f32.mrf.mxu0
  %v4752 = vadd.f32 0.0, %v4751
  %v4753 = vpop.f32.mrf.mxu0
  %v4754 = vadd.f32 0.0, %v4753
  %4755 = vdwg.mxu0
  %4756 = vmatpush.bf16.msra.mxu0 0
  %4757 = vmatpush.bf16.msra.mxu0 0
  %4758 = vmatpush.bf16.msra.mxu0 0
  %4759 = vmatpush.bf16.msra.mxu0 0
  %4760 = vmatpush.bf16.msra.mxu0 0
  %4761 = vmatpush.bf16.msra.mxu0 %v2622
  %4762 = vmatpush.bf16.msra.mxu0 %v1851
  %4763 = vmatpush.bf16.msra.mxu0 %v1694
  %4764 = vmatmul.bf16.gmra.mxu0 %v2417
  %v4765 = vpop.f32.mrf.mxu0
  %v4766 = vadd.f32 0.0, %v4765
  %v4767 = vpop.f32.mrf.mxu0
  %v4768 = vadd.f32 0.0, %v4767
  %4769 = vmatmul.bf16.gmra.mxu0 %v2420
  %v4770 = vpop.f32.mrf.mxu0
  %v4771 = vadd.f32 0.0, %v4770
  %v4772 = vpop.f32.mrf.mxu0
  %v4773 = vadd.f32 0.0, %v4772
  %4774 = vmatmul.bf16.gmra.mxu0 %v2423
  %v4775 = vpop.f32.mrf.mxu0
  %v4776 = vadd.f32 0.0, %v4775
  %v4777 = vpop.f32.mrf.mxu0
  %v4778 = vadd.f32 0.0, %v4777
  %4779 = vmatmul.bf16.gmra.mxu0 %v2426
  %v4780 = vpop.f32.mrf.mxu0
  %v4781 = vadd.f32 0.0, %v4780
  %v4782 = vpop.f32.mrf.mxu0
  %v4783 = vadd.f32 0.0, %v4782
  %4784 = vdwg.mxu0
  %4785 = vmatpush.bf16.msra.mxu0 0
  %4786 = vmatpush.bf16.msra.mxu0 0
  %4787 = vmatpush.bf16.msra.mxu0 0
  %4788 = vmatpush.bf16.msra.mxu0 0
  %4789 = vmatpush.bf16.msra.mxu0 0
  %4790 = vmatpush.bf16.msra.mxu0 %v2625
  %4791 = vmatpush.bf16.msra.mxu0 %v1852
  %4792 = vmatpush.bf16.msra.mxu0 %v1695
  %4793 = vmatmul.bf16.gmra.mxu0 %v2417
  %v4794 = vpop.f32.mrf.mxu0
  %v4795 = vadd.f32 0.0, %v4794
  %v4796 = vpop.f32.mrf.mxu0
  %v4797 = vadd.f32 0.0, %v4796
  %4798 = vmatmul.bf16.gmra.mxu0 %v2420
  %v4799 = vpop.f32.mrf.mxu0
  %v4800 = vadd.f32 0.0, %v4799
  %v4801 = vpop.f32.mrf.mxu0
  %v4802 = vadd.f32 0.0, %v4801
  %4803 = vmatmul.bf16.gmra.mxu0 %v2423
  %v4804 = vpop.f32.mrf.mxu0
  %v4805 = vadd.f32 0.0, %v4804
  %v4806 = vpop.f32.mrf.mxu0
  %v4807 = vadd.f32 0.0, %v4806
  %4808 = vmatmul.bf16.gmra.mxu0 %v2426
  %v4809 = vpop.f32.mrf.mxu0
  %v4810 = vadd.f32 0.0, %v4809
  %v4811 = vpop.f32.mrf.mxu0
  %v4812 = vadd.f32 0.0, %v4811
  %4813 = vdwg.mxu0
  %4814 = vmatpush.bf16.msra.mxu0 0
  %4815 = vmatpush.bf16.msra.mxu0 0
  %4816 = vmatpush.bf16.msra.mxu0 0
  %4817 = vmatpush.bf16.msra.mxu0 0
  %4818 = vmatpush.bf16.msra.mxu0 0
  %4819 = vmatpush.bf16.msra.mxu0 %v2628
  %4820 = vmatpush.bf16.msra.mxu0 %v1853
  %4821 = vmatpush.bf16.msra.mxu0 %v1696
  %4822 = vmatmul.bf16.gmra.mxu0 %v2417
  %v4823 = vpop.f32.mrf.mxu0
  %v4824 = vadd.f32 0.0, %v4823
  %v4825 = vpop.f32.mrf.mxu0
  %v4826 = vadd.f32 0.0, %v4825
  %4827 = vmatmul.bf16.gmra.mxu0 %v2420
  %v4828 = vpop.f32.mrf.mxu0
  %v4829 = vadd.f32 0.0, %v4828
  %v4830 = vpop.f32.mrf.mxu0
  %v4831 = vadd.f32 0.0, %v4830
  %4832 = vmatmul.bf16.gmra.mxu0 %v2423
  %v4833 = vpop.f32.mrf.mxu0
  %v4834 = vadd.f32 0.0, %v4833
  %v4835 = vpop.f32.mrf.mxu0
  %v4836 = vadd.f32 0.0, %v4835
  %4837 = vmatmul.bf16.gmra.mxu0 %v2426
  %v4838 = vpop.f32.mrf.mxu0
  %v4839 = vadd.f32 0.0, %v4838
  %v4840 = vpop.f32.mrf.mxu0
  %v4841 = vadd.f32 0.0, %v4840
  %4842 = vdwg.mxu0
  %4843 = vmatpush.bf16.msra.mxu0 0
  %4844 = vmatpush.bf16.msra.mxu0 0
  %4845 = vmatpush.bf16.msra.mxu0 0
  %4846 = vmatpush.bf16.msra.mxu0 0
  %4847 = vmatpush.bf16.msra.mxu0 0
  %4848 = vmatpush.bf16.msra.mxu0 %v2631
  %4849 = vmatpush.bf16.msra.mxu0 %v1854
  %4850 = vmatpush.bf16.msra.mxu0 %v1697
  %4851 = vmatmul.bf16.gmra.mxu0 %v2417
  %v4852 = vpop.f32.mrf.mxu0
  %v4853 = vadd.f32 0.0, %v4852
  %v4854 = vpop.f32.mrf.mxu0
  %v4855 = vadd.f32 0.0, %v4854
  %4856 = vmatmul.bf16.gmra.mxu0 %v2420
  %v4857 = vpop.f32.mrf.mxu0
  %v4858 = vadd.f32 0.0, %v4857
  %v4859 = vpop.f32.mrf.mxu0
  %v4860 = vadd.f32 0.0, %v4859
  %4861 = vmatmul.bf16.gmra.mxu0 %v2423
  %v4862 = vpop.f32.mrf.mxu0
  %v4863 = vadd.f32 0.0, %v4862
  %v4864 = vpop.f32.mrf.mxu0
  %v4865 = vadd.f32 0.0, %v4864
  %4866 = vmatmul.bf16.gmra.mxu0 %v2426
  %v4867 = vpop.f32.mrf.mxu0
  %v4868 = vadd.f32 0.0, %v4867
  %v4869 = vpop.f32.mrf.mxu0
  %v4870 = vadd.f32 0.0, %v4869
  %4871 = vdwg.mxu0
  %4872 = vmatpush.bf16.msra.mxu0 0
  %4873 = vmatpush.bf16.msra.mxu0 0
  %4874 = vmatpush.bf16.msra.mxu0 0
  %4875 = vmatpush.bf16.msra.mxu0 0
  %4876 = vmatpush.bf16.msra.mxu0 0
  %4877 = vmatpush.bf16.msra.mxu0 %v2634
  %4878 = vmatpush.bf16.msra.mxu0 %v1855
  %4879 = vmatpush.bf16.msra.mxu0 %v1698
  %4880 = vmatmul.bf16.gmra.mxu0 %v2417
  %v4881 = vpop.f32.mrf.mxu0
  %v4882 = vadd.f32 0.0, %v4881
  %v4883 = vpop.f32.mrf.mxu0
  %v4884 = vadd.f32 0.0, %v4883
  %4885 = vmatmul.bf16.gmra.mxu0 %v2420
  %v4886 = vpop.f32.mrf.mxu0
  %v4887 = vadd.f32 0.0, %v4886
  %v4888 = vpop.f32.mrf.mxu0
  %v4889 = vadd.f32 0.0, %v4888
  %4890 = vmatmul.bf16.gmra.mxu0 %v2423
  %v4891 = vpop.f32.mrf.mxu0
  %v4892 = vadd.f32 0.0, %v4891
  %v4893 = vpop.f32.mrf.mxu0
  %v4894 = vadd.f32 0.0, %v4893
  %4895 = vmatmul.bf16.gmra.mxu0 %v2426
  %v4896 = vpop.f32.mrf.mxu0
  %v4897 = vadd.f32 0.0, %v4896
  %v4898 = vpop.f32.mrf.mxu0
  %v4899 = vadd.f32 0.0, %v4898
  %4900 = vdwg.mxu0
  %4901 = vmatpush.bf16.msra.mxu0 0
  %4902 = vmatpush.bf16.msra.mxu0 0
  %4903 = vmatpush.bf16.msra.mxu0 0
  %4904 = vmatpush.bf16.msra.mxu0 0
  %4905 = vmatpush.bf16.msra.mxu0 0
  %4906 = vmatpush.bf16.msra.mxu0 %v2637
  %4907 = vmatpush.bf16.msra.mxu0 %v1856
  %4908 = vmatpush.bf16.msra.mxu0 %v1699
  %4909 = vmatmul.bf16.gmra.mxu0 %v2417
  %v4910 = vpop.f32.mrf.mxu0
  %v4911 = vadd.f32 0.0, %v4910
  %v4912 = vpop.f32.mrf.mxu0
  %v4913 = vadd.f32 0.0, %v4912
  %4914 = vmatmul.bf16.gmra.mxu0 %v2420
  %v4915 = vpop.f32.mrf.mxu0
  %v4916 = vadd.f32 0.0, %v4915
  %v4917 = vpop.f32.mrf.mxu0
  %v4918 = vadd.f32 0.0, %v4917
  %4919 = vmatmul.bf16.gmra.mxu0 %v2423
  %v4920 = vpop.f32.mrf.mxu0
  %v4921 = vadd.f32 0.0, %v4920
  %v4922 = vpop.f32.mrf.mxu0
  %v4923 = vadd.f32 0.0, %v4922
  %4924 = vmatmul.bf16.gmra.mxu0 %v2426
  %v4925 = vpop.f32.mrf.mxu0
  %v4926 = vadd.f32 0.0, %v4925
  %v4927 = vpop.f32.mrf.mxu0
  %v4928 = vadd.f32 0.0, %v4927
  %4929 = vdwg.mxu0
  %4930 = vmatpush.bf16.msra.mxu0 0
  %4931 = vmatpush.bf16.msra.mxu0 0
  %4932 = vmatpush.bf16.msra.mxu0 0
  %4933 = vmatpush.bf16.msra.mxu0 0
  %4934 = vmatpush.bf16.msra.mxu0 0
  %4935 = vmatpush.bf16.msra.mxu0 %v2640
  %4936 = vmatpush.bf16.msra.mxu0 %v1857
  %4937 = vmatpush.bf16.msra.mxu0 %v1700
  %4938 = vmatmul.bf16.gmra.mxu0 %v2417
  %v4939 = vpop.f32.mrf.mxu0
  %v4940 = vadd.f32 0.0, %v4939
  %v4941 = vpop.f32.mrf.mxu0
  %v4942 = vadd.f32 0.0, %v4941
  %4943 = vmatmul.bf16.gmra.mxu0 %v2420
  %v4944 = vpop.f32.mrf.mxu0
  %v4945 = vadd.f32 0.0, %v4944
  %v4946 = vpop.f32.mrf.mxu0
  %v4947 = vadd.f32 0.0, %v4946
  %4948 = vmatmul.bf16.gmra.mxu0 %v2423
  %v4949 = vpop.f32.mrf.mxu0
  %v4950 = vadd.f32 0.0, %v4949
  %v4951 = vpop.f32.mrf.mxu0
  %v4952 = vadd.f32 0.0, %v4951
  %4953 = vmatmul.bf16.gmra.mxu0 %v2426
  %v4954 = vpop.f32.mrf.mxu0
  %v4955 = vadd.f32 0.0, %v4954
  %v4956 = vpop.f32.mrf.mxu0
  %v4957 = vadd.f32 0.0, %v4956
  %4958 = vdwg.mxu0
  %4959 = vmatpush.bf16.msra.mxu0 0
  %4960 = vmatpush.bf16.msra.mxu0 0
  %4961 = vmatpush.bf16.msra.mxu0 0
  %4962 = vmatpush.bf16.msra.mxu0 0
  %4963 = vmatpush.bf16.msra.mxu0 0
  %4964 = vmatpush.bf16.msra.mxu0 %v2643
  %4965 = vmatpush.bf16.msra.mxu0 %v1858
  %4966 = vmatpush.bf16.msra.mxu0 %v1701
  %4967 = vmatmul.bf16.gmra.mxu0 %v2417
  %v4968 = vpop.f32.mrf.mxu0
  %v4969 = vadd.f32 0.0, %v4968
  %v4970 = vpop.f32.mrf.mxu0
  %v4971 = vadd.f32 0.0, %v4970
  %4972 = vmatmul.bf16.gmra.mxu0 %v2420
  %v4973 = vpop.f32.mrf.mxu0
  %v4974 = vadd.f32 0.0, %v4973
  %v4975 = vpop.f32.mrf.mxu0
  %v4976 = vadd.f32 0.0, %v4975
  %4977 = vmatmul.bf16.gmra.mxu0 %v2423
  %v4978 = vpop.f32.mrf.mxu0
  %v4979 = vadd.f32 0.0, %v4978
  %v4980 = vpop.f32.mrf.mxu0
  %v4981 = vadd.f32 0.0, %v4980
  %4982 = vmatmul.bf16.gmra.mxu0 %v2426
  %v4983 = vpop.f32.mrf.mxu0
  %v4984 = vadd.f32 0.0, %v4983
  %v4985 = vpop.f32.mrf.mxu0
  %v4986 = vadd.f32 0.0, %v4985
  %4987 = vdwg.mxu0
  %4988 = vmatpush.bf16.msra.mxu0 0
  %4989 = vmatpush.bf16.msra.mxu0 0
  %4990 = vmatpush.bf16.msra.mxu0 0
  %4991 = vmatpush.bf16.msra.mxu0 0
  %4992 = vmatpush.bf16.msra.mxu0 0
  %4993 = vmatpush.bf16.msra.mxu0 %v2646
  %4994 = vmatpush.bf16.msra.mxu0 %v1859
  %4995 = vmatpush.bf16.msra.mxu0 %v1702
  %4996 = vmatmul.bf16.gmra.mxu0 %v2417
  %v4997 = vpop.f32.mrf.mxu0
  %v4998 = vadd.f32 0.0, %v4997
  %v4999 = vpop.f32.mrf.mxu0
  %v5000 = vadd.f32 0.0, %v4999
  %5001 = vmatmul.bf16.gmra.mxu0 %v2420
  %v5002 = vpop.f32.mrf.mxu0
  %v5003 = vadd.f32 0.0, %v5002
  %v5004 = vpop.f32.mrf.mxu0
  %v5005 = vadd.f32 0.0, %v5004
  %5006 = vmatmul.bf16.gmra.mxu0 %v2423
  %v5007 = vpop.f32.mrf.mxu0
  %v5008 = vadd.f32 0.0, %v5007
  %v5009 = vpop.f32.mrf.mxu0
  %v5010 = vadd.f32 0.0, %v5009
  %5011 = vmatmul.bf16.gmra.mxu0 %v2426
  %v5012 = vpop.f32.mrf.mxu0
  %v5013 = vadd.f32 0.0, %v5012
  %v5014 = vpop.f32.mrf.mxu0
  %v5015 = vadd.f32 0.0, %v5014
  %5016 = vdwg.mxu0
  %5017 = vmatpush.bf16.msra.mxu0 0
  %5018 = vmatpush.bf16.msra.mxu0 0
  %5019 = vmatpush.bf16.msra.mxu0 0
  %5020 = vmatpush.bf16.msra.mxu0 0
  %5021 = vmatpush.bf16.msra.mxu0 0
  %5022 = vmatpush.bf16.msra.mxu0 %v2649
  %5023 = vmatpush.bf16.msra.mxu0 %v1860
  %5024 = vmatpush.bf16.msra.mxu0 %v1703
  %5025 = vmatmul.bf16.gmra.mxu0 %v2417
  %v5026 = vpop.f32.mrf.mxu0
  %v5027 = vadd.f32 0.0, %v5026
  %v5028 = vpop.f32.mrf.mxu0
  %v5029 = vadd.f32 0.0, %v5028
  %5030 = vmatmul.bf16.gmra.mxu0 %v2420
  %v5031 = vpop.f32.mrf.mxu0
  %v5032 = vadd.f32 0.0, %v5031
  %v5033 = vpop.f32.mrf.mxu0
  %v5034 = vadd.f32 0.0, %v5033
  %5035 = vmatmul.bf16.gmra.mxu0 %v2423
  %v5036 = vpop.f32.mrf.mxu0
  %v5037 = vadd.f32 0.0, %v5036
  %v5038 = vpop.f32.mrf.mxu0
  %v5039 = vadd.f32 0.0, %v5038
  %5040 = vmatmul.bf16.gmra.mxu0 %v2426
  %v5041 = vpop.f32.mrf.mxu0
  %v5042 = vadd.f32 0.0, %v5041
  %v5043 = vpop.f32.mrf.mxu0
  %v5044 = vadd.f32 0.0, %v5043
  %5045 = vdwg.mxu0
  %5046 = vmatpush.bf16.msra.mxu0 0
  %5047 = vmatpush.bf16.msra.mxu0 0
  %5048 = vmatpush.bf16.msra.mxu0 0
  %5049 = vmatpush.bf16.msra.mxu0 0
  %5050 = vmatpush.bf16.msra.mxu0 0
  %5051 = vmatpush.bf16.msra.mxu0 %v2652
  %5052 = vmatpush.bf16.msra.mxu0 %v1861
  %5053 = vmatpush.bf16.msra.mxu0 %v1704
  %5054 = vmatmul.bf16.gmra.mxu0 %v2417
  %v5055 = vpop.f32.mrf.mxu0
  %v5056 = vadd.f32 0.0, %v5055
  %v5057 = vpop.f32.mrf.mxu0
  %v5058 = vadd.f32 0.0, %v5057
  %5059 = vmatmul.bf16.gmra.mxu0 %v2420
  %v5060 = vpop.f32.mrf.mxu0
  %v5061 = vadd.f32 0.0, %v5060
  %v5062 = vpop.f32.mrf.mxu0
  %v5063 = vadd.f32 0.0, %v5062
  %5064 = vmatmul.bf16.gmra.mxu0 %v2423
  %v5065 = vpop.f32.mrf.mxu0
  %v5066 = vadd.f32 0.0, %v5065
  %v5067 = vpop.f32.mrf.mxu0
  %v5068 = vadd.f32 0.0, %v5067
  %5069 = vmatmul.bf16.gmra.mxu0 %v2426
  %v5070 = vpop.f32.mrf.mxu0
  %v5071 = vadd.f32 0.0, %v5070
  %v5072 = vpop.f32.mrf.mxu0
  %v5073 = vadd.f32 0.0, %v5072
  %5074 = vdwg.mxu0
  %5075 = vmatpush.bf16.msra.mxu0 0
  %5076 = vmatpush.bf16.msra.mxu0 0
  %5077 = vmatpush.bf16.msra.mxu0 0
  %5078 = vmatpush.bf16.msra.mxu0 0
  %5079 = vmatpush.bf16.msra.mxu0 0
  %5080 = vmatpush.bf16.msra.mxu0 %v2655
  %5081 = vmatpush.bf16.msra.mxu0 %v1862
  %5082 = vmatpush.bf16.msra.mxu0 %v1705
  %5083 = vmatmul.bf16.gmra.mxu0 %v2417
  %v5084 = vpop.f32.mrf.mxu0
  %v5085 = vadd.f32 0.0, %v5084
  %v5086 = vpop.f32.mrf.mxu0
  %v5087 = vadd.f32 0.0, %v5086
  %5088 = vmatmul.bf16.gmra.mxu0 %v2420
  %v5089 = vpop.f32.mrf.mxu0
  %v5090 = vadd.f32 0.0, %v5089
  %v5091 = vpop.f32.mrf.mxu0
  %v5092 = vadd.f32 0.0, %v5091
  %5093 = vmatmul.bf16.gmra.mxu0 %v2423
  %v5094 = vpop.f32.mrf.mxu0
  %v5095 = vadd.f32 0.0, %v5094
  %v5096 = vpop.f32.mrf.mxu0
  %v5097 = vadd.f32 0.0, %v5096
  %5098 = vmatmul.bf16.gmra.mxu0 %v2426
  %v5099 = vpop.f32.mrf.mxu0
  %v5100 = vadd.f32 0.0, %v5099
  %v5101 = vpop.f32.mrf.mxu0
  %v5102 = vadd.f32 0.0, %v5101
  %5103 = vdwg.mxu0
  %5104 = vmatpush.bf16.msra.mxu0 0
  %5105 = vmatpush.bf16.msra.mxu0 0
  %5106 = vmatpush.bf16.msra.mxu0 0
  %5107 = vmatpush.bf16.msra.mxu0 0
  %5108 = vmatpush.bf16.msra.mxu0 0
  %5109 = vmatpush.bf16.msra.mxu0 %v2658
  %5110 = vmatpush.bf16.msra.mxu0 %v1863
  %5111 = vmatpush.bf16.msra.mxu0 %v1706
  %5112 = vmatmul.bf16.gmra.mxu0 %v2417
  %v5113 = vpop.f32.mrf.mxu0
  %v5114 = vadd.f32 0.0, %v5113
  %v5115 = vpop.f32.mrf.mxu0
  %v5116 = vadd.f32 0.0, %v5115
  %5117 = vmatmul.bf16.gmra.mxu0 %v2420
  %v5118 = vpop.f32.mrf.mxu0
  %v5119 = vadd.f32 0.0, %v5118
  %v5120 = vpop.f32.mrf.mxu0
  %v5121 = vadd.f32 0.0, %v5120
  %5122 = vmatmul.bf16.gmra.mxu0 %v2423
  %v5123 = vpop.f32.mrf.mxu0
  %v5124 = vadd.f32 0.0, %v5123
  %v5125 = vpop.f32.mrf.mxu0
  %v5126 = vadd.f32 0.0, %v5125
  %5127 = vmatmul.bf16.gmra.mxu0 %v2426
  %v5128 = vpop.f32.mrf.mxu0
  %v5129 = vadd.f32 0.0, %v5128
  %v5130 = vpop.f32.mrf.mxu0
  %v5131 = vadd.f32 0.0, %v5130
  %5132 = vdwg.mxu0
  %5133 = vmatpush.bf16.msra.mxu0 0
  %5134 = vmatpush.bf16.msra.mxu0 0
  %5135 = vmatpush.bf16.msra.mxu0 0
  %5136 = vmatpush.bf16.msra.mxu0 0
  %5137 = vmatpush.bf16.msra.mxu0 0
  %5138 = vmatpush.bf16.msra.mxu0 %v2661
  %5139 = vmatpush.bf16.msra.mxu0 %v1864
  %5140 = vmatpush.bf16.msra.mxu0 %v1707
  %5141 = vmatmul.bf16.gmra.mxu0 %v2417
  %v5142 = vpop.f32.mrf.mxu0
  %v5143 = vadd.f32 0.0, %v5142
  %v5144 = vpop.f32.mrf.mxu0
  %v5145 = vadd.f32 0.0, %v5144
  %5146 = vmatmul.bf16.gmra.mxu0 %v2420
  %v5147 = vpop.f32.mrf.mxu0
  %v5148 = vadd.f32 0.0, %v5147
  %v5149 = vpop.f32.mrf.mxu0
  %v5150 = vadd.f32 0.0, %v5149
  %5151 = vmatmul.bf16.gmra.mxu0 %v2423
  %v5152 = vpop.f32.mrf.mxu0
  %v5153 = vadd.f32 0.0, %v5152
  %v5154 = vpop.f32.mrf.mxu0
  %v5155 = vadd.f32 0.0, %v5154
  %5156 = vmatmul.bf16.gmra.mxu0 %v2426
  %v5157 = vpop.f32.mrf.mxu0
  %v5158 = vadd.f32 0.0, %v5157
  %v5159 = vpop.f32.mrf.mxu0
  %v5160 = vadd.f32 0.0, %v5159
  %5161 = vdwg.mxu0
  %5162 = vmatpush.bf16.msra.mxu0 0
  %5163 = vmatpush.bf16.msra.mxu0 0
  %5164 = vmatpush.bf16.msra.mxu0 0
  %5165 = vmatpush.bf16.msra.mxu0 0
  %5166 = vmatpush.bf16.msra.mxu0 0
  %5167 = vmatpush.bf16.msra.mxu0 %v2664
  %5168 = vmatpush.bf16.msra.mxu0 %v1865
  %5169 = vmatpush.bf16.msra.mxu0 %v1708
  %5170 = vmatmul.bf16.gmra.mxu0 %v2417
  %v5171 = vpop.f32.mrf.mxu0
  %v5172 = vadd.f32 0.0, %v5171
  %v5173 = vpop.f32.mrf.mxu0
  %v5174 = vadd.f32 0.0, %v5173
  %5175 = vmatmul.bf16.gmra.mxu0 %v2420
  %v5176 = vpop.f32.mrf.mxu0
  %v5177 = vadd.f32 0.0, %v5176
  %v5178 = vpop.f32.mrf.mxu0
  %v5179 = vadd.f32 0.0, %v5178
  %5180 = vmatmul.bf16.gmra.mxu0 %v2423
  %v5181 = vpop.f32.mrf.mxu0
  %v5182 = vadd.f32 0.0, %v5181
  %v5183 = vpop.f32.mrf.mxu0
  %v5184 = vadd.f32 0.0, %v5183
  %5185 = vmatmul.bf16.gmra.mxu0 %v2426
  %v5186 = vpop.f32.mrf.mxu0
  %v5187 = vadd.f32 0.0, %v5186
  %v5188 = vpop.f32.mrf.mxu0
  %v5189 = vadd.f32 0.0, %v5188
  %5190 = vdwg.mxu0
  %5191 = vmatpush.bf16.msra.mxu0 0
  %5192 = vmatpush.bf16.msra.mxu0 0
  %5193 = vmatpush.bf16.msra.mxu0 0
  %5194 = vmatpush.bf16.msra.mxu0 0
  %5195 = vmatpush.bf16.msra.mxu0 0
  %5196 = vmatpush.bf16.msra.mxu0 %v2667
  %5197 = vmatpush.bf16.msra.mxu0 %v1866
  %5198 = vmatpush.bf16.msra.mxu0 %v1709
  %5199 = vmatmul.bf16.gmra.mxu0 %v2417
  %v5200 = vpop.f32.mrf.mxu0
  %v5201 = vadd.f32 0.0, %v5200
  %v5202 = vpop.f32.mrf.mxu0
  %v5203 = vadd.f32 0.0, %v5202
  %5204 = vmatmul.bf16.gmra.mxu0 %v2420
  %v5205 = vpop.f32.mrf.mxu0
  %v5206 = vadd.f32 0.0, %v5205
  %v5207 = vpop.f32.mrf.mxu0
  %v5208 = vadd.f32 0.0, %v5207
  %5209 = vmatmul.bf16.gmra.mxu0 %v2423
  %v5210 = vpop.f32.mrf.mxu0
  %v5211 = vadd.f32 0.0, %v5210
  %v5212 = vpop.f32.mrf.mxu0
  %v5213 = vadd.f32 0.0, %v5212
  %5214 = vmatmul.bf16.gmra.mxu0 %v2426
  %v5215 = vpop.f32.mrf.mxu0
  %v5216 = vadd.f32 0.0, %v5215
  %v5217 = vpop.f32.mrf.mxu0
  %v5218 = vadd.f32 0.0, %v5217
  %5219 = vdwg.mxu0
  %5220 = vmatpush.bf16.msra.mxu0 0
  %5221 = vmatpush.bf16.msra.mxu0 0
  %5222 = vmatpush.bf16.msra.mxu0 0
  %5223 = vmatpush.bf16.msra.mxu0 0
  %5224 = vmatpush.bf16.msra.mxu0 0
  %5225 = vmatpush.bf16.msra.mxu0 %v2670
  %5226 = vmatpush.bf16.msra.mxu0 %v1867
  %5227 = vmatpush.bf16.msra.mxu0 %v1710
  %5228 = vmatmul.bf16.gmra.mxu0 %v2417
  %v5229 = vpop.f32.mrf.mxu0
  %v5230 = vadd.f32 0.0, %v5229
  %v5231 = vpop.f32.mrf.mxu0
  %v5232 = vadd.f32 0.0, %v5231
  %5233 = vmatmul.bf16.gmra.mxu0 %v2420
  %v5234 = vpop.f32.mrf.mxu0
  %v5235 = vadd.f32 0.0, %v5234
  %v5236 = vpop.f32.mrf.mxu0
  %v5237 = vadd.f32 0.0, %v5236
  %5238 = vmatmul.bf16.gmra.mxu0 %v2423
  %v5239 = vpop.f32.mrf.mxu0
  %v5240 = vadd.f32 0.0, %v5239
  %v5241 = vpop.f32.mrf.mxu0
  %v5242 = vadd.f32 0.0, %v5241
  %5243 = vmatmul.bf16.gmra.mxu0 %v2426
  %v5244 = vpop.f32.mrf.mxu0
  %v5245 = vadd.f32 0.0, %v5244
  %v5246 = vpop.f32.mrf.mxu0
  %v5247 = vadd.f32 0.0, %v5246
  %5248 = vdwg.mxu0
  %5249 = vmatpush.bf16.msra.mxu0 0
  %5250 = vmatpush.bf16.msra.mxu0 0
  %5251 = vmatpush.bf16.msra.mxu0 0
  %5252 = vmatpush.bf16.msra.mxu0 0
  %5253 = vmatpush.bf16.msra.mxu0 0
  %5254 = vmatpush.bf16.msra.mxu0 %v2673
  %5255 = vmatpush.bf16.msra.mxu0 %v1868
  %5256 = vmatpush.bf16.msra.mxu0 %v1711
  %5257 = vmatmul.bf16.gmra.mxu0 %v2417
  %v5258 = vpop.f32.mrf.mxu0
  %v5259 = vadd.f32 0.0, %v5258
  %v5260 = vpop.f32.mrf.mxu0
  %v5261 = vadd.f32 0.0, %v5260
  %5262 = vmatmul.bf16.gmra.mxu0 %v2420
  %v5263 = vpop.f32.mrf.mxu0
  %v5264 = vadd.f32 0.0, %v5263
  %v5265 = vpop.f32.mrf.mxu0
  %v5266 = vadd.f32 0.0, %v5265
  %5267 = vmatmul.bf16.gmra.mxu0 %v2423
  %v5268 = vpop.f32.mrf.mxu0
  %v5269 = vadd.f32 0.0, %v5268
  %v5270 = vpop.f32.mrf.mxu0
  %v5271 = vadd.f32 0.0, %v5270
  %5272 = vmatmul.bf16.gmra.mxu0 %v2426
  %v5273 = vpop.f32.mrf.mxu0
  %v5274 = vadd.f32 0.0, %v5273
  %v5275 = vpop.f32.mrf.mxu0
  %v5276 = vadd.f32 0.0, %v5275
  %5277 = vdwg.mxu0
  %5278 = vmatpush.bf16.msra.mxu0 0
  %5279 = vmatpush.bf16.msra.mxu0 0
  %5280 = vmatpush.bf16.msra.mxu0 0
  %5281 = vmatpush.bf16.msra.mxu0 0
  %5282 = vmatpush.bf16.msra.mxu0 0
  %5283 = vmatpush.bf16.msra.mxu0 %v2676
  %5284 = vmatpush.bf16.msra.mxu0 %v1869
  %5285 = vmatpush.bf16.msra.mxu0 %v1712
  %5286 = vmatmul.bf16.gmra.mxu0 %v2417
  %v5287 = vpop.f32.mrf.mxu0
  %v5288 = vadd.f32 0.0, %v5287
  %v5289 = vpop.f32.mrf.mxu0
  %v5290 = vadd.f32 0.0, %v5289
  %5291 = vmatmul.bf16.gmra.mxu0 %v2420
  %v5292 = vpop.f32.mrf.mxu0
  %v5293 = vadd.f32 0.0, %v5292
  %v5294 = vpop.f32.mrf.mxu0
  %v5295 = vadd.f32 0.0, %v5294
  %5296 = vmatmul.bf16.gmra.mxu0 %v2423
  %v5297 = vpop.f32.mrf.mxu0
  %v5298 = vadd.f32 0.0, %v5297
  %v5299 = vpop.f32.mrf.mxu0
  %v5300 = vadd.f32 0.0, %v5299
  %5301 = vmatmul.bf16.gmra.mxu0 %v2426
  %v5302 = vpop.f32.mrf.mxu0
  %v5303 = vadd.f32 0.0, %v5302
  %v5304 = vpop.f32.mrf.mxu0
  %v5305 = vadd.f32 0.0, %v5304
  %5306 = vdwg.mxu0
  %5307 = vmatpush.bf16.msra.mxu0 0
  %5308 = vmatpush.bf16.msra.mxu0 0
  %5309 = vmatpush.bf16.msra.mxu0 0
  %5310 = vmatpush.bf16.msra.mxu0 0
  %5311 = vmatpush.bf16.msra.mxu0 0
  %5312 = vmatpush.bf16.msra.mxu0 %v2679
  %5313 = vmatpush.bf16.msra.mxu0 %v1870
  %5314 = vmatpush.bf16.msra.mxu0 %v1713
  %5315 = vmatmul.bf16.gmra.mxu0 %v2417
  %v5316 = vpop.f32.mrf.mxu0
  %v5317 = vadd.f32 0.0, %v5316
  %v5318 = vpop.f32.mrf.mxu0
  %v5319 = vadd.f32 0.0, %v5318
  %5320 = vmatmul.bf16.gmra.mxu0 %v2420
  %v5321 = vpop.f32.mrf.mxu0
  %v5322 = vadd.f32 0.0, %v5321
  %v5323 = vpop.f32.mrf.mxu0
  %v5324 = vadd.f32 0.0, %v5323
  %5325 = vmatmul.bf16.gmra.mxu0 %v2423
  %v5326 = vpop.f32.mrf.mxu0
  %v5327 = vadd.f32 0.0, %v5326
  %v5328 = vpop.f32.mrf.mxu0
  %v5329 = vadd.f32 0.0, %v5328
  %5330 = vmatmul.bf16.gmra.mxu0 %v2426
  %v5331 = vpop.f32.mrf.mxu0
  %v5332 = vadd.f32 0.0, %v5331
  %v5333 = vpop.f32.mrf.mxu0
  %v5334 = vadd.f32 0.0, %v5333
  %5335 = vdwg.mxu0
  %5336 = vmatpush.bf16.msra.mxu0 0
  %5337 = vmatpush.bf16.msra.mxu0 0
  %5338 = vmatpush.bf16.msra.mxu0 0
  %5339 = vmatpush.bf16.msra.mxu0 0
  %5340 = vmatpush.bf16.msra.mxu0 0
  %5341 = vmatpush.bf16.msra.mxu0 %v2682
  %5342 = vmatpush.bf16.msra.mxu0 %v1871
  %5343 = vmatpush.bf16.msra.mxu0 %v1714
  %5344 = vmatmul.bf16.gmra.mxu0 %v2417
  %v5345 = vpop.f32.mrf.mxu0
  %v5346 = vadd.f32 0.0, %v5345
  %v5347 = vpop.f32.mrf.mxu0
  %v5348 = vadd.f32 0.0, %v5347
  %5349 = vmatmul.bf16.gmra.mxu0 %v2420
  %v5350 = vpop.f32.mrf.mxu0
  %v5351 = vadd.f32 0.0, %v5350
  %v5352 = vpop.f32.mrf.mxu0
  %v5353 = vadd.f32 0.0, %v5352
  %5354 = vmatmul.bf16.gmra.mxu0 %v2423
  %v5355 = vpop.f32.mrf.mxu0
  %v5356 = vadd.f32 0.0, %v5355
  %v5357 = vpop.f32.mrf.mxu0
  %v5358 = vadd.f32 0.0, %v5357
  %5359 = vmatmul.bf16.gmra.mxu0 %v2426
  %v5360 = vpop.f32.mrf.mxu0
  %v5361 = vadd.f32 0.0, %v5360
  %v5362 = vpop.f32.mrf.mxu0
  %v5363 = vadd.f32 0.0, %v5362
  %5364 = vdwg.mxu0
  %5365 = vmatpush.bf16.msra.mxu0 0
  %5366 = vmatpush.bf16.msra.mxu0 0
  %5367 = vmatpush.bf16.msra.mxu0 0
  %5368 = vmatpush.bf16.msra.mxu0 0
  %5369 = vmatpush.bf16.msra.mxu0 0
  %5370 = vmatpush.bf16.msra.mxu0 %v2685
  %5371 = vmatpush.bf16.msra.mxu0 %v1872
  %5372 = vmatpush.bf16.msra.mxu0 %v1715
  %5373 = vmatmul.bf16.gmra.mxu0 %v2417
  %v5374 = vpop.f32.mrf.mxu0
  %v5375 = vadd.f32 0.0, %v5374
  %v5376 = vpop.f32.mrf.mxu0
  %v5377 = vadd.f32 0.0, %v5376
  %5378 = vmatmul.bf16.gmra.mxu0 %v2420
  %v5379 = vpop.f32.mrf.mxu0
  %v5380 = vadd.f32 0.0, %v5379
  %v5381 = vpop.f32.mrf.mxu0
  %v5382 = vadd.f32 0.0, %v5381
  %5383 = vmatmul.bf16.gmra.mxu0 %v2423
  %v5384 = vpop.f32.mrf.mxu0
  %v5385 = vadd.f32 0.0, %v5384
  %v5386 = vpop.f32.mrf.mxu0
  %v5387 = vadd.f32 0.0, %v5386
  %5388 = vmatmul.bf16.gmra.mxu0 %v2426
  %v5389 = vpop.f32.mrf.mxu0
  %v5390 = vadd.f32 0.0, %v5389
  %v5391 = vpop.f32.mrf.mxu0
  %v5392 = vadd.f32 0.0, %v5391
  %5393 = vdwg.mxu0
  %5394 = vmatpush.bf16.msra.mxu0 0
  %5395 = vmatpush.bf16.msra.mxu0 0
  %5396 = vmatpush.bf16.msra.mxu0 0
  %5397 = vmatpush.bf16.msra.mxu0 0
  %5398 = vmatpush.bf16.msra.mxu0 0
  %5399 = vmatpush.bf16.msra.mxu0 %v2688
  %5400 = vmatpush.bf16.msra.mxu0 %v1873
  %5401 = vmatpush.bf16.msra.mxu0 %v1716
  %5402 = vmatmul.bf16.gmra.mxu0 %v2417
  %v5403 = vpop.f32.mrf.mxu0
  %v5404 = vadd.f32 0.0, %v5403
  %v5405 = vpop.f32.mrf.mxu0
  %v5406 = vadd.f32 0.0, %v5405
  %5407 = vmatmul.bf16.gmra.mxu0 %v2420
  %v5408 = vpop.f32.mrf.mxu0
  %v5409 = vadd.f32 0.0, %v5408
  %v5410 = vpop.f32.mrf.mxu0
  %v5411 = vadd.f32 0.0, %v5410
  %5412 = vmatmul.bf16.gmra.mxu0 %v2423
  %v5413 = vpop.f32.mrf.mxu0
  %v5414 = vadd.f32 0.0, %v5413
  %v5415 = vpop.f32.mrf.mxu0
  %v5416 = vadd.f32 0.0, %v5415
  %5417 = vmatmul.bf16.gmra.mxu0 %v2426
  %v5418 = vpop.f32.mrf.mxu0
  %v5419 = vadd.f32 0.0, %v5418
  %v5420 = vpop.f32.mrf.mxu0
  %v5421 = vadd.f32 0.0, %v5420
  %5422 = vdwg.mxu0
  %5423 = vmatpush.bf16.msra.mxu0 0
  %5424 = vmatpush.bf16.msra.mxu0 0
  %5425 = vmatpush.bf16.msra.mxu0 0
  %5426 = vmatpush.bf16.msra.mxu0 0
  %5427 = vmatpush.bf16.msra.mxu0 0
  %5428 = vmatpush.bf16.msra.mxu0 %v2691
  %5429 = vmatpush.bf16.msra.mxu0 %v1874
  %5430 = vmatpush.bf16.msra.mxu0 %v1717
  %5431 = vmatmul.bf16.gmra.mxu0 %v2417
  %v5432 = vpop.f32.mrf.mxu0
  %v5433 = vadd.f32 0.0, %v5432
  %v5434 = vpop.f32.mrf.mxu0
  %v5435 = vadd.f32 0.0, %v5434
  %5436 = vmatmul.bf16.gmra.mxu0 %v2420
  %v5437 = vpop.f32.mrf.mxu0
  %v5438 = vadd.f32 0.0, %v5437
  %v5439 = vpop.f32.mrf.mxu0
  %v5440 = vadd.f32 0.0, %v5439
  %5441 = vmatmul.bf16.gmra.mxu0 %v2423
  %v5442 = vpop.f32.mrf.mxu0
  %v5443 = vadd.f32 0.0, %v5442
  %v5444 = vpop.f32.mrf.mxu0
  %v5445 = vadd.f32 0.0, %v5444
  %5446 = vmatmul.bf16.gmra.mxu0 %v2426
  %v5447 = vpop.f32.mrf.mxu0
  %v5448 = vadd.f32 0.0, %v5447
  %v5449 = vpop.f32.mrf.mxu0
  %v5450 = vadd.f32 0.0, %v5449
  %5451 = vdwg.mxu0
  %5452 = vmatpush.bf16.msra.mxu0 0
  %5453 = vmatpush.bf16.msra.mxu0 0
  %5454 = vmatpush.bf16.msra.mxu0 0
  %5455 = vmatpush.bf16.msra.mxu0 0
  %5456 = vmatpush.bf16.msra.mxu0 0
  %5457 = vmatpush.bf16.msra.mxu0 %v2694
  %5458 = vmatpush.bf16.msra.mxu0 %v1875
  %5459 = vmatpush.bf16.msra.mxu0 %v1718
  %5460 = vmatmul.bf16.gmra.mxu0 %v2417
  %v5461 = vpop.f32.mrf.mxu0
  %v5462 = vadd.f32 0.0, %v5461
  %v5463 = vpop.f32.mrf.mxu0
  %v5464 = vadd.f32 0.0, %v5463
  %5465 = vmatmul.bf16.gmra.mxu0 %v2420
  %v5466 = vpop.f32.mrf.mxu0
  %v5467 = vadd.f32 0.0, %v5466
  %v5468 = vpop.f32.mrf.mxu0
  %v5469 = vadd.f32 0.0, %v5468
  %5470 = vmatmul.bf16.gmra.mxu0 %v2423
  %v5471 = vpop.f32.mrf.mxu0
  %v5472 = vadd.f32 0.0, %v5471
  %v5473 = vpop.f32.mrf.mxu0
  %v5474 = vadd.f32 0.0, %v5473
  %5475 = vmatmul.bf16.gmra.mxu0 %v2426
  %v5476 = vpop.f32.mrf.mxu0
  %v5477 = vadd.f32 0.0, %v5476
  %v5478 = vpop.f32.mrf.mxu0
  %v5479 = vadd.f32 0.0, %v5478
  %5480 = vdwg.mxu0
  %5481 = vmatpush.bf16.msra.mxu0 0
  %5482 = vmatpush.bf16.msra.mxu0 0
  %5483 = vmatpush.bf16.msra.mxu0 0
  %5484 = vmatpush.bf16.msra.mxu0 0
  %5485 = vmatpush.bf16.msra.mxu0 0
  %5486 = vmatpush.bf16.msra.mxu0 %v2697
  %5487 = vmatpush.bf16.msra.mxu0 %v1876
  %5488 = vmatpush.bf16.msra.mxu0 %v1719
  %5489 = vmatmul.bf16.gmra.mxu0 %v2417
  %v5490 = vpop.f32.mrf.mxu0
  %v5491 = vadd.f32 0.0, %v5490
  %v5492 = vpop.f32.mrf.mxu0
  %v5493 = vadd.f32 0.0, %v5492
  %5494 = vmatmul.bf16.gmra.mxu0 %v2420
  %v5495 = vpop.f32.mrf.mxu0
  %v5496 = vadd.f32 0.0, %v5495
  %v5497 = vpop.f32.mrf.mxu0
  %v5498 = vadd.f32 0.0, %v5497
  %5499 = vmatmul.bf16.gmra.mxu0 %v2423
  %v5500 = vpop.f32.mrf.mxu0
  %v5501 = vadd.f32 0.0, %v5500
  %v5502 = vpop.f32.mrf.mxu0
  %v5503 = vadd.f32 0.0, %v5502
  %5504 = vmatmul.bf16.gmra.mxu0 %v2426
  %v5505 = vpop.f32.mrf.mxu0
  %v5506 = vadd.f32 0.0, %v5505
  %v5507 = vpop.f32.mrf.mxu0
  %v5508 = vadd.f32 0.0, %v5507
  %5509 = vdwg.mxu0
  %5510 = vmatpush.bf16.msra.mxu0 0
  %5511 = vmatpush.bf16.msra.mxu0 0
  %5512 = vmatpush.bf16.msra.mxu0 0
  %5513 = vmatpush.bf16.msra.mxu0 0
  %5514 = vmatpush.bf16.msra.mxu0 0
  %5515 = vmatpush.bf16.msra.mxu0 %v2700
  %5516 = vmatpush.bf16.msra.mxu0 %v1877
  %5517 = vmatpush.bf16.msra.mxu0 %v1720
  %5518 = vmatmul.bf16.gmra.mxu0 %v2417
  %v5519 = vpop.f32.mrf.mxu0
  %v5520 = vadd.f32 0.0, %v5519
  %v5521 = vpop.f32.mrf.mxu0
  %v5522 = vadd.f32 0.0, %v5521
  %5523 = vmatmul.bf16.gmra.mxu0 %v2420
  %v5524 = vpop.f32.mrf.mxu0
  %v5525 = vadd.f32 0.0, %v5524
  %v5526 = vpop.f32.mrf.mxu0
  %v5527 = vadd.f32 0.0, %v5526
  %5528 = vmatmul.bf16.gmra.mxu0 %v2423
  %v5529 = vpop.f32.mrf.mxu0
  %v5530 = vadd.f32 0.0, %v5529
  %v5531 = vpop.f32.mrf.mxu0
  %v5532 = vadd.f32 0.0, %v5531
  %5533 = vmatmul.bf16.gmra.mxu0 %v2426
  %v5534 = vpop.f32.mrf.mxu0
  %v5535 = vadd.f32 0.0, %v5534
  %v5536 = vpop.f32.mrf.mxu0
  %v5537 = vadd.f32 0.0, %v5536
  %5538 = vdwg.mxu0
  %5539 = vmatpush.bf16.msra.mxu0 0
  %5540 = vmatpush.bf16.msra.mxu0 0
  %5541 = vmatpush.bf16.msra.mxu0 0
  %5542 = vmatpush.bf16.msra.mxu0 0
  %5543 = vmatpush.bf16.msra.mxu0 0
  %5544 = vmatpush.bf16.msra.mxu0 %v2703
  %5545 = vmatpush.bf16.msra.mxu0 %v1878
  %5546 = vmatpush.bf16.msra.mxu0 %v1721
  %5547 = vmatmul.bf16.gmra.mxu0 %v2417
  %v5548 = vpop.f32.mrf.mxu0
  %v5549 = vadd.f32 0.0, %v5548
  %v5550 = vpop.f32.mrf.mxu0
  %v5551 = vadd.f32 0.0, %v5550
  %5552 = vmatmul.bf16.gmra.mxu0 %v2420
  %v5553 = vpop.f32.mrf.mxu0
  %v5554 = vadd.f32 0.0, %v5553
  %v5555 = vpop.f32.mrf.mxu0
  %v5556 = vadd.f32 0.0, %v5555
  %5557 = vmatmul.bf16.gmra.mxu0 %v2423
  %v5558 = vpop.f32.mrf.mxu0
  %v5559 = vadd.f32 0.0, %v5558
  %v5560 = vpop.f32.mrf.mxu0
  %v5561 = vadd.f32 0.0, %v5560
  %5562 = vmatmul.bf16.gmra.mxu0 %v2426
  %v5563 = vpop.f32.mrf.mxu0
  %v5564 = vadd.f32 0.0, %v5563
  %v5565 = vpop.f32.mrf.mxu0
  %v5566 = vadd.f32 0.0, %v5565
  %5567 = vdwg.mxu0
  %5568 = vmatpush.bf16.msra.mxu0 0
  %5569 = vmatpush.bf16.msra.mxu0 0
  %5570 = vmatpush.bf16.msra.mxu0 0
  %5571 = vmatpush.bf16.msra.mxu0 0
  %5572 = vmatpush.bf16.msra.mxu0 0
  %5573 = vmatpush.bf16.msra.mxu0 %v2706
  %5574 = vmatpush.bf16.msra.mxu0 %v1879
  %5575 = vmatpush.bf16.msra.mxu0 %v1722
  %5576 = vmatmul.bf16.gmra.mxu0 %v2417
  %v5577 = vpop.f32.mrf.mxu0
  %v5578 = vadd.f32 0.0, %v5577
  %v5579 = vpop.f32.mrf.mxu0
  %v5580 = vadd.f32 0.0, %v5579
  %5581 = vmatmul.bf16.gmra.mxu0 %v2420
  %v5582 = vpop.f32.mrf.mxu0
  %v5583 = vadd.f32 0.0, %v5582
  %v5584 = vpop.f32.mrf.mxu0
  %v5585 = vadd.f32 0.0, %v5584
  %5586 = vmatmul.bf16.gmra.mxu0 %v2423
  %v5587 = vpop.f32.mrf.mxu0
  %v5588 = vadd.f32 0.0, %v5587
  %v5589 = vpop.f32.mrf.mxu0
  %v5590 = vadd.f32 0.0, %v5589
  %5591 = vmatmul.bf16.gmra.mxu0 %v2426
  %v5592 = vpop.f32.mrf.mxu0
  %v5593 = vadd.f32 0.0, %v5592
  %v5594 = vpop.f32.mrf.mxu0
  %v5595 = vadd.f32 0.0, %v5594
  %5596 = vdwg.mxu0
  %5597 = vmatpush.bf16.msra.mxu0 0
  %5598 = vmatpush.bf16.msra.mxu0 0
  %5599 = vmatpush.bf16.msra.mxu0 0
  %5600 = vmatpush.bf16.msra.mxu0 0
  %5601 = vmatpush.bf16.msra.mxu0 0
  %5602 = vmatpush.bf16.msra.mxu0 %v2709
  %5603 = vmatpush.bf16.msra.mxu0 %v1880
  %5604 = vmatpush.bf16.msra.mxu0 %v1723
  %5605 = vmatmul.bf16.gmra.mxu0 %v2417
  %v5606 = vpop.f32.mrf.mxu0
  %v5607 = vadd.f32 0.0, %v5606
  %v5608 = vpop.f32.mrf.mxu0
  %v5609 = vadd.f32 0.0, %v5608
  %5610 = vmatmul.bf16.gmra.mxu0 %v2420
  %v5611 = vpop.f32.mrf.mxu0
  %v5612 = vadd.f32 0.0, %v5611
  %v5613 = vpop.f32.mrf.mxu0
  %v5614 = vadd.f32 0.0, %v5613
  %5615 = vmatmul.bf16.gmra.mxu0 %v2423
  %v5616 = vpop.f32.mrf.mxu0
  %v5617 = vadd.f32 0.0, %v5616
  %v5618 = vpop.f32.mrf.mxu0
  %v5619 = vadd.f32 0.0, %v5618
  %5620 = vmatmul.bf16.gmra.mxu0 %v2426
  %v5621 = vpop.f32.mrf.mxu0
  %v5622 = vadd.f32 0.0, %v5621
  %v5623 = vpop.f32.mrf.mxu0
  %v5624 = vadd.f32 0.0, %v5623
  %5625 = vdwg.mxu0
  %5626 = vmatpush.bf16.msra.mxu0 0
  %5627 = vmatpush.bf16.msra.mxu0 0
  %5628 = vmatpush.bf16.msra.mxu0 0
  %5629 = vmatpush.bf16.msra.mxu0 0
  %5630 = vmatpush.bf16.msra.mxu0 0
  %5631 = vmatpush.bf16.msra.mxu0 %v2712
  %5632 = vmatpush.bf16.msra.mxu0 %v1881
  %5633 = vmatpush.bf16.msra.mxu0 %v1724
  %5634 = vmatmul.bf16.gmra.mxu0 %v2417
  %v5635 = vpop.f32.mrf.mxu0
  %v5636 = vadd.f32 0.0, %v5635
  %v5637 = vpop.f32.mrf.mxu0
  %v5638 = vadd.f32 0.0, %v5637
  %5639 = vmatmul.bf16.gmra.mxu0 %v2420
  %v5640 = vpop.f32.mrf.mxu0
  %v5641 = vadd.f32 0.0, %v5640
  %v5642 = vpop.f32.mrf.mxu0
  %v5643 = vadd.f32 0.0, %v5642
  %5644 = vmatmul.bf16.gmra.mxu0 %v2423
  %v5645 = vpop.f32.mrf.mxu0
  %v5646 = vadd.f32 0.0, %v5645
  %v5647 = vpop.f32.mrf.mxu0
  %v5648 = vadd.f32 0.0, %v5647
  %5649 = vmatmul.bf16.gmra.mxu0 %v2426
  %v5650 = vpop.f32.mrf.mxu0
  %v5651 = vadd.f32 0.0, %v5650
  %v5652 = vpop.f32.mrf.mxu0
  %v5653 = vadd.f32 0.0, %v5652
  %5654 = vdwg.mxu0
  %5655 = vmatpush.bf16.msra.mxu0 0
  %5656 = vmatpush.bf16.msra.mxu0 0
  %5657 = vmatpush.bf16.msra.mxu0 0
  %5658 = vmatpush.bf16.msra.mxu0 0
  %5659 = vmatpush.bf16.msra.mxu0 0
  %5660 = vmatpush.bf16.msra.mxu0 %v2715
  %5661 = vmatpush.bf16.msra.mxu0 %v1882
  %5662 = vmatpush.bf16.msra.mxu0 %v1725
  %5663 = vmatmul.bf16.gmra.mxu0 %v2417
  %v5664 = vpop.f32.mrf.mxu0
  %v5665 = vadd.f32 0.0, %v5664
  %v5666 = vpop.f32.mrf.mxu0
  %v5667 = vadd.f32 0.0, %v5666
  %5668 = vmatmul.bf16.gmra.mxu0 %v2420
  %v5669 = vpop.f32.mrf.mxu0
  %v5670 = vadd.f32 0.0, %v5669
  %v5671 = vpop.f32.mrf.mxu0
  %v5672 = vadd.f32 0.0, %v5671
  %5673 = vmatmul.bf16.gmra.mxu0 %v2423
  %v5674 = vpop.f32.mrf.mxu0
  %v5675 = vadd.f32 0.0, %v5674
  %v5676 = vpop.f32.mrf.mxu0
  %v5677 = vadd.f32 0.0, %v5676
  %5678 = vmatmul.bf16.gmra.mxu0 %v2426
  %v5679 = vpop.f32.mrf.mxu0
  %v5680 = vadd.f32 0.0, %v5679
  %v5681 = vpop.f32.mrf.mxu0
  %v5682 = vadd.f32 0.0, %v5681
  %5683 = vdwg.mxu0
  %5684 = vmatpush.bf16.msra.mxu0 0
  %5685 = vmatpush.bf16.msra.mxu0 0
  %5686 = vmatpush.bf16.msra.mxu0 0
  %5687 = vmatpush.bf16.msra.mxu0 0
  %5688 = vmatpush.bf16.msra.mxu0 0
  %5689 = vmatpush.bf16.msra.mxu0 %v2718
  %5690 = vmatpush.bf16.msra.mxu0 %v1883
  %5691 = vmatpush.bf16.msra.mxu0 %v1726
  %5692 = vmatmul.bf16.gmra.mxu0 %v2417
  %v5693 = vpop.f32.mrf.mxu0
  %v5694 = vadd.f32 0.0, %v5693
  %v5695 = vpop.f32.mrf.mxu0
  %v5696 = vadd.f32 0.0, %v5695
  %5697 = vmatmul.bf16.gmra.mxu0 %v2420
  %v5698 = vpop.f32.mrf.mxu0
  %v5699 = vadd.f32 0.0, %v5698
  %v5700 = vpop.f32.mrf.mxu0
  %v5701 = vadd.f32 0.0, %v5700
  %5702 = vmatmul.bf16.gmra.mxu0 %v2423
  %v5703 = vpop.f32.mrf.mxu0
  %v5704 = vadd.f32 0.0, %v5703
  %v5705 = vpop.f32.mrf.mxu0
  %v5706 = vadd.f32 0.0, %v5705
  %5707 = vmatmul.bf16.gmra.mxu0 %v2426
  %v5708 = vpop.f32.mrf.mxu0
  %v5709 = vadd.f32 0.0, %v5708
  %v5710 = vpop.f32.mrf.mxu0
  %v5711 = vadd.f32 0.0, %v5710
  %5712 = vdwg.mxu0
  %5713 = vmatpush.bf16.msra.mxu0 0
  %5714 = vmatpush.bf16.msra.mxu0 0
  %5715 = vmatpush.bf16.msra.mxu0 0
  %5716 = vmatpush.bf16.msra.mxu0 0
  %5717 = vmatpush.bf16.msra.mxu0 0
  %5718 = vmatpush.bf16.msra.mxu0 %v2721
  %5719 = vmatpush.bf16.msra.mxu0 %v1884
  %5720 = vmatpush.bf16.msra.mxu0 %v1727
  %5721 = vmatmul.bf16.gmra.mxu0 %v2417
  %v5722 = vpop.f32.mrf.mxu0
  %v5723 = vadd.f32 0.0, %v5722
  %v5724 = vpop.f32.mrf.mxu0
  %v5725 = vadd.f32 0.0, %v5724
  %5726 = vmatmul.bf16.gmra.mxu0 %v2420
  %v5727 = vpop.f32.mrf.mxu0
  %v5728 = vadd.f32 0.0, %v5727
  %v5729 = vpop.f32.mrf.mxu0
  %v5730 = vadd.f32 0.0, %v5729
  %5731 = vmatmul.bf16.gmra.mxu0 %v2423
  %v5732 = vpop.f32.mrf.mxu0
  %v5733 = vadd.f32 0.0, %v5732
  %v5734 = vpop.f32.mrf.mxu0
  %v5735 = vadd.f32 0.0, %v5734
  %5736 = vmatmul.bf16.gmra.mxu0 %v2426
  %v5737 = vpop.f32.mrf.mxu0
  %v5738 = vadd.f32 0.0, %v5737
  %v5739 = vpop.f32.mrf.mxu0
  %v5740 = vadd.f32 0.0, %v5739
  %5741 = vdwg.mxu0
  %5742 = vmatpush.bf16.msra.mxu0 0
  %5743 = vmatpush.bf16.msra.mxu0 0
  %5744 = vmatpush.bf16.msra.mxu0 0
  %5745 = vmatpush.bf16.msra.mxu0 0
  %5746 = vmatpush.bf16.msra.mxu0 0
  %5747 = vmatpush.bf16.msra.mxu0 %v2724
  %5748 = vmatpush.bf16.msra.mxu0 %v1885
  %5749 = vmatpush.bf16.msra.mxu0 %v1728
  %5750 = vmatmul.bf16.gmra.mxu0 %v2417
  %v5751 = vpop.f32.mrf.mxu0
  %v5752 = vadd.f32 0.0, %v5751
  %v5753 = vpop.f32.mrf.mxu0
  %v5754 = vadd.f32 0.0, %v5753
  %5755 = vmatmul.bf16.gmra.mxu0 %v2420
  %v5756 = vpop.f32.mrf.mxu0
  %v5757 = vadd.f32 0.0, %v5756
  %v5758 = vpop.f32.mrf.mxu0
  %v5759 = vadd.f32 0.0, %v5758
  %5760 = vmatmul.bf16.gmra.mxu0 %v2423
  %v5761 = vpop.f32.mrf.mxu0
  %v5762 = vadd.f32 0.0, %v5761
  %v5763 = vpop.f32.mrf.mxu0
  %v5764 = vadd.f32 0.0, %v5763
  %5765 = vmatmul.bf16.gmra.mxu0 %v2426
  %v5766 = vpop.f32.mrf.mxu0
  %v5767 = vadd.f32 0.0, %v5766
  %v5768 = vpop.f32.mrf.mxu0
  %v5769 = vadd.f32 0.0, %v5768
  %5770 = vdwg.mxu0
  %5771 = vmatpush.bf16.msra.mxu0 0
  %5772 = vmatpush.bf16.msra.mxu0 0
  %5773 = vmatpush.bf16.msra.mxu0 0
  %5774 = vmatpush.bf16.msra.mxu0 0
  %5775 = vmatpush.bf16.msra.mxu0 0
  %5776 = vmatpush.bf16.msra.mxu0 %v2727
  %5777 = vmatpush.bf16.msra.mxu0 %v1886
  %5778 = vmatpush.bf16.msra.mxu0 %v1729
  %5779 = vmatmul.bf16.gmra.mxu0 %v2417
  %v5780 = vpop.f32.mrf.mxu0
  %v5781 = vadd.f32 0.0, %v5780
  %v5782 = vpop.f32.mrf.mxu0
  %v5783 = vadd.f32 0.0, %v5782
  %5784 = vmatmul.bf16.gmra.mxu0 %v2420
  %v5785 = vpop.f32.mrf.mxu0
  %v5786 = vadd.f32 0.0, %v5785
  %v5787 = vpop.f32.mrf.mxu0
  %v5788 = vadd.f32 0.0, %v5787
  %5789 = vmatmul.bf16.gmra.mxu0 %v2423
  %v5790 = vpop.f32.mrf.mxu0
  %v5791 = vadd.f32 0.0, %v5790
  %v5792 = vpop.f32.mrf.mxu0
  %v5793 = vadd.f32 0.0, %v5792
  %5794 = vmatmul.bf16.gmra.mxu0 %v2426
  %v5795 = vpop.f32.mrf.mxu0
  %v5796 = vadd.f32 0.0, %v5795
  %v5797 = vpop.f32.mrf.mxu0
  %v5798 = vadd.f32 0.0, %v5797
  %5799 = vdwg.mxu0
  %5800 = vmatpush.bf16.msra.mxu0 0
  %5801 = vmatpush.bf16.msra.mxu0 0
  %5802 = vmatpush.bf16.msra.mxu0 0
  %5803 = vmatpush.bf16.msra.mxu0 0
  %5804 = vmatpush.bf16.msra.mxu0 0
  %5805 = vmatpush.bf16.msra.mxu0 %v2730
  %5806 = vmatpush.bf16.msra.mxu0 %v1887
  %5807 = vmatpush.bf16.msra.mxu0 %v1730
  %5808 = vmatmul.bf16.gmra.mxu0 %v2417
  %v5809 = vpop.f32.mrf.mxu0
  %v5810 = vadd.f32 0.0, %v5809
  %v5811 = vpop.f32.mrf.mxu0
  %v5812 = vadd.f32 0.0, %v5811
  %5813 = vmatmul.bf16.gmra.mxu0 %v2420
  %v5814 = vpop.f32.mrf.mxu0
  %v5815 = vadd.f32 0.0, %v5814
  %v5816 = vpop.f32.mrf.mxu0
  %v5817 = vadd.f32 0.0, %v5816
  %5818 = vmatmul.bf16.gmra.mxu0 %v2423
  %v5819 = vpop.f32.mrf.mxu0
  %v5820 = vadd.f32 0.0, %v5819
  %v5821 = vpop.f32.mrf.mxu0
  %v5822 = vadd.f32 0.0, %v5821
  %5823 = vmatmul.bf16.gmra.mxu0 %v2426
  %v5824 = vpop.f32.mrf.mxu0
  %v5825 = vadd.f32 0.0, %v5824
  %v5826 = vpop.f32.mrf.mxu0
  %v5827 = vadd.f32 0.0, %v5826
  %5828 = vdwg.mxu0
  %5829 = vmatpush.bf16.msra.mxu0 0
  %5830 = vmatpush.bf16.msra.mxu0 0
  %5831 = vmatpush.bf16.msra.mxu0 0
  %5832 = vmatpush.bf16.msra.mxu0 0
  %5833 = vmatpush.bf16.msra.mxu0 0
  %5834 = vmatpush.bf16.msra.mxu0 %v2733
  %5835 = vmatpush.bf16.msra.mxu0 %v1888
  %5836 = vmatpush.bf16.msra.mxu0 %v1731
  %5837 = vmatmul.bf16.gmra.mxu0 %v2417
  %v5838 = vpop.f32.mrf.mxu0
  %v5839 = vadd.f32 0.0, %v5838
  %v5840 = vpop.f32.mrf.mxu0
  %v5841 = vadd.f32 0.0, %v5840
  %5842 = vmatmul.bf16.gmra.mxu0 %v2420
  %v5843 = vpop.f32.mrf.mxu0
  %v5844 = vadd.f32 0.0, %v5843
  %v5845 = vpop.f32.mrf.mxu0
  %v5846 = vadd.f32 0.0, %v5845
  %5847 = vmatmul.bf16.gmra.mxu0 %v2423
  %v5848 = vpop.f32.mrf.mxu0
  %v5849 = vadd.f32 0.0, %v5848
  %v5850 = vpop.f32.mrf.mxu0
  %v5851 = vadd.f32 0.0, %v5850
  %5852 = vmatmul.bf16.gmra.mxu0 %v2426
  %v5853 = vpop.f32.mrf.mxu0
  %v5854 = vadd.f32 0.0, %v5853
  %v5855 = vpop.f32.mrf.mxu0
  %v5856 = vadd.f32 0.0, %v5855
  %5857 = vdwg.mxu0
  %5858 = vmatpush.bf16.msra.mxu0 0
  %5859 = vmatpush.bf16.msra.mxu0 0
  %5860 = vmatpush.bf16.msra.mxu0 0
  %5861 = vmatpush.bf16.msra.mxu0 0
  %5862 = vmatpush.bf16.msra.mxu0 0
  %5863 = vmatpush.bf16.msra.mxu0 %v2736
  %5864 = vmatpush.bf16.msra.mxu0 %v1889
  %5865 = vmatpush.bf16.msra.mxu0 %v1732
  %5866 = vmatmul.bf16.gmra.mxu0 %v2417
  %v5867 = vpop.f32.mrf.mxu0
  %v5868 = vadd.f32 0.0, %v5867
  %v5869 = vpop.f32.mrf.mxu0
  %v5870 = vadd.f32 0.0, %v5869
  %5871 = vmatmul.bf16.gmra.mxu0 %v2420
  %v5872 = vpop.f32.mrf.mxu0
  %v5873 = vadd.f32 0.0, %v5872
  %v5874 = vpop.f32.mrf.mxu0
  %v5875 = vadd.f32 0.0, %v5874
  %5876 = vmatmul.bf16.gmra.mxu0 %v2423
  %v5877 = vpop.f32.mrf.mxu0
  %v5878 = vadd.f32 0.0, %v5877
  %v5879 = vpop.f32.mrf.mxu0
  %v5880 = vadd.f32 0.0, %v5879
  %5881 = vmatmul.bf16.gmra.mxu0 %v2426
  %v5882 = vpop.f32.mrf.mxu0
  %v5883 = vadd.f32 0.0, %v5882
  %v5884 = vpop.f32.mrf.mxu0
  %v5885 = vadd.f32 0.0, %v5884
  %5886 = vdwg.mxu0
  %5887 = vmatpush.bf16.msra.mxu0 0
  %5888 = vmatpush.bf16.msra.mxu0 0
  %5889 = vmatpush.bf16.msra.mxu0 0
  %5890 = vmatpush.bf16.msra.mxu0 0
  %5891 = vmatpush.bf16.msra.mxu0 0
  %5892 = vmatpush.bf16.msra.mxu0 %v2739
  %5893 = vmatpush.bf16.msra.mxu0 %v1890
  %5894 = vmatpush.bf16.msra.mxu0 %v1733
  %5895 = vmatmul.bf16.gmra.mxu0 %v2417
  %v5896 = vpop.f32.mrf.mxu0
  %v5897 = vadd.f32 0.0, %v5896
  %v5898 = vpop.f32.mrf.mxu0
  %v5899 = vadd.f32 0.0, %v5898
  %5900 = vmatmul.bf16.gmra.mxu0 %v2420
  %v5901 = vpop.f32.mrf.mxu0
  %v5902 = vadd.f32 0.0, %v5901
  %v5903 = vpop.f32.mrf.mxu0
  %v5904 = vadd.f32 0.0, %v5903
  %5905 = vmatmul.bf16.gmra.mxu0 %v2423
  %v5906 = vpop.f32.mrf.mxu0
  %v5907 = vadd.f32 0.0, %v5906
  %v5908 = vpop.f32.mrf.mxu0
  %v5909 = vadd.f32 0.0, %v5908
  %5910 = vmatmul.bf16.gmra.mxu0 %v2426
  %v5911 = vpop.f32.mrf.mxu0
  %v5912 = vadd.f32 0.0, %v5911
  %v5913 = vpop.f32.mrf.mxu0
  %v5914 = vadd.f32 0.0, %v5913
  %5915 = vdwg.mxu0
  %5916 = vmatpush.bf16.msra.mxu0 0
  %5917 = vmatpush.bf16.msra.mxu0 0
  %5918 = vmatpush.bf16.msra.mxu0 0
  %5919 = vmatpush.bf16.msra.mxu0 0
  %5920 = vmatpush.bf16.msra.mxu0 0
  %5921 = vmatpush.bf16.msra.mxu0 %v2742
  %5922 = vmatpush.bf16.msra.mxu0 %v1891
  %5923 = vmatpush.bf16.msra.mxu0 %v1734
  %5924 = vmatmul.bf16.gmra.mxu0 %v2417
  %v5925 = vpop.f32.mrf.mxu0
  %v5926 = vadd.f32 0.0, %v5925
  %v5927 = vpop.f32.mrf.mxu0
  %v5928 = vadd.f32 0.0, %v5927
  %5929 = vmatmul.bf16.gmra.mxu0 %v2420
  %v5930 = vpop.f32.mrf.mxu0
  %v5931 = vadd.f32 0.0, %v5930
  %v5932 = vpop.f32.mrf.mxu0
  %v5933 = vadd.f32 0.0, %v5932
  %5934 = vmatmul.bf16.gmra.mxu0 %v2423
  %v5935 = vpop.f32.mrf.mxu0
  %v5936 = vadd.f32 0.0, %v5935
  %v5937 = vpop.f32.mrf.mxu0
  %v5938 = vadd.f32 0.0, %v5937
  %5939 = vmatmul.bf16.gmra.mxu0 %v2426
  %v5940 = vpop.f32.mrf.mxu0
  %v5941 = vadd.f32 0.0, %v5940
  %v5942 = vpop.f32.mrf.mxu0
  %v5943 = vadd.f32 0.0, %v5942
  %5944 = vdwg.mxu0
  %5945 = vmatpush.bf16.msra.mxu0 0
  %5946 = vmatpush.bf16.msra.mxu0 0
  %5947 = vmatpush.bf16.msra.mxu0 0
  %5948 = vmatpush.bf16.msra.mxu0 0
  %5949 = vmatpush.bf16.msra.mxu0 0
  %5950 = vmatpush.bf16.msra.mxu0 %v2745
  %5951 = vmatpush.bf16.msra.mxu0 %v1892
  %5952 = vmatpush.bf16.msra.mxu0 %v1735
  %5953 = vmatmul.bf16.gmra.mxu0 %v2417
  %v5954 = vpop.f32.mrf.mxu0
  %v5955 = vadd.f32 0.0, %v5954
  %v5956 = vpop.f32.mrf.mxu0
  %v5957 = vadd.f32 0.0, %v5956
  %5958 = vmatmul.bf16.gmra.mxu0 %v2420
  %v5959 = vpop.f32.mrf.mxu0
  %v5960 = vadd.f32 0.0, %v5959
  %v5961 = vpop.f32.mrf.mxu0
  %v5962 = vadd.f32 0.0, %v5961
  %5963 = vmatmul.bf16.gmra.mxu0 %v2423
  %v5964 = vpop.f32.mrf.mxu0
  %v5965 = vadd.f32 0.0, %v5964
  %v5966 = vpop.f32.mrf.mxu0
  %v5967 = vadd.f32 0.0, %v5966
  %5968 = vmatmul.bf16.gmra.mxu0 %v2426
  %v5969 = vpop.f32.mrf.mxu0
  %v5970 = vadd.f32 0.0, %v5969
  %v5971 = vpop.f32.mrf.mxu0
  %v5972 = vadd.f32 0.0, %v5971
  %5973 = vdwg.mxu0
  %5974 = vmatpush.bf16.msra.mxu0 0
  %5975 = vmatpush.bf16.msra.mxu0 0
  %5976 = vmatpush.bf16.msra.mxu0 0
  %5977 = vmatpush.bf16.msra.mxu0 0
  %5978 = vmatpush.bf16.msra.mxu0 0
  %5979 = vmatpush.bf16.msra.mxu0 %v2748
  %5980 = vmatpush.bf16.msra.mxu0 %v1893
  %5981 = vmatpush.bf16.msra.mxu0 %v1736
  %5982 = vmatmul.bf16.gmra.mxu0 %v2417
  %v5983 = vpop.f32.mrf.mxu0
  %v5984 = vadd.f32 0.0, %v5983
  %v5985 = vpop.f32.mrf.mxu0
  %v5986 = vadd.f32 0.0, %v5985
  %5987 = vmatmul.bf16.gmra.mxu0 %v2420
  %v5988 = vpop.f32.mrf.mxu0
  %v5989 = vadd.f32 0.0, %v5988
  %v5990 = vpop.f32.mrf.mxu0
  %v5991 = vadd.f32 0.0, %v5990
  %5992 = vmatmul.bf16.gmra.mxu0 %v2423
  %v5993 = vpop.f32.mrf.mxu0
  %v5994 = vadd.f32 0.0, %v5993
  %v5995 = vpop.f32.mrf.mxu0
  %v5996 = vadd.f32 0.0, %v5995
  %5997 = vmatmul.bf16.gmra.mxu0 %v2426
  %v5998 = vpop.f32.mrf.mxu0
  %v5999 = vadd.f32 0.0, %v5998
  %v6000 = vpop.f32.mrf.mxu0
  %v6001 = vadd.f32 0.0, %v6000
  %6002 = vdwg.mxu0
  %6003 = vmatpush.bf16.msra.mxu0 0
  %6004 = vmatpush.bf16.msra.mxu0 0
  %6005 = vmatpush.bf16.msra.mxu0 0
  %6006 = vmatpush.bf16.msra.mxu0 0
  %6007 = vmatpush.bf16.msra.mxu0 0
  %6008 = vmatpush.bf16.msra.mxu0 %v2751
  %6009 = vmatpush.bf16.msra.mxu0 %v1894
  %6010 = vmatpush.bf16.msra.mxu0 %v1737
  %6011 = vmatmul.bf16.gmra.mxu0 %v2417
  %v6012 = vpop.f32.mrf.mxu0
  %v6013 = vadd.f32 0.0, %v6012
  %v6014 = vpop.f32.mrf.mxu0
  %v6015 = vadd.f32 0.0, %v6014
  %6016 = vmatmul.bf16.gmra.mxu0 %v2420
  %v6017 = vpop.f32.mrf.mxu0
  %v6018 = vadd.f32 0.0, %v6017
  %v6019 = vpop.f32.mrf.mxu0
  %v6020 = vadd.f32 0.0, %v6019
  %6021 = vmatmul.bf16.gmra.mxu0 %v2423
  %v6022 = vpop.f32.mrf.mxu0
  %v6023 = vadd.f32 0.0, %v6022
  %v6024 = vpop.f32.mrf.mxu0
  %v6025 = vadd.f32 0.0, %v6024
  %6026 = vmatmul.bf16.gmra.mxu0 %v2426
  %v6027 = vpop.f32.mrf.mxu0
  %v6028 = vadd.f32 0.0, %v6027
  %v6029 = vpop.f32.mrf.mxu0
  %v6030 = vadd.f32 0.0, %v6029
  %6031 = vdwg.mxu0
  %6032 = vmatpush.bf16.msra.mxu0 0
  %6033 = vmatpush.bf16.msra.mxu0 0
  %6034 = vmatpush.bf16.msra.mxu0 0
  %6035 = vmatpush.bf16.msra.mxu0 0
  %6036 = vmatpush.bf16.msra.mxu0 0
  %6037 = vmatpush.bf16.msra.mxu0 %v2754
  %6038 = vmatpush.bf16.msra.mxu0 %v1895
  %6039 = vmatpush.bf16.msra.mxu0 %v1738
  %6040 = vmatmul.bf16.gmra.mxu0 %v2417
  %v6041 = vpop.f32.mrf.mxu0
  %v6042 = vadd.f32 0.0, %v6041
  %v6043 = vpop.f32.mrf.mxu0
  %v6044 = vadd.f32 0.0, %v6043
  %6045 = vmatmul.bf16.gmra.mxu0 %v2420
  %v6046 = vpop.f32.mrf.mxu0
  %v6047 = vadd.f32 0.0, %v6046
  %v6048 = vpop.f32.mrf.mxu0
  %v6049 = vadd.f32 0.0, %v6048
  %6050 = vmatmul.bf16.gmra.mxu0 %v2423
  %v6051 = vpop.f32.mrf.mxu0
  %v6052 = vadd.f32 0.0, %v6051
  %v6053 = vpop.f32.mrf.mxu0
  %v6054 = vadd.f32 0.0, %v6053
  %6055 = vmatmul.bf16.gmra.mxu0 %v2426
  %v6056 = vpop.f32.mrf.mxu0
  %v6057 = vadd.f32 0.0, %v6056
  %v6058 = vpop.f32.mrf.mxu0
  %v6059 = vadd.f32 0.0, %v6058
  %6060 = vdwg.mxu0
  %6061 = vmatpush.bf16.msra.mxu0 0
  %6062 = vmatpush.bf16.msra.mxu0 0
  %6063 = vmatpush.bf16.msra.mxu0 0
  %6064 = vmatpush.bf16.msra.mxu0 0
  %6065 = vmatpush.bf16.msra.mxu0 0
  %6066 = vmatpush.bf16.msra.mxu0 %v2757
  %6067 = vmatpush.bf16.msra.mxu0 %v1896
  %6068 = vmatpush.bf16.msra.mxu0 %v1739
  %6069 = vmatmul.bf16.gmra.mxu0 %v2417
  %v6070 = vpop.f32.mrf.mxu0
  %v6071 = vadd.f32 0.0, %v6070
  %v6072 = vpop.f32.mrf.mxu0
  %v6073 = vadd.f32 0.0, %v6072
  %6074 = vmatmul.bf16.gmra.mxu0 %v2420
  %v6075 = vpop.f32.mrf.mxu0
  %v6076 = vadd.f32 0.0, %v6075
  %v6077 = vpop.f32.mrf.mxu0
  %v6078 = vadd.f32 0.0, %v6077
  %6079 = vmatmul.bf16.gmra.mxu0 %v2423
  %v6080 = vpop.f32.mrf.mxu0
  %v6081 = vadd.f32 0.0, %v6080
  %v6082 = vpop.f32.mrf.mxu0
  %v6083 = vadd.f32 0.0, %v6082
  %6084 = vmatmul.bf16.gmra.mxu0 %v2426
  %v6085 = vpop.f32.mrf.mxu0
  %v6086 = vadd.f32 0.0, %v6085
  %v6087 = vpop.f32.mrf.mxu0
  %v6088 = vadd.f32 0.0, %v6087
  %6089 = vdwg.mxu0
  %6090 = vmatpush.bf16.msra.mxu0 0
  %6091 = vmatpush.bf16.msra.mxu0 0
  %6092 = vmatpush.bf16.msra.mxu0 0
  %6093 = vmatpush.bf16.msra.mxu0 0
  %6094 = vmatpush.bf16.msra.mxu0 0
  %6095 = vmatpush.bf16.msra.mxu0 %v2760
  %6096 = vmatpush.bf16.msra.mxu0 %v1897
  %6097 = vmatpush.bf16.msra.mxu0 %v1740
  %6098 = vmatmul.bf16.gmra.mxu0 %v2417
  %v6099 = vpop.f32.mrf.mxu0
  %v6100 = vadd.f32 0.0, %v6099
  %v6101 = vpop.f32.mrf.mxu0
  %v6102 = vadd.f32 0.0, %v6101
  %6103 = vmatmul.bf16.gmra.mxu0 %v2420
  %v6104 = vpop.f32.mrf.mxu0
  %v6105 = vadd.f32 0.0, %v6104
  %v6106 = vpop.f32.mrf.mxu0
  %v6107 = vadd.f32 0.0, %v6106
  %6108 = vmatmul.bf16.gmra.mxu0 %v2423
  %v6109 = vpop.f32.mrf.mxu0
  %v6110 = vadd.f32 0.0, %v6109
  %v6111 = vpop.f32.mrf.mxu0
  %v6112 = vadd.f32 0.0, %v6111
  %6113 = vmatmul.bf16.gmra.mxu0 %v2426
  %v6114 = vpop.f32.mrf.mxu0
  %v6115 = vadd.f32 0.0, %v6114
  %v6116 = vpop.f32.mrf.mxu0
  %v6117 = vadd.f32 0.0, %v6116
  %6118 = vdwg.mxu0
  %6119 = vmatpush.bf16.msra.mxu0 0
  %6120 = vmatpush.bf16.msra.mxu0 0
  %6121 = vmatpush.bf16.msra.mxu0 0
  %6122 = vmatpush.bf16.msra.mxu0 0
  %6123 = vmatpush.bf16.msra.mxu0 0
  %6124 = vmatpush.bf16.msra.mxu0 %v2763
  %6125 = vmatpush.bf16.msra.mxu0 %v1898
  %6126 = vmatpush.bf16.msra.mxu0 %v1741
  %6127 = vmatmul.bf16.gmra.mxu0 %v2417
  %v6128 = vpop.f32.mrf.mxu0
  %v6129 = vadd.f32 0.0, %v6128
  %v6130 = vpop.f32.mrf.mxu0
  %v6131 = vadd.f32 0.0, %v6130
  %6132 = vmatmul.bf16.gmra.mxu0 %v2420
  %v6133 = vpop.f32.mrf.mxu0
  %v6134 = vadd.f32 0.0, %v6133
  %v6135 = vpop.f32.mrf.mxu0
  %v6136 = vadd.f32 0.0, %v6135
  %6137 = vmatmul.bf16.gmra.mxu0 %v2423
  %v6138 = vpop.f32.mrf.mxu0
  %v6139 = vadd.f32 0.0, %v6138
  %v6140 = vpop.f32.mrf.mxu0
  %v6141 = vadd.f32 0.0, %v6140
  %6142 = vmatmul.bf16.gmra.mxu0 %v2426
  %v6143 = vpop.f32.mrf.mxu0
  %v6144 = vadd.f32 0.0, %v6143
  %v6145 = vpop.f32.mrf.mxu0
  %v6146 = vadd.f32 0.0, %v6145
  %6147 = vdwg.mxu0
  %6148 = vmatpush.bf16.msra.mxu0 0
  %6149 = vmatpush.bf16.msra.mxu0 0
  %6150 = vmatpush.bf16.msra.mxu0 0
  %6151 = vmatpush.bf16.msra.mxu0 0
  %6152 = vmatpush.bf16.msra.mxu0 0
  %6153 = vmatpush.bf16.msra.mxu0 %v2766
  %6154 = vmatpush.bf16.msra.mxu0 %v1899
  %6155 = vmatpush.bf16.msra.mxu0 %v1742
  %6156 = vmatmul.bf16.gmra.mxu0 %v2417
  %v6157 = vpop.f32.mrf.mxu0
  %v6158 = vadd.f32 0.0, %v6157
  %v6159 = vpop.f32.mrf.mxu0
  %v6160 = vadd.f32 0.0, %v6159
  %6161 = vmatmul.bf16.gmra.mxu0 %v2420
  %v6162 = vpop.f32.mrf.mxu0
  %v6163 = vadd.f32 0.0, %v6162
  %v6164 = vpop.f32.mrf.mxu0
  %v6165 = vadd.f32 0.0, %v6164
  %6166 = vmatmul.bf16.gmra.mxu0 %v2423
  %v6167 = vpop.f32.mrf.mxu0
  %v6168 = vadd.f32 0.0, %v6167
  %v6169 = vpop.f32.mrf.mxu0
  %v6170 = vadd.f32 0.0, %v6169
  %6171 = vmatmul.bf16.gmra.mxu0 %v2426
  %v6172 = vpop.f32.mrf.mxu0
  %v6173 = vadd.f32 0.0, %v6172
  %v6174 = vpop.f32.mrf.mxu0
  %v6175 = vadd.f32 0.0, %v6174
  %6176 = vdwg.mxu0
  %6177 = vmatpush.bf16.msra.mxu0 0
  %6178 = vmatpush.bf16.msra.mxu0 0
  %6179 = vmatpush.bf16.msra.mxu0 0
  %6180 = vmatpush.bf16.msra.mxu0 0
  %6181 = vmatpush.bf16.msra.mxu0 0
  %6182 = vmatpush.bf16.msra.mxu0 %v2769
  %6183 = vmatpush.bf16.msra.mxu0 %v1900
  %6184 = vmatpush.bf16.msra.mxu0 %v1743
  %6185 = vmatmul.bf16.gmra.mxu0 %v2417
  %v6186 = vpop.f32.mrf.mxu0
  %v6187 = vadd.f32 0.0, %v6186
  %v6188 = vpop.f32.mrf.mxu0
  %v6189 = vadd.f32 0.0, %v6188
  %6190 = vmatmul.bf16.gmra.mxu0 %v2420
  %v6191 = vpop.f32.mrf.mxu0
  %v6192 = vadd.f32 0.0, %v6191
  %v6193 = vpop.f32.mrf.mxu0
  %v6194 = vadd.f32 0.0, %v6193
  %6195 = vmatmul.bf16.gmra.mxu0 %v2423
  %v6196 = vpop.f32.mrf.mxu0
  %v6197 = vadd.f32 0.0, %v6196
  %v6198 = vpop.f32.mrf.mxu0
  %v6199 = vadd.f32 0.0, %v6198
  %6200 = vmatmul.bf16.gmra.mxu0 %v2426
  %v6201 = vpop.f32.mrf.mxu0
  %v6202 = vadd.f32 0.0, %v6201
  %v6203 = vpop.f32.mrf.mxu0
  %v6204 = vadd.f32 0.0, %v6203
  %6205 = vdwg.mxu0
  %6206 = vmatpush.bf16.msra.mxu0 0
  %6207 = vmatpush.bf16.msra.mxu0 0
  %6208 = vmatpush.bf16.msra.mxu0 0
  %6209 = vmatpush.bf16.msra.mxu0 0
  %6210 = vmatpush.bf16.msra.mxu0 0
  %6211 = vmatpush.bf16.msra.mxu0 %v2772
  %6212 = vmatpush.bf16.msra.mxu0 %v1901
  %6213 = vmatpush.bf16.msra.mxu0 %v1744
  %6214 = vmatmul.bf16.gmra.mxu0 %v2417
  %v6215 = vpop.f32.mrf.mxu0
  %v6216 = vadd.f32 0.0, %v6215
  %v6217 = vpop.f32.mrf.mxu0
  %v6218 = vadd.f32 0.0, %v6217
  %6219 = vmatmul.bf16.gmra.mxu0 %v2420
  %v6220 = vpop.f32.mrf.mxu0
  %v6221 = vadd.f32 0.0, %v6220
  %v6222 = vpop.f32.mrf.mxu0
  %v6223 = vadd.f32 0.0, %v6222
  %6224 = vmatmul.bf16.gmra.mxu0 %v2423
  %v6225 = vpop.f32.mrf.mxu0
  %v6226 = vadd.f32 0.0, %v6225
  %v6227 = vpop.f32.mrf.mxu0
  %v6228 = vadd.f32 0.0, %v6227
  %6229 = vmatmul.bf16.gmra.mxu0 %v2426
  %v6230 = vpop.f32.mrf.mxu0
  %v6231 = vadd.f32 0.0, %v6230
  %v6232 = vpop.f32.mrf.mxu0
  %v6233 = vadd.f32 0.0, %v6232
  %6234 = vdwg.mxu0
  %6235 = vmatpush.bf16.msra.mxu0 0
  %6236 = vmatpush.bf16.msra.mxu0 0
  %6237 = vmatpush.bf16.msra.mxu0 0
  %6238 = vmatpush.bf16.msra.mxu0 0
  %6239 = vmatpush.bf16.msra.mxu0 0
  %6240 = vmatpush.bf16.msra.mxu0 %v2775
  %6241 = vmatpush.bf16.msra.mxu0 %v1902
  %6242 = vmatpush.bf16.msra.mxu0 %v1745
  %6243 = vmatmul.bf16.gmra.mxu0 %v2417
  %v6244 = vpop.f32.mrf.mxu0
  %v6245 = vadd.f32 0.0, %v6244
  %v6246 = vpop.f32.mrf.mxu0
  %v6247 = vadd.f32 0.0, %v6246
  %6248 = vmatmul.bf16.gmra.mxu0 %v2420
  %v6249 = vpop.f32.mrf.mxu0
  %v6250 = vadd.f32 0.0, %v6249
  %v6251 = vpop.f32.mrf.mxu0
  %v6252 = vadd.f32 0.0, %v6251
  %6253 = vmatmul.bf16.gmra.mxu0 %v2423
  %v6254 = vpop.f32.mrf.mxu0
  %v6255 = vadd.f32 0.0, %v6254
  %v6256 = vpop.f32.mrf.mxu0
  %v6257 = vadd.f32 0.0, %v6256
  %6258 = vmatmul.bf16.gmra.mxu0 %v2426
  %v6259 = vpop.f32.mrf.mxu0
  %v6260 = vadd.f32 0.0, %v6259
  %v6261 = vpop.f32.mrf.mxu0
  %v6262 = vadd.f32 0.0, %v6261
  %6263 = vdwg.mxu0
  %6264 = vmatpush.bf16.msra.mxu0 0
  %6265 = vmatpush.bf16.msra.mxu0 0
  %6266 = vmatpush.bf16.msra.mxu0 0
  %6267 = vmatpush.bf16.msra.mxu0 0
  %6268 = vmatpush.bf16.msra.mxu0 0
  %6269 = vmatpush.bf16.msra.mxu0 %v2778
  %6270 = vmatpush.bf16.msra.mxu0 %v1903
  %6271 = vmatpush.bf16.msra.mxu0 %v1746
  %6272 = vmatmul.bf16.gmra.mxu0 %v2417
  %v6273 = vpop.f32.mrf.mxu0
  %v6274 = vadd.f32 0.0, %v6273
  %v6275 = vpop.f32.mrf.mxu0
  %v6276 = vadd.f32 0.0, %v6275
  %6277 = vmatmul.bf16.gmra.mxu0 %v2420
  %v6278 = vpop.f32.mrf.mxu0
  %v6279 = vadd.f32 0.0, %v6278
  %v6280 = vpop.f32.mrf.mxu0
  %v6281 = vadd.f32 0.0, %v6280
  %6282 = vmatmul.bf16.gmra.mxu0 %v2423
  %v6283 = vpop.f32.mrf.mxu0
  %v6284 = vadd.f32 0.0, %v6283
  %v6285 = vpop.f32.mrf.mxu0
  %v6286 = vadd.f32 0.0, %v6285
  %6287 = vmatmul.bf16.gmra.mxu0 %v2426
  %v6288 = vpop.f32.mrf.mxu0
  %v6289 = vadd.f32 0.0, %v6288
  %v6290 = vpop.f32.mrf.mxu0
  %v6291 = vadd.f32 0.0, %v6290
  %6292 = vdwg.mxu0
  %6293 = vmatpush.bf16.msra.mxu0 0
  %6294 = vmatpush.bf16.msra.mxu0 0
  %6295 = vmatpush.bf16.msra.mxu0 0
  %6296 = vmatpush.bf16.msra.mxu0 0
  %6297 = vmatpush.bf16.msra.mxu0 0
  %6298 = vmatpush.bf16.msra.mxu0 %v2781
  %6299 = vmatpush.bf16.msra.mxu0 %v1904
  %6300 = vmatpush.bf16.msra.mxu0 %v1747
  %6301 = vmatmul.bf16.gmra.mxu0 %v2417
  %v6302 = vpop.f32.mrf.mxu0
  %v6303 = vadd.f32 0.0, %v6302
  %v6304 = vpop.f32.mrf.mxu0
  %v6305 = vadd.f32 0.0, %v6304
  %6306 = vmatmul.bf16.gmra.mxu0 %v2420
  %v6307 = vpop.f32.mrf.mxu0
  %v6308 = vadd.f32 0.0, %v6307
  %v6309 = vpop.f32.mrf.mxu0
  %v6310 = vadd.f32 0.0, %v6309
  %6311 = vmatmul.bf16.gmra.mxu0 %v2423
  %v6312 = vpop.f32.mrf.mxu0
  %v6313 = vadd.f32 0.0, %v6312
  %v6314 = vpop.f32.mrf.mxu0
  %v6315 = vadd.f32 0.0, %v6314
  %6316 = vmatmul.bf16.gmra.mxu0 %v2426
  %v6317 = vpop.f32.mrf.mxu0
  %v6318 = vadd.f32 0.0, %v6317
  %v6319 = vpop.f32.mrf.mxu0
  %v6320 = vadd.f32 0.0, %v6319
  %6321 = vdwg.mxu0
  %6322 = vmatpush.bf16.msra.mxu0 0
  %6323 = vmatpush.bf16.msra.mxu0 0
  %6324 = vmatpush.bf16.msra.mxu0 0
  %6325 = vmatpush.bf16.msra.mxu0 0
  %6326 = vmatpush.bf16.msra.mxu0 0
  %6327 = vmatpush.bf16.msra.mxu0 %v2784
  %6328 = vmatpush.bf16.msra.mxu0 %v1905
  %6329 = vmatpush.bf16.msra.mxu0 %v1748
  %6330 = vmatmul.bf16.gmra.mxu0 %v2417
  %v6331 = vpop.f32.mrf.mxu0
  %v6332 = vadd.f32 0.0, %v6331
  %v6333 = vpop.f32.mrf.mxu0
  %v6334 = vadd.f32 0.0, %v6333
  %6335 = vmatmul.bf16.gmra.mxu0 %v2420
  %v6336 = vpop.f32.mrf.mxu0
  %v6337 = vadd.f32 0.0, %v6336
  %v6338 = vpop.f32.mrf.mxu0
  %v6339 = vadd.f32 0.0, %v6338
  %6340 = vmatmul.bf16.gmra.mxu0 %v2423
  %v6341 = vpop.f32.mrf.mxu0
  %v6342 = vadd.f32 0.0, %v6341
  %v6343 = vpop.f32.mrf.mxu0
  %v6344 = vadd.f32 0.0, %v6343
  %6345 = vmatmul.bf16.gmra.mxu0 %v2426
  %v6346 = vpop.f32.mrf.mxu0
  %v6347 = vadd.f32 0.0, %v6346
  %v6348 = vpop.f32.mrf.mxu0
  %v6349 = vadd.f32 0.0, %v6348
  %6350 = vdwg.mxu0
  %6351 = vmatpush.bf16.msra.mxu0 0
  %6352 = vmatpush.bf16.msra.mxu0 0
  %6353 = vmatpush.bf16.msra.mxu0 0
  %6354 = vmatpush.bf16.msra.mxu0 0
  %6355 = vmatpush.bf16.msra.mxu0 0
  %6356 = vmatpush.bf16.msra.mxu0 %v2787
  %6357 = vmatpush.bf16.msra.mxu0 %v1906
  %6358 = vmatpush.bf16.msra.mxu0 %v1749
  %6359 = vmatmul.bf16.gmra.mxu0 %v2417
  %v6360 = vpop.f32.mrf.mxu0
  %v6361 = vadd.f32 0.0, %v6360
  %v6362 = vpop.f32.mrf.mxu0
  %v6363 = vadd.f32 0.0, %v6362
  %6364 = vmatmul.bf16.gmra.mxu0 %v2420
  %v6365 = vpop.f32.mrf.mxu0
  %v6366 = vadd.f32 0.0, %v6365
  %v6367 = vpop.f32.mrf.mxu0
  %v6368 = vadd.f32 0.0, %v6367
  %6369 = vmatmul.bf16.gmra.mxu0 %v2423
  %v6370 = vpop.f32.mrf.mxu0
  %v6371 = vadd.f32 0.0, %v6370
  %v6372 = vpop.f32.mrf.mxu0
  %v6373 = vadd.f32 0.0, %v6372
  %6374 = vmatmul.bf16.gmra.mxu0 %v2426
  %v6375 = vpop.f32.mrf.mxu0
  %v6376 = vadd.f32 0.0, %v6375
  %v6377 = vpop.f32.mrf.mxu0
  %v6378 = vadd.f32 0.0, %v6377
  %6379 = vdwg.mxu0
  %6380 = vmatpush.bf16.msra.mxu0 0
  %6381 = vmatpush.bf16.msra.mxu0 0
  %6382 = vmatpush.bf16.msra.mxu0 0
  %6383 = vmatpush.bf16.msra.mxu0 0
  %6384 = vmatpush.bf16.msra.mxu0 0
  %6385 = vmatpush.bf16.msra.mxu0 %v2790
  %6386 = vmatpush.bf16.msra.mxu0 %v1907
  %6387 = vmatpush.bf16.msra.mxu0 %v1750
  %6388 = vmatmul.bf16.gmra.mxu0 %v2417
  %v6389 = vpop.f32.mrf.mxu0
  %v6390 = vadd.f32 0.0, %v6389
  %v6391 = vpop.f32.mrf.mxu0
  %v6392 = vadd.f32 0.0, %v6391
  %6393 = vmatmul.bf16.gmra.mxu0 %v2420
  %v6394 = vpop.f32.mrf.mxu0
  %v6395 = vadd.f32 0.0, %v6394
  %v6396 = vpop.f32.mrf.mxu0
  %v6397 = vadd.f32 0.0, %v6396
  %6398 = vmatmul.bf16.gmra.mxu0 %v2423
  %v6399 = vpop.f32.mrf.mxu0
  %v6400 = vadd.f32 0.0, %v6399
  %v6401 = vpop.f32.mrf.mxu0
  %v6402 = vadd.f32 0.0, %v6401
  %6403 = vmatmul.bf16.gmra.mxu0 %v2426
  %v6404 = vpop.f32.mrf.mxu0
  %v6405 = vadd.f32 0.0, %v6404
  %v6406 = vpop.f32.mrf.mxu0
  %v6407 = vadd.f32 0.0, %v6406
  %6408 = vdwg.mxu0
  %6409 = vmatpush.bf16.msra.mxu0 0
  %6410 = vmatpush.bf16.msra.mxu0 0
  %6411 = vmatpush.bf16.msra.mxu0 0
  %6412 = vmatpush.bf16.msra.mxu0 0
  %6413 = vmatpush.bf16.msra.mxu0 0
  %6414 = vmatpush.bf16.msra.mxu0 %v2793
  %6415 = vmatpush.bf16.msra.mxu0 %v1908
  %6416 = vmatpush.bf16.msra.mxu0 %v1751
  %6417 = vmatmul.bf16.gmra.mxu0 %v2417
  %v6418 = vpop.f32.mrf.mxu0
  %v6419 = vadd.f32 0.0, %v6418
  %v6420 = vpop.f32.mrf.mxu0
  %v6421 = vadd.f32 0.0, %v6420
  %6422 = vmatmul.bf16.gmra.mxu0 %v2420
  %v6423 = vpop.f32.mrf.mxu0
  %v6424 = vadd.f32 0.0, %v6423
  %v6425 = vpop.f32.mrf.mxu0
  %v6426 = vadd.f32 0.0, %v6425
  %6427 = vmatmul.bf16.gmra.mxu0 %v2423
  %v6428 = vpop.f32.mrf.mxu0
  %v6429 = vadd.f32 0.0, %v6428
  %v6430 = vpop.f32.mrf.mxu0
  %v6431 = vadd.f32 0.0, %v6430
  %6432 = vmatmul.bf16.gmra.mxu0 %v2426
  %v6433 = vpop.f32.mrf.mxu0
  %v6434 = vadd.f32 0.0, %v6433
  %v6435 = vpop.f32.mrf.mxu0
  %v6436 = vadd.f32 0.0, %v6435
  %6437 = vdwg.mxu0
  %6438 = vmatpush.bf16.msra.mxu0 0
  %6439 = vmatpush.bf16.msra.mxu0 0
  %6440 = vmatpush.bf16.msra.mxu0 0
  %6441 = vmatpush.bf16.msra.mxu0 0
  %6442 = vmatpush.bf16.msra.mxu0 0
  %6443 = vmatpush.bf16.msra.mxu0 %v2796
  %6444 = vmatpush.bf16.msra.mxu0 %v1909
  %6445 = vmatpush.bf16.msra.mxu0 %v1752
  %6446 = vmatmul.bf16.gmra.mxu0 %v2417
  %v6447 = vpop.f32.mrf.mxu0
  %v6448 = vadd.f32 0.0, %v6447
  %v6449 = vpop.f32.mrf.mxu0
  %v6450 = vadd.f32 0.0, %v6449
  %6451 = vmatmul.bf16.gmra.mxu0 %v2420
  %v6452 = vpop.f32.mrf.mxu0
  %v6453 = vadd.f32 0.0, %v6452
  %v6454 = vpop.f32.mrf.mxu0
  %v6455 = vadd.f32 0.0, %v6454
  %6456 = vmatmul.bf16.gmra.mxu0 %v2423
  %v6457 = vpop.f32.mrf.mxu0
  %v6458 = vadd.f32 0.0, %v6457
  %v6459 = vpop.f32.mrf.mxu0
  %v6460 = vadd.f32 0.0, %v6459
  %6461 = vmatmul.bf16.gmra.mxu0 %v2426
  %v6462 = vpop.f32.mrf.mxu0
  %v6463 = vadd.f32 0.0, %v6462
  %v6464 = vpop.f32.mrf.mxu0
  %v6465 = vadd.f32 0.0, %v6464
  %6466 = vdwg.mxu0
  %6467 = vmatpush.bf16.msra.mxu0 0
  %6468 = vmatpush.bf16.msra.mxu0 0
  %6469 = vmatpush.bf16.msra.mxu0 0
  %6470 = vmatpush.bf16.msra.mxu0 0
  %6471 = vmatpush.bf16.msra.mxu0 0
  %6472 = vmatpush.bf16.msra.mxu0 %v2799
  %6473 = vmatpush.bf16.msra.mxu0 %v1910
  %6474 = vmatpush.bf16.msra.mxu0 %v1753
  %6475 = vmatmul.bf16.gmra.mxu0 %v2417
  %v6476 = vpop.f32.mrf.mxu0
  %v6477 = vadd.f32 0.0, %v6476
  %v6478 = vpop.f32.mrf.mxu0
  %v6479 = vadd.f32 0.0, %v6478
  %6480 = vmatmul.bf16.gmra.mxu0 %v2420
  %v6481 = vpop.f32.mrf.mxu0
  %v6482 = vadd.f32 0.0, %v6481
  %v6483 = vpop.f32.mrf.mxu0
  %v6484 = vadd.f32 0.0, %v6483
  %6485 = vmatmul.bf16.gmra.mxu0 %v2423
  %v6486 = vpop.f32.mrf.mxu0
  %v6487 = vadd.f32 0.0, %v6486
  %v6488 = vpop.f32.mrf.mxu0
  %v6489 = vadd.f32 0.0, %v6488
  %6490 = vmatmul.bf16.gmra.mxu0 %v2426
  %v6491 = vpop.f32.mrf.mxu0
  %v6492 = vadd.f32 0.0, %v6491
  %v6493 = vpop.f32.mrf.mxu0
  %v6494 = vadd.f32 0.0, %v6493
  %6495 = vdwg.mxu0
  %6496 = vmatpush.bf16.msra.mxu0 0
  %6497 = vmatpush.bf16.msra.mxu0 0
  %6498 = vmatpush.bf16.msra.mxu0 0
  %6499 = vmatpush.bf16.msra.mxu0 0
  %6500 = vmatpush.bf16.msra.mxu0 0
  %6501 = vmatpush.bf16.msra.mxu0 %v2802
  %6502 = vmatpush.bf16.msra.mxu0 %v1911
  %6503 = vmatpush.bf16.msra.mxu0 %v1754
  %6504 = vmatmul.bf16.gmra.mxu0 %v2417
  %v6505 = vpop.f32.mrf.mxu0
  %v6506 = vadd.f32 0.0, %v6505
  %v6507 = vpop.f32.mrf.mxu0
  %v6508 = vadd.f32 0.0, %v6507
  %6509 = vmatmul.bf16.gmra.mxu0 %v2420
  %v6510 = vpop.f32.mrf.mxu0
  %v6511 = vadd.f32 0.0, %v6510
  %v6512 = vpop.f32.mrf.mxu0
  %v6513 = vadd.f32 0.0, %v6512
  %6514 = vmatmul.bf16.gmra.mxu0 %v2423
  %v6515 = vpop.f32.mrf.mxu0
  %v6516 = vadd.f32 0.0, %v6515
  %v6517 = vpop.f32.mrf.mxu0
  %v6518 = vadd.f32 0.0, %v6517
  %6519 = vmatmul.bf16.gmra.mxu0 %v2426
  %v6520 = vpop.f32.mrf.mxu0
  %v6521 = vadd.f32 0.0, %v6520
  %v6522 = vpop.f32.mrf.mxu0
  %v6523 = vadd.f32 0.0, %v6522
  %6524 = vdwg.mxu0
  %6525 = vmatpush.bf16.msra.mxu0 0
  %6526 = vmatpush.bf16.msra.mxu0 0
  %6527 = vmatpush.bf16.msra.mxu0 0
  %6528 = vmatpush.bf16.msra.mxu0 0
  %6529 = vmatpush.bf16.msra.mxu0 0
  %6530 = vmatpush.bf16.msra.mxu0 %v2805
  %6531 = vmatpush.bf16.msra.mxu0 %v1912
  %6532 = vmatpush.bf16.msra.mxu0 %v1755
  %6533 = vmatmul.bf16.gmra.mxu0 %v2417
  %v6534 = vpop.f32.mrf.mxu0
  %v6535 = vadd.f32 0.0, %v6534
  %v6536 = vpop.f32.mrf.mxu0
  %v6537 = vadd.f32 0.0, %v6536
  %6538 = vmatmul.bf16.gmra.mxu0 %v2420
  %v6539 = vpop.f32.mrf.mxu0
  %v6540 = vadd.f32 0.0, %v6539
  %v6541 = vpop.f32.mrf.mxu0
  %v6542 = vadd.f32 0.0, %v6541
  %6543 = vmatmul.bf16.gmra.mxu0 %v2423
  %v6544 = vpop.f32.mrf.mxu0
  %v6545 = vadd.f32 0.0, %v6544
  %v6546 = vpop.f32.mrf.mxu0
  %v6547 = vadd.f32 0.0, %v6546
  %6548 = vmatmul.bf16.gmra.mxu0 %v2426
  %v6549 = vpop.f32.mrf.mxu0
  %v6550 = vadd.f32 0.0, %v6549
  %v6551 = vpop.f32.mrf.mxu0
  %v6552 = vadd.f32 0.0, %v6551
  %6553 = vdwg.mxu0
  %6554 = vmatpush.bf16.msra.mxu0 0
  %6555 = vmatpush.bf16.msra.mxu0 0
  %6556 = vmatpush.bf16.msra.mxu0 0
  %6557 = vmatpush.bf16.msra.mxu0 0
  %6558 = vmatpush.bf16.msra.mxu0 0
  %6559 = vmatpush.bf16.msra.mxu0 %v2808
  %6560 = vmatpush.bf16.msra.mxu0 %v1913
  %6561 = vmatpush.bf16.msra.mxu0 %v1756
  %6562 = vmatmul.bf16.gmra.mxu0 %v2417
  %v6563 = vpop.f32.mrf.mxu0
  %v6564 = vadd.f32 0.0, %v6563
  %v6565 = vpop.f32.mrf.mxu0
  %v6566 = vadd.f32 0.0, %v6565
  %6567 = vmatmul.bf16.gmra.mxu0 %v2420
  %v6568 = vpop.f32.mrf.mxu0
  %v6569 = vadd.f32 0.0, %v6568
  %v6570 = vpop.f32.mrf.mxu0
  %v6571 = vadd.f32 0.0, %v6570
  %6572 = vmatmul.bf16.gmra.mxu0 %v2423
  %v6573 = vpop.f32.mrf.mxu0
  %v6574 = vadd.f32 0.0, %v6573
  %v6575 = vpop.f32.mrf.mxu0
  %v6576 = vadd.f32 0.0, %v6575
  %6577 = vmatmul.bf16.gmra.mxu0 %v2426
  %v6578 = vpop.f32.mrf.mxu0
  %v6579 = vadd.f32 0.0, %v6578
  %v6580 = vpop.f32.mrf.mxu0
  %v6581 = vadd.f32 0.0, %v6580
  %6582 = vdwg.mxu0
  %6583 = vmatpush.bf16.msra.mxu0 0
  %6584 = vmatpush.bf16.msra.mxu0 0
  %6585 = vmatpush.bf16.msra.mxu0 0
  %6586 = vmatpush.bf16.msra.mxu0 0
  %6587 = vmatpush.bf16.msra.mxu0 0
  %6588 = vmatpush.bf16.msra.mxu0 %v2811
  %6589 = vmatpush.bf16.msra.mxu0 %v1914
  %6590 = vmatpush.bf16.msra.mxu0 %v1757
  %6591 = vmatmul.bf16.gmra.mxu0 %v2417
  %v6592 = vpop.f32.mrf.mxu0
  %v6593 = vadd.f32 0.0, %v6592
  %v6594 = vpop.f32.mrf.mxu0
  %v6595 = vadd.f32 0.0, %v6594
  %6596 = vmatmul.bf16.gmra.mxu0 %v2420
  %v6597 = vpop.f32.mrf.mxu0
  %v6598 = vadd.f32 0.0, %v6597
  %v6599 = vpop.f32.mrf.mxu0
  %v6600 = vadd.f32 0.0, %v6599
  %6601 = vmatmul.bf16.gmra.mxu0 %v2423
  %v6602 = vpop.f32.mrf.mxu0
  %v6603 = vadd.f32 0.0, %v6602
  %v6604 = vpop.f32.mrf.mxu0
  %v6605 = vadd.f32 0.0, %v6604
  %6606 = vmatmul.bf16.gmra.mxu0 %v2426
  %v6607 = vpop.f32.mrf.mxu0
  %v6608 = vadd.f32 0.0, %v6607
  %v6609 = vpop.f32.mrf.mxu0
  %v6610 = vadd.f32 0.0, %v6609
  %6611 = vdwg.mxu0
  %6612 = vmatpush.bf16.msra.mxu0 0
  %6613 = vmatpush.bf16.msra.mxu0 0
  %6614 = vmatpush.bf16.msra.mxu0 0
  %6615 = vmatpush.bf16.msra.mxu0 0
  %6616 = vmatpush.bf16.msra.mxu0 0
  %6617 = vmatpush.bf16.msra.mxu0 %v2814
  %6618 = vmatpush.bf16.msra.mxu0 %v1915
  %6619 = vmatpush.bf16.msra.mxu0 %v1758
  %6620 = vmatmul.bf16.gmra.mxu0 %v2417
  %v6621 = vpop.f32.mrf.mxu0
  %v6622 = vadd.f32 0.0, %v6621
  %v6623 = vpop.f32.mrf.mxu0
  %v6624 = vadd.f32 0.0, %v6623
  %6625 = vmatmul.bf16.gmra.mxu0 %v2420
  %v6626 = vpop.f32.mrf.mxu0
  %v6627 = vadd.f32 0.0, %v6626
  %v6628 = vpop.f32.mrf.mxu0
  %v6629 = vadd.f32 0.0, %v6628
  %6630 = vmatmul.bf16.gmra.mxu0 %v2423
  %v6631 = vpop.f32.mrf.mxu0
  %v6632 = vadd.f32 0.0, %v6631
  %v6633 = vpop.f32.mrf.mxu0
  %v6634 = vadd.f32 0.0, %v6633
  %6635 = vmatmul.bf16.gmra.mxu0 %v2426
  %v6636 = vpop.f32.mrf.mxu0
  %v6637 = vadd.f32 0.0, %v6636
  %v6638 = vpop.f32.mrf.mxu0
  %v6639 = vadd.f32 0.0, %v6638
  %6640 = vdwg.mxu0
  %6641 = vmatpush.bf16.msra.mxu0 0
  %6642 = vmatpush.bf16.msra.mxu0 0
  %6643 = vmatpush.bf16.msra.mxu0 0
  %6644 = vmatpush.bf16.msra.mxu0 0
  %6645 = vmatpush.bf16.msra.mxu0 0
  %6646 = vmatpush.bf16.msra.mxu0 %v2817
  %6647 = vmatpush.bf16.msra.mxu0 %v1916
  %6648 = vmatpush.bf16.msra.mxu0 %v1759
  %6649 = vmatmul.bf16.gmra.mxu0 %v2417
  %v6650 = vpop.f32.mrf.mxu0
  %v6651 = vadd.f32 0.0, %v6650
  %v6652 = vpop.f32.mrf.mxu0
  %v6653 = vadd.f32 0.0, %v6652
  %6654 = vmatmul.bf16.gmra.mxu0 %v2420
  %v6655 = vpop.f32.mrf.mxu0
  %v6656 = vadd.f32 0.0, %v6655
  %v6657 = vpop.f32.mrf.mxu0
  %v6658 = vadd.f32 0.0, %v6657
  %6659 = vmatmul.bf16.gmra.mxu0 %v2423
  %v6660 = vpop.f32.mrf.mxu0
  %v6661 = vadd.f32 0.0, %v6660
  %v6662 = vpop.f32.mrf.mxu0
  %v6663 = vadd.f32 0.0, %v6662
  %6664 = vmatmul.bf16.gmra.mxu0 %v2426
  %v6665 = vpop.f32.mrf.mxu0
  %v6666 = vadd.f32 0.0, %v6665
  %v6667 = vpop.f32.mrf.mxu0
  %v6668 = vadd.f32 0.0, %v6667
  %6669 = vdwg.mxu0
  %6670 = vmatpush.bf16.msra.mxu0 0
  %6671 = vmatpush.bf16.msra.mxu0 0
  %6672 = vmatpush.bf16.msra.mxu0 0
  %6673 = vmatpush.bf16.msra.mxu0 0
  %6674 = vmatpush.bf16.msra.mxu0 0
  %6675 = vmatpush.bf16.msra.mxu0 %v2820
  %6676 = vmatpush.bf16.msra.mxu0 %v1917
  %6677 = vmatpush.bf16.msra.mxu0 %v1760
  %6678 = vmatmul.bf16.gmra.mxu0 %v2417
  %v6679 = vpop.f32.mrf.mxu0
  %v6680 = vadd.f32 0.0, %v6679
  %v6681 = vpop.f32.mrf.mxu0
  %v6682 = vadd.f32 0.0, %v6681
  %6683 = vmatmul.bf16.gmra.mxu0 %v2420
  %v6684 = vpop.f32.mrf.mxu0
  %v6685 = vadd.f32 0.0, %v6684
  %v6686 = vpop.f32.mrf.mxu0
  %v6687 = vadd.f32 0.0, %v6686
  %6688 = vmatmul.bf16.gmra.mxu0 %v2423
  %v6689 = vpop.f32.mrf.mxu0
  %v6690 = vadd.f32 0.0, %v6689
  %v6691 = vpop.f32.mrf.mxu0
  %v6692 = vadd.f32 0.0, %v6691
  %6693 = vmatmul.bf16.gmra.mxu0 %v2426
  %v6694 = vpop.f32.mrf.mxu0
  %v6695 = vadd.f32 0.0, %v6694
  %v6696 = vpop.f32.mrf.mxu0
  %v6697 = vadd.f32 0.0, %v6696
  %6698 = vdwg.mxu0
  %6699 = vmatpush.bf16.msra.mxu0 0
  %6700 = vmatpush.bf16.msra.mxu0 0
  %6701 = vmatpush.bf16.msra.mxu0 0
  %6702 = vmatpush.bf16.msra.mxu0 0
  %6703 = vmatpush.bf16.msra.mxu0 0
  %6704 = vmatpush.bf16.msra.mxu0 %v2823
  %6705 = vmatpush.bf16.msra.mxu0 %v1918
  %6706 = vmatpush.bf16.msra.mxu0 %v1761
  %6707 = vmatmul.bf16.gmra.mxu0 %v2417
  %v6708 = vpop.f32.mrf.mxu0
  %v6709 = vadd.f32 0.0, %v6708
  %v6710 = vpop.f32.mrf.mxu0
  %v6711 = vadd.f32 0.0, %v6710
  %6712 = vmatmul.bf16.gmra.mxu0 %v2420
  %v6713 = vpop.f32.mrf.mxu0
  %v6714 = vadd.f32 0.0, %v6713
  %v6715 = vpop.f32.mrf.mxu0
  %v6716 = vadd.f32 0.0, %v6715
  %6717 = vmatmul.bf16.gmra.mxu0 %v2423
  %v6718 = vpop.f32.mrf.mxu0
  %v6719 = vadd.f32 0.0, %v6718
  %v6720 = vpop.f32.mrf.mxu0
  %v6721 = vadd.f32 0.0, %v6720
  %6722 = vmatmul.bf16.gmra.mxu0 %v2426
  %v6723 = vpop.f32.mrf.mxu0
  %v6724 = vadd.f32 0.0, %v6723
  %v6725 = vpop.f32.mrf.mxu0
  %v6726 = vadd.f32 0.0, %v6725
  %6727 = vdwg.mxu0
  %6728 = vmatpush.bf16.msra.mxu0 0
  %6729 = vmatpush.bf16.msra.mxu0 0
  %6730 = vmatpush.bf16.msra.mxu0 0
  %6731 = vmatpush.bf16.msra.mxu0 0
  %6732 = vmatpush.bf16.msra.mxu0 0
  %6733 = vmatpush.bf16.msra.mxu0 %v2826
  %6734 = vmatpush.bf16.msra.mxu0 %v1919
  %6735 = vmatpush.bf16.msra.mxu0 %v1762
  %6736 = vmatmul.bf16.gmra.mxu0 %v2417
  %v6737 = vpop.f32.mrf.mxu0
  %v6738 = vadd.f32 0.0, %v6737
  %v6739 = vpop.f32.mrf.mxu0
  %v6740 = vadd.f32 0.0, %v6739
  %6741 = vmatmul.bf16.gmra.mxu0 %v2420
  %v6742 = vpop.f32.mrf.mxu0
  %v6743 = vadd.f32 0.0, %v6742
  %v6744 = vpop.f32.mrf.mxu0
  %v6745 = vadd.f32 0.0, %v6744
  %6746 = vmatmul.bf16.gmra.mxu0 %v2423
  %v6747 = vpop.f32.mrf.mxu0
  %v6748 = vadd.f32 0.0, %v6747
  %v6749 = vpop.f32.mrf.mxu0
  %v6750 = vadd.f32 0.0, %v6749
  %6751 = vmatmul.bf16.gmra.mxu0 %v2426
  %v6752 = vpop.f32.mrf.mxu0
  %v6753 = vadd.f32 0.0, %v6752
  %v6754 = vpop.f32.mrf.mxu0
  %v6755 = vadd.f32 0.0, %v6754
  %6756 = vdwg.mxu0
  %6757 = vmatpush.bf16.msra.mxu0 0
  %6758 = vmatpush.bf16.msra.mxu0 0
  %6759 = vmatpush.bf16.msra.mxu0 0
  %6760 = vmatpush.bf16.msra.mxu0 0
  %6761 = vmatpush.bf16.msra.mxu0 0
  %6762 = vmatpush.bf16.msra.mxu0 %v2829
  %6763 = vmatpush.bf16.msra.mxu0 %v1920
  %6764 = vmatpush.bf16.msra.mxu0 %v1763
  %6765 = vmatmul.bf16.gmra.mxu0 %v2417
  %v6766 = vpop.f32.mrf.mxu0
  %v6767 = vadd.f32 0.0, %v6766
  %v6768 = vpop.f32.mrf.mxu0
  %v6769 = vadd.f32 0.0, %v6768
  %6770 = vmatmul.bf16.gmra.mxu0 %v2420
  %v6771 = vpop.f32.mrf.mxu0
  %v6772 = vadd.f32 0.0, %v6771
  %v6773 = vpop.f32.mrf.mxu0
  %v6774 = vadd.f32 0.0, %v6773
  %6775 = vmatmul.bf16.gmra.mxu0 %v2423
  %v6776 = vpop.f32.mrf.mxu0
  %v6777 = vadd.f32 0.0, %v6776
  %v6778 = vpop.f32.mrf.mxu0
  %v6779 = vadd.f32 0.0, %v6778
  %6780 = vmatmul.bf16.gmra.mxu0 %v2426
  %v6781 = vpop.f32.mrf.mxu0
  %v6782 = vadd.f32 0.0, %v6781
  %v6783 = vpop.f32.mrf.mxu0
  %v6784 = vadd.f32 0.0, %v6783
  %6785 = vdwg.mxu0
  %6786 = vmatpush.bf16.msra.mxu0 0
  %6787 = vmatpush.bf16.msra.mxu0 0
  %6788 = vmatpush.bf16.msra.mxu0 0
  %6789 = vmatpush.bf16.msra.mxu0 0
  %6790 = vmatpush.bf16.msra.mxu0 0
  %6791 = vmatpush.bf16.msra.mxu0 %v2832
  %6792 = vmatpush.bf16.msra.mxu0 %v1921
  %6793 = vmatpush.bf16.msra.mxu0 %v1764
  %6794 = vmatmul.bf16.gmra.mxu0 %v2417
  %v6795 = vpop.f32.mrf.mxu0
  %v6796 = vadd.f32 0.0, %v6795
  %v6797 = vpop.f32.mrf.mxu0
  %v6798 = vadd.f32 0.0, %v6797
  %6799 = vmatmul.bf16.gmra.mxu0 %v2420
  %v6800 = vpop.f32.mrf.mxu0
  %v6801 = vadd.f32 0.0, %v6800
  %v6802 = vpop.f32.mrf.mxu0
  %v6803 = vadd.f32 0.0, %v6802
  %6804 = vmatmul.bf16.gmra.mxu0 %v2423
  %v6805 = vpop.f32.mrf.mxu0
  %v6806 = vadd.f32 0.0, %v6805
  %v6807 = vpop.f32.mrf.mxu0
  %v6808 = vadd.f32 0.0, %v6807
  %6809 = vmatmul.bf16.gmra.mxu0 %v2426
  %v6810 = vpop.f32.mrf.mxu0
  %v6811 = vadd.f32 0.0, %v6810
  %v6812 = vpop.f32.mrf.mxu0
  %v6813 = vadd.f32 0.0, %v6812
  %6814 = vdwg.mxu0
  %6815 = vmatpush.bf16.msra.mxu0 0
  %6816 = vmatpush.bf16.msra.mxu0 0
  %6817 = vmatpush.bf16.msra.mxu0 0
  %6818 = vmatpush.bf16.msra.mxu0 0
  %6819 = vmatpush.bf16.msra.mxu0 0
  %6820 = vmatpush.bf16.msra.mxu0 %v2835
  %6821 = vmatpush.bf16.msra.mxu0 %v1922
  %6822 = vmatpush.bf16.msra.mxu0 %v1765
  %6823 = vmatmul.bf16.gmra.mxu0 %v2417
  %v6824 = vpop.f32.mrf.mxu0
  %v6825 = vadd.f32 0.0, %v6824
  %v6826 = vpop.f32.mrf.mxu0
  %v6827 = vadd.f32 0.0, %v6826
  %6828 = vmatmul.bf16.gmra.mxu0 %v2420
  %v6829 = vpop.f32.mrf.mxu0
  %v6830 = vadd.f32 0.0, %v6829
  %v6831 = vpop.f32.mrf.mxu0
  %v6832 = vadd.f32 0.0, %v6831
  %6833 = vmatmul.bf16.gmra.mxu0 %v2423
  %v6834 = vpop.f32.mrf.mxu0
  %v6835 = vadd.f32 0.0, %v6834
  %v6836 = vpop.f32.mrf.mxu0
  %v6837 = vadd.f32 0.0, %v6836
  %6838 = vmatmul.bf16.gmra.mxu0 %v2426
  %v6839 = vpop.f32.mrf.mxu0
  %v6840 = vadd.f32 0.0, %v6839
  %v6841 = vpop.f32.mrf.mxu0
  %v6842 = vadd.f32 0.0, %v6841
  %6843 = vdwg.mxu0
  %6844 = vmatpush.bf16.msra.mxu0 0
  %6845 = vmatpush.bf16.msra.mxu0 0
  %6846 = vmatpush.bf16.msra.mxu0 0
  %6847 = vmatpush.bf16.msra.mxu0 0
  %6848 = vmatpush.bf16.msra.mxu0 0
  %6849 = vmatpush.bf16.msra.mxu0 %v2838
  %6850 = vmatpush.bf16.msra.mxu0 %v1923
  %6851 = vmatpush.bf16.msra.mxu0 %v1766
  %6852 = vmatmul.bf16.gmra.mxu0 %v2417
  %v6853 = vpop.f32.mrf.mxu0
  %v6854 = vadd.f32 0.0, %v6853
  %v6855 = vpop.f32.mrf.mxu0
  %v6856 = vadd.f32 0.0, %v6855
  %6857 = vmatmul.bf16.gmra.mxu0 %v2420
  %v6858 = vpop.f32.mrf.mxu0
  %v6859 = vadd.f32 0.0, %v6858
  %v6860 = vpop.f32.mrf.mxu0
  %v6861 = vadd.f32 0.0, %v6860
  %6862 = vmatmul.bf16.gmra.mxu0 %v2423
  %v6863 = vpop.f32.mrf.mxu0
  %v6864 = vadd.f32 0.0, %v6863
  %v6865 = vpop.f32.mrf.mxu0
  %v6866 = vadd.f32 0.0, %v6865
  %6867 = vmatmul.bf16.gmra.mxu0 %v2426
  %v6868 = vpop.f32.mrf.mxu0
  %v6869 = vadd.f32 0.0, %v6868
  %v6870 = vpop.f32.mrf.mxu0
  %v6871 = vadd.f32 0.0, %v6870
  %6872 = vdwg.mxu0
  %6873 = vmatpush.bf16.msra.mxu0 0
  %6874 = vmatpush.bf16.msra.mxu0 0
  %6875 = vmatpush.bf16.msra.mxu0 0
  %6876 = vmatpush.bf16.msra.mxu0 0
  %6877 = vmatpush.bf16.msra.mxu0 0
  %6878 = vmatpush.bf16.msra.mxu0 %v2841
  %6879 = vmatpush.bf16.msra.mxu0 %v1924
  %6880 = vmatpush.bf16.msra.mxu0 %v1767
  %6881 = vmatmul.bf16.gmra.mxu0 %v2417
  %v6882 = vpop.f32.mrf.mxu0
  %v6883 = vadd.f32 0.0, %v6882
  %v6884 = vpop.f32.mrf.mxu0
  %v6885 = vadd.f32 0.0, %v6884
  %6886 = vmatmul.bf16.gmra.mxu0 %v2420
  %v6887 = vpop.f32.mrf.mxu0
  %v6888 = vadd.f32 0.0, %v6887
  %v6889 = vpop.f32.mrf.mxu0
  %v6890 = vadd.f32 0.0, %v6889
  %6891 = vmatmul.bf16.gmra.mxu0 %v2423
  %v6892 = vpop.f32.mrf.mxu0
  %v6893 = vadd.f32 0.0, %v6892
  %v6894 = vpop.f32.mrf.mxu0
  %v6895 = vadd.f32 0.0, %v6894
  %6896 = vmatmul.bf16.gmra.mxu0 %v2426
  %v6897 = vpop.f32.mrf.mxu0
  %v6898 = vadd.f32 0.0, %v6897
  %v6899 = vpop.f32.mrf.mxu0
  %v6900 = vadd.f32 0.0, %v6899
  %6901 = vdwg.mxu0
  %6902 = vmatpush.bf16.msra.mxu0 0
  %6903 = vmatpush.bf16.msra.mxu0 0
  %6904 = vmatpush.bf16.msra.mxu0 0
  %6905 = vmatpush.bf16.msra.mxu0 0
  %6906 = vmatpush.bf16.msra.mxu0 0
  %6907 = vmatpush.bf16.msra.mxu0 %v2844
  %6908 = vmatpush.bf16.msra.mxu0 %v1925
  %6909 = vmatpush.bf16.msra.mxu0 %v1768
  %6910 = vmatmul.bf16.gmra.mxu0 %v2417
  %v6911 = vpop.f32.mrf.mxu0
  %v6912 = vadd.f32 0.0, %v6911
  %v6913 = vpop.f32.mrf.mxu0
  %v6914 = vadd.f32 0.0, %v6913
  %6915 = vmatmul.bf16.gmra.mxu0 %v2420
  %v6916 = vpop.f32.mrf.mxu0
  %v6917 = vadd.f32 0.0, %v6916
  %v6918 = vpop.f32.mrf.mxu0
  %v6919 = vadd.f32 0.0, %v6918
  %6920 = vmatmul.bf16.gmra.mxu0 %v2423
  %v6921 = vpop.f32.mrf.mxu0
  %v6922 = vadd.f32 0.0, %v6921
  %v6923 = vpop.f32.mrf.mxu0
  %v6924 = vadd.f32 0.0, %v6923
  %6925 = vmatmul.bf16.gmra.mxu0 %v2426
  %v6926 = vpop.f32.mrf.mxu0
  %v6927 = vadd.f32 0.0, %v6926
  %v6928 = vpop.f32.mrf.mxu0
  %v6929 = vadd.f32 0.0, %v6928
  %6930 = vdwg.mxu0
  %6931 = vmatpush.bf16.msra.mxu0 0
  %6932 = vmatpush.bf16.msra.mxu0 0
  %6933 = vmatpush.bf16.msra.mxu0 0
  %6934 = vmatpush.bf16.msra.mxu0 0
  %6935 = vmatpush.bf16.msra.mxu0 0
  %6936 = vmatpush.bf16.msra.mxu0 %v2847
  %6937 = vmatpush.bf16.msra.mxu0 %v1926
  %6938 = vmatpush.bf16.msra.mxu0 %v1769
  %6939 = vmatmul.bf16.gmra.mxu0 %v2417
  %v6940 = vpop.f32.mrf.mxu0
  %v6941 = vadd.f32 0.0, %v6940
  %v6942 = vpop.f32.mrf.mxu0
  %v6943 = vadd.f32 0.0, %v6942
  %6944 = vmatmul.bf16.gmra.mxu0 %v2420
  %v6945 = vpop.f32.mrf.mxu0
  %v6946 = vadd.f32 0.0, %v6945
  %v6947 = vpop.f32.mrf.mxu0
  %v6948 = vadd.f32 0.0, %v6947
  %6949 = vmatmul.bf16.gmra.mxu0 %v2423
  %v6950 = vpop.f32.mrf.mxu0
  %v6951 = vadd.f32 0.0, %v6950
  %v6952 = vpop.f32.mrf.mxu0
  %v6953 = vadd.f32 0.0, %v6952
  %6954 = vmatmul.bf16.gmra.mxu0 %v2426
  %v6955 = vpop.f32.mrf.mxu0
  %v6956 = vadd.f32 0.0, %v6955
  %v6957 = vpop.f32.mrf.mxu0
  %v6958 = vadd.f32 0.0, %v6957
  %6959 = vdwg.mxu0
  %6960 = vmatpush.bf16.msra.mxu0 0
  %6961 = vmatpush.bf16.msra.mxu0 0
  %6962 = vmatpush.bf16.msra.mxu0 0
  %6963 = vmatpush.bf16.msra.mxu0 0
  %6964 = vmatpush.bf16.msra.mxu0 0
  %6965 = vmatpush.bf16.msra.mxu0 %v2850
  %6966 = vmatpush.bf16.msra.mxu0 %v1927
  %6967 = vmatpush.bf16.msra.mxu0 %v1770
  %6968 = vmatmul.bf16.gmra.mxu0 %v2417
  %v6969 = vpop.f32.mrf.mxu0
  %v6970 = vadd.f32 0.0, %v6969
  %v6971 = vpop.f32.mrf.mxu0
  %v6972 = vadd.f32 0.0, %v6971
  %6973 = vmatmul.bf16.gmra.mxu0 %v2420
  %v6974 = vpop.f32.mrf.mxu0
  %v6975 = vadd.f32 0.0, %v6974
  %v6976 = vpop.f32.mrf.mxu0
  %v6977 = vadd.f32 0.0, %v6976
  %6978 = vmatmul.bf16.gmra.mxu0 %v2423
  %v6979 = vpop.f32.mrf.mxu0
  %v6980 = vadd.f32 0.0, %v6979
  %v6981 = vpop.f32.mrf.mxu0
  %v6982 = vadd.f32 0.0, %v6981
  %6983 = vmatmul.bf16.gmra.mxu0 %v2426
  %v6984 = vpop.f32.mrf.mxu0
  %v6985 = vadd.f32 0.0, %v6984
  %v6986 = vpop.f32.mrf.mxu0
  %v6987 = vadd.f32 0.0, %v6986
  %6988 = vdwg.mxu0
  %6989 = vmatpush.bf16.msra.mxu0 0
  %6990 = vmatpush.bf16.msra.mxu0 0
  %6991 = vmatpush.bf16.msra.mxu0 0
  %6992 = vmatpush.bf16.msra.mxu0 0
  %6993 = vmatpush.bf16.msra.mxu0 0
  %6994 = vmatpush.bf16.msra.mxu0 %v2853
  %6995 = vmatpush.bf16.msra.mxu0 %v1928
  %6996 = vmatpush.bf16.msra.mxu0 %v1771
  %6997 = vmatmul.bf16.gmra.mxu0 %v2417
  %v6998 = vpop.f32.mrf.mxu0
  %v6999 = vadd.f32 0.0, %v6998
  %v7000 = vpop.f32.mrf.mxu0
  %v7001 = vadd.f32 0.0, %v7000
  %7002 = vmatmul.bf16.gmra.mxu0 %v2420
  %v7003 = vpop.f32.mrf.mxu0
  %v7004 = vadd.f32 0.0, %v7003
  %v7005 = vpop.f32.mrf.mxu0
  %v7006 = vadd.f32 0.0, %v7005
  %7007 = vmatmul.bf16.gmra.mxu0 %v2423
  %v7008 = vpop.f32.mrf.mxu0
  %v7009 = vadd.f32 0.0, %v7008
  %v7010 = vpop.f32.mrf.mxu0
  %v7011 = vadd.f32 0.0, %v7010
  %7012 = vmatmul.bf16.gmra.mxu0 %v2426
  %v7013 = vpop.f32.mrf.mxu0
  %v7014 = vadd.f32 0.0, %v7013
  %v7015 = vpop.f32.mrf.mxu0
  %v7016 = vadd.f32 0.0, %v7015
  %7017 = vdwg.mxu0
  %7018 = vmatpush.bf16.msra.mxu0 0
  %7019 = vmatpush.bf16.msra.mxu0 0
  %7020 = vmatpush.bf16.msra.mxu0 0
  %7021 = vmatpush.bf16.msra.mxu0 0
  %7022 = vmatpush.bf16.msra.mxu0 0
  %7023 = vmatpush.bf16.msra.mxu0 %v2856
  %7024 = vmatpush.bf16.msra.mxu0 %v1929
  %7025 = vmatpush.bf16.msra.mxu0 %v1772
  %7026 = vmatmul.bf16.gmra.mxu0 %v2417
  %v7027 = vpop.f32.mrf.mxu0
  %v7028 = vadd.f32 0.0, %v7027
  %v7029 = vpop.f32.mrf.mxu0
  %v7030 = vadd.f32 0.0, %v7029
  %7031 = vmatmul.bf16.gmra.mxu0 %v2420
  %v7032 = vpop.f32.mrf.mxu0
  %v7033 = vadd.f32 0.0, %v7032
  %v7034 = vpop.f32.mrf.mxu0
  %v7035 = vadd.f32 0.0, %v7034
  %7036 = vmatmul.bf16.gmra.mxu0 %v2423
  %v7037 = vpop.f32.mrf.mxu0
  %v7038 = vadd.f32 0.0, %v7037
  %v7039 = vpop.f32.mrf.mxu0
  %v7040 = vadd.f32 0.0, %v7039
  %7041 = vmatmul.bf16.gmra.mxu0 %v2426
  %v7042 = vpop.f32.mrf.mxu0
  %v7043 = vadd.f32 0.0, %v7042
  %v7044 = vpop.f32.mrf.mxu0
  %v7045 = vadd.f32 0.0, %v7044
  %7046 = vdwg.mxu0
  %7047 = vmatpush.bf16.msra.mxu0 0
  %7048 = vmatpush.bf16.msra.mxu0 0
  %7049 = vmatpush.bf16.msra.mxu0 0
  %7050 = vmatpush.bf16.msra.mxu0 0
  %7051 = vmatpush.bf16.msra.mxu0 0
  %7052 = vmatpush.bf16.msra.mxu0 %v2859
  %7053 = vmatpush.bf16.msra.mxu0 %v1930
  %7054 = vmatpush.bf16.msra.mxu0 %v1773
  %7055 = vmatmul.bf16.gmra.mxu0 %v2417
  %v7056 = vpop.f32.mrf.mxu0
  %v7057 = vadd.f32 0.0, %v7056
  %v7058 = vpop.f32.mrf.mxu0
  %v7059 = vadd.f32 0.0, %v7058
  %7060 = vmatmul.bf16.gmra.mxu0 %v2420
  %v7061 = vpop.f32.mrf.mxu0
  %v7062 = vadd.f32 0.0, %v7061
  %v7063 = vpop.f32.mrf.mxu0
  %v7064 = vadd.f32 0.0, %v7063
  %7065 = vmatmul.bf16.gmra.mxu0 %v2423
  %v7066 = vpop.f32.mrf.mxu0
  %v7067 = vadd.f32 0.0, %v7066
  %v7068 = vpop.f32.mrf.mxu0
  %v7069 = vadd.f32 0.0, %v7068
  %7070 = vmatmul.bf16.gmra.mxu0 %v2426
  %v7071 = vpop.f32.mrf.mxu0
  %v7072 = vadd.f32 0.0, %v7071
  %v7073 = vpop.f32.mrf.mxu0
  %v7074 = vadd.f32 0.0, %v7073
  %7075 = vdwg.mxu0
  %7076 = vmatpush.bf16.msra.mxu0 0
  %7077 = vmatpush.bf16.msra.mxu0 0
  %7078 = vmatpush.bf16.msra.mxu0 0
  %7079 = vmatpush.bf16.msra.mxu0 0
  %7080 = vmatpush.bf16.msra.mxu0 0
  %7081 = vmatpush.bf16.msra.mxu0 %v2862
  %7082 = vmatpush.bf16.msra.mxu0 %v1931
  %7083 = vmatpush.bf16.msra.mxu0 %v1774
  %7084 = vmatmul.bf16.gmra.mxu0 %v2417
  %v7085 = vpop.f32.mrf.mxu0
  %v7086 = vadd.f32 0.0, %v7085
  %v7087 = vpop.f32.mrf.mxu0
  %v7088 = vadd.f32 0.0, %v7087
  %7089 = vmatmul.bf16.gmra.mxu0 %v2420
  %v7090 = vpop.f32.mrf.mxu0
  %v7091 = vadd.f32 0.0, %v7090
  %v7092 = vpop.f32.mrf.mxu0
  %v7093 = vadd.f32 0.0, %v7092
  %7094 = vmatmul.bf16.gmra.mxu0 %v2423
  %v7095 = vpop.f32.mrf.mxu0
  %v7096 = vadd.f32 0.0, %v7095
  %v7097 = vpop.f32.mrf.mxu0
  %v7098 = vadd.f32 0.0, %v7097
  %7099 = vmatmul.bf16.gmra.mxu0 %v2426
  %v7100 = vpop.f32.mrf.mxu0
  %v7101 = vadd.f32 0.0, %v7100
  %v7102 = vpop.f32.mrf.mxu0
  %v7103 = vadd.f32 0.0, %v7102
  %7104 = vdwg.mxu0
  %7105 = vmatpush.bf16.msra.mxu0 0
  %7106 = vmatpush.bf16.msra.mxu0 0
  %7107 = vmatpush.bf16.msra.mxu0 0
  %7108 = vmatpush.bf16.msra.mxu0 0
  %7109 = vmatpush.bf16.msra.mxu0 0
  %7110 = vmatpush.bf16.msra.mxu0 %v2865
  %7111 = vmatpush.bf16.msra.mxu0 %v1932
  %7112 = vmatpush.bf16.msra.mxu0 %v1775
  %7113 = vmatmul.bf16.gmra.mxu0 %v2417
  %v7114 = vpop.f32.mrf.mxu0
  %v7115 = vadd.f32 0.0, %v7114
  %v7116 = vpop.f32.mrf.mxu0
  %v7117 = vadd.f32 0.0, %v7116
  %7118 = vmatmul.bf16.gmra.mxu0 %v2420
  %v7119 = vpop.f32.mrf.mxu0
  %v7120 = vadd.f32 0.0, %v7119
  %v7121 = vpop.f32.mrf.mxu0
  %v7122 = vadd.f32 0.0, %v7121
  %7123 = vmatmul.bf16.gmra.mxu0 %v2423
  %v7124 = vpop.f32.mrf.mxu0
  %v7125 = vadd.f32 0.0, %v7124
  %v7126 = vpop.f32.mrf.mxu0
  %v7127 = vadd.f32 0.0, %v7126
  %7128 = vmatmul.bf16.gmra.mxu0 %v2426
  %v7129 = vpop.f32.mrf.mxu0
  %v7130 = vadd.f32 0.0, %v7129
  %v7131 = vpop.f32.mrf.mxu0
  %v7132 = vadd.f32 0.0, %v7131
  %7133 = vdwg.mxu0
  %7134 = vmatpush.bf16.msra.mxu0 0
  %7135 = vmatpush.bf16.msra.mxu0 0
  %7136 = vmatpush.bf16.msra.mxu0 0
  %7137 = vmatpush.bf16.msra.mxu0 0
  %7138 = vmatpush.bf16.msra.mxu0 0
  %7139 = vmatpush.bf16.msra.mxu0 %v2868
  %7140 = vmatpush.bf16.msra.mxu0 %v1933
  %7141 = vmatpush.bf16.msra.mxu0 %v1776
  %7142 = vmatmul.bf16.gmra.mxu0 %v2417
  %v7143 = vpop.f32.mrf.mxu0
  %v7144 = vadd.f32 0.0, %v7143
  %v7145 = vpop.f32.mrf.mxu0
  %v7146 = vadd.f32 0.0, %v7145
  %7147 = vmatmul.bf16.gmra.mxu0 %v2420
  %v7148 = vpop.f32.mrf.mxu0
  %v7149 = vadd.f32 0.0, %v7148
  %v7150 = vpop.f32.mrf.mxu0
  %v7151 = vadd.f32 0.0, %v7150
  %7152 = vmatmul.bf16.gmra.mxu0 %v2423
  %v7153 = vpop.f32.mrf.mxu0
  %v7154 = vadd.f32 0.0, %v7153
  %v7155 = vpop.f32.mrf.mxu0
  %v7156 = vadd.f32 0.0, %v7155
  %7157 = vmatmul.bf16.gmra.mxu0 %v2426
  %v7158 = vpop.f32.mrf.mxu0
  %v7159 = vadd.f32 0.0, %v7158
  %v7160 = vpop.f32.mrf.mxu0
  %v7161 = vadd.f32 0.0, %v7160
  %7162 = vdwg.mxu0
  %7163 = vmatpush.bf16.msra.mxu0 0
  %7164 = vmatpush.bf16.msra.mxu0 0
  %7165 = vmatpush.bf16.msra.mxu0 0
  %7166 = vmatpush.bf16.msra.mxu0 0
  %7167 = vmatpush.bf16.msra.mxu0 0
  %7168 = vmatpush.bf16.msra.mxu0 %v2871
  %7169 = vmatpush.bf16.msra.mxu0 %v1934
  %7170 = vmatpush.bf16.msra.mxu0 %v1777
  %7171 = vmatmul.bf16.gmra.mxu0 %v2417
  %v7172 = vpop.f32.mrf.mxu0
  %v7173 = vadd.f32 0.0, %v7172
  %v7174 = vpop.f32.mrf.mxu0
  %v7175 = vadd.f32 0.0, %v7174
  %7176 = vmatmul.bf16.gmra.mxu0 %v2420
  %v7177 = vpop.f32.mrf.mxu0
  %v7178 = vadd.f32 0.0, %v7177
  %v7179 = vpop.f32.mrf.mxu0
  %v7180 = vadd.f32 0.0, %v7179
  %7181 = vmatmul.bf16.gmra.mxu0 %v2423
  %v7182 = vpop.f32.mrf.mxu0
  %v7183 = vadd.f32 0.0, %v7182
  %v7184 = vpop.f32.mrf.mxu0
  %v7185 = vadd.f32 0.0, %v7184
  %7186 = vmatmul.bf16.gmra.mxu0 %v2426
  %v7187 = vpop.f32.mrf.mxu0
  %v7188 = vadd.f32 0.0, %v7187
  %v7189 = vpop.f32.mrf.mxu0
  %v7190 = vadd.f32 0.0, %v7189
  %7191 = vdwg.mxu0
  %7192 = vmatpush.bf16.msra.mxu0 0
  %7193 = vmatpush.bf16.msra.mxu0 0
  %7194 = vmatpush.bf16.msra.mxu0 0
  %7195 = vmatpush.bf16.msra.mxu0 0
  %7196 = vmatpush.bf16.msra.mxu0 0
  %7197 = vmatpush.bf16.msra.mxu0 %v2874
  %7198 = vmatpush.bf16.msra.mxu0 %v1935
  %7199 = vmatpush.bf16.msra.mxu0 %v1778
  %7200 = vmatmul.bf16.gmra.mxu0 %v2417
  %v7201 = vpop.f32.mrf.mxu0
  %v7202 = vadd.f32 0.0, %v7201
  %v7203 = vpop.f32.mrf.mxu0
  %v7204 = vadd.f32 0.0, %v7203
  %7205 = vmatmul.bf16.gmra.mxu0 %v2420
  %v7206 = vpop.f32.mrf.mxu0
  %v7207 = vadd.f32 0.0, %v7206
  %v7208 = vpop.f32.mrf.mxu0
  %v7209 = vadd.f32 0.0, %v7208
  %7210 = vmatmul.bf16.gmra.mxu0 %v2423
  %v7211 = vpop.f32.mrf.mxu0
  %v7212 = vadd.f32 0.0, %v7211
  %v7213 = vpop.f32.mrf.mxu0
  %v7214 = vadd.f32 0.0, %v7213
  %7215 = vmatmul.bf16.gmra.mxu0 %v2426
  %v7216 = vpop.f32.mrf.mxu0
  %v7217 = vadd.f32 0.0, %v7216
  %v7218 = vpop.f32.mrf.mxu0
  %v7219 = vadd.f32 0.0, %v7218
  %7220 = vdwg.mxu0
  %7221 = vmatpush.bf16.msra.mxu0 0
  %7222 = vmatpush.bf16.msra.mxu0 0
  %7223 = vmatpush.bf16.msra.mxu0 0
  %7224 = vmatpush.bf16.msra.mxu0 0
  %7225 = vmatpush.bf16.msra.mxu0 0
  %7226 = vmatpush.bf16.msra.mxu0 %v2877
  %7227 = vmatpush.bf16.msra.mxu0 %v1936
  %7228 = vmatpush.bf16.msra.mxu0 %v1779
  %7229 = vmatmul.bf16.gmra.mxu0 %v2417
  %v7230 = vpop.f32.mrf.mxu0
  %v7231 = vadd.f32 0.0, %v7230
  %v7232 = vpop.f32.mrf.mxu0
  %v7233 = vadd.f32 0.0, %v7232
  %7234 = vmatmul.bf16.gmra.mxu0 %v2420
  %v7235 = vpop.f32.mrf.mxu0
  %v7236 = vadd.f32 0.0, %v7235
  %v7237 = vpop.f32.mrf.mxu0
  %v7238 = vadd.f32 0.0, %v7237
  %7239 = vmatmul.bf16.gmra.mxu0 %v2423
  %v7240 = vpop.f32.mrf.mxu0
  %v7241 = vadd.f32 0.0, %v7240
  %v7242 = vpop.f32.mrf.mxu0
  %v7243 = vadd.f32 0.0, %v7242
  %7244 = vmatmul.bf16.gmra.mxu0 %v2426
  %v7245 = vpop.f32.mrf.mxu0
  %v7246 = vadd.f32 0.0, %v7245
  %v7247 = vpop.f32.mrf.mxu0
  %v7248 = vadd.f32 0.0, %v7247
  %7249 = vdwg.mxu0
  %7250 = vmatpush.bf16.msra.mxu0 0
  %7251 = vmatpush.bf16.msra.mxu0 0
  %7252 = vmatpush.bf16.msra.mxu0 0
  %7253 = vmatpush.bf16.msra.mxu0 0
  %7254 = vmatpush.bf16.msra.mxu0 0
  %7255 = vmatpush.bf16.msra.mxu0 %v2880
  %7256 = vmatpush.bf16.msra.mxu0 %v1937
  %7257 = vmatpush.bf16.msra.mxu0 %v1780
  %7258 = vmatmul.bf16.gmra.mxu0 %v2417
  %v7259 = vpop.f32.mrf.mxu0
  %v7260 = vadd.f32 0.0, %v7259
  %v7261 = vpop.f32.mrf.mxu0
  %v7262 = vadd.f32 0.0, %v7261
  %7263 = vmatmul.bf16.gmra.mxu0 %v2420
  %v7264 = vpop.f32.mrf.mxu0
  %v7265 = vadd.f32 0.0, %v7264
  %v7266 = vpop.f32.mrf.mxu0
  %v7267 = vadd.f32 0.0, %v7266
  %7268 = vmatmul.bf16.gmra.mxu0 %v2423
  %v7269 = vpop.f32.mrf.mxu0
  %v7270 = vadd.f32 0.0, %v7269
  %v7271 = vpop.f32.mrf.mxu0
  %v7272 = vadd.f32 0.0, %v7271
  %7273 = vmatmul.bf16.gmra.mxu0 %v2426
  %v7274 = vpop.f32.mrf.mxu0
  %v7275 = vadd.f32 0.0, %v7274
  %v7276 = vpop.f32.mrf.mxu0
  %v7277 = vadd.f32 0.0, %v7276
  %7278 = vdwg.mxu0
  %7279 = vmatpush.bf16.msra.mxu0 0
  %7280 = vmatpush.bf16.msra.mxu0 0
  %7281 = vmatpush.bf16.msra.mxu0 0
  %7282 = vmatpush.bf16.msra.mxu0 0
  %7283 = vmatpush.bf16.msra.mxu0 0
  %7284 = vmatpush.bf16.msra.mxu0 %v2883
  %7285 = vmatpush.bf16.msra.mxu0 %v1938
  %7286 = vmatpush.bf16.msra.mxu0 %v1781
  %7287 = vmatmul.bf16.gmra.mxu0 %v2417
  %v7288 = vpop.f32.mrf.mxu0
  %v7289 = vadd.f32 0.0, %v7288
  %v7290 = vpop.f32.mrf.mxu0
  %v7291 = vadd.f32 0.0, %v7290
  %7292 = vmatmul.bf16.gmra.mxu0 %v2420
  %v7293 = vpop.f32.mrf.mxu0
  %v7294 = vadd.f32 0.0, %v7293
  %v7295 = vpop.f32.mrf.mxu0
  %v7296 = vadd.f32 0.0, %v7295
  %7297 = vmatmul.bf16.gmra.mxu0 %v2423
  %v7298 = vpop.f32.mrf.mxu0
  %v7299 = vadd.f32 0.0, %v7298
  %v7300 = vpop.f32.mrf.mxu0
  %v7301 = vadd.f32 0.0, %v7300
  %7302 = vmatmul.bf16.gmra.mxu0 %v2426
  %v7303 = vpop.f32.mrf.mxu0
  %v7304 = vadd.f32 0.0, %v7303
  %v7305 = vpop.f32.mrf.mxu0
  %v7306 = vadd.f32 0.0, %v7305
  %7307 = vdwg.mxu0
  %7308 = vmatpush.bf16.msra.mxu0 0
  %7309 = vmatpush.bf16.msra.mxu0 0
  %7310 = vmatpush.bf16.msra.mxu0 0
  %7311 = vmatpush.bf16.msra.mxu0 0
  %7312 = vmatpush.bf16.msra.mxu0 0
  %7313 = vmatpush.bf16.msra.mxu0 %v2886
  %7314 = vmatpush.bf16.msra.mxu0 %v1939
  %7315 = vmatpush.bf16.msra.mxu0 %v1782
  %7316 = vmatmul.bf16.gmra.mxu0 %v2417
  %v7317 = vpop.f32.mrf.mxu0
  %v7318 = vadd.f32 0.0, %v7317
  %v7319 = vpop.f32.mrf.mxu0
  %v7320 = vadd.f32 0.0, %v7319
  %7321 = vmatmul.bf16.gmra.mxu0 %v2420
  %v7322 = vpop.f32.mrf.mxu0
  %v7323 = vadd.f32 0.0, %v7322
  %v7324 = vpop.f32.mrf.mxu0
  %v7325 = vadd.f32 0.0, %v7324
  %7326 = vmatmul.bf16.gmra.mxu0 %v2423
  %v7327 = vpop.f32.mrf.mxu0
  %v7328 = vadd.f32 0.0, %v7327
  %v7329 = vpop.f32.mrf.mxu0
  %v7330 = vadd.f32 0.0, %v7329
  %7331 = vmatmul.bf16.gmra.mxu0 %v2426
  %v7332 = vpop.f32.mrf.mxu0
  %v7333 = vadd.f32 0.0, %v7332
  %v7334 = vpop.f32.mrf.mxu0
  %v7335 = vadd.f32 0.0, %v7334
  %7336 = vdwg.mxu0
  %7337 = vmatpush.bf16.msra.mxu0 0
  %7338 = vmatpush.bf16.msra.mxu0 0
  %7339 = vmatpush.bf16.msra.mxu0 0
  %7340 = vmatpush.bf16.msra.mxu0 0
  %7341 = vmatpush.bf16.msra.mxu0 0
  %7342 = vmatpush.bf16.msra.mxu0 %v2889
  %7343 = vmatpush.bf16.msra.mxu0 %v1940
  %7344 = vmatpush.bf16.msra.mxu0 %v1783
  %7345 = vmatmul.bf16.gmra.mxu0 %v2417
  %v7346 = vpop.f32.mrf.mxu0
  %v7347 = vadd.f32 0.0, %v7346
  %v7348 = vpop.f32.mrf.mxu0
  %v7349 = vadd.f32 0.0, %v7348
  %7350 = vmatmul.bf16.gmra.mxu0 %v2420
  %v7351 = vpop.f32.mrf.mxu0
  %v7352 = vadd.f32 0.0, %v7351
  %v7353 = vpop.f32.mrf.mxu0
  %v7354 = vadd.f32 0.0, %v7353
  %7355 = vmatmul.bf16.gmra.mxu0 %v2423
  %v7356 = vpop.f32.mrf.mxu0
  %v7357 = vadd.f32 0.0, %v7356
  %v7358 = vpop.f32.mrf.mxu0
  %v7359 = vadd.f32 0.0, %v7358
  %7360 = vmatmul.bf16.gmra.mxu0 %v2426
  %v7361 = vpop.f32.mrf.mxu0
  %v7362 = vadd.f32 0.0, %v7361
  %v7363 = vpop.f32.mrf.mxu0
  %v7364 = vadd.f32 0.0, %v7363
  %7365 = vdwg.mxu0
  %7366 = vmatpush.bf16.msra.mxu0 0
  %7367 = vmatpush.bf16.msra.mxu0 0
  %7368 = vmatpush.bf16.msra.mxu0 0
  %7369 = vmatpush.bf16.msra.mxu0 0
  %7370 = vmatpush.bf16.msra.mxu0 0
  %7371 = vmatpush.bf16.msra.mxu0 %v2892
  %7372 = vmatpush.bf16.msra.mxu0 %v1941
  %7373 = vmatpush.bf16.msra.mxu0 %v1784
  %7374 = vmatmul.bf16.gmra.mxu0 %v2417
  %v7375 = vpop.f32.mrf.mxu0
  %v7376 = vadd.f32 0.0, %v7375
  %v7377 = vpop.f32.mrf.mxu0
  %v7378 = vadd.f32 0.0, %v7377
  %7379 = vmatmul.bf16.gmra.mxu0 %v2420
  %v7380 = vpop.f32.mrf.mxu0
  %v7381 = vadd.f32 0.0, %v7380
  %v7382 = vpop.f32.mrf.mxu0
  %v7383 = vadd.f32 0.0, %v7382
  %7384 = vmatmul.bf16.gmra.mxu0 %v2423
  %v7385 = vpop.f32.mrf.mxu0
  %v7386 = vadd.f32 0.0, %v7385
  %v7387 = vpop.f32.mrf.mxu0
  %v7388 = vadd.f32 0.0, %v7387
  %7389 = vmatmul.bf16.gmra.mxu0 %v2426
  %v7390 = vpop.f32.mrf.mxu0
  %v7391 = vadd.f32 0.0, %v7390
  %v7392 = vpop.f32.mrf.mxu0
  %v7393 = vadd.f32 0.0, %v7392
  %7394 = vdwg.mxu0
  %7395 = vmatpush.bf16.msra.mxu0 0
  %7396 = vmatpush.bf16.msra.mxu0 0
  %7397 = vmatpush.bf16.msra.mxu0 0
  %7398 = vmatpush.bf16.msra.mxu0 0
  %7399 = vmatpush.bf16.msra.mxu0 0
  %7400 = vmatpush.bf16.msra.mxu0 %v2895
  %7401 = vmatpush.bf16.msra.mxu0 %v1942
  %7402 = vmatpush.bf16.msra.mxu0 %v1785
  %7403 = vmatmul.bf16.gmra.mxu0 %v2417
  %v7404 = vpop.f32.mrf.mxu0
  %v7405 = vadd.f32 0.0, %v7404
  %v7406 = vpop.f32.mrf.mxu0
  %v7407 = vadd.f32 0.0, %v7406
  %7408 = vmatmul.bf16.gmra.mxu0 %v2420
  %v7409 = vpop.f32.mrf.mxu0
  %v7410 = vadd.f32 0.0, %v7409
  %v7411 = vpop.f32.mrf.mxu0
  %v7412 = vadd.f32 0.0, %v7411
  %7413 = vmatmul.bf16.gmra.mxu0 %v2423
  %v7414 = vpop.f32.mrf.mxu0
  %v7415 = vadd.f32 0.0, %v7414
  %v7416 = vpop.f32.mrf.mxu0
  %v7417 = vadd.f32 0.0, %v7416
  %7418 = vmatmul.bf16.gmra.mxu0 %v2426
  %v7419 = vpop.f32.mrf.mxu0
  %v7420 = vadd.f32 0.0, %v7419
  %v7421 = vpop.f32.mrf.mxu0
  %v7422 = vadd.f32 0.0, %v7421
  %7423 = vdwg.mxu0
  %7424 = vmatpush.bf16.msra.mxu0 0
  %7425 = vmatpush.bf16.msra.mxu0 0
  %7426 = vmatpush.bf16.msra.mxu0 0
  %7427 = vmatpush.bf16.msra.mxu0 0
  %7428 = vmatpush.bf16.msra.mxu0 0
  %7429 = vmatpush.bf16.msra.mxu0 %v2898
  %7430 = vmatpush.bf16.msra.mxu0 %v1943
  %7431 = vmatpush.bf16.msra.mxu0 %v1786
  %7432 = vmatmul.bf16.gmra.mxu0 %v2417
  %v7433 = vpop.f32.mrf.mxu0
  %v7434 = vadd.f32 0.0, %v7433
  %v7435 = vpop.f32.mrf.mxu0
  %v7436 = vadd.f32 0.0, %v7435
  %7437 = vmatmul.bf16.gmra.mxu0 %v2420
  %v7438 = vpop.f32.mrf.mxu0
  %v7439 = vadd.f32 0.0, %v7438
  %v7440 = vpop.f32.mrf.mxu0
  %v7441 = vadd.f32 0.0, %v7440
  %7442 = vmatmul.bf16.gmra.mxu0 %v2423
  %v7443 = vpop.f32.mrf.mxu0
  %v7444 = vadd.f32 0.0, %v7443
  %v7445 = vpop.f32.mrf.mxu0
  %v7446 = vadd.f32 0.0, %v7445
  %7447 = vmatmul.bf16.gmra.mxu0 %v2426
  %v7448 = vpop.f32.mrf.mxu0
  %v7449 = vadd.f32 0.0, %v7448
  %v7450 = vpop.f32.mrf.mxu0
  %v7451 = vadd.f32 0.0, %v7450
  %7452 = vdwg.mxu0
  %v7453 = vmax.f32 %v2910, %v2915
  %v7454 = vmax.f32 %v2939, %v2944
  %v7455 = vmax.f32 %v2968, %v2973
  %v7456 = vmax.f32 %v2997, %v3002
  %v7457 = vmax.f32 %v3026, %v3031
  %v7458 = vmax.f32 %v3055, %v3060
  %v7459 = vmax.f32 %v3084, %v3089
  %v7460 = vmax.f32 %v3113, %v3118
  %v7461 = vmax.f32 %v3142, %v3147
  %v7462 = vmax.f32 %v3171, %v3176
  %v7463 = vmax.f32 %v3200, %v3205
  %v7464 = vmax.f32 %v3229, %v3234
  %v7465 = vmax.f32 %v3258, %v3263
  %v7466 = vmax.f32 %v3287, %v3292
  %v7467 = vmax.f32 %v3316, %v3321
  %v7468 = vmax.f32 %v3345, %v3350
  %v7469 = vmax.f32 %v3374, %v3379
  %v7470 = vmax.f32 %v3403, %v3408
  %v7471 = vmax.f32 %v3432, %v3437
  %v7472 = vmax.f32 %v3461, %v3466
  %v7473 = vmax.f32 %v3490, %v3495
  %v7474 = vmax.f32 %v3519, %v3524
  %v7475 = vmax.f32 %v3548, %v3553
  %v7476 = vmax.f32 %v3577, %v3582
  %v7477 = vmax.f32 %v3606, %v3611
  %v7478 = vmax.f32 %v3635, %v3640
  %v7479 = vmax.f32 %v3664, %v3669
  %v7480 = vmax.f32 %v3693, %v3698
  %v7481 = vmax.f32 %v3722, %v3727
  %v7482 = vmax.f32 %v3751, %v3756
  %v7483 = vmax.f32 %v3780, %v3785
  %v7484 = vmax.f32 %v3809, %v3814
  %v7485 = vmax.f32 %v3838, %v3843
  %v7486 = vmax.f32 %v3867, %v3872
  %v7487 = vmax.f32 %v3896, %v3901
  %v7488 = vmax.f32 %v3925, %v3930
  %v7489 = vmax.f32 %v3954, %v3959
  %v7490 = vmax.f32 %v3983, %v3988
  %v7491 = vmax.f32 %v4012, %v4017
  %v7492 = vmax.f32 %v4041, %v4046
  %v7493 = vmax.f32 %v4070, %v4075
  %v7494 = vmax.f32 %v4099, %v4104
  %v7495 = vmax.f32 %v4128, %v4133
  %v7496 = vmax.f32 %v4157, %v4162
  %v7497 = vmax.f32 %v4186, %v4191
  %v7498 = vmax.f32 %v4215, %v4220
  %v7499 = vmax.f32 %v4244, %v4249
  %v7500 = vmax.f32 %v4273, %v4278
  %v7501 = vmax.f32 %v4302, %v4307
  %v7502 = vmax.f32 %v4331, %v4336
  %v7503 = vmax.f32 %v4360, %v4365
  %v7504 = vmax.f32 %v4389, %v4394
  %v7505 = vmax.f32 %v4418, %v4423
  %v7506 = vmax.f32 %v4447, %v4452
  %v7507 = vmax.f32 %v4476, %v4481
  %v7508 = vmax.f32 %v4505, %v4510
  %v7509 = vmax.f32 %v4534, %v4539
  %v7510 = vmax.f32 %v4563, %v4568
  %v7511 = vmax.f32 %v4592, %v4597
  %v7512 = vmax.f32 %v4621, %v4626
  %v7513 = vmax.f32 %v4650, %v4655
  %v7514 = vmax.f32 %v4679, %v4684
  %v7515 = vmax.f32 %v4708, %v4713
  %v7516 = vmax.f32 %v4737, %v4742
  %v7517 = vmax.f32 %v4766, %v4771
  %v7518 = vmax.f32 %v4795, %v4800
  %v7519 = vmax.f32 %v4824, %v4829
  %v7520 = vmax.f32 %v4853, %v4858
  %v7521 = vmax.f32 %v4882, %v4887
  %v7522 = vmax.f32 %v4911, %v4916
  %v7523 = vmax.f32 %v4940, %v4945
  %v7524 = vmax.f32 %v4969, %v4974
  %v7525 = vmax.f32 %v4998, %v5003
  %v7526 = vmax.f32 %v5027, %v5032
  %v7527 = vmax.f32 %v5056, %v5061
  %v7528 = vmax.f32 %v5085, %v5090
  %v7529 = vmax.f32 %v5114, %v5119
  %v7530 = vmax.f32 %v5143, %v5148
  %v7531 = vmax.f32 %v5172, %v5177
  %v7532 = vmax.f32 %v5201, %v5206
  %v7533 = vmax.f32 %v5230, %v5235
  %v7534 = vmax.f32 %v5259, %v5264
  %v7535 = vmax.f32 %v5288, %v5293
  %v7536 = vmax.f32 %v5317, %v5322
  %v7537 = vmax.f32 %v5346, %v5351
  %v7538 = vmax.f32 %v5375, %v5380
  %v7539 = vmax.f32 %v5404, %v5409
  %v7540 = vmax.f32 %v5433, %v5438
  %v7541 = vmax.f32 %v5462, %v5467
  %v7542 = vmax.f32 %v5491, %v5496
  %v7543 = vmax.f32 %v5520, %v5525
  %v7544 = vmax.f32 %v5549, %v5554
  %v7545 = vmax.f32 %v5578, %v5583
  %v7546 = vmax.f32 %v5607, %v5612
  %v7547 = vmax.f32 %v5636, %v5641
  %v7548 = vmax.f32 %v5665, %v5670
  %v7549 = vmax.f32 %v5694, %v5699
  %v7550 = vmax.f32 %v5723, %v5728
  %v7551 = vmax.f32 %v5752, %v5757
  %v7552 = vmax.f32 %v5781, %v5786
  %v7553 = vmax.f32 %v5810, %v5815
  %v7554 = vmax.f32 %v5839, %v5844
  %v7555 = vmax.f32 %v5868, %v5873
  %v7556 = vmax.f32 %v5897, %v5902
  %v7557 = vmax.f32 %v5926, %v5931
  %v7558 = vmax.f32 %v5955, %v5960
  %v7559 = vmax.f32 %v5984, %v5989
  %v7560 = vmax.f32 %v6013, %v6018
  %v7561 = vmax.f32 %v6042, %v6047
  %v7562 = vmax.f32 %v6071, %v6076
  %v7563 = vmax.f32 %v6100, %v6105
  %v7564 = vmax.f32 %v6129, %v6134
  %v7565 = vmax.f32 %v6158, %v6163
  %v7566 = vmax.f32 %v6187, %v6192
  %v7567 = vmax.f32 %v6216, %v6221
  %v7568 = vmax.f32 %v6245, %v6250
  %v7569 = vmax.f32 %v6274, %v6279
  %v7570 = vmax.f32 %v6303, %v6308
  %v7571 = vmax.f32 %v6332, %v6337
  %v7572 = vmax.f32 %v6361, %v6366
  %v7573 = vmax.f32 %v6390, %v6395
  %v7574 = vmax.f32 %v6419, %v6424
  %v7575 = vmax.f32 %v6448, %v6453
  %v7576 = vmax.f32 %v6477, %v6482
  %v7577 = vmax.f32 %v6506, %v6511
  %v7578 = vmax.f32 %v6535, %v6540
  %v7579 = vmax.f32 %v6564, %v6569
  %v7580 = vmax.f32 %v6593, %v6598
  %v7581 = vmax.f32 %v6622, %v6627
  %v7582 = vmax.f32 %v6651, %v6656
  %v7583 = vmax.f32 %v6680, %v6685
  %v7584 = vmax.f32 %v6709, %v6714
  %v7585 = vmax.f32 %v6738, %v6743
  %v7586 = vmax.f32 %v6767, %v6772
  %v7587 = vmax.f32 %v6796, %v6801
  %v7588 = vmax.f32 %v6825, %v6830
  %v7589 = vmax.f32 %v6854, %v6859
  %v7590 = vmax.f32 %v6883, %v6888
  %v7591 = vmax.f32 %v6912, %v6917
  %v7592 = vmax.f32 %v6941, %v6946
  %v7593 = vmax.f32 %v6970, %v6975
  %v7594 = vmax.f32 %v6999, %v7004
  %v7595 = vmax.f32 %v7028, %v7033
  %v7596 = vmax.f32 %v7057, %v7062
  %v7597 = vmax.f32 %v7086, %v7091
  %v7598 = vmax.f32 %v7115, %v7120
  %v7599 = vmax.f32 %v7144, %v7149
  %v7600 = vmax.f32 %v7173, %v7178
  %v7601 = vmax.f32 %v7202, %v7207
  %v7602 = vmax.f32 %v7231, %v7236
  %v7603 = vmax.f32 %v7260, %v7265
  %v7604 = vmax.f32 %v7289, %v7294
  %v7605 = vmax.f32 %v7318, %v7323
  %v7606 = vmax.f32 %v7347, %v7352
  %v7607 = vmax.f32 %v7376, %v7381
  %v7608 = vmax.f32 %v7405, %v7410
  %v7609 = vmax.f32 %v7434, %v7439
  %v7610 = vmax.f32 %v2912, %v2917
  %v7611 = vmax.f32 %v2941, %v2946
  %v7612 = vmax.f32 %v2970, %v2975
  %v7613 = vmax.f32 %v2999, %v3004
  %v7614 = vmax.f32 %v3028, %v3033
  %v7615 = vmax.f32 %v3057, %v3062
  %v7616 = vmax.f32 %v3086, %v3091
  %v7617 = vmax.f32 %v3115, %v3120
  %v7618 = vmax.f32 %v3144, %v3149
  %v7619 = vmax.f32 %v3173, %v3178
  %v7620 = vmax.f32 %v3202, %v3207
  %v7621 = vmax.f32 %v3231, %v3236
  %v7622 = vmax.f32 %v3260, %v3265
  %v7623 = vmax.f32 %v3289, %v3294
  %v7624 = vmax.f32 %v3318, %v3323
  %v7625 = vmax.f32 %v3347, %v3352
  %v7626 = vmax.f32 %v3376, %v3381
  %v7627 = vmax.f32 %v3405, %v3410
  %v7628 = vmax.f32 %v3434, %v3439
  %v7629 = vmax.f32 %v3463, %v3468
  %v7630 = vmax.f32 %v3492, %v3497
  %v7631 = vmax.f32 %v3521, %v3526
  %v7632 = vmax.f32 %v3550, %v3555
  %v7633 = vmax.f32 %v3579, %v3584
  %v7634 = vmax.f32 %v3608, %v3613
  %v7635 = vmax.f32 %v3637, %v3642
  %v7636 = vmax.f32 %v3666, %v3671
  %v7637 = vmax.f32 %v3695, %v3700
  %v7638 = vmax.f32 %v3724, %v3729
  %v7639 = vmax.f32 %v3753, %v3758
  %v7640 = vmax.f32 %v3782, %v3787
  %v7641 = vmax.f32 %v3811, %v3816
  %v7642 = vmax.f32 %v3840, %v3845
  %v7643 = vmax.f32 %v3869, %v3874
  %v7644 = vmax.f32 %v3898, %v3903
  %v7645 = vmax.f32 %v3927, %v3932
  %v7646 = vmax.f32 %v3956, %v3961
  %v7647 = vmax.f32 %v3985, %v3990
  %v7648 = vmax.f32 %v4014, %v4019
  %v7649 = vmax.f32 %v4043, %v4048
  %v7650 = vmax.f32 %v4072, %v4077
  %v7651 = vmax.f32 %v4101, %v4106
  %v7652 = vmax.f32 %v4130, %v4135
  %v7653 = vmax.f32 %v4159, %v4164
  %v7654 = vmax.f32 %v4188, %v4193
  %v7655 = vmax.f32 %v4217, %v4222
  %v7656 = vmax.f32 %v4246, %v4251
  %v7657 = vmax.f32 %v4275, %v4280
  %v7658 = vmax.f32 %v4304, %v4309
  %v7659 = vmax.f32 %v4333, %v4338
  %v7660 = vmax.f32 %v4362, %v4367
  %v7661 = vmax.f32 %v4391, %v4396
  %v7662 = vmax.f32 %v4420, %v4425
  %v7663 = vmax.f32 %v4449, %v4454
  %v7664 = vmax.f32 %v4478, %v4483
  %v7665 = vmax.f32 %v4507, %v4512
  %v7666 = vmax.f32 %v4536, %v4541
  %v7667 = vmax.f32 %v4565, %v4570
  %v7668 = vmax.f32 %v4594, %v4599
  %v7669 = vmax.f32 %v4623, %v4628
  %v7670 = vmax.f32 %v4652, %v4657
  %v7671 = vmax.f32 %v4681, %v4686
  %v7672 = vmax.f32 %v4710, %v4715
  %v7673 = vmax.f32 %v4739, %v4744
  %v7674 = vmax.f32 %v4768, %v4773
  %v7675 = vmax.f32 %v4797, %v4802
  %v7676 = vmax.f32 %v4826, %v4831
  %v7677 = vmax.f32 %v4855, %v4860
  %v7678 = vmax.f32 %v4884, %v4889
  %v7679 = vmax.f32 %v4913, %v4918
  %v7680 = vmax.f32 %v4942, %v4947
  %v7681 = vmax.f32 %v4971, %v4976
  %v7682 = vmax.f32 %v5000, %v5005
  %v7683 = vmax.f32 %v5029, %v5034
  %v7684 = vmax.f32 %v5058, %v5063
  %v7685 = vmax.f32 %v5087, %v5092
  %v7686 = vmax.f32 %v5116, %v5121
  %v7687 = vmax.f32 %v5145, %v5150
  %v7688 = vmax.f32 %v5174, %v5179
  %v7689 = vmax.f32 %v5203, %v5208
  %v7690 = vmax.f32 %v5232, %v5237
  %v7691 = vmax.f32 %v5261, %v5266
  %v7692 = vmax.f32 %v5290, %v5295
  %v7693 = vmax.f32 %v5319, %v5324
  %v7694 = vmax.f32 %v5348, %v5353
  %v7695 = vmax.f32 %v5377, %v5382
  %v7696 = vmax.f32 %v5406, %v5411
  %v7697 = vmax.f32 %v5435, %v5440
  %v7698 = vmax.f32 %v5464, %v5469
  %v7699 = vmax.f32 %v5493, %v5498
  %v7700 = vmax.f32 %v5522, %v5527
  %v7701 = vmax.f32 %v5551, %v5556
  %v7702 = vmax.f32 %v5580, %v5585
  %v7703 = vmax.f32 %v5609, %v5614
  %v7704 = vmax.f32 %v5638, %v5643
  %v7705 = vmax.f32 %v5667, %v5672
  %v7706 = vmax.f32 %v5696, %v5701
  %v7707 = vmax.f32 %v5725, %v5730
  %v7708 = vmax.f32 %v5754, %v5759
  %v7709 = vmax.f32 %v5783, %v5788
  %v7710 = vmax.f32 %v5812, %v5817
  %v7711 = vmax.f32 %v5841, %v5846
  %v7712 = vmax.f32 %v5870, %v5875
  %v7713 = vmax.f32 %v5899, %v5904
  %v7714 = vmax.f32 %v5928, %v5933
  %v7715 = vmax.f32 %v5957, %v5962
  %v7716 = vmax.f32 %v5986, %v5991
  %v7717 = vmax.f32 %v6015, %v6020
  %v7718 = vmax.f32 %v6044, %v6049
  %v7719 = vmax.f32 %v6073, %v6078
  %v7720 = vmax.f32 %v6102, %v6107
  %v7721 = vmax.f32 %v6131, %v6136
  %v7722 = vmax.f32 %v6160, %v6165
  %v7723 = vmax.f32 %v6189, %v6194
  %v7724 = vmax.f32 %v6218, %v6223
  %v7725 = vmax.f32 %v6247, %v6252
  %v7726 = vmax.f32 %v6276, %v6281
  %v7727 = vmax.f32 %v6305, %v6310
  %v7728 = vmax.f32 %v6334, %v6339
  %v7729 = vmax.f32 %v6363, %v6368
  %v7730 = vmax.f32 %v6392, %v6397
  %v7731 = vmax.f32 %v6421, %v6426
  %v7732 = vmax.f32 %v6450, %v6455
  %v7733 = vmax.f32 %v6479, %v6484
  %v7734 = vmax.f32 %v6508, %v6513
  %v7735 = vmax.f32 %v6537, %v6542
  %v7736 = vmax.f32 %v6566, %v6571
  %v7737 = vmax.f32 %v6595, %v6600
  %v7738 = vmax.f32 %v6624, %v6629
  %v7739 = vmax.f32 %v6653, %v6658
  %v7740 = vmax.f32 %v6682, %v6687
  %v7741 = vmax.f32 %v6711, %v6716
  %v7742 = vmax.f32 %v6740, %v6745
  %v7743 = vmax.f32 %v6769, %v6774
  %v7744 = vmax.f32 %v6798, %v6803
  %v7745 = vmax.f32 %v6827, %v6832
  %v7746 = vmax.f32 %v6856, %v6861
  %v7747 = vmax.f32 %v6885, %v6890
  %v7748 = vmax.f32 %v6914, %v6919
  %v7749 = vmax.f32 %v6943, %v6948
  %v7750 = vmax.f32 %v6972, %v6977
  %v7751 = vmax.f32 %v7001, %v7006
  %v7752 = vmax.f32 %v7030, %v7035
  %v7753 = vmax.f32 %v7059, %v7064
  %v7754 = vmax.f32 %v7088, %v7093
  %v7755 = vmax.f32 %v7117, %v7122
  %v7756 = vmax.f32 %v7146, %v7151
  %v7757 = vmax.f32 %v7175, %v7180
  %v7758 = vmax.f32 %v7204, %v7209
  %v7759 = vmax.f32 %v7233, %v7238
  %v7760 = vmax.f32 %v7262, %v7267
  %v7761 = vmax.f32 %v7291, %v7296
  %v7762 = vmax.f32 %v7320, %v7325
  %v7763 = vmax.f32 %v7349, %v7354
  %v7764 = vmax.f32 %v7378, %v7383
  %v7765 = vmax.f32 %v7407, %v7412
  %v7766 = vmax.f32 %v7436, %v7441
  %v7767 = vmax.f32 %v2920, %v2925
  %v7768 = vmax.f32 %v2949, %v2954
  %v7769 = vmax.f32 %v2978, %v2983
  %v7770 = vmax.f32 %v3007, %v3012
  %v7771 = vmax.f32 %v3036, %v3041
  %v7772 = vmax.f32 %v3065, %v3070
  %v7773 = vmax.f32 %v3094, %v3099
  %v7774 = vmax.f32 %v3123, %v3128
  %v7775 = vmax.f32 %v3152, %v3157
  %v7776 = vmax.f32 %v3181, %v3186
  %v7777 = vmax.f32 %v3210, %v3215
  %v7778 = vmax.f32 %v3239, %v3244
  %v7779 = vmax.f32 %v3268, %v3273
  %v7780 = vmax.f32 %v3297, %v3302
  %v7781 = vmax.f32 %v3326, %v3331
  %v7782 = vmax.f32 %v3355, %v3360
  %v7783 = vmax.f32 %v3384, %v3389
  %v7784 = vmax.f32 %v3413, %v3418
  %v7785 = vmax.f32 %v3442, %v3447
  %v7786 = vmax.f32 %v3471, %v3476
  %v7787 = vmax.f32 %v3500, %v3505
  %v7788 = vmax.f32 %v3529, %v3534
  %v7789 = vmax.f32 %v3558, %v3563
  %v7790 = vmax.f32 %v3587, %v3592
  %v7791 = vmax.f32 %v3616, %v3621
  %v7792 = vmax.f32 %v3645, %v3650
  %v7793 = vmax.f32 %v3674, %v3679
  %v7794 = vmax.f32 %v3703, %v3708
  %v7795 = vmax.f32 %v3732, %v3737
  %v7796 = vmax.f32 %v3761, %v3766
  %v7797 = vmax.f32 %v3790, %v3795
  %v7798 = vmax.f32 %v3819, %v3824
  %v7799 = vmax.f32 %v3848, %v3853
  %v7800 = vmax.f32 %v3877, %v3882
  %v7801 = vmax.f32 %v3906, %v3911
  %v7802 = vmax.f32 %v3935, %v3940
  %v7803 = vmax.f32 %v3964, %v3969
  %v7804 = vmax.f32 %v3993, %v3998
  %v7805 = vmax.f32 %v4022, %v4027
  %v7806 = vmax.f32 %v4051, %v4056
  %v7807 = vmax.f32 %v4080, %v4085
  %v7808 = vmax.f32 %v4109, %v4114
  %v7809 = vmax.f32 %v4138, %v4143
  %v7810 = vmax.f32 %v4167, %v4172
  %v7811 = vmax.f32 %v4196, %v4201
  %v7812 = vmax.f32 %v4225, %v4230
  %v7813 = vmax.f32 %v4254, %v4259
  %v7814 = vmax.f32 %v4283, %v4288
  %v7815 = vmax.f32 %v4312, %v4317
  %v7816 = vmax.f32 %v4341, %v4346
  %v7817 = vmax.f32 %v4370, %v4375
  %v7818 = vmax.f32 %v4399, %v4404
  %v7819 = vmax.f32 %v4428, %v4433
  %v7820 = vmax.f32 %v4457, %v4462
  %v7821 = vmax.f32 %v4486, %v4491
  %v7822 = vmax.f32 %v4515, %v4520
  %v7823 = vmax.f32 %v4544, %v4549
  %v7824 = vmax.f32 %v4573, %v4578
  %v7825 = vmax.f32 %v4602, %v4607
  %v7826 = vmax.f32 %v4631, %v4636
  %v7827 = vmax.f32 %v4660, %v4665
  %v7828 = vmax.f32 %v4689, %v4694
  %v7829 = vmax.f32 %v4718, %v4723
  %v7830 = vmax.f32 %v4747, %v4752
  %v7831 = vmax.f32 %v4776, %v4781
  %v7832 = vmax.f32 %v4805, %v4810
  %v7833 = vmax.f32 %v4834, %v4839
  %v7834 = vmax.f32 %v4863, %v4868
  %v7835 = vmax.f32 %v4892, %v4897
  %v7836 = vmax.f32 %v4921, %v4926
  %v7837 = vmax.f32 %v4950, %v4955
  %v7838 = vmax.f32 %v4979, %v4984
  %v7839 = vmax.f32 %v5008, %v5013
  %v7840 = vmax.f32 %v5037, %v5042
  %v7841 = vmax.f32 %v5066, %v5071
  %v7842 = vmax.f32 %v5095, %v5100
  %v7843 = vmax.f32 %v5124, %v5129
  %v7844 = vmax.f32 %v5153, %v5158
  %v7845 = vmax.f32 %v5182, %v5187
  %v7846 = vmax.f32 %v5211, %v5216
  %v7847 = vmax.f32 %v5240, %v5245
  %v7848 = vmax.f32 %v5269, %v5274
  %v7849 = vmax.f32 %v5298, %v5303
  %v7850 = vmax.f32 %v5327, %v5332
  %v7851 = vmax.f32 %v5356, %v5361
  %v7852 = vmax.f32 %v5385, %v5390
  %v7853 = vmax.f32 %v5414, %v5419
  %v7854 = vmax.f32 %v5443, %v5448
  %v7855 = vmax.f32 %v5472, %v5477
  %v7856 = vmax.f32 %v5501, %v5506
  %v7857 = vmax.f32 %v5530, %v5535
  %v7858 = vmax.f32 %v5559, %v5564
  %v7859 = vmax.f32 %v5588, %v5593
  %v7860 = vmax.f32 %v5617, %v5622
  %v7861 = vmax.f32 %v5646, %v5651
  %v7862 = vmax.f32 %v5675, %v5680
  %v7863 = vmax.f32 %v5704, %v5709
  %v7864 = vmax.f32 %v5733, %v5738
  %v7865 = vmax.f32 %v5762, %v5767
  %v7866 = vmax.f32 %v5791, %v5796
  %v7867 = vmax.f32 %v5820, %v5825
  %v7868 = vmax.f32 %v5849, %v5854
  %v7869 = vmax.f32 %v5878, %v5883
  %v7870 = vmax.f32 %v5907, %v5912
  %v7871 = vmax.f32 %v5936, %v5941
  %v7872 = vmax.f32 %v5965, %v5970
  %v7873 = vmax.f32 %v5994, %v5999
  %v7874 = vmax.f32 %v6023, %v6028
  %v7875 = vmax.f32 %v6052, %v6057
  %v7876 = vmax.f32 %v6081, %v6086
  %v7877 = vmax.f32 %v6110, %v6115
  %v7878 = vmax.f32 %v6139, %v6144
  %v7879 = vmax.f32 %v6168, %v6173
  %v7880 = vmax.f32 %v6197, %v6202
  %v7881 = vmax.f32 %v6226, %v6231
  %v7882 = vmax.f32 %v6255, %v6260
  %v7883 = vmax.f32 %v6284, %v6289
  %v7884 = vmax.f32 %v6313, %v6318
  %v7885 = vmax.f32 %v6342, %v6347
  %v7886 = vmax.f32 %v6371, %v6376
  %v7887 = vmax.f32 %v6400, %v6405
  %v7888 = vmax.f32 %v6429, %v6434
  %v7889 = vmax.f32 %v6458, %v6463
  %v7890 = vmax.f32 %v6487, %v6492
  %v7891 = vmax.f32 %v6516, %v6521
  %v7892 = vmax.f32 %v6545, %v6550
  %v7893 = vmax.f32 %v6574, %v6579
  %v7894 = vmax.f32 %v6603, %v6608
  %v7895 = vmax.f32 %v6632, %v6637
  %v7896 = vmax.f32 %v6661, %v6666
  %v7897 = vmax.f32 %v6690, %v6695
  %v7898 = vmax.f32 %v6719, %v6724
  %v7899 = vmax.f32 %v6748, %v6753
  %v7900 = vmax.f32 %v6777, %v6782
  %v7901 = vmax.f32 %v6806, %v6811
  %v7902 = vmax.f32 %v6835, %v6840
  %v7903 = vmax.f32 %v6864, %v6869
  %v7904 = vmax.f32 %v6893, %v6898
  %v7905 = vmax.f32 %v6922, %v6927
  %v7906 = vmax.f32 %v6951, %v6956
  %v7907 = vmax.f32 %v6980, %v6985
  %v7908 = vmax.f32 %v7009, %v7014
  %v7909 = vmax.f32 %v7038, %v7043
  %v7910 = vmax.f32 %v7067, %v7072
  %v7911 = vmax.f32 %v7096, %v7101
  %v7912 = vmax.f32 %v7125, %v7130
  %v7913 = vmax.f32 %v7154, %v7159
  %v7914 = vmax.f32 %v7183, %v7188
  %v7915 = vmax.f32 %v7212, %v7217
  %v7916 = vmax.f32 %v7241, %v7246
  %v7917 = vmax.f32 %v7270, %v7275
  %v7918 = vmax.f32 %v7299, %v7304
  %v7919 = vmax.f32 %v7328, %v7333
  %v7920 = vmax.f32 %v7357, %v7362
  %v7921 = vmax.f32 %v7386, %v7391
  %v7922 = vmax.f32 %v7415, %v7420
  %v7923 = vmax.f32 %v7444, %v7449
  %v7924 = vmax.f32 %v2922, %v2927
  %v7925 = vmax.f32 %v2951, %v2956
  %v7926 = vmax.f32 %v2980, %v2985
  %v7927 = vmax.f32 %v3009, %v3014
  %v7928 = vmax.f32 %v3038, %v3043
  %v7929 = vmax.f32 %v3067, %v3072
  %v7930 = vmax.f32 %v3096, %v3101
  %v7931 = vmax.f32 %v3125, %v3130
  %v7932 = vmax.f32 %v3154, %v3159
  %v7933 = vmax.f32 %v3183, %v3188
  %v7934 = vmax.f32 %v3212, %v3217
  %v7935 = vmax.f32 %v3241, %v3246
  %v7936 = vmax.f32 %v3270, %v3275
  %v7937 = vmax.f32 %v3299, %v3304
  %v7938 = vmax.f32 %v3328, %v3333
  %v7939 = vmax.f32 %v3357, %v3362
  %v7940 = vmax.f32 %v3386, %v3391
  %v7941 = vmax.f32 %v3415, %v3420
  %v7942 = vmax.f32 %v3444, %v3449
  %v7943 = vmax.f32 %v3473, %v3478
  %v7944 = vmax.f32 %v3502, %v3507
  %v7945 = vmax.f32 %v3531, %v3536
  %v7946 = vmax.f32 %v3560, %v3565
  %v7947 = vmax.f32 %v3589, %v3594
  %v7948 = vmax.f32 %v3618, %v3623
  %v7949 = vmax.f32 %v3647, %v3652
  %v7950 = vmax.f32 %v3676, %v3681
  %v7951 = vmax.f32 %v3705, %v3710
  %v7952 = vmax.f32 %v3734, %v3739
  %v7953 = vmax.f32 %v3763, %v3768
  %v7954 = vmax.f32 %v3792, %v3797
  %v7955 = vmax.f32 %v3821, %v3826
  %v7956 = vmax.f32 %v3850, %v3855
  %v7957 = vmax.f32 %v3879, %v3884
  %v7958 = vmax.f32 %v3908, %v3913
  %v7959 = vmax.f32 %v3937, %v3942
  %v7960 = vmax.f32 %v3966, %v3971
  %v7961 = vmax.f32 %v3995, %v4000
  %v7962 = vmax.f32 %v4024, %v4029
  %v7963 = vmax.f32 %v4053, %v4058
  %v7964 = vmax.f32 %v4082, %v4087
  %v7965 = vmax.f32 %v4111, %v4116
  %v7966 = vmax.f32 %v4140, %v4145
  %v7967 = vmax.f32 %v4169, %v4174
  %v7968 = vmax.f32 %v4198, %v4203
  %v7969 = vmax.f32 %v4227, %v4232
  %v7970 = vmax.f32 %v4256, %v4261
  %v7971 = vmax.f32 %v4285, %v4290
  %v7972 = vmax.f32 %v4314, %v4319
  %v7973 = vmax.f32 %v4343, %v4348
  %v7974 = vmax.f32 %v4372, %v4377
  %v7975 = vmax.f32 %v4401, %v4406
  %v7976 = vmax.f32 %v4430, %v4435
  %v7977 = vmax.f32 %v4459, %v4464
  %v7978 = vmax.f32 %v4488, %v4493
  %v7979 = vmax.f32 %v4517, %v4522
  %v7980 = vmax.f32 %v4546, %v4551
  %v7981 = vmax.f32 %v4575, %v4580
  %v7982 = vmax.f32 %v4604, %v4609
  %v7983 = vmax.f32 %v4633, %v4638
  %v7984 = vmax.f32 %v4662, %v4667
  %v7985 = vmax.f32 %v4691, %v4696
  %v7986 = vmax.f32 %v4720, %v4725
  %v7987 = vmax.f32 %v4749, %v4754
  %v7988 = vmax.f32 %v4778, %v4783
  %v7989 = vmax.f32 %v4807, %v4812
  %v7990 = vmax.f32 %v4836, %v4841
  %v7991 = vmax.f32 %v4865, %v4870
  %v7992 = vmax.f32 %v4894, %v4899
  %v7993 = vmax.f32 %v4923, %v4928
  %v7994 = vmax.f32 %v4952, %v4957
  %v7995 = vmax.f32 %v4981, %v4986
  %v7996 = vmax.f32 %v5010, %v5015
  %v7997 = vmax.f32 %v5039, %v5044
  %v7998 = vmax.f32 %v5068, %v5073
  %v7999 = vmax.f32 %v5097, %v5102
  %v8000 = vmax.f32 %v5126, %v5131
  %v8001 = vmax.f32 %v5155, %v5160
  %v8002 = vmax.f32 %v5184, %v5189
  %v8003 = vmax.f32 %v5213, %v5218
  %v8004 = vmax.f32 %v5242, %v5247
  %v8005 = vmax.f32 %v5271, %v5276
  %v8006 = vmax.f32 %v5300, %v5305
  %v8007 = vmax.f32 %v5329, %v5334
  %v8008 = vmax.f32 %v5358, %v5363
  %v8009 = vmax.f32 %v5387, %v5392
  %v8010 = vmax.f32 %v5416, %v5421
  %v8011 = vmax.f32 %v5445, %v5450
  %v8012 = vmax.f32 %v5474, %v5479
  %v8013 = vmax.f32 %v5503, %v5508
  %v8014 = vmax.f32 %v5532, %v5537
  %v8015 = vmax.f32 %v5561, %v5566
  %v8016 = vmax.f32 %v5590, %v5595
  %v8017 = vmax.f32 %v5619, %v5624
  %v8018 = vmax.f32 %v5648, %v5653
  %v8019 = vmax.f32 %v5677, %v5682
  %v8020 = vmax.f32 %v5706, %v5711
  %v8021 = vmax.f32 %v5735, %v5740
  %v8022 = vmax.f32 %v5764, %v5769
  %v8023 = vmax.f32 %v5793, %v5798
  %v8024 = vmax.f32 %v5822, %v5827
  %v8025 = vmax.f32 %v5851, %v5856
  %v8026 = vmax.f32 %v5880, %v5885
  %v8027 = vmax.f32 %v5909, %v5914
  %v8028 = vmax.f32 %v5938, %v5943
  %v8029 = vmax.f32 %v5967, %v5972
  %v8030 = vmax.f32 %v5996, %v6001
  %v8031 = vmax.f32 %v6025, %v6030
  %v8032 = vmax.f32 %v6054, %v6059
  %v8033 = vmax.f32 %v6083, %v6088
  %v8034 = vmax.f32 %v6112, %v6117
  %v8035 = vmax.f32 %v6141, %v6146
  %v8036 = vmax.f32 %v6170, %v6175
  %v8037 = vmax.f32 %v6199, %v6204
  %v8038 = vmax.f32 %v6228, %v6233
  %v8039 = vmax.f32 %v6257, %v6262
  %v8040 = vmax.f32 %v6286, %v6291
  %v8041 = vmax.f32 %v6315, %v6320
  %v8042 = vmax.f32 %v6344, %v6349
  %v8043 = vmax.f32 %v6373, %v6378
  %v8044 = vmax.f32 %v6402, %v6407
  %v8045 = vmax.f32 %v6431, %v6436
  %v8046 = vmax.f32 %v6460, %v6465
  %v8047 = vmax.f32 %v6489, %v6494
  %v8048 = vmax.f32 %v6518, %v6523
  %v8049 = vmax.f32 %v6547, %v6552
  %v8050 = vmax.f32 %v6576, %v6581
  %v8051 = vmax.f32 %v6605, %v6610
  %v8052 = vmax.f32 %v6634, %v6639
  %v8053 = vmax.f32 %v6663, %v6668
  %v8054 = vmax.f32 %v6692, %v6697
  %v8055 = vmax.f32 %v6721, %v6726
  %v8056 = vmax.f32 %v6750, %v6755
  %v8057 = vmax.f32 %v6779, %v6784
  %v8058 = vmax.f32 %v6808, %v6813
  %v8059 = vmax.f32 %v6837, %v6842
  %v8060 = vmax.f32 %v6866, %v6871
  %v8061 = vmax.f32 %v6895, %v6900
  %v8062 = vmax.f32 %v6924, %v6929
  %v8063 = vmax.f32 %v6953, %v6958
  %v8064 = vmax.f32 %v6982, %v6987
  %v8065 = vmax.f32 %v7011, %v7016
  %v8066 = vmax.f32 %v7040, %v7045
  %v8067 = vmax.f32 %v7069, %v7074
  %v8068 = vmax.f32 %v7098, %v7103
  %v8069 = vmax.f32 %v7127, %v7132
  %v8070 = vmax.f32 %v7156, %v7161
  %v8071 = vmax.f32 %v7185, %v7190
  %v8072 = vmax.f32 %v7214, %v7219
  %v8073 = vmax.f32 %v7243, %v7248
  %v8074 = vmax.f32 %v7272, %v7277
  %v8075 = vmax.f32 %v7301, %v7306
  %v8076 = vmax.f32 %v7330, %v7335
  %v8077 = vmax.f32 %v7359, %v7364
  %v8078 = vmax.f32 %v7388, %v7393
  %v8079 = vmax.f32 %v7417, %v7422
  %v8080 = vmax.f32 %v7446, %v7451
  %v8081 = vmax.f32 %v7453, %v7767
  %v8082 = vmax.f32 %v7454, %v7768
  %v8083 = vmax.f32 %v7455, %v7769
  %v8084 = vmax.f32 %v7456, %v7770
  %v8085 = vmax.f32 %v7457, %v7771
  %v8086 = vmax.f32 %v7458, %v7772
  %v8087 = vmax.f32 %v7459, %v7773
  %v8088 = vmax.f32 %v7460, %v7774
  %v8089 = vmax.f32 %v7461, %v7775
  %v8090 = vmax.f32 %v7462, %v7776
  %v8091 = vmax.f32 %v7463, %v7777
  %v8092 = vmax.f32 %v7464, %v7778
  %v8093 = vmax.f32 %v7465, %v7779
  %v8094 = vmax.f32 %v7466, %v7780
  %v8095 = vmax.f32 %v7467, %v7781
  %v8096 = vmax.f32 %v7468, %v7782
  %v8097 = vmax.f32 %v7469, %v7783
  %v8098 = vmax.f32 %v7470, %v7784
  %v8099 = vmax.f32 %v7471, %v7785
  %v8100 = vmax.f32 %v7472, %v7786
  %v8101 = vmax.f32 %v7473, %v7787
  %v8102 = vmax.f32 %v7474, %v7788
  %v8103 = vmax.f32 %v7475, %v7789
  %v8104 = vmax.f32 %v7476, %v7790
  %v8105 = vmax.f32 %v7477, %v7791
  %v8106 = vmax.f32 %v7478, %v7792
  %v8107 = vmax.f32 %v7479, %v7793
  %v8108 = vmax.f32 %v7480, %v7794
  %v8109 = vmax.f32 %v7481, %v7795
  %v8110 = vmax.f32 %v7482, %v7796
  %v8111 = vmax.f32 %v7483, %v7797
  %v8112 = vmax.f32 %v7484, %v7798
  %v8113 = vmax.f32 %v7485, %v7799
  %v8114 = vmax.f32 %v7486, %v7800
  %v8115 = vmax.f32 %v7487, %v7801
  %v8116 = vmax.f32 %v7488, %v7802
  %v8117 = vmax.f32 %v7489, %v7803
  %v8118 = vmax.f32 %v7490, %v7804
  %v8119 = vmax.f32 %v7491, %v7805
  %v8120 = vmax.f32 %v7492, %v7806
  %v8121 = vmax.f32 %v7493, %v7807
  %v8122 = vmax.f32 %v7494, %v7808
  %v8123 = vmax.f32 %v7495, %v7809
  %v8124 = vmax.f32 %v7496, %v7810
  %v8125 = vmax.f32 %v7497, %v7811
  %v8126 = vmax.f32 %v7498, %v7812
  %v8127 = vmax.f32 %v7499, %v7813
  %v8128 = vmax.f32 %v7500, %v7814
  %v8129 = vmax.f32 %v7501, %v7815
  %v8130 = vmax.f32 %v7502, %v7816
  %v8131 = vmax.f32 %v7503, %v7817
  %v8132 = vmax.f32 %v7504, %v7818
  %v8133 = vmax.f32 %v7505, %v7819
  %v8134 = vmax.f32 %v7506, %v7820
  %v8135 = vmax.f32 %v7507, %v7821
  %v8136 = vmax.f32 %v7508, %v7822
  %v8137 = vmax.f32 %v7509, %v7823
  %v8138 = vmax.f32 %v7510, %v7824
  %v8139 = vmax.f32 %v7511, %v7825
  %v8140 = vmax.f32 %v7512, %v7826
  %v8141 = vmax.f32 %v7513, %v7827
  %v8142 = vmax.f32 %v7514, %v7828
  %v8143 = vmax.f32 %v7515, %v7829
  %v8144 = vmax.f32 %v7516, %v7830
  %v8145 = vmax.f32 %v7517, %v7831
  %v8146 = vmax.f32 %v7518, %v7832
  %v8147 = vmax.f32 %v7519, %v7833
  %v8148 = vmax.f32 %v7520, %v7834
  %v8149 = vmax.f32 %v7521, %v7835
  %v8150 = vmax.f32 %v7522, %v7836
  %v8151 = vmax.f32 %v7523, %v7837
  %v8152 = vmax.f32 %v7524, %v7838
  %v8153 = vmax.f32 %v7525, %v7839
  %v8154 = vmax.f32 %v7526, %v7840
  %v8155 = vmax.f32 %v7527, %v7841
  %v8156 = vmax.f32 %v7528, %v7842
  %v8157 = vmax.f32 %v7529, %v7843
  %v8158 = vmax.f32 %v7530, %v7844
  %v8159 = vmax.f32 %v7531, %v7845
  %v8160 = vmax.f32 %v7532, %v7846
  %v8161 = vmax.f32 %v7533, %v7847
  %v8162 = vmax.f32 %v7534, %v7848
  %v8163 = vmax.f32 %v7535, %v7849
  %v8164 = vmax.f32 %v7536, %v7850
  %v8165 = vmax.f32 %v7537, %v7851
  %v8166 = vmax.f32 %v7538, %v7852
  %v8167 = vmax.f32 %v7539, %v7853
  %v8168 = vmax.f32 %v7540, %v7854
  %v8169 = vmax.f32 %v7541, %v7855
  %v8170 = vmax.f32 %v7542, %v7856
  %v8171 = vmax.f32 %v7543, %v7857
  %v8172 = vmax.f32 %v7544, %v7858
  %v8173 = vmax.f32 %v7545, %v7859
  %v8174 = vmax.f32 %v7546, %v7860
  %v8175 = vmax.f32 %v7547, %v7861
  %v8176 = vmax.f32 %v7548, %v7862
  %v8177 = vmax.f32 %v7549, %v7863
  %v8178 = vmax.f32 %v7550, %v7864
  %v8179 = vmax.f32 %v7551, %v7865
  %v8180 = vmax.f32 %v7552, %v7866
  %v8181 = vmax.f32 %v7553, %v7867
  %v8182 = vmax.f32 %v7554, %v7868
  %v8183 = vmax.f32 %v7555, %v7869
  %v8184 = vmax.f32 %v7556, %v7870
  %v8185 = vmax.f32 %v7557, %v7871
  %v8186 = vmax.f32 %v7558, %v7872
  %v8187 = vmax.f32 %v7559, %v7873
  %v8188 = vmax.f32 %v7560, %v7874
  %v8189 = vmax.f32 %v7561, %v7875
  %v8190 = vmax.f32 %v7562, %v7876
  %v8191 = vmax.f32 %v7563, %v7877
  %v8192 = vmax.f32 %v7564, %v7878
  %v8193 = vmax.f32 %v7565, %v7879
  %v8194 = vmax.f32 %v7566, %v7880
  %v8195 = vmax.f32 %v7567, %v7881
  %v8196 = vmax.f32 %v7568, %v7882
  %v8197 = vmax.f32 %v7569, %v7883
  %v8198 = vmax.f32 %v7570, %v7884
  %v8199 = vmax.f32 %v7571, %v7885
  %v8200 = vmax.f32 %v7572, %v7886
  %v8201 = vmax.f32 %v7573, %v7887
  %v8202 = vmax.f32 %v7574, %v7888
  %v8203 = vmax.f32 %v7575, %v7889
  %v8204 = vmax.f32 %v7576, %v7890
  %v8205 = vmax.f32 %v7577, %v7891
  %v8206 = vmax.f32 %v7578, %v7892
  %v8207 = vmax.f32 %v7579, %v7893
  %v8208 = vmax.f32 %v7580, %v7894
  %v8209 = vmax.f32 %v7581, %v7895
  %v8210 = vmax.f32 %v7582, %v7896
  %v8211 = vmax.f32 %v7583, %v7897
  %v8212 = vmax.f32 %v7584, %v7898
  %v8213 = vmax.f32 %v7585, %v7899
  %v8214 = vmax.f32 %v7586, %v7900
  %v8215 = vmax.f32 %v7587, %v7901
  %v8216 = vmax.f32 %v7588, %v7902
  %v8217 = vmax.f32 %v7589, %v7903
  %v8218 = vmax.f32 %v7590, %v7904
  %v8219 = vmax.f32 %v7591, %v7905
  %v8220 = vmax.f32 %v7592, %v7906
  %v8221 = vmax.f32 %v7593, %v7907
  %v8222 = vmax.f32 %v7594, %v7908
  %v8223 = vmax.f32 %v7595, %v7909
  %v8224 = vmax.f32 %v7596, %v7910
  %v8225 = vmax.f32 %v7597, %v7911
  %v8226 = vmax.f32 %v7598, %v7912
  %v8227 = vmax.f32 %v7599, %v7913
  %v8228 = vmax.f32 %v7600, %v7914
  %v8229 = vmax.f32 %v7601, %v7915
  %v8230 = vmax.f32 %v7602, %v7916
  %v8231 = vmax.f32 %v7603, %v7917
  %v8232 = vmax.f32 %v7604, %v7918
  %v8233 = vmax.f32 %v7605, %v7919
  %v8234 = vmax.f32 %v7606, %v7920
  %v8235 = vmax.f32 %v7607, %v7921
  %v8236 = vmax.f32 %v7608, %v7922
  %v8237 = vmax.f32 %v7609, %v7923
  %v8238 = vmax.f32 %v7610, %v7924
  %v8239 = vmax.f32 %v7611, %v7925
  %v8240 = vmax.f32 %v7612, %v7926
  %v8241 = vmax.f32 %v7613, %v7927
  %v8242 = vmax.f32 %v7614, %v7928
  %v8243 = vmax.f32 %v7615, %v7929
  %v8244 = vmax.f32 %v7616, %v7930
  %v8245 = vmax.f32 %v7617, %v7931
  %v8246 = vmax.f32 %v7618, %v7932
  %v8247 = vmax.f32 %v7619, %v7933
  %v8248 = vmax.f32 %v7620, %v7934
  %v8249 = vmax.f32 %v7621, %v7935
  %v8250 = vmax.f32 %v7622, %v7936
  %v8251 = vmax.f32 %v7623, %v7937
  %v8252 = vmax.f32 %v7624, %v7938
  %v8253 = vmax.f32 %v7625, %v7939
  %v8254 = vmax.f32 %v7626, %v7940
  %v8255 = vmax.f32 %v7627, %v7941
  %v8256 = vmax.f32 %v7628, %v7942
  %v8257 = vmax.f32 %v7629, %v7943
  %v8258 = vmax.f32 %v7630, %v7944
  %v8259 = vmax.f32 %v7631, %v7945
  %v8260 = vmax.f32 %v7632, %v7946
  %v8261 = vmax.f32 %v7633, %v7947
  %v8262 = vmax.f32 %v7634, %v7948
  %v8263 = vmax.f32 %v7635, %v7949
  %v8264 = vmax.f32 %v7636, %v7950
  %v8265 = vmax.f32 %v7637, %v7951
  %v8266 = vmax.f32 %v7638, %v7952
  %v8267 = vmax.f32 %v7639, %v7953
  %v8268 = vmax.f32 %v7640, %v7954
  %v8269 = vmax.f32 %v7641, %v7955
  %v8270 = vmax.f32 %v7642, %v7956
  %v8271 = vmax.f32 %v7643, %v7957
  %v8272 = vmax.f32 %v7644, %v7958
  %v8273 = vmax.f32 %v7645, %v7959
  %v8274 = vmax.f32 %v7646, %v7960
  %v8275 = vmax.f32 %v7647, %v7961
  %v8276 = vmax.f32 %v7648, %v7962
  %v8277 = vmax.f32 %v7649, %v7963
  %v8278 = vmax.f32 %v7650, %v7964
  %v8279 = vmax.f32 %v7651, %v7965
  %v8280 = vmax.f32 %v7652, %v7966
  %v8281 = vmax.f32 %v7653, %v7967
  %v8282 = vmax.f32 %v7654, %v7968
  %v8283 = vmax.f32 %v7655, %v7969
  %v8284 = vmax.f32 %v7656, %v7970
  %v8285 = vmax.f32 %v7657, %v7971
  %v8286 = vmax.f32 %v7658, %v7972
  %v8287 = vmax.f32 %v7659, %v7973
  %v8288 = vmax.f32 %v7660, %v7974
  %v8289 = vmax.f32 %v7661, %v7975
  %v8290 = vmax.f32 %v7662, %v7976
  %v8291 = vmax.f32 %v7663, %v7977
  %v8292 = vmax.f32 %v7664, %v7978
  %v8293 = vmax.f32 %v7665, %v7979
  %v8294 = vmax.f32 %v7666, %v7980
  %v8295 = vmax.f32 %v7667, %v7981
  %v8296 = vmax.f32 %v7668, %v7982
  %v8297 = vmax.f32 %v7669, %v7983
  %v8298 = vmax.f32 %v7670, %v7984
  %v8299 = vmax.f32 %v7671, %v7985
  %v8300 = vmax.f32 %v7672, %v7986
  %v8301 = vmax.f32 %v7673, %v7987
  %v8302 = vmax.f32 %v7674, %v7988
  %v8303 = vmax.f32 %v7675, %v7989
  %v8304 = vmax.f32 %v7676, %v7990
  %v8305 = vmax.f32 %v7677, %v7991
  %v8306 = vmax.f32 %v7678, %v7992
  %v8307 = vmax.f32 %v7679, %v7993
  %v8308 = vmax.f32 %v7680, %v7994
  %v8309 = vmax.f32 %v7681, %v7995
  %v8310 = vmax.f32 %v7682, %v7996
  %v8311 = vmax.f32 %v7683, %v7997
  %v8312 = vmax.f32 %v7684, %v7998
  %v8313 = vmax.f32 %v7685, %v7999
  %v8314 = vmax.f32 %v7686, %v8000
  %v8315 = vmax.f32 %v7687, %v8001
  %v8316 = vmax.f32 %v7688, %v8002
  %v8317 = vmax.f32 %v7689, %v8003
  %v8318 = vmax.f32 %v7690, %v8004
  %v8319 = vmax.f32 %v7691, %v8005
  %v8320 = vmax.f32 %v7692, %v8006
  %v8321 = vmax.f32 %v7693, %v8007
  %v8322 = vmax.f32 %v7694, %v8008
  %v8323 = vmax.f32 %v7695, %v8009
  %v8324 = vmax.f32 %v7696, %v8010
  %v8325 = vmax.f32 %v7697, %v8011
  %v8326 = vmax.f32 %v7698, %v8012
  %v8327 = vmax.f32 %v7699, %v8013
  %v8328 = vmax.f32 %v7700, %v8014
  %v8329 = vmax.f32 %v7701, %v8015
  %v8330 = vmax.f32 %v7702, %v8016
  %v8331 = vmax.f32 %v7703, %v8017
  %v8332 = vmax.f32 %v7704, %v8018
  %v8333 = vmax.f32 %v7705, %v8019
  %v8334 = vmax.f32 %v7706, %v8020
  %v8335 = vmax.f32 %v7707, %v8021
  %v8336 = vmax.f32 %v7708, %v8022
  %v8337 = vmax.f32 %v7709, %v8023
  %v8338 = vmax.f32 %v7710, %v8024
  %v8339 = vmax.f32 %v7711, %v8025
  %v8340 = vmax.f32 %v7712, %v8026
  %v8341 = vmax.f32 %v7713, %v8027
  %v8342 = vmax.f32 %v7714, %v8028
  %v8343 = vmax.f32 %v7715, %v8029
  %v8344 = vmax.f32 %v7716, %v8030
  %v8345 = vmax.f32 %v7717, %v8031
  %v8346 = vmax.f32 %v7718, %v8032
  %v8347 = vmax.f32 %v7719, %v8033
  %v8348 = vmax.f32 %v7720, %v8034
  %v8349 = vmax.f32 %v7721, %v8035
  %v8350 = vmax.f32 %v7722, %v8036
  %v8351 = vmax.f32 %v7723, %v8037
  %v8352 = vmax.f32 %v7724, %v8038
  %v8353 = vmax.f32 %v7725, %v8039
  %v8354 = vmax.f32 %v7726, %v8040
  %v8355 = vmax.f32 %v7727, %v8041
  %v8356 = vmax.f32 %v7728, %v8042
  %v8357 = vmax.f32 %v7729, %v8043
  %v8358 = vmax.f32 %v7730, %v8044
  %v8359 = vmax.f32 %v7731, %v8045
  %v8360 = vmax.f32 %v7732, %v8046
  %v8361 = vmax.f32 %v7733, %v8047
  %v8362 = vmax.f32 %v7734, %v8048
  %v8363 = vmax.f32 %v7735, %v8049
  %v8364 = vmax.f32 %v7736, %v8050
  %v8365 = vmax.f32 %v7737, %v8051
  %v8366 = vmax.f32 %v7738, %v8052
  %v8367 = vmax.f32 %v7739, %v8053
  %v8368 = vmax.f32 %v7740, %v8054
  %v8369 = vmax.f32 %v7741, %v8055
  %v8370 = vmax.f32 %v7742, %v8056
  %v8371 = vmax.f32 %v7743, %v8057
  %v8372 = vmax.f32 %v7744, %v8058
  %v8373 = vmax.f32 %v7745, %v8059
  %v8374 = vmax.f32 %v7746, %v8060
  %v8375 = vmax.f32 %v7747, %v8061
  %v8376 = vmax.f32 %v7748, %v8062
  %v8377 = vmax.f32 %v7749, %v8063
  %v8378 = vmax.f32 %v7750, %v8064
  %v8379 = vmax.f32 %v7751, %v8065
  %v8380 = vmax.f32 %v7752, %v8066
  %v8381 = vmax.f32 %v7753, %v8067
  %v8382 = vmax.f32 %v7754, %v8068
  %v8383 = vmax.f32 %v7755, %v8069
  %v8384 = vmax.f32 %v7756, %v8070
  %v8385 = vmax.f32 %v7757, %v8071
  %v8386 = vmax.f32 %v7758, %v8072
  %v8387 = vmax.f32 %v7759, %v8073
  %v8388 = vmax.f32 %v7760, %v8074
  %v8389 = vmax.f32 %v7761, %v8075
  %v8390 = vmax.f32 %v7762, %v8076
  %v8391 = vmax.f32 %v7763, %v8077
  %v8392 = vmax.f32 %v7764, %v8078
  %v8393 = vmax.f32 %v7765, %v8079
  %v8394 = vmax.f32 %v7766, %v8080
  %v8395 = vld [vmem:[%s2] sm:$0xff]
  %v8396 = vld [vmem:[%s2 + $0x8] sm:$0xff]
  %8398 = vset.pattern.permute.xlu0 0
  %8399 = vperm.xlu0 %8398, %v8395
  %v8400 = vpop.permute.xlu0 %8399
  %8403 = vset.pattern.permute.xlu0 0
  %8404 = vperm.xlu0 %8403, %v8396
  %v8405 = vpop.permute.xlu0 %8404
  %v8407 = vadd.f32 %v8081, %v8400
  %v8408 = vadd.f32 %v8082, %v8400
  %v8409 = vadd.f32 %v8083, %v8400
  %v8410 = vadd.f32 %v8084, %v8400
  %v8411 = vadd.f32 %v8085, %v8400
  %v8412 = vadd.f32 %v8086, %v8400
  %v8413 = vadd.f32 %v8087, %v8400
  %v8414 = vadd.f32 %v8088, %v8400
  %v8415 = vadd.f32 %v8089, %v8400
  %v8416 = vadd.f32 %v8090, %v8400
  %v8417 = vadd.f32 %v8091, %v8400
  %v8418 = vadd.f32 %v8092, %v8400
  %v8419 = vadd.f32 %v8093, %v8400
  %v8420 = vadd.f32 %v8094, %v8400
  %v8421 = vadd.f32 %v8095, %v8400
  %v8422 = vadd.f32 %v8096, %v8400
  %v8423 = vadd.f32 %v8097, %v8400
  %v8424 = vadd.f32 %v8098, %v8400
  %v8425 = vadd.f32 %v8099, %v8400
  %v8426 = vadd.f32 %v8100, %v8400
  %v8427 = vadd.f32 %v8101, %v8400
  %v8428 = vadd.f32 %v8102, %v8400
  %v8429 = vadd.f32 %v8103, %v8400
  %v8430 = vadd.f32 %v8104, %v8400
  %v8431 = vadd.f32 %v8105, %v8400
  %v8432 = vadd.f32 %v8106, %v8400
  %v8433 = vadd.f32 %v8107, %v8400
  %v8434 = vadd.f32 %v8108, %v8400
  %v8435 = vadd.f32 %v8109, %v8400
  %v8436 = vadd.f32 %v8110, %v8400
  %v8437 = vadd.f32 %v8111, %v8400
  %v8438 = vadd.f32 %v8112, %v8400
  %v8439 = vadd.f32 %v8113, %v8400
  %v8440 = vadd.f32 %v8114, %v8400
  %v8441 = vadd.f32 %v8115, %v8400
  %v8442 = vadd.f32 %v8116, %v8400
  %v8443 = vadd.f32 %v8117, %v8400
  %v8444 = vadd.f32 %v8118, %v8400
  %v8445 = vadd.f32 %v8119, %v8400
  %v8446 = vadd.f32 %v8120, %v8400
  %v8447 = vadd.f32 %v8121, %v8400
  %v8448 = vadd.f32 %v8122, %v8400
  %v8449 = vadd.f32 %v8123, %v8400
  %v8450 = vadd.f32 %v8124, %v8400
  %v8451 = vadd.f32 %v8125, %v8400
  %v8452 = vadd.f32 %v8126, %v8400
  %v8453 = vadd.f32 %v8127, %v8400
  %v8454 = vadd.f32 %v8128, %v8400
  %v8455 = vadd.f32 %v8129, %v8400
  %v8456 = vadd.f32 %v8130, %v8400
  %v8457 = vadd.f32 %v8131, %v8400
  %v8458 = vadd.f32 %v8132, %v8400
  %v8459 = vadd.f32 %v8133, %v8400
  %v8460 = vadd.f32 %v8134, %v8400
  %v8461 = vadd.f32 %v8135, %v8400
  %v8462 = vadd.f32 %v8136, %v8400
  %v8463 = vadd.f32 %v8137, %v8400
  %v8464 = vadd.f32 %v8138, %v8400
  %v8465 = vadd.f32 %v8139, %v8400
  %v8466 = vadd.f32 %v8140, %v8400
  %v8467 = vadd.f32 %v8141, %v8400
  %v8468 = vadd.f32 %v8142, %v8400
  %v8469 = vadd.f32 %v8143, %v8400
  %v8470 = vadd.f32 %v8144, %v8400
  %v8471 = vadd.f32 %v8145, %v8400
  %v8472 = vadd.f32 %v8146, %v8400
  %v8473 = vadd.f32 %v8147, %v8400
  %v8474 = vadd.f32 %v8148, %v8400
  %v8475 = vadd.f32 %v8149, %v8400
  %v8476 = vadd.f32 %v8150, %v8400
  %v8477 = vadd.f32 %v8151, %v8400
  %v8478 = vadd.f32 %v8152, %v8400
  %v8479 = vadd.f32 %v8153, %v8400
  %v8480 = vadd.f32 %v8154, %v8400
  %v8481 = vadd.f32 %v8155, %v8400
  %v8482 = vadd.f32 %v8156, %v8400
  %v8483 = vadd.f32 %v8157, %v8400
  %v8484 = vadd.f32 %v8158, %v8400
  %v8485 = vadd.f32 %v8159, %v8400
  %v8486 = vadd.f32 %v8160, %v8400
  %v8487 = vadd.f32 %v8161, %v8400
  %v8488 = vadd.f32 %v8162, %v8400
  %v8489 = vadd.f32 %v8163, %v8400
  %v8490 = vadd.f32 %v8164, %v8400
  %v8491 = vadd.f32 %v8165, %v8400
  %v8492 = vadd.f32 %v8166, %v8400
  %v8493 = vadd.f32 %v8167, %v8400
  %v8494 = vadd.f32 %v8168, %v8400
  %v8495 = vadd.f32 %v8169, %v8400
  %v8496 = vadd.f32 %v8170, %v8400
  %v8497 = vadd.f32 %v8171, %v8400
  %v8498 = vadd.f32 %v8172, %v8400
  %v8499 = vadd.f32 %v8173, %v8400
  %v8500 = vadd.f32 %v8174, %v8400
  %v8501 = vadd.f32 %v8175, %v8400
  %v8502 = vadd.f32 %v8176, %v8400
  %v8503 = vadd.f32 %v8177, %v8400
  %v8504 = vadd.f32 %v8178, %v8400
  %v8505 = vadd.f32 %v8179, %v8400
  %v8506 = vadd.f32 %v8180, %v8400
  %v8507 = vadd.f32 %v8181, %v8400
  %v8508 = vadd.f32 %v8182, %v8400
  %v8509 = vadd.f32 %v8183, %v8400
  %v8510 = vadd.f32 %v8184, %v8400
  %v8511 = vadd.f32 %v8185, %v8400
  %v8512 = vadd.f32 %v8186, %v8400
  %v8513 = vadd.f32 %v8187, %v8400
  %v8514 = vadd.f32 %v8188, %v8400
  %v8515 = vadd.f32 %v8189, %v8400
  %v8516 = vadd.f32 %v8190, %v8400
  %v8517 = vadd.f32 %v8191, %v8400
  %v8518 = vadd.f32 %v8192, %v8400
  %v8519 = vadd.f32 %v8193, %v8400
  %v8520 = vadd.f32 %v8194, %v8400
  %v8521 = vadd.f32 %v8195, %v8400
  %v8522 = vadd.f32 %v8196, %v8400
  %v8523 = vadd.f32 %v8197, %v8400
  %v8524 = vadd.f32 %v8198, %v8400
  %v8525 = vadd.f32 %v8199, %v8400
  %v8526 = vadd.f32 %v8200, %v8400
  %v8527 = vadd.f32 %v8201, %v8400
  %v8528 = vadd.f32 %v8202, %v8400
  %v8529 = vadd.f32 %v8203, %v8400
  %v8530 = vadd.f32 %v8204, %v8400
  %v8531 = vadd.f32 %v8205, %v8400
  %v8532 = vadd.f32 %v8206, %v8400
  %v8533 = vadd.f32 %v8207, %v8400
  %v8534 = vadd.f32 %v8208, %v8400
  %v8535 = vadd.f32 %v8209, %v8400
  %v8536 = vadd.f32 %v8210, %v8400
  %v8537 = vadd.f32 %v8211, %v8400
  %v8538 = vadd.f32 %v8212, %v8400
  %v8539 = vadd.f32 %v8213, %v8400
  %v8540 = vadd.f32 %v8214, %v8400
  %v8541 = vadd.f32 %v8215, %v8400
  %v8542 = vadd.f32 %v8216, %v8400
  %v8543 = vadd.f32 %v8217, %v8400
  %v8544 = vadd.f32 %v8218, %v8400
  %v8545 = vadd.f32 %v8219, %v8400
  %v8546 = vadd.f32 %v8220, %v8400
  %v8547 = vadd.f32 %v8221, %v8400
  %v8548 = vadd.f32 %v8222, %v8400
  %v8549 = vadd.f32 %v8223, %v8400
  %v8550 = vadd.f32 %v8224, %v8400
  %v8551 = vadd.f32 %v8225, %v8400
  %v8552 = vadd.f32 %v8226, %v8400
  %v8553 = vadd.f32 %v8227, %v8400
  %v8554 = vadd.f32 %v8228, %v8400
  %v8555 = vadd.f32 %v8229, %v8400
  %v8556 = vadd.f32 %v8230, %v8400
  %v8557 = vadd.f32 %v8231, %v8400
  %v8558 = vadd.f32 %v8232, %v8400
  %v8559 = vadd.f32 %v8233, %v8400
  %v8560 = vadd.f32 %v8234, %v8400
  %v8561 = vadd.f32 %v8235, %v8400
  %v8562 = vadd.f32 %v8236, %v8400
  %v8563 = vadd.f32 %v8237, %v8400
  %v8564 = vadd.f32 %v8238, %v8405
  %v8565 = vadd.f32 %v8239, %v8405
  %v8566 = vadd.f32 %v8240, %v8405
  %v8567 = vadd.f32 %v8241, %v8405
  %v8568 = vadd.f32 %v8242, %v8405
  %v8569 = vadd.f32 %v8243, %v8405
  %v8570 = vadd.f32 %v8244, %v8405
  %v8571 = vadd.f32 %v8245, %v8405
  %v8572 = vadd.f32 %v8246, %v8405
  %v8573 = vadd.f32 %v8247, %v8405
  %v8574 = vadd.f32 %v8248, %v8405
  %v8575 = vadd.f32 %v8249, %v8405
  %v8576 = vadd.f32 %v8250, %v8405
  %v8577 = vadd.f32 %v8251, %v8405
  %v8578 = vadd.f32 %v8252, %v8405
  %v8579 = vadd.f32 %v8253, %v8405
  %v8580 = vadd.f32 %v8254, %v8405
  %v8581 = vadd.f32 %v8255, %v8405
  %v8582 = vadd.f32 %v8256, %v8405
  %v8583 = vadd.f32 %v8257, %v8405
  %v8584 = vadd.f32 %v8258, %v8405
  %v8585 = vadd.f32 %v8259, %v8405
  %v8586 = vadd.f32 %v8260, %v8405
  %v8587 = vadd.f32 %v8261, %v8405
  %v8588 = vadd.f32 %v8262, %v8405
  %v8589 = vadd.f32 %v8263, %v8405
  %v8590 = vadd.f32 %v8264, %v8405
  %v8591 = vadd.f32 %v8265, %v8405
  %v8592 = vadd.f32 %v8266, %v8405
  %v8593 = vadd.f32 %v8267, %v8405
  %v8594 = vadd.f32 %v8268, %v8405
  %v8595 = vadd.f32 %v8269, %v8405
  %v8596 = vadd.f32 %v8270, %v8405
  %v8597 = vadd.f32 %v8271, %v8405
  %v8598 = vadd.f32 %v8272, %v8405
  %v8599 = vadd.f32 %v8273, %v8405
  %v8600 = vadd.f32 %v8274, %v8405
  %v8601 = vadd.f32 %v8275, %v8405
  %v8602 = vadd.f32 %v8276, %v8405
  %v8603 = vadd.f32 %v8277, %v8405
  %v8604 = vadd.f32 %v8278, %v8405
  %v8605 = vadd.f32 %v8279, %v8405
  %v8606 = vadd.f32 %v8280, %v8405
  %v8607 = vadd.f32 %v8281, %v8405
  %v8608 = vadd.f32 %v8282, %v8405
  %v8609 = vadd.f32 %v8283, %v8405
  %v8610 = vadd.f32 %v8284, %v8405
  %v8611 = vadd.f32 %v8285, %v8405
  %v8612 = vadd.f32 %v8286, %v8405
  %v8613 = vadd.f32 %v8287, %v8405
  %v8614 = vadd.f32 %v8288, %v8405
  %v8615 = vadd.f32 %v8289, %v8405
  %v8616 = vadd.f32 %v8290, %v8405
  %v8617 = vadd.f32 %v8291, %v8405
  %v8618 = vadd.f32 %v8292, %v8405
  %v8619 = vadd.f32 %v8293, %v8405
  %v8620 = vadd.f32 %v8294, %v8405
  %v8621 = vadd.f32 %v8295, %v8405
  %v8622 = vadd.f32 %v8296, %v8405
  %v8623 = vadd.f32 %v8297, %v8405
  %v8624 = vadd.f32 %v8298, %v8405
  %v8625 = vadd.f32 %v8299, %v8405
  %v8626 = vadd.f32 %v8300, %v8405
  %v8627 = vadd.f32 %v8301, %v8405
  %v8628 = vadd.f32 %v8302, %v8405
  %v8629 = vadd.f32 %v8303, %v8405
  %v8630 = vadd.f32 %v8304, %v8405
  %v8631 = vadd.f32 %v8305, %v8405
  %v8632 = vadd.f32 %v8306, %v8405
  %v8633 = vadd.f32 %v8307, %v8405
  %v8634 = vadd.f32 %v8308, %v8405
  %v8635 = vadd.f32 %v8309, %v8405
  %v8636 = vadd.f32 %v8310, %v8405
  %v8637 = vadd.f32 %v8311, %v8405
  %v8638 = vadd.f32 %v8312, %v8405
  %v8639 = vadd.f32 %v8313, %v8405
  %v8640 = vadd.f32 %v8314, %v8405
  %v8641 = vadd.f32 %v8315, %v8405
  %v8642 = vadd.f32 %v8316, %v8405
  %v8643 = vadd.f32 %v8317, %v8405
  %v8644 = vadd.f32 %v8318, %v8405
  %v8645 = vadd.f32 %v8319, %v8405
  %v8646 = vadd.f32 %v8320, %v8405
  %v8647 = vadd.f32 %v8321, %v8405
  %v8648 = vadd.f32 %v8322, %v8405
  %v8649 = vadd.f32 %v8323, %v8405
  %v8650 = vadd.f32 %v8324, %v8405
  %v8651 = vadd.f32 %v8325, %v8405
  %v8652 = vadd.f32 %v8326, %v8405
  %v8653 = vadd.f32 %v8327, %v8405
  %v8654 = vadd.f32 %v8328, %v8405
  %v8655 = vadd.f32 %v8329, %v8405
  %v8656 = vadd.f32 %v8330, %v8405
  %v8657 = vadd.f32 %v8331, %v8405
  %v8658 = vadd.f32 %v8332, %v8405
  %v8659 = vadd.f32 %v8333, %v8405
  %v8660 = vadd.f32 %v8334, %v8405
  %v8661 = vadd.f32 %v8335, %v8405
  %v8662 = vadd.f32 %v8336, %v8405
  %v8663 = vadd.f32 %v8337, %v8405
  %v8664 = vadd.f32 %v8338, %v8405
  %v8665 = vadd.f32 %v8339, %v8405
  %v8666 = vadd.f32 %v8340, %v8405
  %v8667 = vadd.f32 %v8341, %v8405
  %v8668 = vadd.f32 %v8342, %v8405
  %v8669 = vadd.f32 %v8343, %v8405
  %v8670 = vadd.f32 %v8344, %v8405
  %v8671 = vadd.f32 %v8345, %v8405
  %v8672 = vadd.f32 %v8346, %v8405
  %v8673 = vadd.f32 %v8347, %v8405
  %v8674 = vadd.f32 %v8348, %v8405
  %v8675 = vadd.f32 %v8349, %v8405
  %v8676 = vadd.f32 %v8350, %v8405
  %v8677 = vadd.f32 %v8351, %v8405
  %v8678 = vadd.f32 %v8352, %v8405
  %v8679 = vadd.f32 %v8353, %v8405
  %v8680 = vadd.f32 %v8354, %v8405
  %v8681 = vadd.f32 %v8355, %v8405
  %v8682 = vadd.f32 %v8356, %v8405
  %v8683 = vadd.f32 %v8357, %v8405
  %v8684 = vadd.f32 %v8358, %v8405
  %v8685 = vadd.f32 %v8359, %v8405
  %v8686 = vadd.f32 %v8360, %v8405
  %v8687 = vadd.f32 %v8361, %v8405
  %v8688 = vadd.f32 %v8362, %v8405
  %v8689 = vadd.f32 %v8363, %v8405
  %v8690 = vadd.f32 %v8364, %v8405
  %v8691 = vadd.f32 %v8365, %v8405
  %v8692 = vadd.f32 %v8366, %v8405
  %v8693 = vadd.f32 %v8367, %v8405
  %v8694 = vadd.f32 %v8368, %v8405
  %v8695 = vadd.f32 %v8369, %v8405
  %v8696 = vadd.f32 %v8370, %v8405
  %v8697 = vadd.f32 %v8371, %v8405
  %v8698 = vadd.f32 %v8372, %v8405
  %v8699 = vadd.f32 %v8373, %v8405
  %v8700 = vadd.f32 %v8374, %v8405
  %v8701 = vadd.f32 %v8375, %v8405
  %v8702 = vadd.f32 %v8376, %v8405
  %v8703 = vadd.f32 %v8377, %v8405
  %v8704 = vadd.f32 %v8378, %v8405
  %v8705 = vadd.f32 %v8379, %v8405
  %v8706 = vadd.f32 %v8380, %v8405
  %v8707 = vadd.f32 %v8381, %v8405
  %v8708 = vadd.f32 %v8382, %v8405
  %v8709 = vadd.f32 %v8383, %v8405
  %v8710 = vadd.f32 %v8384, %v8405
  %v8711 = vadd.f32 %v8385, %v8405
  %v8712 = vadd.f32 %v8386, %v8405
  %v8713 = vadd.f32 %v8387, %v8405
  %v8714 = vadd.f32 %v8388, %v8405
  %v8715 = vadd.f32 %v8389, %v8405
  %v8716 = vadd.f32 %v8390, %v8405
  %v8717 = vadd.f32 %v8391, %v8405
  %v8718 = vadd.f32 %v8392, %v8405
  %v8719 = vadd.f32 %v8393, %v8405
  %v8720 = vadd.f32 %v8394, %v8405
  %v8721 = vmax.f32 %v8407, 0.0
  %v8722 = vmax.f32 %v8408, 0.0
  %v8723 = vmax.f32 %v8409, 0.0
  %v8724 = vmax.f32 %v8410, 0.0
  %v8725 = vmax.f32 %v8411, 0.0
  %v8726 = vmax.f32 %v8412, 0.0
  %v8727 = vmax.f32 %v8413, 0.0
  %v8728 = vmax.f32 %v8414, 0.0
  %v8729 = vmax.f32 %v8415, 0.0
  %v8730 = vmax.f32 %v8416, 0.0
  %v8731 = vmax.f32 %v8417, 0.0
  %v8732 = vmax.f32 %v8418, 0.0
  %v8733 = vmax.f32 %v8419, 0.0
  %v8734 = vmax.f32 %v8420, 0.0
  %v8735 = vmax.f32 %v8421, 0.0
  %v8736 = vmax.f32 %v8422, 0.0
  %v8737 = vmax.f32 %v8423, 0.0
  %v8738 = vmax.f32 %v8424, 0.0
  %v8739 = vmax.f32 %v8425, 0.0
  %v8740 = vmax.f32 %v8426, 0.0
  %v8741 = vmax.f32 %v8427, 0.0
  %v8742 = vmax.f32 %v8428, 0.0
  %v8743 = vmax.f32 %v8429, 0.0
  %v8744 = vmax.f32 %v8430, 0.0
  %v8745 = vmax.f32 %v8431, 0.0
  %v8746 = vmax.f32 %v8432, 0.0
  %v8747 = vmax.f32 %v8433, 0.0
  %v8748 = vmax.f32 %v8434, 0.0
  %v8749 = vmax.f32 %v8435, 0.0
  %v8750 = vmax.f32 %v8436, 0.0
  %v8751 = vmax.f32 %v8437, 0.0
  %v8752 = vmax.f32 %v8438, 0.0
  %v8753 = vmax.f32 %v8439, 0.0
  %v8754 = vmax.f32 %v8440, 0.0
  %v8755 = vmax.f32 %v8441, 0.0
  %v8756 = vmax.f32 %v8442, 0.0
  %v8757 = vmax.f32 %v8443, 0.0
  %v8758 = vmax.f32 %v8444, 0.0
  %v8759 = vmax.f32 %v8445, 0.0
  %v8760 = vmax.f32 %v8446, 0.0
  %v8761 = vmax.f32 %v8447, 0.0
  %v8762 = vmax.f32 %v8448, 0.0
  %v8763 = vmax.f32 %v8449, 0.0
  %v8764 = vmax.f32 %v8450, 0.0
  %v8765 = vmax.f32 %v8451, 0.0
  %v8766 = vmax.f32 %v8452, 0.0
  %v8767 = vmax.f32 %v8453, 0.0
  %v8768 = vmax.f32 %v8454, 0.0
  %v8769 = vmax.f32 %v8455, 0.0
  %v8770 = vmax.f32 %v8456, 0.0
  %v8771 = vmax.f32 %v8457, 0.0
  %v8772 = vmax.f32 %v8458, 0.0
  %v8773 = vmax.f32 %v8459, 0.0
  %v8774 = vmax.f32 %v8460, 0.0
  %v8775 = vmax.f32 %v8461, 0.0
  %v8776 = vmax.f32 %v8462, 0.0
  %v8777 = vmax.f32 %v8463, 0.0
  %v8778 = vmax.f32 %v8464, 0.0
  %v8779 = vmax.f32 %v8465, 0.0
  %v8780 = vmax.f32 %v8466, 0.0
  %v8781 = vmax.f32 %v8467, 0.0
  %v8782 = vmax.f32 %v8468, 0.0
  %v8783 = vmax.f32 %v8469, 0.0
  %v8784 = vmax.f32 %v8470, 0.0
  %v8785 = vmax.f32 %v8471, 0.0
  %v8786 = vmax.f32 %v8472, 0.0
  %v8787 = vmax.f32 %v8473, 0.0
  %v8788 = vmax.f32 %v8474, 0.0
  %v8789 = vmax.f32 %v8475, 0.0
  %v8790 = vmax.f32 %v8476, 0.0
  %v8791 = vmax.f32 %v8477, 0.0
  %v8792 = vmax.f32 %v8478, 0.0
  %v8793 = vmax.f32 %v8479, 0.0
  %v8794 = vmax.f32 %v8480, 0.0
  %v8795 = vmax.f32 %v8481, 0.0
  %v8796 = vmax.f32 %v8482, 0.0
  %v8797 = vmax.f32 %v8483, 0.0
  %v8798 = vmax.f32 %v8484, 0.0
  %v8799 = vmax.f32 %v8485, 0.0
  %v8800 = vmax.f32 %v8486, 0.0
  %v8801 = vmax.f32 %v8487, 0.0
  %v8802 = vmax.f32 %v8488, 0.0
  %v8803 = vmax.f32 %v8489, 0.0
  %v8804 = vmax.f32 %v8490, 0.0
  %v8805 = vmax.f32 %v8491, 0.0
  %v8806 = vmax.f32 %v8492, 0.0
  %v8807 = vmax.f32 %v8493, 0.0
  %v8808 = vmax.f32 %v8494, 0.0
  %v8809 = vmax.f32 %v8495, 0.0
  %v8810 = vmax.f32 %v8496, 0.0
  %v8811 = vmax.f32 %v8497, 0.0
  %v8812 = vmax.f32 %v8498, 0.0
  %v8813 = vmax.f32 %v8499, 0.0
  %v8814 = vmax.f32 %v8500, 0.0
  %v8815 = vmax.f32 %v8501, 0.0
  %v8816 = vmax.f32 %v8502, 0.0
  %v8817 = vmax.f32 %v8503, 0.0
  %v8818 = vmax.f32 %v8504, 0.0
  %v8819 = vmax.f32 %v8505, 0.0
  %v8820 = vmax.f32 %v8506, 0.0
  %v8821 = vmax.f32 %v8507, 0.0
  %v8822 = vmax.f32 %v8508, 0.0
  %v8823 = vmax.f32 %v8509, 0.0
  %v8824 = vmax.f32 %v8510, 0.0
  %v8825 = vmax.f32 %v8511, 0.0
  %v8826 = vmax.f32 %v8512, 0.0
  %v8827 = vmax.f32 %v8513, 0.0
  %v8828 = vmax.f32 %v8514, 0.0
  %v8829 = vmax.f32 %v8515, 0.0
  %v8830 = vmax.f32 %v8516, 0.0
  %v8831 = vmax.f32 %v8517, 0.0
  %v8832 = vmax.f32 %v8518, 0.0
  %v8833 = vmax.f32 %v8519, 0.0
  %v8834 = vmax.f32 %v8520, 0.0
  %v8835 = vmax.f32 %v8521, 0.0
  %v8836 = vmax.f32 %v8522, 0.0
  %v8837 = vmax.f32 %v8523, 0.0
  %v8838 = vmax.f32 %v8524, 0.0
  %v8839 = vmax.f32 %v8525, 0.0
  %v8840 = vmax.f32 %v8526, 0.0
  %v8841 = vmax.f32 %v8527, 0.0
  %v8842 = vmax.f32 %v8528, 0.0
  %v8843 = vmax.f32 %v8529, 0.0
  %v8844 = vmax.f32 %v8530, 0.0
  %v8845 = vmax.f32 %v8531, 0.0
  %v8846 = vmax.f32 %v8532, 0.0
  %v8847 = vmax.f32 %v8533, 0.0
  %v8848 = vmax.f32 %v8534, 0.0
  %v8849 = vmax.f32 %v8535, 0.0
  %v8850 = vmax.f32 %v8536, 0.0
  %v8851 = vmax.f32 %v8537, 0.0
  %v8852 = vmax.f32 %v8538, 0.0
  %v8853 = vmax.f32 %v8539, 0.0
  %v8854 = vmax.f32 %v8540, 0.0
  %v8855 = vmax.f32 %v8541, 0.0
  %v8856 = vmax.f32 %v8542, 0.0
  %v8857 = vmax.f32 %v8543, 0.0
  %v8858 = vmax.f32 %v8544, 0.0
  %v8859 = vmax.f32 %v8545, 0.0
  %v8860 = vmax.f32 %v8546, 0.0
  %v8861 = vmax.f32 %v8547, 0.0
  %v8862 = vmax.f32 %v8548, 0.0
  %v8863 = vmax.f32 %v8549, 0.0
  %v8864 = vmax.f32 %v8550, 0.0
  %v8865 = vmax.f32 %v8551, 0.0
  %v8866 = vmax.f32 %v8552, 0.0
  %v8867 = vmax.f32 %v8553, 0.0
  %v8868 = vmax.f32 %v8554, 0.0
  %v8869 = vmax.f32 %v8555, 0.0
  %v8870 = vmax.f32 %v8556, 0.0
  %v8871 = vmax.f32 %v8557, 0.0
  %v8872 = vmax.f32 %v8558, 0.0
  %v8873 = vmax.f32 %v8559, 0.0
  %v8874 = vmax.f32 %v8560, 0.0
  %v8875 = vmax.f32 %v8561, 0.0
  %v8876 = vmax.f32 %v8562, 0.0
  %v8877 = vmax.f32 %v8563, 0.0
  %v8878 = vmax.f32 %v8564, 0.0
  %v8879 = vmax.f32 %v8565, 0.0
  %v8880 = vmax.f32 %v8566, 0.0
  %v8881 = vmax.f32 %v8567, 0.0
  %v8882 = vmax.f32 %v8568, 0.0
  %v8883 = vmax.f32 %v8569, 0.0
  %v8884 = vmax.f32 %v8570, 0.0
  %v8885 = vmax.f32 %v8571, 0.0
  %v8886 = vmax.f32 %v8572, 0.0
  %v8887 = vmax.f32 %v8573, 0.0
  %v8888 = vmax.f32 %v8574, 0.0
  %v8889 = vmax.f32 %v8575, 0.0
  %v8890 = vmax.f32 %v8576, 0.0
  %v8891 = vmax.f32 %v8577, 0.0
  %v8892 = vmax.f32 %v8578, 0.0
  %v8893 = vmax.f32 %v8579, 0.0
  %v8894 = vmax.f32 %v8580, 0.0
  %v8895 = vmax.f32 %v8581, 0.0
  %v8896 = vmax.f32 %v8582, 0.0
  %v8897 = vmax.f32 %v8583, 0.0
  %v8898 = vmax.f32 %v8584, 0.0
  %v8899 = vmax.f32 %v8585, 0.0
  %v8900 = vmax.f32 %v8586, 0.0
  %v8901 = vmax.f32 %v8587, 0.0
  %v8902 = vmax.f32 %v8588, 0.0
  %v8903 = vmax.f32 %v8589, 0.0
  %v8904 = vmax.f32 %v8590, 0.0
  %v8905 = vmax.f32 %v8591, 0.0
  %v8906 = vmax.f32 %v8592, 0.0
  %v8907 = vmax.f32 %v8593, 0.0
  %v8908 = vmax.f32 %v8594, 0.0
  %v8909 = vmax.f32 %v8595, 0.0
  %v8910 = vmax.f32 %v8596, 0.0
  %v8911 = vmax.f32 %v8597, 0.0
  %v8912 = vmax.f32 %v8598, 0.0
  %v8913 = vmax.f32 %v8599, 0.0
  %v8914 = vmax.f32 %v8600, 0.0
  %v8915 = vmax.f32 %v8601, 0.0
  %v8916 = vmax.f32 %v8602, 0.0
  %v8917 = vmax.f32 %v8603, 0.0
  %v8918 = vmax.f32 %v8604, 0.0
  %v8919 = vmax.f32 %v8605, 0.0
  %v8920 = vmax.f32 %v8606, 0.0
  %v8921 = vmax.f32 %v8607, 0.0
  %v8922 = vmax.f32 %v8608, 0.0
  %v8923 = vmax.f32 %v8609, 0.0
  %v8924 = vmax.f32 %v8610, 0.0
  %v8925 = vmax.f32 %v8611, 0.0
  %v8926 = vmax.f32 %v8612, 0.0
  %v8927 = vmax.f32 %v8613, 0.0
  %v8928 = vmax.f32 %v8614, 0.0
  %v8929 = vmax.f32 %v8615, 0.0
  %v8930 = vmax.f32 %v8616, 0.0
  %v8931 = vmax.f32 %v8617, 0.0
  %v8932 = vmax.f32 %v8618, 0.0
  %v8933 = vmax.f32 %v8619, 0.0
  %v8934 = vmax.f32 %v8620, 0.0
  %v8935 = vmax.f32 %v8621, 0.0
  %v8936 = vmax.f32 %v8622, 0.0
  %v8937 = vmax.f32 %v8623, 0.0
  %v8938 = vmax.f32 %v8624, 0.0
  %v8939 = vmax.f32 %v8625, 0.0
  %v8940 = vmax.f32 %v8626, 0.0
  %v8941 = vmax.f32 %v8627, 0.0
  %v8942 = vmax.f32 %v8628, 0.0
  %v8943 = vmax.f32 %v8629, 0.0
  %v8944 = vmax.f32 %v8630, 0.0
  %v8945 = vmax.f32 %v8631, 0.0
  %v8946 = vmax.f32 %v8632, 0.0
  %v8947 = vmax.f32 %v8633, 0.0
  %v8948 = vmax.f32 %v8634, 0.0
  %v8949 = vmax.f32 %v8635, 0.0
  %v8950 = vmax.f32 %v8636, 0.0
  %v8951 = vmax.f32 %v8637, 0.0
  %v8952 = vmax.f32 %v8638, 0.0
  %v8953 = vmax.f32 %v8639, 0.0
  %v8954 = vmax.f32 %v8640, 0.0
  %v8955 = vmax.f32 %v8641, 0.0
  %v8956 = vmax.f32 %v8642, 0.0
  %v8957 = vmax.f32 %v8643, 0.0
  %v8958 = vmax.f32 %v8644, 0.0
  %v8959 = vmax.f32 %v8645, 0.0
  %v8960 = vmax.f32 %v8646, 0.0
  %v8961 = vmax.f32 %v8647, 0.0
  %v8962 = vmax.f32 %v8648, 0.0
  %v8963 = vmax.f32 %v8649, 0.0
  %v8964 = vmax.f32 %v8650, 0.0
  %v8965 = vmax.f32 %v8651, 0.0
  %v8966 = vmax.f32 %v8652, 0.0
  %v8967 = vmax.f32 %v8653, 0.0
  %v8968 = vmax.f32 %v8654, 0.0
  %v8969 = vmax.f32 %v8655, 0.0
  %v8970 = vmax.f32 %v8656, 0.0
  %v8971 = vmax.f32 %v8657, 0.0
  %v8972 = vmax.f32 %v8658, 0.0
  %v8973 = vmax.f32 %v8659, 0.0
  %v8974 = vmax.f32 %v8660, 0.0
  %v8975 = vmax.f32 %v8661, 0.0
  %v8976 = vmax.f32 %v8662, 0.0
  %v8977 = vmax.f32 %v8663, 0.0
  %v8978 = vmax.f32 %v8664, 0.0
  %v8979 = vmax.f32 %v8665, 0.0
  %v8980 = vmax.f32 %v8666, 0.0
  %v8981 = vmax.f32 %v8667, 0.0
  %v8982 = vmax.f32 %v8668, 0.0
  %v8983 = vmax.f32 %v8669, 0.0
  %v8984 = vmax.f32 %v8670, 0.0
  %v8985 = vmax.f32 %v8671, 0.0
  %v8986 = vmax.f32 %v8672, 0.0
  %v8987 = vmax.f32 %v8673, 0.0
  %v8988 = vmax.f32 %v8674, 0.0
  %v8989 = vmax.f32 %v8675, 0.0
  %v8990 = vmax.f32 %v8676, 0.0
  %v8991 = vmax.f32 %v8677, 0.0
  %v8992 = vmax.f32 %v8678, 0.0
  %v8993 = vmax.f32 %v8679, 0.0
  %v8994 = vmax.f32 %v8680, 0.0
  %v8995 = vmax.f32 %v8681, 0.0
  %v8996 = vmax.f32 %v8682, 0.0
  %v8997 = vmax.f32 %v8683, 0.0
  %v8998 = vmax.f32 %v8684, 0.0
  %v8999 = vmax.f32 %v8685, 0.0
  %v9000 = vmax.f32 %v8686, 0.0
  %v9001 = vmax.f32 %v8687, 0.0
  %v9002 = vmax.f32 %v8688, 0.0
  %v9003 = vmax.f32 %v8689, 0.0
  %v9004 = vmax.f32 %v8690, 0.0
  %v9005 = vmax.f32 %v8691, 0.0
  %v9006 = vmax.f32 %v8692, 0.0
  %v9007 = vmax.f32 %v8693, 0.0
  %v9008 = vmax.f32 %v8694, 0.0
  %v9009 = vmax.f32 %v8695, 0.0
  %v9010 = vmax.f32 %v8696, 0.0
  %v9011 = vmax.f32 %v8697, 0.0
  %v9012 = vmax.f32 %v8698, 0.0
  %v9013 = vmax.f32 %v8699, 0.0
  %v9014 = vmax.f32 %v8700, 0.0
  %v9015 = vmax.f32 %v8701, 0.0
  %v9016 = vmax.f32 %v8702, 0.0
  %v9017 = vmax.f32 %v8703, 0.0
  %v9018 = vmax.f32 %v8704, 0.0
  %v9019 = vmax.f32 %v8705, 0.0
  %v9020 = vmax.f32 %v8706, 0.0
  %v9021 = vmax.f32 %v8707, 0.0
  %v9022 = vmax.f32 %v8708, 0.0
  %v9023 = vmax.f32 %v8709, 0.0
  %v9024 = vmax.f32 %v8710, 0.0
  %v9025 = vmax.f32 %v8711, 0.0
  %v9026 = vmax.f32 %v8712, 0.0
  %v9027 = vmax.f32 %v8713, 0.0
  %v9028 = vmax.f32 %v8714, 0.0
  %v9029 = vmax.f32 %v8715, 0.0
  %v9030 = vmax.f32 %v8716, 0.0
  %v9031 = vmax.f32 %v8717, 0.0
  %v9032 = vmax.f32 %v8718, 0.0
  %v9033 = vmax.f32 %v8719, 0.0
  %v9034 = vmax.f32 %v8720, 0.0
  %v9035 = vpack.c.bf16 %v8722, %v8721
  %v9036 = vpack.c.bf16 %v8724, %v8723
  %v9037 = vpack.c.bf16 %v8726, %v8725
  %v9038 = vpack.c.bf16 %v8728, %v8727
  %v9039 = vpack.c.bf16 %v8730, %v8729
  %v9040 = vpack.c.bf16 %v8732, %v8731
  %v9041 = vpack.c.bf16 %v8734, %v8733
  %v9042 = vpack.c.bf16 %v8736, %v8735
  %v9043 = vpack.c.bf16 %v8738, %v8737
  %v9044 = vpack.c.bf16 %v8740, %v8739
  %v9045 = vpack.c.bf16 %v8742, %v8741
  %v9046 = vpack.c.bf16 %v8744, %v8743
  %v9047 = vpack.c.bf16 %v8746, %v8745
  %v9048 = vpack.c.bf16 %v8748, %v8747
  %v9049 = vpack.c.bf16 %v8750, %v8749
  %v9050 = vpack.c.bf16 %v8752, %v8751
  %v9051 = vpack.c.bf16 %v8754, %v8753
  %v9052 = vpack.c.bf16 %v8756, %v8755
  %v9053 = vpack.c.bf16 %v8758, %v8757
  %v9054 = vpack.c.bf16 %v8760, %v8759
  %v9055 = vpack.c.bf16 %v8762, %v8761
  %v9056 = vpack.c.bf16 %v8764, %v8763
  %v9057 = vpack.c.bf16 %v8766, %v8765
  %v9058 = vpack.c.bf16 %v8768, %v8767
  %v9059 = vpack.c.bf16 %v8770, %v8769
  %v9060 = vpack.c.bf16 %v8772, %v8771
  %v9061 = vpack.c.bf16 %v8774, %v8773
  %v9062 = vpack.c.bf16 %v8776, %v8775
  %v9063 = vpack.c.bf16 %v8778, %v8777
  %v9064 = vpack.c.bf16 %v8780, %v8779
  %v9065 = vpack.c.bf16 %v8782, %v8781
  %v9066 = vpack.c.bf16 %v8784, %v8783
  %v9067 = vpack.c.bf16 %v8786, %v8785
  %v9068 = vpack.c.bf16 %v8788, %v8787
  %v9069 = vpack.c.bf16 %v8790, %v8789
  %v9070 = vpack.c.bf16 %v8792, %v8791
  %v9071 = vpack.c.bf16 %v8794, %v8793
  %v9072 = vpack.c.bf16 %v8796, %v8795
  %v9073 = vpack.c.bf16 %v8798, %v8797
  %v9074 = vpack.c.bf16 %v8800, %v8799
  %v9075 = vpack.c.bf16 %v8802, %v8801
  %v9076 = vpack.c.bf16 %v8804, %v8803
  %v9077 = vpack.c.bf16 %v8806, %v8805
  %v9078 = vpack.c.bf16 %v8808, %v8807
  %v9079 = vpack.c.bf16 %v8810, %v8809
  %v9080 = vpack.c.bf16 %v8812, %v8811
  %v9081 = vpack.c.bf16 %v8814, %v8813
  %v9082 = vpack.c.bf16 %v8816, %v8815
  %v9083 = vpack.c.bf16 %v8818, %v8817
  %v9084 = vpack.c.bf16 %v8820, %v8819
  %v9085 = vpack.c.bf16 %v8822, %v8821
  %v9086 = vpack.c.bf16 %v8824, %v8823
  %v9087 = vpack.c.bf16 %v8826, %v8825
  %v9088 = vpack.c.bf16 %v8828, %v8827
  %v9089 = vpack.c.bf16 %v8830, %v8829
  %v9090 = vpack.c.bf16 %v8832, %v8831
  %v9091 = vpack.c.bf16 %v8834, %v8833
  %v9092 = vpack.c.bf16 %v8836, %v8835
  %v9093 = vpack.c.bf16 %v8838, %v8837
  %v9094 = vpack.c.bf16 %v8840, %v8839
  %v9095 = vpack.c.bf16 %v8842, %v8841
  %v9096 = vpack.c.bf16 %v8844, %v8843
  %v9097 = vpack.c.bf16 %v8846, %v8845
  %v9098 = vpack.c.bf16 %v8848, %v8847
  %v9099 = vpack.c.bf16 %v8850, %v8849
  %v9100 = vpack.c.bf16 %v8852, %v8851
  %v9101 = vpack.c.bf16 %v8854, %v8853
  %v9102 = vpack.c.bf16 %v8856, %v8855
  %v9103 = vpack.c.bf16 %v8858, %v8857
  %v9104 = vpack.c.bf16 %v8860, %v8859
  %v9105 = vpack.c.bf16 %v8862, %v8861
  %v9106 = vpack.c.bf16 %v8864, %v8863
  %v9107 = vpack.c.bf16 %v8866, %v8865
  %v9108 = vpack.c.bf16 %v8868, %v8867
  %v9109 = vpack.c.bf16 %v8870, %v8869
  %v9110 = vpack.c.bf16 %v8872, %v8871
  %v9111 = vpack.c.bf16 %v8874, %v8873
  %v9112 = vpack.c.bf16 %v8876, %v8875
  %v9113 = vpack.c.bf16 %v8877, %v8877
  %v9114 = vpack.c.bf16 %v8879, %v8878
  %v9115 = vpack.c.bf16 %v8881, %v8880
  %v9116 = vpack.c.bf16 %v8883, %v8882
  %v9117 = vpack.c.bf16 %v8885, %v8884
  %v9118 = vpack.c.bf16 %v8887, %v8886
  %v9119 = vpack.c.bf16 %v8889, %v8888
  %v9120 = vpack.c.bf16 %v8891, %v8890
  %v9121 = vpack.c.bf16 %v8893, %v8892
  %v9122 = vpack.c.bf16 %v8895, %v8894
  %v9123 = vpack.c.bf16 %v8897, %v8896
  %v9124 = vpack.c.bf16 %v8899, %v8898
  %v9125 = vpack.c.bf16 %v8901, %v8900
  %v9126 = vpack.c.bf16 %v8903, %v8902
  %v9127 = vpack.c.bf16 %v8905, %v8904
  %v9128 = vpack.c.bf16 %v8907, %v8906
  %v9129 = vpack.c.bf16 %v8909, %v8908
  %v9130 = vpack.c.bf16 %v8911, %v8910
  %v9131 = vpack.c.bf16 %v8913, %v8912
  %v9132 = vpack.c.bf16 %v8915, %v8914
  %v9133 = vpack.c.bf16 %v8917, %v8916
  %v9134 = vpack.c.bf16 %v8919, %v8918
  %v9135 = vpack.c.bf16 %v8921, %v8920
  %v9136 = vpack.c.bf16 %v8923, %v8922
  %v9137 = vpack.c.bf16 %v8925, %v8924
  %v9138 = vpack.c.bf16 %v8927, %v8926
  %v9139 = vpack.c.bf16 %v8929, %v8928
  %v9140 = vpack.c.bf16 %v8931, %v8930
  %v9141 = vpack.c.bf16 %v8933, %v8932
  %v9142 = vpack.c.bf16 %v8935, %v8934
  %v9143 = vpack.c.bf16 %v8937, %v8936
  %v9144 = vpack.c.bf16 %v8939, %v8938
  %v9145 = vpack.c.bf16 %v8941, %v8940
  %v9146 = vpack.c.bf16 %v8943, %v8942
  %v9147 = vpack.c.bf16 %v8945, %v8944
  %v9148 = vpack.c.bf16 %v8947, %v8946
  %v9149 = vpack.c.bf16 %v8949, %v8948
  %v9150 = vpack.c.bf16 %v8951, %v8950
  %v9151 = vpack.c.bf16 %v8953, %v8952
  %v9152 = vpack.c.bf16 %v8955, %v8954
  %v9153 = vpack.c.bf16 %v8957, %v8956
  %v9154 = vpack.c.bf16 %v8959, %v8958
  %v9155 = vpack.c.bf16 %v8961, %v8960
  %v9156 = vpack.c.bf16 %v8963, %v8962
  %v9157 = vpack.c.bf16 %v8965, %v8964
  %v9158 = vpack.c.bf16 %v8967, %v8966
  %v9159 = vpack.c.bf16 %v8969, %v8968
  %v9160 = vpack.c.bf16 %v8971, %v8970
  %v9161 = vpack.c.bf16 %v8973, %v8972
  %v9162 = vpack.c.bf16 %v8975, %v8974
  %v9163 = vpack.c.bf16 %v8977, %v8976
  %v9164 = vpack.c.bf16 %v8979, %v8978
  %v9165 = vpack.c.bf16 %v8981, %v8980
  %v9166 = vpack.c.bf16 %v8983, %v8982
  %v9167 = vpack.c.bf16 %v8985, %v8984
  %v9168 = vpack.c.bf16 %v8987, %v8986
  %v9169 = vpack.c.bf16 %v8989, %v8988
  %v9170 = vpack.c.bf16 %v8991, %v8990
  %v9171 = vpack.c.bf16 %v8993, %v8992
  %v9172 = vpack.c.bf16 %v8995, %v8994
  %v9173 = vpack.c.bf16 %v8997, %v8996
  %v9174 = vpack.c.bf16 %v8999, %v8998
  %v9175 = vpack.c.bf16 %v9001, %v9000
  %v9176 = vpack.c.bf16 %v9003, %v9002
  %v9177 = vpack.c.bf16 %v9005, %v9004
  %v9178 = vpack.c.bf16 %v9007, %v9006
  %v9179 = vpack.c.bf16 %v9009, %v9008
  %v9180 = vpack.c.bf16 %v9011, %v9010
  %v9181 = vpack.c.bf16 %v9013, %v9012
  %v9182 = vpack.c.bf16 %v9015, %v9014
  %v9183 = vpack.c.bf16 %v9017, %v9016
  %v9184 = vpack.c.bf16 %v9019, %v9018
  %v9185 = vpack.c.bf16 %v9021, %v9020
  %v9186 = vpack.c.bf16 %v9023, %v9022
  %v9187 = vpack.c.bf16 %v9025, %v9024
  %v9188 = vpack.c.bf16 %v9027, %v9026
  %v9189 = vpack.c.bf16 %v9029, %v9028
  %v9190 = vpack.c.bf16 %v9031, %v9030
  %v9191 = vpack.c.bf16 %v9033, %v9032
  %v9192 = vpack.c.bf16 %v9034, %v9034
  %v9199 = vunpack.c.l.b16 %v9035
  %v9200 = vunpack.c.h.b16 %v9035
  %v9201 = vunpack.c.l.b16 %v9036
  %v9202 = vunpack.c.h.b16 %v9036
  %v9203 = vunpack.c.l.b16 %v9037
  %v9204 = vunpack.c.l.b16 %v9114
  %v9205 = vunpack.c.h.b16 %v9114
  %v9206 = vunpack.c.l.b16 %v9115
  %v9207 = vunpack.c.h.b16 %v9115
  %v9208 = vunpack.c.l.b16 %v9116
  %v9209 = vpack.c.b16 %v9204, %v9199
  %v9210 = vpack.c.b16 %v9205, %v9200
  %v9211 = vpack.c.b16 %v9206, %v9201
  %v9212 = vpack.c.b16 %v9207, %v9202
  %v9213 = vpack.c.b16 %v9208, %v9203
  %v9225 = vunpack.c.h.b16 %v9041
  %v9226 = vunpack.c.l.b16 %v9042
  %v9227 = vunpack.c.h.b16 %v9042
  %v9228 = vunpack.c.l.b16 %v9043
  %v9229 = vunpack.c.h.b16 %v9043
  %v9230 = vunpack.c.h.b16 %v9120
  %v9231 = vunpack.c.l.b16 %v9121
  %v9232 = vunpack.c.h.b16 %v9121
  %v9233 = vunpack.c.l.b16 %v9122
  %v9234 = vunpack.c.h.b16 %v9122
  %v9235 = vpack.c.b16 %v9230, %v9225
  %v9236 = vpack.c.b16 %v9231, %v9226
  %v9237 = vpack.c.b16 %v9232, %v9227
  %v9238 = vpack.c.b16 %v9233, %v9228
  %v9239 = vpack.c.b16 %v9234, %v9229
  %v9251 = vunpack.c.l.b16 %v9048
  %v9252 = vunpack.c.h.b16 %v9048
  %v9253 = vunpack.c.l.b16 %v9049
  %v9254 = vunpack.c.h.b16 %v9049
  %v9255 = vunpack.c.l.b16 %v9050
  %v9256 = vunpack.c.l.b16 %v9127
  %v9257 = vunpack.c.h.b16 %v9127
  %v9258 = vunpack.c.l.b16 %v9128
  %v9259 = vunpack.c.h.b16 %v9128
  %v9260 = vunpack.c.l.b16 %v9129
  %v9261 = vpack.c.b16 %v9256, %v9251
  %v9262 = vpack.c.b16 %v9257, %v9252
  %v9263 = vpack.c.b16 %v9258, %v9253
  %v9264 = vpack.c.b16 %v9259, %v9254
  %v9265 = vpack.c.b16 %v9260, %v9255
  %v9277 = vunpack.c.h.b16 %v9054
  %v9278 = vunpack.c.l.b16 %v9055
  %v9279 = vunpack.c.h.b16 %v9055
  %v9280 = vunpack.c.l.b16 %v9056
  %v9281 = vunpack.c.h.b16 %v9056
  %v9282 = vunpack.c.h.b16 %v9133
  %v9283 = vunpack.c.l.b16 %v9134
  %v9284 = vunpack.c.h.b16 %v9134
  %v9285 = vunpack.c.l.b16 %v9135
  %v9286 = vunpack.c.h.b16 %v9135
  %v9287 = vpack.c.b16 %v9282, %v9277
  %v9288 = vpack.c.b16 %v9283, %v9278
  %v9289 = vpack.c.b16 %v9284, %v9279
  %v9290 = vpack.c.b16 %v9285, %v9280
  %v9291 = vpack.c.b16 %v9286, %v9281
  %v9303 = vunpack.c.l.b16 %v9061
  %v9304 = vunpack.c.h.b16 %v9061
  %v9305 = vunpack.c.l.b16 %v9062
  %v9306 = vunpack.c.h.b16 %v9062
  %v9307 = vunpack.c.l.b16 %v9063
  %v9308 = vunpack.c.l.b16 %v9140
  %v9309 = vunpack.c.h.b16 %v9140
  %v9310 = vunpack.c.l.b16 %v9141
  %v9311 = vunpack.c.h.b16 %v9141
  %v9312 = vunpack.c.l.b16 %v9142
  %v9313 = vpack.c.b16 %v9308, %v9303
  %v9314 = vpack.c.b16 %v9309, %v9304
  %v9315 = vpack.c.b16 %v9310, %v9305
  %v9316 = vpack.c.b16 %v9311, %v9306
  %v9317 = vpack.c.b16 %v9312, %v9307
  %v9329 = vunpack.c.h.b16 %v9038
  %v9330 = vunpack.c.l.b16 %v9039
  %v9331 = vunpack.c.h.b16 %v9039
  %v9332 = vunpack.c.l.b16 %v9040
  %v9333 = vunpack.c.h.b16 %v9040
  %v9334 = vunpack.c.h.b16 %v9117
  %v9335 = vunpack.c.l.b16 %v9118
  %v9336 = vunpack.c.h.b16 %v9118
  %v9337 = vunpack.c.l.b16 %v9119
  %v9338 = vunpack.c.h.b16 %v9119
  %v9339 = vpack.c.b16 %v9334, %v9329
  %v9340 = vpack.c.b16 %v9335, %v9330
  %v9341 = vpack.c.b16 %v9336, %v9331
  %v9342 = vpack.c.b16 %v9337, %v9332
  %v9343 = vpack.c.b16 %v9338, %v9333
  %v9355 = vunpack.c.l.b16 %v9045
  %v9356 = vunpack.c.h.b16 %v9045
  %v9357 = vunpack.c.l.b16 %v9046
  %v9358 = vunpack.c.h.b16 %v9046
  %v9359 = vunpack.c.l.b16 %v9047
  %v9360 = vunpack.c.l.b16 %v9124
  %v9361 = vunpack.c.h.b16 %v9124
  %v9362 = vunpack.c.l.b16 %v9125
  %v9363 = vunpack.c.h.b16 %v9125
  %v9364 = vunpack.c.l.b16 %v9126
  %v9365 = vpack.c.b16 %v9360, %v9355
  %v9366 = vpack.c.b16 %v9361, %v9356
  %v9367 = vpack.c.b16 %v9362, %v9357
  %v9368 = vpack.c.b16 %v9363, %v9358
  %v9369 = vpack.c.b16 %v9364, %v9359
  %v9381 = vunpack.c.h.b16 %v9051
  %v9382 = vunpack.c.l.b16 %v9052
  %v9383 = vunpack.c.h.b16 %v9052
  %v9384 = vunpack.c.l.b16 %v9053
  %v9385 = vunpack.c.h.b16 %v9053
  %v9386 = vunpack.c.h.b16 %v9130
  %v9387 = vunpack.c.l.b16 %v9131
  %v9388 = vunpack.c.h.b16 %v9131
  %v9389 = vunpack.c.l.b16 %v9132
  %v9390 = vunpack.c.h.b16 %v9132
  %v9391 = vpack.c.b16 %v9386, %v9381
  %v9392 = vpack.c.b16 %v9387, %v9382
  %v9393 = vpack.c.b16 %v9388, %v9383
  %v9394 = vpack.c.b16 %v9389, %v9384
  %v9395 = vpack.c.b16 %v9390, %v9385
  %v9407 = vunpack.c.l.b16 %v9058
  %v9408 = vunpack.c.h.b16 %v9058
  %v9409 = vunpack.c.l.b16 %v9059
  %v9410 = vunpack.c.h.b16 %v9059
  %v9411 = vunpack.c.l.b16 %v9060
  %v9412 = vunpack.c.l.b16 %v9137
  %v9413 = vunpack.c.h.b16 %v9137
  %v9414 = vunpack.c.l.b16 %v9138
  %v9415 = vunpack.c.h.b16 %v9138
  %v9416 = vunpack.c.l.b16 %v9139
  %v9417 = vpack.c.b16 %v9412, %v9407
  %v9418 = vpack.c.b16 %v9413, %v9408
  %v9419 = vpack.c.b16 %v9414, %v9409
  %v9420 = vpack.c.b16 %v9415, %v9410
  %v9421 = vpack.c.b16 %v9416, %v9411
  %v9433 = vunpack.c.h.b16 %v9064
  %v9434 = vunpack.c.l.b16 %v9065
  %v9435 = vunpack.c.h.b16 %v9065
  %v9436 = vunpack.c.l.b16 %v9066
  %v9437 = vunpack.c.h.b16 %v9066
  %v9438 = vunpack.c.h.b16 %v9143
  %v9439 = vunpack.c.l.b16 %v9144
  %v9440 = vunpack.c.h.b16 %v9144
  %v9441 = vunpack.c.l.b16 %v9145
  %v9442 = vunpack.c.h.b16 %v9145
  %v9443 = vpack.c.b16 %v9438, %v9433
  %v9444 = vpack.c.b16 %v9439, %v9434
  %v9445 = vpack.c.b16 %v9440, %v9435
  %v9446 = vpack.c.b16 %v9441, %v9436
  %v9447 = vpack.c.b16 %v9442, %v9437
  %v9453 = vunpack.c.h.b16 %v9037
  %v9454 = vunpack.c.h.b16 %v9116
  %v9455 = vpack.c.b16 %v9454, %v9453
  %v9459 = vunpack.c.l.b16 %v9044
  %v9460 = vunpack.c.l.b16 %v9123
  %v9461 = vpack.c.b16 %v9460, %v9459
  %v9463 = vunpack.c.h.b16 %v9050
  %v9464 = vunpack.c.h.b16 %v9129
  %v9465 = vpack.c.b16 %v9464, %v9463
  %v9469 = vunpack.c.l.b16 %v9057
  %v9470 = vunpack.c.l.b16 %v9136
  %v9471 = vpack.c.b16 %v9470, %v9469
  %v9473 = vunpack.c.h.b16 %v9063
  %v9474 = vunpack.c.h.b16 %v9142
  %v9475 = vpack.c.b16 %v9474, %v9473
  %v9477 = vunpack.c.l.b16 %v9041
  %v9478 = vunpack.c.l.b16 %v9120
  %v9479 = vpack.c.b16 %v9478, %v9477
  %v9481 = vunpack.c.h.b16 %v9047
  %v9482 = vunpack.c.h.b16 %v9126
  %v9483 = vpack.c.b16 %v9482, %v9481
  %v9485 = vunpack.c.l.b16 %v9054
  %v9486 = vunpack.c.l.b16 %v9133
  %v9487 = vpack.c.b16 %v9486, %v9485
  %v9489 = vunpack.c.h.b16 %v9060
  %v9490 = vunpack.c.h.b16 %v9139
  %v9491 = vpack.c.b16 %v9490, %v9489
  %v9495 = vunpack.c.l.b16 %v9067
  %v9496 = vunpack.c.l.b16 %v9146
  %v9497 = vpack.c.b16 %v9496, %v9495
  %v9505 = vunpack.c.h.b16 %v9074
  %v9506 = vunpack.c.l.b16 %v9075
  %v9507 = vunpack.c.h.b16 %v9075
  %v9508 = vunpack.c.l.b16 %v9076
  %v9509 = vunpack.c.h.b16 %v9076
  %v9510 = vunpack.c.h.b16 %v9153
  %v9511 = vunpack.c.l.b16 %v9154
  %v9512 = vunpack.c.h.b16 %v9154
  %v9513 = vunpack.c.l.b16 %v9155
  %v9514 = vunpack.c.h.b16 %v9155
  %v9515 = vpack.c.b16 %v9510, %v9505
  %v9516 = vpack.c.b16 %v9511, %v9506
  %v9517 = vpack.c.b16 %v9512, %v9507
  %v9518 = vpack.c.b16 %v9513, %v9508
  %v9519 = vpack.c.b16 %v9514, %v9509
  %v9531 = vunpack.c.l.b16 %v9081
  %v9532 = vunpack.c.h.b16 %v9081
  %v9533 = vunpack.c.l.b16 %v9082
  %v9534 = vunpack.c.h.b16 %v9082
  %v9535 = vunpack.c.l.b16 %v9083
  %v9536 = vunpack.c.l.b16 %v9160
  %v9537 = vunpack.c.h.b16 %v9160
  %v9538 = vunpack.c.l.b16 %v9161
  %v9539 = vunpack.c.h.b16 %v9161
  %v9540 = vunpack.c.l.b16 %v9162
  %v9541 = vpack.c.b16 %v9536, %v9531
  %v9542 = vpack.c.b16 %v9537, %v9532
  %v9543 = vpack.c.b16 %v9538, %v9533
  %v9544 = vpack.c.b16 %v9539, %v9534
  %v9545 = vpack.c.b16 %v9540, %v9535
  %v9557 = vunpack.c.h.b16 %v9087
  %v9558 = vunpack.c.l.b16 %v9088
  %v9559 = vunpack.c.h.b16 %v9088
  %v9560 = vunpack.c.l.b16 %v9089
  %v9561 = vunpack.c.h.b16 %v9089
  %v9562 = vunpack.c.h.b16 %v9166
  %v9563 = vunpack.c.l.b16 %v9167
  %v9564 = vunpack.c.h.b16 %v9167
  %v9565 = vunpack.c.l.b16 %v9168
  %v9566 = vunpack.c.h.b16 %v9168
  %v9567 = vpack.c.b16 %v9562, %v9557
  %v9568 = vpack.c.b16 %v9563, %v9558
  %v9569 = vpack.c.b16 %v9564, %v9559
  %v9570 = vpack.c.b16 %v9565, %v9560
  %v9571 = vpack.c.b16 %v9566, %v9561
  %v9583 = vunpack.c.l.b16 %v9094
  %v9584 = vunpack.c.h.b16 %v9094
  %v9585 = vunpack.c.l.b16 %v9095
  %v9586 = vunpack.c.h.b16 %v9095
  %v9587 = vunpack.c.l.b16 %v9096
  %v9588 = vunpack.c.l.b16 %v9173
  %v9589 = vunpack.c.h.b16 %v9173
  %v9590 = vunpack.c.l.b16 %v9174
  %v9591 = vunpack.c.h.b16 %v9174
  %v9592 = vunpack.c.l.b16 %v9175
  %v9593 = vpack.c.b16 %v9588, %v9583
  %v9594 = vpack.c.b16 %v9589, %v9584
  %v9595 = vpack.c.b16 %v9590, %v9585
  %v9596 = vpack.c.b16 %v9591, %v9586
  %v9597 = vpack.c.b16 %v9592, %v9587
  %v9609 = vunpack.c.h.b16 %v9100
  %v9610 = vunpack.c.l.b16 %v9101
  %v9611 = vunpack.c.h.b16 %v9101
  %v9612 = vunpack.c.l.b16 %v9102
  %v9613 = vunpack.c.h.b16 %v9102
  %v9614 = vunpack.c.h.b16 %v9179
  %v9615 = vunpack.c.l.b16 %v9180
  %v9616 = vunpack.c.h.b16 %v9180
  %v9617 = vunpack.c.l.b16 %v9181
  %v9618 = vunpack.c.h.b16 %v9181
  %v9619 = vpack.c.b16 %v9614, %v9609
  %v9620 = vpack.c.b16 %v9615, %v9610
  %v9621 = vpack.c.b16 %v9616, %v9611
  %v9622 = vpack.c.b16 %v9617, %v9612
  %v9623 = vpack.c.b16 %v9618, %v9613
  %v9635 = vunpack.c.l.b16 %v9078
  %v9636 = vunpack.c.h.b16 %v9078
  %v9637 = vunpack.c.l.b16 %v9079
  %v9638 = vunpack.c.h.b16 %v9079
  %v9639 = vunpack.c.l.b16 %v9080
  %v9640 = vunpack.c.l.b16 %v9157
  %v9641 = vunpack.c.h.b16 %v9157
  %v9642 = vunpack.c.l.b16 %v9158
  %v9643 = vunpack.c.h.b16 %v9158
  %v9644 = vunpack.c.l.b16 %v9159
  %v9645 = vpack.c.b16 %v9640, %v9635
  %v9646 = vpack.c.b16 %v9641, %v9636
  %v9647 = vpack.c.b16 %v9642, %v9637
  %v9648 = vpack.c.b16 %v9643, %v9638
  %v9649 = vpack.c.b16 %v9644, %v9639
  %v9661 = vunpack.c.h.b16 %v9084
  %v9662 = vunpack.c.l.b16 %v9085
  %v9663 = vunpack.c.h.b16 %v9085
  %v9664 = vunpack.c.l.b16 %v9086
  %v9665 = vunpack.c.h.b16 %v9086
  %v9666 = vunpack.c.h.b16 %v9163
  %v9667 = vunpack.c.l.b16 %v9164
  %v9668 = vunpack.c.h.b16 %v9164
  %v9669 = vunpack.c.l.b16 %v9165
  %v9670 = vunpack.c.h.b16 %v9165
  %v9671 = vpack.c.b16 %v9666, %v9661
  %v9672 = vpack.c.b16 %v9667, %v9662
  %v9673 = vpack.c.b16 %v9668, %v9663
  %v9674 = vpack.c.b16 %v9669, %v9664
  %v9675 = vpack.c.b16 %v9670, %v9665
  %v9687 = vunpack.c.l.b16 %v9091
  %v9688 = vunpack.c.h.b16 %v9091
  %v9689 = vunpack.c.l.b16 %v9092
  %v9690 = vunpack.c.h.b16 %v9092
  %v9691 = vunpack.c.l.b16 %v9093
  %v9692 = vunpack.c.l.b16 %v9170
  %v9693 = vunpack.c.h.b16 %v9170
  %v9694 = vunpack.c.l.b16 %v9171
  %v9695 = vunpack.c.h.b16 %v9171
  %v9696 = vunpack.c.l.b16 %v9172
  %v9697 = vpack.c.b16 %v9692, %v9687
  %v9698 = vpack.c.b16 %v9693, %v9688
  %v9699 = vpack.c.b16 %v9694, %v9689
  %v9700 = vpack.c.b16 %v9695, %v9690
  %v9701 = vpack.c.b16 %v9696, %v9691
  %v9713 = vunpack.c.h.b16 %v9097
  %v9714 = vunpack.c.l.b16 %v9098
  %v9715 = vunpack.c.h.b16 %v9098
  %v9716 = vunpack.c.l.b16 %v9099
  %v9717 = vunpack.c.h.b16 %v9099
  %v9718 = vunpack.c.h.b16 %v9176
  %v9719 = vunpack.c.l.b16 %v9177
  %v9720 = vunpack.c.h.b16 %v9177
  %v9721 = vunpack.c.l.b16 %v9178
  %v9722 = vunpack.c.h.b16 %v9178
  %v9723 = vpack.c.b16 %v9718, %v9713
  %v9724 = vpack.c.b16 %v9719, %v9714
  %v9725 = vpack.c.b16 %v9720, %v9715
  %v9726 = vpack.c.b16 %v9721, %v9716
  %v9727 = vpack.c.b16 %v9722, %v9717
  %v9739 = vunpack.c.l.b16 %v9104
  %v9740 = vunpack.c.h.b16 %v9104
  %v9741 = vunpack.c.l.b16 %v9105
  %v9742 = vunpack.c.h.b16 %v9105
  %v9743 = vunpack.c.l.b16 %v9106
  %v9744 = vunpack.c.l.b16 %v9183
  %v9745 = vunpack.c.h.b16 %v9183
  %v9746 = vunpack.c.l.b16 %v9184
  %v9747 = vunpack.c.h.b16 %v9184
  %v9748 = vunpack.c.l.b16 %v9185
  %v9749 = vpack.c.b16 %v9744, %v9739
  %v9750 = vpack.c.b16 %v9745, %v9740
  %v9751 = vpack.c.b16 %v9746, %v9741
  %v9752 = vpack.c.b16 %v9747, %v9742
  %v9753 = vpack.c.b16 %v9748, %v9743
  %v9761 = vunpack.c.l.b16 %v9077
  %v9762 = vunpack.c.l.b16 %v9156
  %v9763 = vpack.c.b16 %v9762, %v9761
  %v9765 = vunpack.c.h.b16 %v9083
  %v9766 = vunpack.c.h.b16 %v9162
  %v9767 = vpack.c.b16 %v9766, %v9765
  %v9771 = vunpack.c.l.b16 %v9090
  %v9772 = vunpack.c.l.b16 %v9169
  %v9773 = vpack.c.b16 %v9772, %v9771
  %v9775 = vunpack.c.h.b16 %v9096
  %v9776 = vunpack.c.h.b16 %v9175
  %v9777 = vpack.c.b16 %v9776, %v9775
  %v9781 = vunpack.c.l.b16 %v9103
  %v9782 = vunpack.c.l.b16 %v9182
  %v9783 = vpack.c.b16 %v9782, %v9781
  %v9785 = vunpack.c.h.b16 %v9080
  %v9786 = vunpack.c.h.b16 %v9159
  %v9787 = vpack.c.b16 %v9786, %v9785
  %v9789 = vunpack.c.l.b16 %v9087
  %v9790 = vunpack.c.l.b16 %v9166
  %v9791 = vpack.c.b16 %v9790, %v9789
  %v9793 = vunpack.c.h.b16 %v9093
  %v9794 = vunpack.c.h.b16 %v9172
  %v9795 = vpack.c.b16 %v9794, %v9793
  %v9797 = vunpack.c.l.b16 %v9100
  %v9798 = vunpack.c.l.b16 %v9179
  %v9799 = vpack.c.b16 %v9798, %v9797
  %v9801 = vunpack.c.h.b16 %v9106
  %v9802 = vunpack.c.h.b16 %v9185
  %v9803 = vpack.c.b16 %v9802, %v9801
  %v9809 = vunpack.c.h.b16 %v9067
  %v9810 = vunpack.c.l.b16 %v9068
  %v9811 = vunpack.c.h.b16 %v9068
  %v9812 = vunpack.c.l.b16 %v9069
  %v9813 = vunpack.c.h.b16 %v9069
  %v9814 = vunpack.c.h.b16 %v9146
  %v9815 = vunpack.c.l.b16 %v9147
  %v9816 = vunpack.c.h.b16 %v9147
  %v9817 = vunpack.c.l.b16 %v9148
  %v9818 = vunpack.c.h.b16 %v9148
  %v9819 = vpack.c.b16 %v9814, %v9809
  %v9820 = vpack.c.b16 %v9815, %v9810
  %v9821 = vpack.c.b16 %v9816, %v9811
  %v9822 = vpack.c.b16 %v9817, %v9812
  %v9823 = vpack.c.b16 %v9818, %v9813
  %v9835 = vunpack.c.l.b16 %v9071
  %v9836 = vunpack.c.h.b16 %v9071
  %v9837 = vunpack.c.l.b16 %v9072
  %v9838 = vunpack.c.h.b16 %v9072
  %v9839 = vunpack.c.l.b16 %v9073
  %v9840 = vunpack.c.l.b16 %v9150
  %v9841 = vunpack.c.h.b16 %v9150
  %v9842 = vunpack.c.l.b16 %v9151
  %v9843 = vunpack.c.h.b16 %v9151
  %v9844 = vunpack.c.l.b16 %v9152
  %v9845 = vpack.c.b16 %v9840, %v9835
  %v9846 = vpack.c.b16 %v9841, %v9836
  %v9847 = vpack.c.b16 %v9842, %v9837
  %v9848 = vpack.c.b16 %v9843, %v9838
  %v9849 = vpack.c.b16 %v9844, %v9839
  %v9857 = vunpack.c.l.b16 %v9070
  %v9858 = vunpack.c.l.b16 %v9149
  %v9859 = vpack.c.b16 %v9858, %v9857
  %v9861 = vunpack.c.h.b16 %v9073
  %v9862 = vunpack.c.h.b16 %v9152
  %v9863 = vpack.c.b16 %v9862, %v9861
  %v9871 = vunpack.c.l.b16 %v9107
  %v9872 = vunpack.c.h.b16 %v9107
  %v9873 = vunpack.c.l.b16 %v9108
  %v9874 = vunpack.c.h.b16 %v9108
  %v9875 = vunpack.c.l.b16 %v9109
  %v9876 = vunpack.c.l.b16 %v9186
  %v9877 = vunpack.c.h.b16 %v9186
  %v9878 = vunpack.c.l.b16 %v9187
  %v9879 = vunpack.c.h.b16 %v9187
  %v9880 = vunpack.c.l.b16 %v9188
  %v9881 = vpack.c.b16 %v9876, %v9871
  %v9882 = vpack.c.b16 %v9877, %v9872
  %v9883 = vpack.c.b16 %v9878, %v9873
  %v9884 = vpack.c.b16 %v9879, %v9874
  %v9885 = vpack.c.b16 %v9880, %v9875
  %v9897 = vunpack.c.h.b16 %v9110
  %v9898 = vunpack.c.l.b16 %v9111
  %v9899 = vunpack.c.h.b16 %v9111
  %v9900 = vunpack.c.l.b16 %v9112
  %v9901 = vunpack.c.h.b16 %v9112
  %v9902 = vunpack.c.h.b16 %v9189
  %v9903 = vunpack.c.l.b16 %v9190
  %v9904 = vunpack.c.h.b16 %v9190
  %v9905 = vunpack.c.l.b16 %v9191
  %v9906 = vunpack.c.h.b16 %v9191
  %v9907 = vpack.c.b16 %v9902, %v9897
  %v9908 = vpack.c.b16 %v9903, %v9898
  %v9909 = vpack.c.b16 %v9904, %v9899
  %v9910 = vpack.c.b16 %v9905, %v9900
  %v9911 = vpack.c.b16 %v9906, %v9901
  %v9917 = vunpack.c.h.b16 %v9109
  %v9918 = vunpack.c.h.b16 %v9188
  %v9919 = vpack.c.b16 %v9918, %v9917
  %v9923 = vunpack.c.l.b16 %v9113
  %v9924 = vunpack.c.l.b16 %v9192
  %v9925 = vpack.c.b16 %v9924, %v9923
  %v9927 = vld [vmem:[%s3] sm:$0xff]
  %v9928 = vld [vmem:[%s3 + $0x8] sm:$0xff]
  %v9929 = vld [vmem:[%s3 + $0x10] sm:$0xff]
  %v9930 = vld [vmem:[%s3 + $0x18] sm:$0xff]
  %v9931 = vld [vmem:[%s3 + $0x20] sm:$0xff]
  %v9932 = vld [vmem:[%s3 + $0x28] sm:$0xff]
  %v9933 = vld [vmem:[%s3 + $0x30] sm:$0xff]
  %v9934 = vld [vmem:[%s3 + $0x38] sm:$0xff]
  %v9935 = vld [vmem:[%s3 + $0x40] sm:$0xff]
  %v9936 = vld [vmem:[%s3 + $0x48] sm:$0xff]
  %v9937 = vld [vmem:[%s3 + $0x50] sm:$0xff]
  %v9938 = vld [vmem:[%s3 + $0x58] sm:$0xff]
  %v9951 = vunpack.c.l.b16 %v9927
  %v9952 = vunpack.c.h.b16 %v9927
  %v9953 = vunpack.c.l.b16 %v9928
  %v9954 = vunpack.c.h.b16 %v9928
  %v9955 = vunpack.c.l.b16 %v9929
  %v9956 = vunpack.c.h.b16 %v9929
  %v9957 = vunpack.c.l.b16 %v9930
  %v9958 = vunpack.c.h.b16 %v9930
  %v9959 = vunpack.c.l.b16 %v9931
  %v9960 = vunpack.c.h.b16 %v9931
  %v9961 = vunpack.c.l.b16 %v9932
  %v9962 = vunpack.c.h.b16 %v9932
  %v9963 = vunpack.c.l.b16 %v9933
  %v9964 = vunpack.c.h.b16 %v9933
  %v9965 = vunpack.c.l.b16 %v9934
  %v9966 = vunpack.c.h.b16 %v9934
  %v9967 = vunpack.c.l.b16 %v9935
  %v9968 = vunpack.c.h.b16 %v9935
  %v9969 = vunpack.c.l.b16 %v9936
  %v9970 = vunpack.c.h.b16 %v9936
  %v9971 = vunpack.c.l.b16 %v9937
  %v9972 = vunpack.c.h.b16 %v9937
  %v9973 = vunpack.c.l.b16 %v9938
  %v9974 = vunpack.c.h.b16 %v9938
  %v9975 = vpack.c.b16 %v9953, %v9951
  %v9976 = vpack.c.b16 %v9954, %v9952
  %v9977 = vpack.c.b16 %v9957, %v9955
  %v9978 = vpack.c.b16 %v9958, %v9956
  %v9979 = vpack.c.b16 %v9961, %v9959
  %v9980 = vpack.c.b16 %v9962, %v9960
  %v9981 = vpack.c.b16 %v9965, %v9963
  %v9982 = vpack.c.b16 %v9966, %v9964
  %v9983 = vpack.c.b16 %v9969, %v9967
  %v9984 = vpack.c.b16 %v9970, %v9968
  %v9985 = vpack.c.b16 %v9973, %v9971
  %v9986 = vpack.c.b16 %v9974, %v9972
  %9999 = vmatpush.bf16.msra.mxu0 %v9646
  %10000 = vmatpush.bf16.msra.mxu0 %v9516
  %10001 = vmatpush.bf16.msra.mxu0 %v9645
  %10002 = vmatpush.bf16.msra.mxu0 %v9515
  %10003 = vmatpush.bf16.msra.mxu0 %v9340
  %10004 = vmatpush.bf16.msra.mxu0 %v9210
  %10005 = vmatpush.bf16.msra.mxu0 %v9339
  %10006 = vmatpush.bf16.msra.mxu0 %v9209
  %10007 = vmatmul.bf16.gmra.mxu0 %v9975
  %v10008 = vpop.f32.mrf.mxu0
  %v10009 = vadd.f32 0.0, %v10008
  %v10010 = vpop.f32.mrf.mxu0
  %v10011 = vadd.f32 0.0, %v10010
  %10012 = vmatmul.bf16.gmra.mxu0 %v9977
  %v10013 = vpop.f32.mrf.mxu0
  %v10014 = vadd.f32 0.0, %v10013
  %v10015 = vpop.f32.mrf.mxu0
  %v10016 = vadd.f32 0.0, %v10015
  %10017 = vmatmul.bf16.gmra.mxu0 %v9979
  %v10018 = vpop.f32.mrf.mxu0
  %v10019 = vadd.f32 0.0, %v10018
  %v10020 = vpop.f32.mrf.mxu0
  %v10021 = vadd.f32 0.0, %v10020
  %10022 = vmatmul.bf16.gmra.mxu0 %v9981
  %v10023 = vpop.f32.mrf.mxu0
  %v10024 = vadd.f32 0.0, %v10023
  %v10025 = vpop.f32.mrf.mxu0
  %v10026 = vadd.f32 0.0, %v10025
  %10027 = vmatmul.bf16.gmra.mxu0 %v9983
  %v10028 = vpop.f32.mrf.mxu0
  %v10029 = vadd.f32 0.0, %v10028
  %v10030 = vpop.f32.mrf.mxu0
  %v10031 = vadd.f32 0.0, %v10030
  %10032 = vmatmul.bf16.gmra.mxu0 %v9985
  %v10033 = vpop.f32.mrf.mxu0
  %v10034 = vadd.f32 0.0, %v10033
  %v10035 = vpop.f32.mrf.mxu0
  %v10036 = vadd.f32 0.0, %v10035
  %10037 = vdwg.mxu0
  %10038 = vmatpush.bf16.msra.mxu0 %v9672
  %10039 = vmatpush.bf16.msra.mxu0 %v9542
  %10040 = vmatpush.bf16.msra.mxu0 %v9671
  %10041 = vmatpush.bf16.msra.mxu0 %v9541
  %10042 = vmatpush.bf16.msra.mxu0 %v9366
  %10043 = vmatpush.bf16.msra.mxu0 %v9236
  %10044 = vmatpush.bf16.msra.mxu0 %v9365
  %10045 = vmatpush.bf16.msra.mxu0 %v9235
  %10046 = vmatmul.bf16.gmra.mxu0 %v9976
  %v10047 = vpop.f32.mrf.mxu0
  %v10048 = vadd.f32 %v10009, %v10047
  %v10049 = vpop.f32.mrf.mxu0
  %v10050 = vadd.f32 %v10011, %v10049
  %10051 = vmatmul.bf16.gmra.mxu0 %v9978
  %v10052 = vpop.f32.mrf.mxu0
  %v10053 = vadd.f32 %v10014, %v10052
  %v10054 = vpop.f32.mrf.mxu0
  %v10055 = vadd.f32 %v10016, %v10054
  %10056 = vmatmul.bf16.gmra.mxu0 %v9980
  %v10057 = vpop.f32.mrf.mxu0
  %v10058 = vadd.f32 %v10019, %v10057
  %v10059 = vpop.f32.mrf.mxu0
  %v10060 = vadd.f32 %v10021, %v10059
  %10061 = vmatmul.bf16.gmra.mxu0 %v9982
  %v10062 = vpop.f32.mrf.mxu0
  %v10063 = vadd.f32 %v10024, %v10062
  %v10064 = vpop.f32.mrf.mxu0
  %v10065 = vadd.f32 %v10026, %v10064
  %10066 = vmatmul.bf16.gmra.mxu0 %v9984
  %v10067 = vpop.f32.mrf.mxu0
  %v10068 = vadd.f32 %v10029, %v10067
  %v10069 = vpop.f32.mrf.mxu0
  %v10070 = vadd.f32 %v10031, %v10069
  %10071 = vmatmul.bf16.gmra.mxu0 %v9986
  %v10072 = vpop.f32.mrf.mxu0
  %v10073 = vadd.f32 %v10034, %v10072
  %v10074 = vpop.f32.mrf.mxu0
  %v10075 = vadd.f32 %v10036, %v10074
  %10076 = vdwg.mxu0
  %10077 = vmatpush.bf16.msra.mxu0 %v9647
  %10078 = vmatpush.bf16.msra.mxu0 %v9517
  %10079 = vmatpush.bf16.msra.mxu0 %v9646
  %10080 = vmatpush.bf16.msra.mxu0 %v9516
  %10081 = vmatpush.bf16.msra.mxu0 %v9341
  %10082 = vmatpush.bf16.msra.mxu0 %v9211
  %10083 = vmatpush.bf16.msra.mxu0 %v9340
  %10084 = vmatpush.bf16.msra.mxu0 %v9210
  %10085 = vmatmul.bf16.gmra.mxu0 %v9975
  %v10086 = vpop.f32.mrf.mxu0
  %v10087 = vadd.f32 0.0, %v10086
  %v10088 = vpop.f32.mrf.mxu0
  %v10089 = vadd.f32 0.0, %v10088
  %10090 = vmatmul.bf16.gmra.mxu0 %v9977
  %v10091 = vpop.f32.mrf.mxu0
  %v10092 = vadd.f32 0.0, %v10091
  %v10093 = vpop.f32.mrf.mxu0
  %v10094 = vadd.f32 0.0, %v10093
  %10095 = vmatmul.bf16.gmra.mxu0 %v9979
  %v10096 = vpop.f32.mrf.mxu0
  %v10097 = vadd.f32 0.0, %v10096
  %v10098 = vpop.f32.mrf.mxu0
  %v10099 = vadd.f32 0.0, %v10098
  %10100 = vmatmul.bf16.gmra.mxu0 %v9981
  %v10101 = vpop.f32.mrf.mxu0
  %v10102 = vadd.f32 0.0, %v10101
  %v10103 = vpop.f32.mrf.mxu0
  %v10104 = vadd.f32 0.0, %v10103
  %10105 = vmatmul.bf16.gmra.mxu0 %v9983
  %v10106 = vpop.f32.mrf.mxu0
  %v10107 = vadd.f32 0.0, %v10106
  %v10108 = vpop.f32.mrf.mxu0
  %v10109 = vadd.f32 0.0, %v10108
  %10110 = vmatmul.bf16.gmra.mxu0 %v9985
  %v10111 = vpop.f32.mrf.mxu0
  %v10112 = vadd.f32 0.0, %v10111
  %v10113 = vpop.f32.mrf.mxu0
  %v10114 = vadd.f32 0.0, %v10113
  %10115 = vdwg.mxu0
  %10116 = vmatpush.bf16.msra.mxu0 %v9673
  %10117 = vmatpush.bf16.msra.mxu0 %v9543
  %10118 = vmatpush.bf16.msra.mxu0 %v9672
  %10119 = vmatpush.bf16.msra.mxu0 %v9542
  %10120 = vmatpush.bf16.msra.mxu0 %v9367
  %10121 = vmatpush.bf16.msra.mxu0 %v9237
  %10122 = vmatpush.bf16.msra.mxu0 %v9366
  %10123 = vmatpush.bf16.msra.mxu0 %v9236
  %10124 = vmatmul.bf16.gmra.mxu0 %v9976
  %v10125 = vpop.f32.mrf.mxu0
  %v10126 = vadd.f32 %v10087, %v10125
  %v10127 = vpop.f32.mrf.mxu0
  %v10128 = vadd.f32 %v10089, %v10127
  %10129 = vmatmul.bf16.gmra.mxu0 %v9978
  %v10130 = vpop.f32.mrf.mxu0
  %v10131 = vadd.f32 %v10092, %v10130
  %v10132 = vpop.f32.mrf.mxu0
  %v10133 = vadd.f32 %v10094, %v10132
  %10134 = vmatmul.bf16.gmra.mxu0 %v9980
  %v10135 = vpop.f32.mrf.mxu0
  %v10136 = vadd.f32 %v10097, %v10135
  %v10137 = vpop.f32.mrf.mxu0
  %v10138 = vadd.f32 %v10099, %v10137
  %10139 = vmatmul.bf16.gmra.mxu0 %v9982
  %v10140 = vpop.f32.mrf.mxu0
  %v10141 = vadd.f32 %v10102, %v10140
  %v10142 = vpop.f32.mrf.mxu0
  %v10143 = vadd.f32 %v10104, %v10142
  %10144 = vmatmul.bf16.gmra.mxu0 %v9984
  %v10145 = vpop.f32.mrf.mxu0
  %v10146 = vadd.f32 %v10107, %v10145
  %v10147 = vpop.f32.mrf.mxu0
  %v10148 = vadd.f32 %v10109, %v10147
  %10149 = vmatmul.bf16.gmra.mxu0 %v9986
  %v10150 = vpop.f32.mrf.mxu0
  %v10151 = vadd.f32 %v10112, %v10150
  %v10152 = vpop.f32.mrf.mxu0
  %v10153 = vadd.f32 %v10114, %v10152
  %10154 = vdwg.mxu0
  %10155 = vmatpush.bf16.msra.mxu0 %v9648
  %10156 = vmatpush.bf16.msra.mxu0 %v9518
  %10157 = vmatpush.bf16.msra.mxu0 %v9647
  %10158 = vmatpush.bf16.msra.mxu0 %v9517
  %10159 = vmatpush.bf16.msra.mxu0 %v9342
  %10160 = vmatpush.bf16.msra.mxu0 %v9212
  %10161 = vmatpush.bf16.msra.mxu0 %v9341
  %10162 = vmatpush.bf16.msra.mxu0 %v9211
  %10163 = vmatmul.bf16.gmra.mxu0 %v9975
  %v10164 = vpop.f32.mrf.mxu0
  %v10165 = vadd.f32 0.0, %v10164
  %v10166 = vpop.f32.mrf.mxu0
  %v10167 = vadd.f32 0.0, %v10166
  %10168 = vmatmul.bf16.gmra.mxu0 %v9977
  %v10169 = vpop.f32.mrf.mxu0
  %v10170 = vadd.f32 0.0, %v10169
  %v10171 = vpop.f32.mrf.mxu0
  %v10172 = vadd.f32 0.0, %v10171
  %10173 = vmatmul.bf16.gmra.mxu0 %v9979
  %v10174 = vpop.f32.mrf.mxu0
  %v10175 = vadd.f32 0.0, %v10174
  %v10176 = vpop.f32.mrf.mxu0
  %v10177 = vadd.f32 0.0, %v10176
  %10178 = vmatmul.bf16.gmra.mxu0 %v9981
  %v10179 = vpop.f32.mrf.mxu0
  %v10180 = vadd.f32 0.0, %v10179
  %v10181 = vpop.f32.mrf.mxu0
  %v10182 = vadd.f32 0.0, %v10181
  %10183 = vmatmul.bf16.gmra.mxu0 %v9983
  %v10184 = vpop.f32.mrf.mxu0
  %v10185 = vadd.f32 0.0, %v10184
  %v10186 = vpop.f32.mrf.mxu0
  %v10187 = vadd.f32 0.0, %v10186
  %10188 = vmatmul.bf16.gmra.mxu0 %v9985
  %v10189 = vpop.f32.mrf.mxu0
  %v10190 = vadd.f32 0.0, %v10189
  %v10191 = vpop.f32.mrf.mxu0
  %v10192 = vadd.f32 0.0, %v10191
  %10193 = vdwg.mxu0
  %10194 = vmatpush.bf16.msra.mxu0 %v9674
  %10195 = vmatpush.bf16.msra.mxu0 %v9544
  %10196 = vmatpush.bf16.msra.mxu0 %v9673
  %10197 = vmatpush.bf16.msra.mxu0 %v9543
  %10198 = vmatpush.bf16.msra.mxu0 %v9368
  %10199 = vmatpush.bf16.msra.mxu0 %v9238
  %10200 = vmatpush.bf16.msra.mxu0 %v9367
  %10201 = vmatpush.bf16.msra.mxu0 %v9237
  %10202 = vmatmul.bf16.gmra.mxu0 %v9976
  %v10203 = vpop.f32.mrf.mxu0
  %v10204 = vadd.f32 %v10165, %v10203
  %v10205 = vpop.f32.mrf.mxu0
  %v10206 = vadd.f32 %v10167, %v10205
  %10207 = vmatmul.bf16.gmra.mxu0 %v9978
  %v10208 = vpop.f32.mrf.mxu0
  %v10209 = vadd.f32 %v10170, %v10208
  %v10210 = vpop.f32.mrf.mxu0
  %v10211 = vadd.f32 %v10172, %v10210
  %10212 = vmatmul.bf16.gmra.mxu0 %v9980
  %v10213 = vpop.f32.mrf.mxu0
  %v10214 = vadd.f32 %v10175, %v10213
  %v10215 = vpop.f32.mrf.mxu0
  %v10216 = vadd.f32 %v10177, %v10215
  %10217 = vmatmul.bf16.gmra.mxu0 %v9982
  %v10218 = vpop.f32.mrf.mxu0
  %v10219 = vadd.f32 %v10180, %v10218
  %v10220 = vpop.f32.mrf.mxu0
  %v10221 = vadd.f32 %v10182, %v10220
  %10222 = vmatmul.bf16.gmra.mxu0 %v9984
  %v10223 = vpop.f32.mrf.mxu0
  %v10224 = vadd.f32 %v10185, %v10223
  %v10225 = vpop.f32.mrf.mxu0
  %v10226 = vadd.f32 %v10187, %v10225
  %10227 = vmatmul.bf16.gmra.mxu0 %v9986
  %v10228 = vpop.f32.mrf.mxu0
  %v10229 = vadd.f32 %v10190, %v10228
  %v10230 = vpop.f32.mrf.mxu0
  %v10231 = vadd.f32 %v10192, %v10230
  %10232 = vdwg.mxu0
  %10233 = vmatpush.bf16.msra.mxu0 %v9649
  %10234 = vmatpush.bf16.msra.mxu0 %v9519
  %10235 = vmatpush.bf16.msra.mxu0 %v9648
  %10236 = vmatpush.bf16.msra.mxu0 %v9518
  %10237 = vmatpush.bf16.msra.mxu0 %v9343
  %10238 = vmatpush.bf16.msra.mxu0 %v9213
  %10239 = vmatpush.bf16.msra.mxu0 %v9342
  %10240 = vmatpush.bf16.msra.mxu0 %v9212
  %10241 = vmatmul.bf16.gmra.mxu0 %v9975
  %v10242 = vpop.f32.mrf.mxu0
  %v10243 = vadd.f32 0.0, %v10242
  %v10244 = vpop.f32.mrf.mxu0
  %v10245 = vadd.f32 0.0, %v10244
  %10246 = vmatmul.bf16.gmra.mxu0 %v9977
  %v10247 = vpop.f32.mrf.mxu0
  %v10248 = vadd.f32 0.0, %v10247
  %v10249 = vpop.f32.mrf.mxu0
  %v10250 = vadd.f32 0.0, %v10249
  %10251 = vmatmul.bf16.gmra.mxu0 %v9979
  %v10252 = vpop.f32.mrf.mxu0
  %v10253 = vadd.f32 0.0, %v10252
  %v10254 = vpop.f32.mrf.mxu0
  %v10255 = vadd.f32 0.0, %v10254
  %10256 = vmatmul.bf16.gmra.mxu0 %v9981
  %v10257 = vpop.f32.mrf.mxu0
  %v10258 = vadd.f32 0.0, %v10257
  %v10259 = vpop.f32.mrf.mxu0
  %v10260 = vadd.f32 0.0, %v10259
  %10261 = vmatmul.bf16.gmra.mxu0 %v9983
  %v10262 = vpop.f32.mrf.mxu0
  %v10263 = vadd.f32 0.0, %v10262
  %v10264 = vpop.f32.mrf.mxu0
  %v10265 = vadd.f32 0.0, %v10264
  %10266 = vmatmul.bf16.gmra.mxu0 %v9985
  %v10267 = vpop.f32.mrf.mxu0
  %v10268 = vadd.f32 0.0, %v10267
  %v10269 = vpop.f32.mrf.mxu0
  %v10270 = vadd.f32 0.0, %v10269
  %10271 = vdwg.mxu0
  %10272 = vmatpush.bf16.msra.mxu0 %v9675
  %10273 = vmatpush.bf16.msra.mxu0 %v9545
  %10274 = vmatpush.bf16.msra.mxu0 %v9674
  %10275 = vmatpush.bf16.msra.mxu0 %v9544
  %10276 = vmatpush.bf16.msra.mxu0 %v9369
  %10277 = vmatpush.bf16.msra.mxu0 %v9239
  %10278 = vmatpush.bf16.msra.mxu0 %v9368
  %10279 = vmatpush.bf16.msra.mxu0 %v9238
  %10280 = vmatmul.bf16.gmra.mxu0 %v9976
  %v10281 = vpop.f32.mrf.mxu0
  %v10282 = vadd.f32 %v10243, %v10281
  %v10283 = vpop.f32.mrf.mxu0
  %v10284 = vadd.f32 %v10245, %v10283
  %10285 = vmatmul.bf16.gmra.mxu0 %v9978
  %v10286 = vpop.f32.mrf.mxu0
  %v10287 = vadd.f32 %v10248, %v10286
  %v10288 = vpop.f32.mrf.mxu0
  %v10289 = vadd.f32 %v10250, %v10288
  %10290 = vmatmul.bf16.gmra.mxu0 %v9980
  %v10291 = vpop.f32.mrf.mxu0
  %v10292 = vadd.f32 %v10253, %v10291
  %v10293 = vpop.f32.mrf.mxu0
  %v10294 = vadd.f32 %v10255, %v10293
  %10295 = vmatmul.bf16.gmra.mxu0 %v9982
  %v10296 = vpop.f32.mrf.mxu0
  %v10297 = vadd.f32 %v10258, %v10296
  %v10298 = vpop.f32.mrf.mxu0
  %v10299 = vadd.f32 %v10260, %v10298
  %10300 = vmatmul.bf16.gmra.mxu0 %v9984
  %v10301 = vpop.f32.mrf.mxu0
  %v10302 = vadd.f32 %v10263, %v10301
  %v10303 = vpop.f32.mrf.mxu0
  %v10304 = vadd.f32 %v10265, %v10303
  %10305 = vmatmul.bf16.gmra.mxu0 %v9986
  %v10306 = vpop.f32.mrf.mxu0
  %v10307 = vadd.f32 %v10268, %v10306
  %v10308 = vpop.f32.mrf.mxu0
  %v10309 = vadd.f32 %v10270, %v10308
  %10310 = vdwg.mxu0
  %10311 = vmatpush.bf16.msra.mxu0 %v9787
  %10312 = vmatpush.bf16.msra.mxu0 %v9763
  %10313 = vmatpush.bf16.msra.mxu0 %v9649
  %10314 = vmatpush.bf16.msra.mxu0 %v9519
  %10315 = vmatpush.bf16.msra.mxu0 %v9479
  %10316 = vmatpush.bf16.msra.mxu0 %v9455
  %10317 = vmatpush.bf16.msra.mxu0 %v9343
  %10318 = vmatpush.bf16.msra.mxu0 %v9213
  %10319 = vmatmul.bf16.gmra.mxu0 %v9975
  %v10320 = vpop.f32.mrf.mxu0
  %v10321 = vadd.f32 0.0, %v10320
  %v10322 = vpop.f32.mrf.mxu0
  %v10323 = vadd.f32 0.0, %v10322
  %10324 = vmatmul.bf16.gmra.mxu0 %v9977
  %v10325 = vpop.f32.mrf.mxu0
  %v10326 = vadd.f32 0.0, %v10325
  %v10327 = vpop.f32.mrf.mxu0
  %v10328 = vadd.f32 0.0, %v10327
  %10329 = vmatmul.bf16.gmra.mxu0 %v9979
  %v10330 = vpop.f32.mrf.mxu0
  %v10331 = vadd.f32 0.0, %v10330
  %v10332 = vpop.f32.mrf.mxu0
  %v10333 = vadd.f32 0.0, %v10332
  %10334 = vmatmul.bf16.gmra.mxu0 %v9981
  %v10335 = vpop.f32.mrf.mxu0
  %v10336 = vadd.f32 0.0, %v10335
  %v10337 = vpop.f32.mrf.mxu0
  %v10338 = vadd.f32 0.0, %v10337
  %10339 = vmatmul.bf16.gmra.mxu0 %v9983
  %v10340 = vpop.f32.mrf.mxu0
  %v10341 = vadd.f32 0.0, %v10340
  %v10342 = vpop.f32.mrf.mxu0
  %v10343 = vadd.f32 0.0, %v10342
  %10344 = vmatmul.bf16.gmra.mxu0 %v9985
  %v10345 = vpop.f32.mrf.mxu0
  %v10346 = vadd.f32 0.0, %v10345
  %v10347 = vpop.f32.mrf.mxu0
  %v10348 = vadd.f32 0.0, %v10347
  %10349 = vdwg.mxu0
  %10350 = vmatpush.bf16.msra.mxu0 %v9791
  %10351 = vmatpush.bf16.msra.mxu0 %v9767
  %10352 = vmatpush.bf16.msra.mxu0 %v9675
  %10353 = vmatpush.bf16.msra.mxu0 %v9545
  %10354 = vmatpush.bf16.msra.mxu0 %v9483
  %10355 = vmatpush.bf16.msra.mxu0 %v9461
  %10356 = vmatpush.bf16.msra.mxu0 %v9369
  %10357 = vmatpush.bf16.msra.mxu0 %v9239
  %10358 = vmatmul.bf16.gmra.mxu0 %v9976
  %v10359 = vpop.f32.mrf.mxu0
  %v10360 = vadd.f32 %v10321, %v10359
  %v10361 = vpop.f32.mrf.mxu0
  %v10362 = vadd.f32 %v10323, %v10361
  %10363 = vmatmul.bf16.gmra.mxu0 %v9978
  %v10364 = vpop.f32.mrf.mxu0
  %v10365 = vadd.f32 %v10326, %v10364
  %v10366 = vpop.f32.mrf.mxu0
  %v10367 = vadd.f32 %v10328, %v10366
  %10368 = vmatmul.bf16.gmra.mxu0 %v9980
  %v10369 = vpop.f32.mrf.mxu0
  %v10370 = vadd.f32 %v10331, %v10369
  %v10371 = vpop.f32.mrf.mxu0
  %v10372 = vadd.f32 %v10333, %v10371
  %10373 = vmatmul.bf16.gmra.mxu0 %v9982
  %v10374 = vpop.f32.mrf.mxu0
  %v10375 = vadd.f32 %v10336, %v10374
  %v10376 = vpop.f32.mrf.mxu0
  %v10377 = vadd.f32 %v10338, %v10376
  %10378 = vmatmul.bf16.gmra.mxu0 %v9984
  %v10379 = vpop.f32.mrf.mxu0
  %v10380 = vadd.f32 %v10341, %v10379
  %v10381 = vpop.f32.mrf.mxu0
  %v10382 = vadd.f32 %v10343, %v10381
  %10383 = vmatmul.bf16.gmra.mxu0 %v9986
  %v10384 = vpop.f32.mrf.mxu0
  %v10385 = vadd.f32 %v10346, %v10384
  %v10386 = vpop.f32.mrf.mxu0
  %v10387 = vadd.f32 %v10348, %v10386
  %10388 = vdwg.mxu0
  %10389 = vmatpush.bf16.msra.mxu0 %v9672
  %10390 = vmatpush.bf16.msra.mxu0 %v9542
  %10391 = vmatpush.bf16.msra.mxu0 %v9671
  %10392 = vmatpush.bf16.msra.mxu0 %v9541
  %10393 = vmatpush.bf16.msra.mxu0 %v9366
  %10394 = vmatpush.bf16.msra.mxu0 %v9236
  %10395 = vmatpush.bf16.msra.mxu0 %v9365
  %10396 = vmatpush.bf16.msra.mxu0 %v9235
  %10397 = vmatmul.bf16.gmra.mxu0 %v9975
  %v10398 = vpop.f32.mrf.mxu0
  %v10399 = vadd.f32 0.0, %v10398
  %v10400 = vpop.f32.mrf.mxu0
  %v10401 = vadd.f32 0.0, %v10400
  %10402 = vmatmul.bf16.gmra.mxu0 %v9977
  %v10403 = vpop.f32.mrf.mxu0
  %v10404 = vadd.f32 0.0, %v10403
  %v10405 = vpop.f32.mrf.mxu0
  %v10406 = vadd.f32 0.0, %v10405
  %10407 = vmatmul.bf16.gmra.mxu0 %v9979
  %v10408 = vpop.f32.mrf.mxu0
  %v10409 = vadd.f32 0.0, %v10408
  %v10410 = vpop.f32.mrf.mxu0
  %v10411 = vadd.f32 0.0, %v10410
  %10412 = vmatmul.bf16.gmra.mxu0 %v9981
  %v10413 = vpop.f32.mrf.mxu0
  %v10414 = vadd.f32 0.0, %v10413
  %v10415 = vpop.f32.mrf.mxu0
  %v10416 = vadd.f32 0.0, %v10415
  %10417 = vmatmul.bf16.gmra.mxu0 %v9983
  %v10418 = vpop.f32.mrf.mxu0
  %v10419 = vadd.f32 0.0, %v10418
  %v10420 = vpop.f32.mrf.mxu0
  %v10421 = vadd.f32 0.0, %v10420
  %10422 = vmatmul.bf16.gmra.mxu0 %v9985
  %v10423 = vpop.f32.mrf.mxu0
  %v10424 = vadd.f32 0.0, %v10423
  %v10425 = vpop.f32.mrf.mxu0
  %v10426 = vadd.f32 0.0, %v10425
  %10427 = vdwg.mxu0
  %10428 = vmatpush.bf16.msra.mxu0 %v9698
  %10429 = vmatpush.bf16.msra.mxu0 %v9568
  %10430 = vmatpush.bf16.msra.mxu0 %v9697
  %10431 = vmatpush.bf16.msra.mxu0 %v9567
  %10432 = vmatpush.bf16.msra.mxu0 %v9392
  %10433 = vmatpush.bf16.msra.mxu0 %v9262
  %10434 = vmatpush.bf16.msra.mxu0 %v9391
  %10435 = vmatpush.bf16.msra.mxu0 %v9261
  %10436 = vmatmul.bf16.gmra.mxu0 %v9976
  %v10437 = vpop.f32.mrf.mxu0
  %v10438 = vadd.f32 %v10399, %v10437
  %v10439 = vpop.f32.mrf.mxu0
  %v10440 = vadd.f32 %v10401, %v10439
  %10441 = vmatmul.bf16.gmra.mxu0 %v9978
  %v10442 = vpop.f32.mrf.mxu0
  %v10443 = vadd.f32 %v10404, %v10442
  %v10444 = vpop.f32.mrf.mxu0
  %v10445 = vadd.f32 %v10406, %v10444
  %10446 = vmatmul.bf16.gmra.mxu0 %v9980
  %v10447 = vpop.f32.mrf.mxu0
  %v10448 = vadd.f32 %v10409, %v10447
  %v10449 = vpop.f32.mrf.mxu0
  %v10450 = vadd.f32 %v10411, %v10449
  %10451 = vmatmul.bf16.gmra.mxu0 %v9982
  %v10452 = vpop.f32.mrf.mxu0
  %v10453 = vadd.f32 %v10414, %v10452
  %v10454 = vpop.f32.mrf.mxu0
  %v10455 = vadd.f32 %v10416, %v10454
  %10456 = vmatmul.bf16.gmra.mxu0 %v9984
  %v10457 = vpop.f32.mrf.mxu0
  %v10458 = vadd.f32 %v10419, %v10457
  %v10459 = vpop.f32.mrf.mxu0
  %v10460 = vadd.f32 %v10421, %v10459
  %10461 = vmatmul.bf16.gmra.mxu0 %v9986
  %v10462 = vpop.f32.mrf.mxu0
  %v10463 = vadd.f32 %v10424, %v10462
  %v10464 = vpop.f32.mrf.mxu0
  %v10465 = vadd.f32 %v10426, %v10464
  %10466 = vdwg.mxu0
  %10467 = vmatpush.bf16.msra.mxu0 %v9673
  %10468 = vmatpush.bf16.msra.mxu0 %v9543
  %10469 = vmatpush.bf16.msra.mxu0 %v9672
  %10470 = vmatpush.bf16.msra.mxu0 %v9542
  %10471 = vmatpush.bf16.msra.mxu0 %v9367
  %10472 = vmatpush.bf16.msra.mxu0 %v9237
  %10473 = vmatpush.bf16.msra.mxu0 %v9366
  %10474 = vmatpush.bf16.msra.mxu0 %v9236
  %10475 = vmatmul.bf16.gmra.mxu0 %v9975
  %v10476 = vpop.f32.mrf.mxu0
  %v10477 = vadd.f32 0.0, %v10476
  %v10478 = vpop.f32.mrf.mxu0
  %v10479 = vadd.f32 0.0, %v10478
  %10480 = vmatmul.bf16.gmra.mxu0 %v9977
  %v10481 = vpop.f32.mrf.mxu0
  %v10482 = vadd.f32 0.0, %v10481
  %v10483 = vpop.f32.mrf.mxu0
  %v10484 = vadd.f32 0.0, %v10483
  %10485 = vmatmul.bf16.gmra.mxu0 %v9979
  %v10486 = vpop.f32.mrf.mxu0
  %v10487 = vadd.f32 0.0, %v10486
  %v10488 = vpop.f32.mrf.mxu0
  %v10489 = vadd.f32 0.0, %v10488
  %10490 = vmatmul.bf16.gmra.mxu0 %v9981
  %v10491 = vpop.f32.mrf.mxu0
  %v10492 = vadd.f32 0.0, %v10491
  %v10493 = vpop.f32.mrf.mxu0
  %v10494 = vadd.f32 0.0, %v10493
  %10495 = vmatmul.bf16.gmra.mxu0 %v9983
  %v10496 = vpop.f32.mrf.mxu0
  %v10497 = vadd.f32 0.0, %v10496
  %v10498 = vpop.f32.mrf.mxu0
  %v10499 = vadd.f32 0.0, %v10498
  %10500 = vmatmul.bf16.gmra.mxu0 %v9985
  %v10501 = vpop.f32.mrf.mxu0
  %v10502 = vadd.f32 0.0, %v10501
  %v10503 = vpop.f32.mrf.mxu0
  %v10504 = vadd.f32 0.0, %v10503
  %10505 = vdwg.mxu0
  %10506 = vmatpush.bf16.msra.mxu0 %v9699
  %10507 = vmatpush.bf16.msra.mxu0 %v9569
  %10508 = vmatpush.bf16.msra.mxu0 %v9698
  %10509 = vmatpush.bf16.msra.mxu0 %v9568
  %10510 = vmatpush.bf16.msra.mxu0 %v9393
  %10511 = vmatpush.bf16.msra.mxu0 %v9263
  %10512 = vmatpush.bf16.msra.mxu0 %v9392
  %10513 = vmatpush.bf16.msra.mxu0 %v9262
  %10514 = vmatmul.bf16.gmra.mxu0 %v9976
  %v10515 = vpop.f32.mrf.mxu0
  %v10516 = vadd.f32 %v10477, %v10515
  %v10517 = vpop.f32.mrf.mxu0
  %v10518 = vadd.f32 %v10479, %v10517
  %10519 = vmatmul.bf16.gmra.mxu0 %v9978
  %v10520 = vpop.f32.mrf.mxu0
  %v10521 = vadd.f32 %v10482, %v10520
  %v10522 = vpop.f32.mrf.mxu0
  %v10523 = vadd.f32 %v10484, %v10522
  %10524 = vmatmul.bf16.gmra.mxu0 %v9980
  %v10525 = vpop.f32.mrf.mxu0
  %v10526 = vadd.f32 %v10487, %v10525
  %v10527 = vpop.f32.mrf.mxu0
  %v10528 = vadd.f32 %v10489, %v10527
  %10529 = vmatmul.bf16.gmra.mxu0 %v9982
  %v10530 = vpop.f32.mrf.mxu0
  %v10531 = vadd.f32 %v10492, %v10530
  %v10532 = vpop.f32.mrf.mxu0
  %v10533 = vadd.f32 %v10494, %v10532
  %10534 = vmatmul.bf16.gmra.mxu0 %v9984
  %v10535 = vpop.f32.mrf.mxu0
  %v10536 = vadd.f32 %v10497, %v10535
  %v10537 = vpop.f32.mrf.mxu0
  %v10538 = vadd.f32 %v10499, %v10537
  %10539 = vmatmul.bf16.gmra.mxu0 %v9986
  %v10540 = vpop.f32.mrf.mxu0
  %v10541 = vadd.f32 %v10502, %v10540
  %v10542 = vpop.f32.mrf.mxu0
  %v10543 = vadd.f32 %v10504, %v10542
  %10544 = vdwg.mxu0
  %10545 = vmatpush.bf16.msra.mxu0 %v9674
  %10546 = vmatpush.bf16.msra.mxu0 %v9544
  %10547 = vmatpush.bf16.msra.mxu0 %v9673
  %10548 = vmatpush.bf16.msra.mxu0 %v9543
  %10549 = vmatpush.bf16.msra.mxu0 %v9368
  %10550 = vmatpush.bf16.msra.mxu0 %v9238
  %10551 = vmatpush.bf16.msra.mxu0 %v9367
  %10552 = vmatpush.bf16.msra.mxu0 %v9237
  %10553 = vmatmul.bf16.gmra.mxu0 %v9975
  %v10554 = vpop.f32.mrf.mxu0
  %v10555 = vadd.f32 0.0, %v10554
  %v10556 = vpop.f32.mrf.mxu0
  %v10557 = vadd.f32 0.0, %v10556
  %10558 = vmatmul.bf16.gmra.mxu0 %v9977
  %v10559 = vpop.f32.mrf.mxu0
  %v10560 = vadd.f32 0.0, %v10559
  %v10561 = vpop.f32.mrf.mxu0
  %v10562 = vadd.f32 0.0, %v10561
  %10563 = vmatmul.bf16.gmra.mxu0 %v9979
  %v10564 = vpop.f32.mrf.mxu0
  %v10565 = vadd.f32 0.0, %v10564
  %v10566 = vpop.f32.mrf.mxu0
  %v10567 = vadd.f32 0.0, %v10566
  %10568 = vmatmul.bf16.gmra.mxu0 %v9981
  %v10569 = vpop.f32.mrf.mxu0
  %v10570 = vadd.f32 0.0, %v10569
  %v10571 = vpop.f32.mrf.mxu0
  %v10572 = vadd.f32 0.0, %v10571
  %10573 = vmatmul.bf16.gmra.mxu0 %v9983
  %v10574 = vpop.f32.mrf.mxu0
  %v10575 = vadd.f32 0.0, %v10574
  %v10576 = vpop.f32.mrf.mxu0
  %v10577 = vadd.f32 0.0, %v10576
  %10578 = vmatmul.bf16.gmra.mxu0 %v9985
  %v10579 = vpop.f32.mrf.mxu0
  %v10580 = vadd.f32 0.0, %v10579
  %v10581 = vpop.f32.mrf.mxu0
  %v10582 = vadd.f32 0.0, %v10581
  %10583 = vdwg.mxu0
  %10584 = vmatpush.bf16.msra.mxu0 %v9700
  %10585 = vmatpush.bf16.msra.mxu0 %v9570
  %10586 = vmatpush.bf16.msra.mxu0 %v9699
  %10587 = vmatpush.bf16.msra.mxu0 %v9569
  %10588 = vmatpush.bf16.msra.mxu0 %v9394
  %10589 = vmatpush.bf16.msra.mxu0 %v9264
  %10590 = vmatpush.bf16.msra.mxu0 %v9393
  %10591 = vmatpush.bf16.msra.mxu0 %v9263
  %10592 = vmatmul.bf16.gmra.mxu0 %v9976
  %v10593 = vpop.f32.mrf.mxu0
  %v10594 = vadd.f32 %v10555, %v10593
  %v10595 = vpop.f32.mrf.mxu0
  %v10596 = vadd.f32 %v10557, %v10595
  %10597 = vmatmul.bf16.gmra.mxu0 %v9978
  %v10598 = vpop.f32.mrf.mxu0
  %v10599 = vadd.f32 %v10560, %v10598
  %v10600 = vpop.f32.mrf.mxu0
  %v10601 = vadd.f32 %v10562, %v10600
  %10602 = vmatmul.bf16.gmra.mxu0 %v9980
  %v10603 = vpop.f32.mrf.mxu0
  %v10604 = vadd.f32 %v10565, %v10603
  %v10605 = vpop.f32.mrf.mxu0
  %v10606 = vadd.f32 %v10567, %v10605
  %10607 = vmatmul.bf16.gmra.mxu0 %v9982
  %v10608 = vpop.f32.mrf.mxu0
  %v10609 = vadd.f32 %v10570, %v10608
  %v10610 = vpop.f32.mrf.mxu0
  %v10611 = vadd.f32 %v10572, %v10610
  %10612 = vmatmul.bf16.gmra.mxu0 %v9984
  %v10613 = vpop.f32.mrf.mxu0
  %v10614 = vadd.f32 %v10575, %v10613
  %v10615 = vpop.f32.mrf.mxu0
  %v10616 = vadd.f32 %v10577, %v10615
  %10617 = vmatmul.bf16.gmra.mxu0 %v9986
  %v10618 = vpop.f32.mrf.mxu0
  %v10619 = vadd.f32 %v10580, %v10618
  %v10620 = vpop.f32.mrf.mxu0
  %v10621 = vadd.f32 %v10582, %v10620
  %10622 = vdwg.mxu0
  %10623 = vmatpush.bf16.msra.mxu0 %v9675
  %10624 = vmatpush.bf16.msra.mxu0 %v9545
  %10625 = vmatpush.bf16.msra.mxu0 %v9674
  %10626 = vmatpush.bf16.msra.mxu0 %v9544
  %10627 = vmatpush.bf16.msra.mxu0 %v9369
  %10628 = vmatpush.bf16.msra.mxu0 %v9239
  %10629 = vmatpush.bf16.msra.mxu0 %v9368
  %10630 = vmatpush.bf16.msra.mxu0 %v9238
  %10631 = vmatmul.bf16.gmra.mxu0 %v9975
  %v10632 = vpop.f32.mrf.mxu0
  %v10633 = vadd.f32 0.0, %v10632
  %v10634 = vpop.f32.mrf.mxu0
  %v10635 = vadd.f32 0.0, %v10634
  %10636 = vmatmul.bf16.gmra.mxu0 %v9977
  %v10637 = vpop.f32.mrf.mxu0
  %v10638 = vadd.f32 0.0, %v10637
  %v10639 = vpop.f32.mrf.mxu0
  %v10640 = vadd.f32 0.0, %v10639
  %10641 = vmatmul.bf16.gmra.mxu0 %v9979
  %v10642 = vpop.f32.mrf.mxu0
  %v10643 = vadd.f32 0.0, %v10642
  %v10644 = vpop.f32.mrf.mxu0
  %v10645 = vadd.f32 0.0, %v10644
  %10646 = vmatmul.bf16.gmra.mxu0 %v9981
  %v10647 = vpop.f32.mrf.mxu0
  %v10648 = vadd.f32 0.0, %v10647
  %v10649 = vpop.f32.mrf.mxu0
  %v10650 = vadd.f32 0.0, %v10649
  %10651 = vmatmul.bf16.gmra.mxu0 %v9983
  %v10652 = vpop.f32.mrf.mxu0
  %v10653 = vadd.f32 0.0, %v10652
  %v10654 = vpop.f32.mrf.mxu0
  %v10655 = vadd.f32 0.0, %v10654
  %10656 = vmatmul.bf16.gmra.mxu0 %v9985
  %v10657 = vpop.f32.mrf.mxu0
  %v10658 = vadd.f32 0.0, %v10657
  %v10659 = vpop.f32.mrf.mxu0
  %v10660 = vadd.f32 0.0, %v10659
  %10661 = vdwg.mxu0
  %10662 = vmatpush.bf16.msra.mxu0 %v9701
  %10663 = vmatpush.bf16.msra.mxu0 %v9571
  %10664 = vmatpush.bf16.msra.mxu0 %v9700
  %10665 = vmatpush.bf16.msra.mxu0 %v9570
  %10666 = vmatpush.bf16.msra.mxu0 %v9395
  %10667 = vmatpush.bf16.msra.mxu0 %v9265
  %10668 = vmatpush.bf16.msra.mxu0 %v9394
  %10669 = vmatpush.bf16.msra.mxu0 %v9264
  %10670 = vmatmul.bf16.gmra.mxu0 %v9976
  %v10671 = vpop.f32.mrf.mxu0
  %v10672 = vadd.f32 %v10633, %v10671
  %v10673 = vpop.f32.mrf.mxu0
  %v10674 = vadd.f32 %v10635, %v10673
  %10675 = vmatmul.bf16.gmra.mxu0 %v9978
  %v10676 = vpop.f32.mrf.mxu0
  %v10677 = vadd.f32 %v10638, %v10676
  %v10678 = vpop.f32.mrf.mxu0
  %v10679 = vadd.f32 %v10640, %v10678
  %10680 = vmatmul.bf16.gmra.mxu0 %v9980
  %v10681 = vpop.f32.mrf.mxu0
  %v10682 = vadd.f32 %v10643, %v10681
  %v10683 = vpop.f32.mrf.mxu0
  %v10684 = vadd.f32 %v10645, %v10683
  %10685 = vmatmul.bf16.gmra.mxu0 %v9982
  %v10686 = vpop.f32.mrf.mxu0
  %v10687 = vadd.f32 %v10648, %v10686
  %v10688 = vpop.f32.mrf.mxu0
  %v10689 = vadd.f32 %v10650, %v10688
  %10690 = vmatmul.bf16.gmra.mxu0 %v9984
  %v10691 = vpop.f32.mrf.mxu0
  %v10692 = vadd.f32 %v10653, %v10691
  %v10693 = vpop.f32.mrf.mxu0
  %v10694 = vadd.f32 %v10655, %v10693
  %10695 = vmatmul.bf16.gmra.mxu0 %v9986
  %v10696 = vpop.f32.mrf.mxu0
  %v10697 = vadd.f32 %v10658, %v10696
  %v10698 = vpop.f32.mrf.mxu0
  %v10699 = vadd.f32 %v10660, %v10698
  %10700 = vdwg.mxu0
  %10701 = vmatpush.bf16.msra.mxu0 %v9791
  %10702 = vmatpush.bf16.msra.mxu0 %v9767
  %10703 = vmatpush.bf16.msra.mxu0 %v9675
  %10704 = vmatpush.bf16.msra.mxu0 %v9545
  %10705 = vmatpush.bf16.msra.mxu0 %v9483
  %10706 = vmatpush.bf16.msra.mxu0 %v9461
  %10707 = vmatpush.bf16.msra.mxu0 %v9369
  %10708 = vmatpush.bf16.msra.mxu0 %v9239
  %10709 = vmatmul.bf16.gmra.mxu0 %v9975
  %v10710 = vpop.f32.mrf.mxu0
  %v10711 = vadd.f32 0.0, %v10710
  %v10712 = vpop.f32.mrf.mxu0
  %v10713 = vadd.f32 0.0, %v10712
  %10714 = vmatmul.bf16.gmra.mxu0 %v9977
  %v10715 = vpop.f32.mrf.mxu0
  %v10716 = vadd.f32 0.0, %v10715
  %v10717 = vpop.f32.mrf.mxu0
  %v10718 = vadd.f32 0.0, %v10717
  %10719 = vmatmul.bf16.gmra.mxu0 %v9979
  %v10720 = vpop.f32.mrf.mxu0
  %v10721 = vadd.f32 0.0, %v10720
  %v10722 = vpop.f32.mrf.mxu0
  %v10723 = vadd.f32 0.0, %v10722
  %10724 = vmatmul.bf16.gmra.mxu0 %v9981
  %v10725 = vpop.f32.mrf.mxu0
  %v10726 = vadd.f32 0.0, %v10725
  %v10727 = vpop.f32.mrf.mxu0
  %v10728 = vadd.f32 0.0, %v10727
  %10729 = vmatmul.bf16.gmra.mxu0 %v9983
  %v10730 = vpop.f32.mrf.mxu0
  %v10731 = vadd.f32 0.0, %v10730
  %v10732 = vpop.f32.mrf.mxu0
  %v10733 = vadd.f32 0.0, %v10732
  %10734 = vmatmul.bf16.gmra.mxu0 %v9985
  %v10735 = vpop.f32.mrf.mxu0
  %v10736 = vadd.f32 0.0, %v10735
  %v10737 = vpop.f32.mrf.mxu0
  %v10738 = vadd.f32 0.0, %v10737
  %10739 = vdwg.mxu0
  %10740 = vmatpush.bf16.msra.mxu0 %v9795
  %10741 = vmatpush.bf16.msra.mxu0 %v9773
  %10742 = vmatpush.bf16.msra.mxu0 %v9701
  %10743 = vmatpush.bf16.msra.mxu0 %v9571
  %10744 = vmatpush.bf16.msra.mxu0 %v9487
  %10745 = vmatpush.bf16.msra.mxu0 %v9465
  %10746 = vmatpush.bf16.msra.mxu0 %v9395
  %10747 = vmatpush.bf16.msra.mxu0 %v9265
  %10748 = vmatmul.bf16.gmra.mxu0 %v9976
  %v10749 = vpop.f32.mrf.mxu0
  %v10750 = vadd.f32 %v10711, %v10749
  %v10751 = vpop.f32.mrf.mxu0
  %v10752 = vadd.f32 %v10713, %v10751
  %10753 = vmatmul.bf16.gmra.mxu0 %v9978
  %v10754 = vpop.f32.mrf.mxu0
  %v10755 = vadd.f32 %v10716, %v10754
  %v10756 = vpop.f32.mrf.mxu0
  %v10757 = vadd.f32 %v10718, %v10756
  %10758 = vmatmul.bf16.gmra.mxu0 %v9980
  %v10759 = vpop.f32.mrf.mxu0
  %v10760 = vadd.f32 %v10721, %v10759
  %v10761 = vpop.f32.mrf.mxu0
  %v10762 = vadd.f32 %v10723, %v10761
  %10763 = vmatmul.bf16.gmra.mxu0 %v9982
  %v10764 = vpop.f32.mrf.mxu0
  %v10765 = vadd.f32 %v10726, %v10764
  %v10766 = vpop.f32.mrf.mxu0
  %v10767 = vadd.f32 %v10728, %v10766
  %10768 = vmatmul.bf16.gmra.mxu0 %v9984
  %v10769 = vpop.f32.mrf.mxu0
  %v10770 = vadd.f32 %v10731, %v10769
  %v10771 = vpop.f32.mrf.mxu0
  %v10772 = vadd.f32 %v10733, %v10771
  %10773 = vmatmul.bf16.gmra.mxu0 %v9986
  %v10774 = vpop.f32.mrf.mxu0
  %v10775 = vadd.f32 %v10736, %v10774
  %v10776 = vpop.f32.mrf.mxu0
  %v10777 = vadd.f32 %v10738, %v10776
  %10778 = vdwg.mxu0
  %10779 = vmatpush.bf16.msra.mxu0 %v9698
  %10780 = vmatpush.bf16.msra.mxu0 %v9568
  %10781 = vmatpush.bf16.msra.mxu0 %v9697
  %10782 = vmatpush.bf16.msra.mxu0 %v9567
  %10783 = vmatpush.bf16.msra.mxu0 %v9392
  %10784 = vmatpush.bf16.msra.mxu0 %v9262
  %10785 = vmatpush.bf16.msra.mxu0 %v9391
  %10786 = vmatpush.bf16.msra.mxu0 %v9261
  %10787 = vmatmul.bf16.gmra.mxu0 %v9975
  %v10788 = vpop.f32.mrf.mxu0
  %v10789 = vadd.f32 0.0, %v10788
  %v10790 = vpop.f32.mrf.mxu0
  %v10791 = vadd.f32 0.0, %v10790
  %10792 = vmatmul.bf16.gmra.mxu0 %v9977
  %v10793 = vpop.f32.mrf.mxu0
  %v10794 = vadd.f32 0.0, %v10793
  %v10795 = vpop.f32.mrf.mxu0
  %v10796 = vadd.f32 0.0, %v10795
  %10797 = vmatmul.bf16.gmra.mxu0 %v9979
  %v10798 = vpop.f32.mrf.mxu0
  %v10799 = vadd.f32 0.0, %v10798
  %v10800 = vpop.f32.mrf.mxu0
  %v10801 = vadd.f32 0.0, %v10800
  %10802 = vmatmul.bf16.gmra.mxu0 %v9981
  %v10803 = vpop.f32.mrf.mxu0
  %v10804 = vadd.f32 0.0, %v10803
  %v10805 = vpop.f32.mrf.mxu0
  %v10806 = vadd.f32 0.0, %v10805
  %10807 = vmatmul.bf16.gmra.mxu0 %v9983
  %v10808 = vpop.f32.mrf.mxu0
  %v10809 = vadd.f32 0.0, %v10808
  %v10810 = vpop.f32.mrf.mxu0
  %v10811 = vadd.f32 0.0, %v10810
  %10812 = vmatmul.bf16.gmra.mxu0 %v9985
  %v10813 = vpop.f32.mrf.mxu0
  %v10814 = vadd.f32 0.0, %v10813
  %v10815 = vpop.f32.mrf.mxu0
  %v10816 = vadd.f32 0.0, %v10815
  %10817 = vdwg.mxu0
  %10818 = vmatpush.bf16.msra.mxu0 %v9724
  %10819 = vmatpush.bf16.msra.mxu0 %v9594
  %10820 = vmatpush.bf16.msra.mxu0 %v9723
  %10821 = vmatpush.bf16.msra.mxu0 %v9593
  %10822 = vmatpush.bf16.msra.mxu0 %v9418
  %10823 = vmatpush.bf16.msra.mxu0 %v9288
  %10824 = vmatpush.bf16.msra.mxu0 %v9417
  %10825 = vmatpush.bf16.msra.mxu0 %v9287
  %10826 = vmatmul.bf16.gmra.mxu0 %v9976
  %v10827 = vpop.f32.mrf.mxu0
  %v10828 = vadd.f32 %v10789, %v10827
  %v10829 = vpop.f32.mrf.mxu0
  %v10830 = vadd.f32 %v10791, %v10829
  %10831 = vmatmul.bf16.gmra.mxu0 %v9978
  %v10832 = vpop.f32.mrf.mxu0
  %v10833 = vadd.f32 %v10794, %v10832
  %v10834 = vpop.f32.mrf.mxu0
  %v10835 = vadd.f32 %v10796, %v10834
  %10836 = vmatmul.bf16.gmra.mxu0 %v9980
  %v10837 = vpop.f32.mrf.mxu0
  %v10838 = vadd.f32 %v10799, %v10837
  %v10839 = vpop.f32.mrf.mxu0
  %v10840 = vadd.f32 %v10801, %v10839
  %10841 = vmatmul.bf16.gmra.mxu0 %v9982
  %v10842 = vpop.f32.mrf.mxu0
  %v10843 = vadd.f32 %v10804, %v10842
  %v10844 = vpop.f32.mrf.mxu0
  %v10845 = vadd.f32 %v10806, %v10844
  %10846 = vmatmul.bf16.gmra.mxu0 %v9984
  %v10847 = vpop.f32.mrf.mxu0
  %v10848 = vadd.f32 %v10809, %v10847
  %v10849 = vpop.f32.mrf.mxu0
  %v10850 = vadd.f32 %v10811, %v10849
  %10851 = vmatmul.bf16.gmra.mxu0 %v9986
  %v10852 = vpop.f32.mrf.mxu0
  %v10853 = vadd.f32 %v10814, %v10852
  %v10854 = vpop.f32.mrf.mxu0
  %v10855 = vadd.f32 %v10816, %v10854
  %10856 = vdwg.mxu0
  %10857 = vmatpush.bf16.msra.mxu0 %v9699
  %10858 = vmatpush.bf16.msra.mxu0 %v9569
  %10859 = vmatpush.bf16.msra.mxu0 %v9698
  %10860 = vmatpush.bf16.msra.mxu0 %v9568
  %10861 = vmatpush.bf16.msra.mxu0 %v9393
  %10862 = vmatpush.bf16.msra.mxu0 %v9263
  %10863 = vmatpush.bf16.msra.mxu0 %v9392
  %10864 = vmatpush.bf16.msra.mxu0 %v9262
  %10865 = vmatmul.bf16.gmra.mxu0 %v9975
  %v10866 = vpop.f32.mrf.mxu0
  %v10867 = vadd.f32 0.0, %v10866
  %v10868 = vpop.f32.mrf.mxu0
  %v10869 = vadd.f32 0.0, %v10868
  %10870 = vmatmul.bf16.gmra.mxu0 %v9977
  %v10871 = vpop.f32.mrf.mxu0
  %v10872 = vadd.f32 0.0, %v10871
  %v10873 = vpop.f32.mrf.mxu0
  %v10874 = vadd.f32 0.0, %v10873
  %10875 = vmatmul.bf16.gmra.mxu0 %v9979
  %v10876 = vpop.f32.mrf.mxu0
  %v10877 = vadd.f32 0.0, %v10876
  %v10878 = vpop.f32.mrf.mxu0
  %v10879 = vadd.f32 0.0, %v10878
  %10880 = vmatmul.bf16.gmra.mxu0 %v9981
  %v10881 = vpop.f32.mrf.mxu0
  %v10882 = vadd.f32 0.0, %v10881
  %v10883 = vpop.f32.mrf.mxu0
  %v10884 = vadd.f32 0.0, %v10883
  %10885 = vmatmul.bf16.gmra.mxu0 %v9983
  %v10886 = vpop.f32.mrf.mxu0
  %v10887 = vadd.f32 0.0, %v10886
  %v10888 = vpop.f32.mrf.mxu0
  %v10889 = vadd.f32 0.0, %v10888
  %10890 = vmatmul.bf16.gmra.mxu0 %v9985
  %v10891 = vpop.f32.mrf.mxu0
  %v10892 = vadd.f32 0.0, %v10891
  %v10893 = vpop.f32.mrf.mxu0
  %v10894 = vadd.f32 0.0, %v10893
  %10895 = vdwg.mxu0
  %10896 = vmatpush.bf16.msra.mxu0 %v9725
  %10897 = vmatpush.bf16.msra.mxu0 %v9595
  %10898 = vmatpush.bf16.msra.mxu0 %v9724
  %10899 = vmatpush.bf16.msra.mxu0 %v9594
  %10900 = vmatpush.bf16.msra.mxu0 %v9419
  %10901 = vmatpush.bf16.msra.mxu0 %v9289
  %10902 = vmatpush.bf16.msra.mxu0 %v9418
  %10903 = vmatpush.bf16.msra.mxu0 %v9288
  %10904 = vmatmul.bf16.gmra.mxu0 %v9976
  %v10905 = vpop.f32.mrf.mxu0
  %v10906 = vadd.f32 %v10867, %v10905
  %v10907 = vpop.f32.mrf.mxu0
  %v10908 = vadd.f32 %v10869, %v10907
  %10909 = vmatmul.bf16.gmra.mxu0 %v9978
  %v10910 = vpop.f32.mrf.mxu0
  %v10911 = vadd.f32 %v10872, %v10910
  %v10912 = vpop.f32.mrf.mxu0
  %v10913 = vadd.f32 %v10874, %v10912
  %10914 = vmatmul.bf16.gmra.mxu0 %v9980
  %v10915 = vpop.f32.mrf.mxu0
  %v10916 = vadd.f32 %v10877, %v10915
  %v10917 = vpop.f32.mrf.mxu0
  %v10918 = vadd.f32 %v10879, %v10917
  %10919 = vmatmul.bf16.gmra.mxu0 %v9982
  %v10920 = vpop.f32.mrf.mxu0
  %v10921 = vadd.f32 %v10882, %v10920
  %v10922 = vpop.f32.mrf.mxu0
  %v10923 = vadd.f32 %v10884, %v10922
  %10924 = vmatmul.bf16.gmra.mxu0 %v9984
  %v10925 = vpop.f32.mrf.mxu0
  %v10926 = vadd.f32 %v10887, %v10925
  %v10927 = vpop.f32.mrf.mxu0
  %v10928 = vadd.f32 %v10889, %v10927
  %10929 = vmatmul.bf16.gmra.mxu0 %v9986
  %v10930 = vpop.f32.mrf.mxu0
  %v10931 = vadd.f32 %v10892, %v10930
  %v10932 = vpop.f32.mrf.mxu0
  %v10933 = vadd.f32 %v10894, %v10932
  %10934 = vdwg.mxu0
  %10935 = vmatpush.bf16.msra.mxu0 %v9700
  %10936 = vmatpush.bf16.msra.mxu0 %v9570
  %10937 = vmatpush.bf16.msra.mxu0 %v9699
  %10938 = vmatpush.bf16.msra.mxu0 %v9569
  %10939 = vmatpush.bf16.msra.mxu0 %v9394
  %10940 = vmatpush.bf16.msra.mxu0 %v9264
  %10941 = vmatpush.bf16.msra.mxu0 %v9393
  %10942 = vmatpush.bf16.msra.mxu0 %v9263
  %10943 = vmatmul.bf16.gmra.mxu0 %v9975
  %v10944 = vpop.f32.mrf.mxu0
  %v10945 = vadd.f32 0.0, %v10944
  %v10946 = vpop.f32.mrf.mxu0
  %v10947 = vadd.f32 0.0, %v10946
  %10948 = vmatmul.bf16.gmra.mxu0 %v9977
  %v10949 = vpop.f32.mrf.mxu0
  %v10950 = vadd.f32 0.0, %v10949
  %v10951 = vpop.f32.mrf.mxu0
  %v10952 = vadd.f32 0.0, %v10951
  %10953 = vmatmul.bf16.gmra.mxu0 %v9979
  %v10954 = vpop.f32.mrf.mxu0
  %v10955 = vadd.f32 0.0, %v10954
  %v10956 = vpop.f32.mrf.mxu0
  %v10957 = vadd.f32 0.0, %v10956
  %10958 = vmatmul.bf16.gmra.mxu0 %v9981
  %v10959 = vpop.f32.mrf.mxu0
  %v10960 = vadd.f32 0.0, %v10959
  %v10961 = vpop.f32.mrf.mxu0
  %v10962 = vadd.f32 0.0, %v10961
  %10963 = vmatmul.bf16.gmra.mxu0 %v9983
  %v10964 = vpop.f32.mrf.mxu0
  %v10965 = vadd.f32 0.0, %v10964
  %v10966 = vpop.f32.mrf.mxu0
  %v10967 = vadd.f32 0.0, %v10966
  %10968 = vmatmul.bf16.gmra.mxu0 %v9985
  %v10969 = vpop.f32.mrf.mxu0
  %v10970 = vadd.f32 0.0, %v10969
  %v10971 = vpop.f32.mrf.mxu0
  %v10972 = vadd.f32 0.0, %v10971
  %10973 = vdwg.mxu0
  %10974 = vmatpush.bf16.msra.mxu0 %v9726
  %10975 = vmatpush.bf16.msra.mxu0 %v9596
  %10976 = vmatpush.bf16.msra.mxu0 %v9725
  %10977 = vmatpush.bf16.msra.mxu0 %v9595
  %10978 = vmatpush.bf16.msra.mxu0 %v9420
  %10979 = vmatpush.bf16.msra.mxu0 %v9290
  %10980 = vmatpush.bf16.msra.mxu0 %v9419
  %10981 = vmatpush.bf16.msra.mxu0 %v9289
  %10982 = vmatmul.bf16.gmra.mxu0 %v9976
  %v10983 = vpop.f32.mrf.mxu0
  %v10984 = vadd.f32 %v10945, %v10983
  %v10985 = vpop.f32.mrf.mxu0
  %v10986 = vadd.f32 %v10947, %v10985
  %10987 = vmatmul.bf16.gmra.mxu0 %v9978
  %v10988 = vpop.f32.mrf.mxu0
  %v10989 = vadd.f32 %v10950, %v10988
  %v10990 = vpop.f32.mrf.mxu0
  %v10991 = vadd.f32 %v10952, %v10990
  %10992 = vmatmul.bf16.gmra.mxu0 %v9980
  %v10993 = vpop.f32.mrf.mxu0
  %v10994 = vadd.f32 %v10955, %v10993
  %v10995 = vpop.f32.mrf.mxu0
  %v10996 = vadd.f32 %v10957, %v10995
  %10997 = vmatmul.bf16.gmra.mxu0 %v9982
  %v10998 = vpop.f32.mrf.mxu0
  %v10999 = vadd.f32 %v10960, %v10998
  %v11000 = vpop.f32.mrf.mxu0
  %v11001 = vadd.f32 %v10962, %v11000
  %11002 = vmatmul.bf16.gmra.mxu0 %v9984
  %v11003 = vpop.f32.mrf.mxu0
  %v11004 = vadd.f32 %v10965, %v11003
  %v11005 = vpop.f32.mrf.mxu0
  %v11006 = vadd.f32 %v10967, %v11005
  %11007 = vmatmul.bf16.gmra.mxu0 %v9986
  %v11008 = vpop.f32.mrf.mxu0
  %v11009 = vadd.f32 %v10970, %v11008
  %v11010 = vpop.f32.mrf.mxu0
  %v11011 = vadd.f32 %v10972, %v11010
  %11012 = vdwg.mxu0
  %11013 = vmatpush.bf16.msra.mxu0 %v9701
  %11014 = vmatpush.bf16.msra.mxu0 %v9571
  %11015 = vmatpush.bf16.msra.mxu0 %v9700
  %11016 = vmatpush.bf16.msra.mxu0 %v9570
  %11017 = vmatpush.bf16.msra.mxu0 %v9395
  %11018 = vmatpush.bf16.msra.mxu0 %v9265
  %11019 = vmatpush.bf16.msra.mxu0 %v9394
  %11020 = vmatpush.bf16.msra.mxu0 %v9264
  %11021 = vmatmul.bf16.gmra.mxu0 %v9975
  %v11022 = vpop.f32.mrf.mxu0
  %v11023 = vadd.f32 0.0, %v11022
  %v11024 = vpop.f32.mrf.mxu0
  %v11025 = vadd.f32 0.0, %v11024
  %11026 = vmatmul.bf16.gmra.mxu0 %v9977
  %v11027 = vpop.f32.mrf.mxu0
  %v11028 = vadd.f32 0.0, %v11027
  %v11029 = vpop.f32.mrf.mxu0
  %v11030 = vadd.f32 0.0, %v11029
  %11031 = vmatmul.bf16.gmra.mxu0 %v9979
  %v11032 = vpop.f32.mrf.mxu0
  %v11033 = vadd.f32 0.0, %v11032
  %v11034 = vpop.f32.mrf.mxu0
  %v11035 = vadd.f32 0.0, %v11034
  %11036 = vmatmul.bf16.gmra.mxu0 %v9981
  %v11037 = vpop.f32.mrf.mxu0
  %v11038 = vadd.f32 0.0, %v11037
  %v11039 = vpop.f32.mrf.mxu0
  %v11040 = vadd.f32 0.0, %v11039
  %11041 = vmatmul.bf16.gmra.mxu0 %v9983
  %v11042 = vpop.f32.mrf.mxu0
  %v11043 = vadd.f32 0.0, %v11042
  %v11044 = vpop.f32.mrf.mxu0
  %v11045 = vadd.f32 0.0, %v11044
  %11046 = vmatmul.bf16.gmra.mxu0 %v9985
  %v11047 = vpop.f32.mrf.mxu0
  %v11048 = vadd.f32 0.0, %v11047
  %v11049 = vpop.f32.mrf.mxu0
  %v11050 = vadd.f32 0.0, %v11049
  %11051 = vdwg.mxu0
  %11052 = vmatpush.bf16.msra.mxu0 %v9727
  %11053 = vmatpush.bf16.msra.mxu0 %v9597
  %11054 = vmatpush.bf16.msra.mxu0 %v9726
  %11055 = vmatpush.bf16.msra.mxu0 %v9596
  %11056 = vmatpush.bf16.msra.mxu0 %v9421
  %11057 = vmatpush.bf16.msra.mxu0 %v9291
  %11058 = vmatpush.bf16.msra.mxu0 %v9420
  %11059 = vmatpush.bf16.msra.mxu0 %v9290
  %11060 = vmatmul.bf16.gmra.mxu0 %v9976
  %v11061 = vpop.f32.mrf.mxu0
  %v11062 = vadd.f32 %v11023, %v11061
  %v11063 = vpop.f32.mrf.mxu0
  %v11064 = vadd.f32 %v11025, %v11063
  %11065 = vmatmul.bf16.gmra.mxu0 %v9978
  %v11066 = vpop.f32.mrf.mxu0
  %v11067 = vadd.f32 %v11028, %v11066
  %v11068 = vpop.f32.mrf.mxu0
  %v11069 = vadd.f32 %v11030, %v11068
  %11070 = vmatmul.bf16.gmra.mxu0 %v9980
  %v11071 = vpop.f32.mrf.mxu0
  %v11072 = vadd.f32 %v11033, %v11071
  %v11073 = vpop.f32.mrf.mxu0
  %v11074 = vadd.f32 %v11035, %v11073
  %11075 = vmatmul.bf16.gmra.mxu0 %v9982
  %v11076 = vpop.f32.mrf.mxu0
  %v11077 = vadd.f32 %v11038, %v11076
  %v11078 = vpop.f32.mrf.mxu0
  %v11079 = vadd.f32 %v11040, %v11078
  %11080 = vmatmul.bf16.gmra.mxu0 %v9984
  %v11081 = vpop.f32.mrf.mxu0
  %v11082 = vadd.f32 %v11043, %v11081
  %v11083 = vpop.f32.mrf.mxu0
  %v11084 = vadd.f32 %v11045, %v11083
  %11085 = vmatmul.bf16.gmra.mxu0 %v9986
  %v11086 = vpop.f32.mrf.mxu0
  %v11087 = vadd.f32 %v11048, %v11086
  %v11088 = vpop.f32.mrf.mxu0
  %v11089 = vadd.f32 %v11050, %v11088
  %11090 = vdwg.mxu0
  %11091 = vmatpush.bf16.msra.mxu0 %v9795
  %11092 = vmatpush.bf16.msra.mxu0 %v9773
  %11093 = vmatpush.bf16.msra.mxu0 %v9701
  %11094 = vmatpush.bf16.msra.mxu0 %v9571
  %11095 = vmatpush.bf16.msra.mxu0 %v9487
  %11096 = vmatpush.bf16.msra.mxu0 %v9465
  %11097 = vmatpush.bf16.msra.mxu0 %v9395
  %11098 = vmatpush.bf16.msra.mxu0 %v9265
  %11099 = vmatmul.bf16.gmra.mxu0 %v9975
  %v11100 = vpop.f32.mrf.mxu0
  %v11101 = vadd.f32 0.0, %v11100
  %v11102 = vpop.f32.mrf.mxu0
  %v11103 = vadd.f32 0.0, %v11102
  %11104 = vmatmul.bf16.gmra.mxu0 %v9977
  %v11105 = vpop.f32.mrf.mxu0
  %v11106 = vadd.f32 0.0, %v11105
  %v11107 = vpop.f32.mrf.mxu0
  %v11108 = vadd.f32 0.0, %v11107
  %11109 = vmatmul.bf16.gmra.mxu0 %v9979
  %v11110 = vpop.f32.mrf.mxu0
  %v11111 = vadd.f32 0.0, %v11110
  %v11112 = vpop.f32.mrf.mxu0
  %v11113 = vadd.f32 0.0, %v11112
  %11114 = vmatmul.bf16.gmra.mxu0 %v9981
  %v11115 = vpop.f32.mrf.mxu0
  %v11116 = vadd.f32 0.0, %v11115
  %v11117 = vpop.f32.mrf.mxu0
  %v11118 = vadd.f32 0.0, %v11117
  %11119 = vmatmul.bf16.gmra.mxu0 %v9983
  %v11120 = vpop.f32.mrf.mxu0
  %v11121 = vadd.f32 0.0, %v11120
  %v11122 = vpop.f32.mrf.mxu0
  %v11123 = vadd.f32 0.0, %v11122
  %11124 = vmatmul.bf16.gmra.mxu0 %v9985
  %v11125 = vpop.f32.mrf.mxu0
  %v11126 = vadd.f32 0.0, %v11125
  %v11127 = vpop.f32.mrf.mxu0
  %v11128 = vadd.f32 0.0, %v11127
  %11129 = vdwg.mxu0
  %11130 = vmatpush.bf16.msra.mxu0 %v9799
  %11131 = vmatpush.bf16.msra.mxu0 %v9777
  %11132 = vmatpush.bf16.msra.mxu0 %v9727
  %11133 = vmatpush.bf16.msra.mxu0 %v9597
  %11134 = vmatpush.bf16.msra.mxu0 %v9491
  %11135 = vmatpush.bf16.msra.mxu0 %v9471
  %11136 = vmatpush.bf16.msra.mxu0 %v9421
  %11137 = vmatpush.bf16.msra.mxu0 %v9291
  %11138 = vmatmul.bf16.gmra.mxu0 %v9976
  %v11139 = vpop.f32.mrf.mxu0
  %v11140 = vadd.f32 %v11101, %v11139
  %v11141 = vpop.f32.mrf.mxu0
  %v11142 = vadd.f32 %v11103, %v11141
  %11143 = vmatmul.bf16.gmra.mxu0 %v9978
  %v11144 = vpop.f32.mrf.mxu0
  %v11145 = vadd.f32 %v11106, %v11144
  %v11146 = vpop.f32.mrf.mxu0
  %v11147 = vadd.f32 %v11108, %v11146
  %11148 = vmatmul.bf16.gmra.mxu0 %v9980
  %v11149 = vpop.f32.mrf.mxu0
  %v11150 = vadd.f32 %v11111, %v11149
  %v11151 = vpop.f32.mrf.mxu0
  %v11152 = vadd.f32 %v11113, %v11151
  %11153 = vmatmul.bf16.gmra.mxu0 %v9982
  %v11154 = vpop.f32.mrf.mxu0
  %v11155 = vadd.f32 %v11116, %v11154
  %v11156 = vpop.f32.mrf.mxu0
  %v11157 = vadd.f32 %v11118, %v11156
  %11158 = vmatmul.bf16.gmra.mxu0 %v9984
  %v11159 = vpop.f32.mrf.mxu0
  %v11160 = vadd.f32 %v11121, %v11159
  %v11161 = vpop.f32.mrf.mxu0
  %v11162 = vadd.f32 %v11123, %v11161
  %11163 = vmatmul.bf16.gmra.mxu0 %v9986
  %v11164 = vpop.f32.mrf.mxu0
  %v11165 = vadd.f32 %v11126, %v11164
  %v11166 = vpop.f32.mrf.mxu0
  %v11167 = vadd.f32 %v11128, %v11166
  %11168 = vdwg.mxu0
  %11169 = vmatpush.bf16.msra.mxu0 %v9724
  %11170 = vmatpush.bf16.msra.mxu0 %v9594
  %11171 = vmatpush.bf16.msra.mxu0 %v9723
  %11172 = vmatpush.bf16.msra.mxu0 %v9593
  %11173 = vmatpush.bf16.msra.mxu0 %v9418
  %11174 = vmatpush.bf16.msra.mxu0 %v9288
  %11175 = vmatpush.bf16.msra.mxu0 %v9417
  %11176 = vmatpush.bf16.msra.mxu0 %v9287
  %11177 = vmatmul.bf16.gmra.mxu0 %v9975
  %v11178 = vpop.f32.mrf.mxu0
  %v11179 = vadd.f32 0.0, %v11178
  %v11180 = vpop.f32.mrf.mxu0
  %v11181 = vadd.f32 0.0, %v11180
  %11182 = vmatmul.bf16.gmra.mxu0 %v9977
  %v11183 = vpop.f32.mrf.mxu0
  %v11184 = vadd.f32 0.0, %v11183
  %v11185 = vpop.f32.mrf.mxu0
  %v11186 = vadd.f32 0.0, %v11185
  %11187 = vmatmul.bf16.gmra.mxu0 %v9979
  %v11188 = vpop.f32.mrf.mxu0
  %v11189 = vadd.f32 0.0, %v11188
  %v11190 = vpop.f32.mrf.mxu0
  %v11191 = vadd.f32 0.0, %v11190
  %11192 = vmatmul.bf16.gmra.mxu0 %v9981
  %v11193 = vpop.f32.mrf.mxu0
  %v11194 = vadd.f32 0.0, %v11193
  %v11195 = vpop.f32.mrf.mxu0
  %v11196 = vadd.f32 0.0, %v11195
  %11197 = vmatmul.bf16.gmra.mxu0 %v9983
  %v11198 = vpop.f32.mrf.mxu0
  %v11199 = vadd.f32 0.0, %v11198
  %v11200 = vpop.f32.mrf.mxu0
  %v11201 = vadd.f32 0.0, %v11200
  %11202 = vmatmul.bf16.gmra.mxu0 %v9985
  %v11203 = vpop.f32.mrf.mxu0
  %v11204 = vadd.f32 0.0, %v11203
  %v11205 = vpop.f32.mrf.mxu0
  %v11206 = vadd.f32 0.0, %v11205
  %11207 = vdwg.mxu0
  %11208 = vmatpush.bf16.msra.mxu0 %v9750
  %11209 = vmatpush.bf16.msra.mxu0 %v9620
  %11210 = vmatpush.bf16.msra.mxu0 %v9749
  %11211 = vmatpush.bf16.msra.mxu0 %v9619
  %11212 = vmatpush.bf16.msra.mxu0 %v9444
  %11213 = vmatpush.bf16.msra.mxu0 %v9314
  %11214 = vmatpush.bf16.msra.mxu0 %v9443
  %11215 = vmatpush.bf16.msra.mxu0 %v9313
  %11216 = vmatmul.bf16.gmra.mxu0 %v9976
  %v11217 = vpop.f32.mrf.mxu0
  %v11218 = vadd.f32 %v11179, %v11217
  %v11219 = vpop.f32.mrf.mxu0
  %v11220 = vadd.f32 %v11181, %v11219
  %11221 = vmatmul.bf16.gmra.mxu0 %v9978
  %v11222 = vpop.f32.mrf.mxu0
  %v11223 = vadd.f32 %v11184, %v11222
  %v11224 = vpop.f32.mrf.mxu0
  %v11225 = vadd.f32 %v11186, %v11224
  %11226 = vmatmul.bf16.gmra.mxu0 %v9980
  %v11227 = vpop.f32.mrf.mxu0
  %v11228 = vadd.f32 %v11189, %v11227
  %v11229 = vpop.f32.mrf.mxu0
  %v11230 = vadd.f32 %v11191, %v11229
  %11231 = vmatmul.bf16.gmra.mxu0 %v9982
  %v11232 = vpop.f32.mrf.mxu0
  %v11233 = vadd.f32 %v11194, %v11232
  %v11234 = vpop.f32.mrf.mxu0
  %v11235 = vadd.f32 %v11196, %v11234
  %11236 = vmatmul.bf16.gmra.mxu0 %v9984
  %v11237 = vpop.f32.mrf.mxu0
  %v11238 = vadd.f32 %v11199, %v11237
  %v11239 = vpop.f32.mrf.mxu0
  %v11240 = vadd.f32 %v11201, %v11239
  %11241 = vmatmul.bf16.gmra.mxu0 %v9986
  %v11242 = vpop.f32.mrf.mxu0
  %v11243 = vadd.f32 %v11204, %v11242
  %v11244 = vpop.f32.mrf.mxu0
  %v11245 = vadd.f32 %v11206, %v11244
  %11246 = vdwg.mxu0
  %11247 = vmatpush.bf16.msra.mxu0 %v9725
  %11248 = vmatpush.bf16.msra.mxu0 %v9595
  %11249 = vmatpush.bf16.msra.mxu0 %v9724
  %11250 = vmatpush.bf16.msra.mxu0 %v9594
  %11251 = vmatpush.bf16.msra.mxu0 %v9419
  %11252 = vmatpush.bf16.msra.mxu0 %v9289
  %11253 = vmatpush.bf16.msra.mxu0 %v9418
  %11254 = vmatpush.bf16.msra.mxu0 %v9288
  %11255 = vmatmul.bf16.gmra.mxu0 %v9975
  %v11256 = vpop.f32.mrf.mxu0
  %v11257 = vadd.f32 0.0, %v11256
  %v11258 = vpop.f32.mrf.mxu0
  %v11259 = vadd.f32 0.0, %v11258
  %11260 = vmatmul.bf16.gmra.mxu0 %v9977
  %v11261 = vpop.f32.mrf.mxu0
  %v11262 = vadd.f32 0.0, %v11261
  %v11263 = vpop.f32.mrf.mxu0
  %v11264 = vadd.f32 0.0, %v11263
  %11265 = vmatmul.bf16.gmra.mxu0 %v9979
  %v11266 = vpop.f32.mrf.mxu0
  %v11267 = vadd.f32 0.0, %v11266
  %v11268 = vpop.f32.mrf.mxu0
  %v11269 = vadd.f32 0.0, %v11268
  %11270 = vmatmul.bf16.gmra.mxu0 %v9981
  %v11271 = vpop.f32.mrf.mxu0
  %v11272 = vadd.f32 0.0, %v11271
  %v11273 = vpop.f32.mrf.mxu0
  %v11274 = vadd.f32 0.0, %v11273
  %11275 = vmatmul.bf16.gmra.mxu0 %v9983
  %v11276 = vpop.f32.mrf.mxu0
  %v11277 = vadd.f32 0.0, %v11276
  %v11278 = vpop.f32.mrf.mxu0
  %v11279 = vadd.f32 0.0, %v11278
  %11280 = vmatmul.bf16.gmra.mxu0 %v9985
  %v11281 = vpop.f32.mrf.mxu0
  %v11282 = vadd.f32 0.0, %v11281
  %v11283 = vpop.f32.mrf.mxu0
  %v11284 = vadd.f32 0.0, %v11283
  %11285 = vdwg.mxu0
  %11286 = vmatpush.bf16.msra.mxu0 %v9751
  %11287 = vmatpush.bf16.msra.mxu0 %v9621
  %11288 = vmatpush.bf16.msra.mxu0 %v9750
  %11289 = vmatpush.bf16.msra.mxu0 %v9620
  %11290 = vmatpush.bf16.msra.mxu0 %v9445
  %11291 = vmatpush.bf16.msra.mxu0 %v9315
  %11292 = vmatpush.bf16.msra.mxu0 %v9444
  %11293 = vmatpush.bf16.msra.mxu0 %v9314
  %11294 = vmatmul.bf16.gmra.mxu0 %v9976
  %v11295 = vpop.f32.mrf.mxu0
  %v11296 = vadd.f32 %v11257, %v11295
  %v11297 = vpop.f32.mrf.mxu0
  %v11298 = vadd.f32 %v11259, %v11297
  %11299 = vmatmul.bf16.gmra.mxu0 %v9978
  %v11300 = vpop.f32.mrf.mxu0
  %v11301 = vadd.f32 %v11262, %v11300
  %v11302 = vpop.f32.mrf.mxu0
  %v11303 = vadd.f32 %v11264, %v11302
  %11304 = vmatmul.bf16.gmra.mxu0 %v9980
  %v11305 = vpop.f32.mrf.mxu0
  %v11306 = vadd.f32 %v11267, %v11305
  %v11307 = vpop.f32.mrf.mxu0
  %v11308 = vadd.f32 %v11269, %v11307
  %11309 = vmatmul.bf16.gmra.mxu0 %v9982
  %v11310 = vpop.f32.mrf.mxu0
  %v11311 = vadd.f32 %v11272, %v11310
  %v11312 = vpop.f32.mrf.mxu0
  %v11313 = vadd.f32 %v11274, %v11312
  %11314 = vmatmul.bf16.gmra.mxu0 %v9984
  %v11315 = vpop.f32.mrf.mxu0
  %v11316 = vadd.f32 %v11277, %v11315
  %v11317 = vpop.f32.mrf.mxu0
  %v11318 = vadd.f32 %v11279, %v11317
  %11319 = vmatmul.bf16.gmra.mxu0 %v9986
  %v11320 = vpop.f32.mrf.mxu0
  %v11321 = vadd.f32 %v11282, %v11320
  %v11322 = vpop.f32.mrf.mxu0
  %v11323 = vadd.f32 %v11284, %v11322
  %11324 = vdwg.mxu0
  %11325 = vmatpush.bf16.msra.mxu0 %v9726
  %11326 = vmatpush.bf16.msra.mxu0 %v9596
  %11327 = vmatpush.bf16.msra.mxu0 %v9725
  %11328 = vmatpush.bf16.msra.mxu0 %v9595
  %11329 = vmatpush.bf16.msra.mxu0 %v9420
  %11330 = vmatpush.bf16.msra.mxu0 %v9290
  %11331 = vmatpush.bf16.msra.mxu0 %v9419
  %11332 = vmatpush.bf16.msra.mxu0 %v9289
  %11333 = vmatmul.bf16.gmra.mxu0 %v9975
  %v11334 = vpop.f32.mrf.mxu0
  %v11335 = vadd.f32 0.0, %v11334
  %v11336 = vpop.f32.mrf.mxu0
  %v11337 = vadd.f32 0.0, %v11336
  %11338 = vmatmul.bf16.gmra.mxu0 %v9977
  %v11339 = vpop.f32.mrf.mxu0
  %v11340 = vadd.f32 0.0, %v11339
  %v11341 = vpop.f32.mrf.mxu0
  %v11342 = vadd.f32 0.0, %v11341
  %11343 = vmatmul.bf16.gmra.mxu0 %v9979
  %v11344 = vpop.f32.mrf.mxu0
  %v11345 = vadd.f32 0.0, %v11344
  %v11346 = vpop.f32.mrf.mxu0
  %v11347 = vadd.f32 0.0, %v11346
  %11348 = vmatmul.bf16.gmra.mxu0 %v9981
  %v11349 = vpop.f32.mrf.mxu0
  %v11350 = vadd.f32 0.0, %v11349
  %v11351 = vpop.f32.mrf.mxu0
  %v11352 = vadd.f32 0.0, %v11351
  %11353 = vmatmul.bf16.gmra.mxu0 %v9983
  %v11354 = vpop.f32.mrf.mxu0
  %v11355 = vadd.f32 0.0, %v11354
  %v11356 = vpop.f32.mrf.mxu0
  %v11357 = vadd.f32 0.0, %v11356
  %11358 = vmatmul.bf16.gmra.mxu0 %v9985
  %v11359 = vpop.f32.mrf.mxu0
  %v11360 = vadd.f32 0.0, %v11359
  %v11361 = vpop.f32.mrf.mxu0
  %v11362 = vadd.f32 0.0, %v11361
  %11363 = vdwg.mxu0
  %11364 = vmatpush.bf16.msra.mxu0 %v9752
  %11365 = vmatpush.bf16.msra.mxu0 %v9622
  %11366 = vmatpush.bf16.msra.mxu0 %v9751
  %11367 = vmatpush.bf16.msra.mxu0 %v9621
  %11368 = vmatpush.bf16.msra.mxu0 %v9446
  %11369 = vmatpush.bf16.msra.mxu0 %v9316
  %11370 = vmatpush.bf16.msra.mxu0 %v9445
  %11371 = vmatpush.bf16.msra.mxu0 %v9315
  %11372 = vmatmul.bf16.gmra.mxu0 %v9976
  %v11373 = vpop.f32.mrf.mxu0
  %v11374 = vadd.f32 %v11335, %v11373
  %v11375 = vpop.f32.mrf.mxu0
  %v11376 = vadd.f32 %v11337, %v11375
  %11377 = vmatmul.bf16.gmra.mxu0 %v9978
  %v11378 = vpop.f32.mrf.mxu0
  %v11379 = vadd.f32 %v11340, %v11378
  %v11380 = vpop.f32.mrf.mxu0
  %v11381 = vadd.f32 %v11342, %v11380
  %11382 = vmatmul.bf16.gmra.mxu0 %v9980
  %v11383 = vpop.f32.mrf.mxu0
  %v11384 = vadd.f32 %v11345, %v11383
  %v11385 = vpop.f32.mrf.mxu0
  %v11386 = vadd.f32 %v11347, %v11385
  %11387 = vmatmul.bf16.gmra.mxu0 %v9982
  %v11388 = vpop.f32.mrf.mxu0
  %v11389 = vadd.f32 %v11350, %v11388
  %v11390 = vpop.f32.mrf.mxu0
  %v11391 = vadd.f32 %v11352, %v11390
  %11392 = vmatmul.bf16.gmra.mxu0 %v9984
  %v11393 = vpop.f32.mrf.mxu0
  %v11394 = vadd.f32 %v11355, %v11393
  %v11395 = vpop.f32.mrf.mxu0
  %v11396 = vadd.f32 %v11357, %v11395
  %11397 = vmatmul.bf16.gmra.mxu0 %v9986
  %v11398 = vpop.f32.mrf.mxu0
  %v11399 = vadd.f32 %v11360, %v11398
  %v11400 = vpop.f32.mrf.mxu0
  %v11401 = vadd.f32 %v11362, %v11400
  %11402 = vdwg.mxu0
  %11403 = vmatpush.bf16.msra.mxu0 %v9727
  %11404 = vmatpush.bf16.msra.mxu0 %v9597
  %11405 = vmatpush.bf16.msra.mxu0 %v9726
  %11406 = vmatpush.bf16.msra.mxu0 %v9596
  %11407 = vmatpush.bf16.msra.mxu0 %v9421
  %11408 = vmatpush.bf16.msra.mxu0 %v9291
  %11409 = vmatpush.bf16.msra.mxu0 %v9420
  %11410 = vmatpush.bf16.msra.mxu0 %v9290
  %11411 = vmatmul.bf16.gmra.mxu0 %v9975
  %v11412 = vpop.f32.mrf.mxu0
  %v11413 = vadd.f32 0.0, %v11412
  %v11414 = vpop.f32.mrf.mxu0
  %v11415 = vadd.f32 0.0, %v11414
  %11416 = vmatmul.bf16.gmra.mxu0 %v9977
  %v11417 = vpop.f32.mrf.mxu0
  %v11418 = vadd.f32 0.0, %v11417
  %v11419 = vpop.f32.mrf.mxu0
  %v11420 = vadd.f32 0.0, %v11419
  %11421 = vmatmul.bf16.gmra.mxu0 %v9979
  %v11422 = vpop.f32.mrf.mxu0
  %v11423 = vadd.f32 0.0, %v11422
  %v11424 = vpop.f32.mrf.mxu0
  %v11425 = vadd.f32 0.0, %v11424
  %11426 = vmatmul.bf16.gmra.mxu0 %v9981
  %v11427 = vpop.f32.mrf.mxu0
  %v11428 = vadd.f32 0.0, %v11427
  %v11429 = vpop.f32.mrf.mxu0
  %v11430 = vadd.f32 0.0, %v11429
  %11431 = vmatmul.bf16.gmra.mxu0 %v9983
  %v11432 = vpop.f32.mrf.mxu0
  %v11433 = vadd.f32 0.0, %v11432
  %v11434 = vpop.f32.mrf.mxu0
  %v11435 = vadd.f32 0.0, %v11434
  %11436 = vmatmul.bf16.gmra.mxu0 %v9985
  %v11437 = vpop.f32.mrf.mxu0
  %v11438 = vadd.f32 0.0, %v11437
  %v11439 = vpop.f32.mrf.mxu0
  %v11440 = vadd.f32 0.0, %v11439
  %11441 = vdwg.mxu0
  %11442 = vmatpush.bf16.msra.mxu0 %v9753
  %11443 = vmatpush.bf16.msra.mxu0 %v9623
  %11444 = vmatpush.bf16.msra.mxu0 %v9752
  %11445 = vmatpush.bf16.msra.mxu0 %v9622
  %11446 = vmatpush.bf16.msra.mxu0 %v9447
  %11447 = vmatpush.bf16.msra.mxu0 %v9317
  %11448 = vmatpush.bf16.msra.mxu0 %v9446
  %11449 = vmatpush.bf16.msra.mxu0 %v9316
  %11450 = vmatmul.bf16.gmra.mxu0 %v9976
  %v11451 = vpop.f32.mrf.mxu0
  %v11452 = vadd.f32 %v11413, %v11451
  %v11453 = vpop.f32.mrf.mxu0
  %v11454 = vadd.f32 %v11415, %v11453
  %11455 = vmatmul.bf16.gmra.mxu0 %v9978
  %v11456 = vpop.f32.mrf.mxu0
  %v11457 = vadd.f32 %v11418, %v11456
  %v11458 = vpop.f32.mrf.mxu0
  %v11459 = vadd.f32 %v11420, %v11458
  %11460 = vmatmul.bf16.gmra.mxu0 %v9980
  %v11461 = vpop.f32.mrf.mxu0
  %v11462 = vadd.f32 %v11423, %v11461
  %v11463 = vpop.f32.mrf.mxu0
  %v11464 = vadd.f32 %v11425, %v11463
  %11465 = vmatmul.bf16.gmra.mxu0 %v9982
  %v11466 = vpop.f32.mrf.mxu0
  %v11467 = vadd.f32 %v11428, %v11466
  %v11468 = vpop.f32.mrf.mxu0
  %v11469 = vadd.f32 %v11430, %v11468
  %11470 = vmatmul.bf16.gmra.mxu0 %v9984
  %v11471 = vpop.f32.mrf.mxu0
  %v11472 = vadd.f32 %v11433, %v11471
  %v11473 = vpop.f32.mrf.mxu0
  %v11474 = vadd.f32 %v11435, %v11473
  %11475 = vmatmul.bf16.gmra.mxu0 %v9986
  %v11476 = vpop.f32.mrf.mxu0
  %v11477 = vadd.f32 %v11438, %v11476
  %v11478 = vpop.f32.mrf.mxu0
  %v11479 = vadd.f32 %v11440, %v11478
  %11480 = vdwg.mxu0
  %11481 = vmatpush.bf16.msra.mxu0 %v9799
  %11482 = vmatpush.bf16.msra.mxu0 %v9777
  %11483 = vmatpush.bf16.msra.mxu0 %v9727
  %11484 = vmatpush.bf16.msra.mxu0 %v9597
  %11485 = vmatpush.bf16.msra.mxu0 %v9491
  %11486 = vmatpush.bf16.msra.mxu0 %v9471
  %11487 = vmatpush.bf16.msra.mxu0 %v9421
  %11488 = vmatpush.bf16.msra.mxu0 %v9291
  %11489 = vmatmul.bf16.gmra.mxu0 %v9975
  %v11490 = vpop.f32.mrf.mxu0
  %v11491 = vadd.f32 0.0, %v11490
  %v11492 = vpop.f32.mrf.mxu0
  %v11493 = vadd.f32 0.0, %v11492
  %11494 = vmatmul.bf16.gmra.mxu0 %v9977
  %v11495 = vpop.f32.mrf.mxu0
  %v11496 = vadd.f32 0.0, %v11495
  %v11497 = vpop.f32.mrf.mxu0
  %v11498 = vadd.f32 0.0, %v11497
  %11499 = vmatmul.bf16.gmra.mxu0 %v9979
  %v11500 = vpop.f32.mrf.mxu0
  %v11501 = vadd.f32 0.0, %v11500
  %v11502 = vpop.f32.mrf.mxu0
  %v11503 = vadd.f32 0.0, %v11502
  %11504 = vmatmul.bf16.gmra.mxu0 %v9981
  %v11505 = vpop.f32.mrf.mxu0
  %v11506 = vadd.f32 0.0, %v11505
  %v11507 = vpop.f32.mrf.mxu0
  %v11508 = vadd.f32 0.0, %v11507
  %11509 = vmatmul.bf16.gmra.mxu0 %v9983
  %v11510 = vpop.f32.mrf.mxu0
  %v11511 = vadd.f32 0.0, %v11510
  %v11512 = vpop.f32.mrf.mxu0
  %v11513 = vadd.f32 0.0, %v11512
  %11514 = vmatmul.bf16.gmra.mxu0 %v9985
  %v11515 = vpop.f32.mrf.mxu0
  %v11516 = vadd.f32 0.0, %v11515
  %v11517 = vpop.f32.mrf.mxu0
  %v11518 = vadd.f32 0.0, %v11517
  %11519 = vdwg.mxu0
  %11520 = vmatpush.bf16.msra.mxu0 %v9803
  %11521 = vmatpush.bf16.msra.mxu0 %v9783
  %11522 = vmatpush.bf16.msra.mxu0 %v9753
  %11523 = vmatpush.bf16.msra.mxu0 %v9623
  %11524 = vmatpush.bf16.msra.mxu0 %v9497
  %11525 = vmatpush.bf16.msra.mxu0 %v9475
  %11526 = vmatpush.bf16.msra.mxu0 %v9447
  %11527 = vmatpush.bf16.msra.mxu0 %v9317
  %11528 = vmatmul.bf16.gmra.mxu0 %v9976
  %v11529 = vpop.f32.mrf.mxu0
  %v11530 = vadd.f32 %v11491, %v11529
  %v11531 = vpop.f32.mrf.mxu0
  %v11532 = vadd.f32 %v11493, %v11531
  %11533 = vmatmul.bf16.gmra.mxu0 %v9978
  %v11534 = vpop.f32.mrf.mxu0
  %v11535 = vadd.f32 %v11496, %v11534
  %v11536 = vpop.f32.mrf.mxu0
  %v11537 = vadd.f32 %v11498, %v11536
  %11538 = vmatmul.bf16.gmra.mxu0 %v9980
  %v11539 = vpop.f32.mrf.mxu0
  %v11540 = vadd.f32 %v11501, %v11539
  %v11541 = vpop.f32.mrf.mxu0
  %v11542 = vadd.f32 %v11503, %v11541
  %11543 = vmatmul.bf16.gmra.mxu0 %v9982
  %v11544 = vpop.f32.mrf.mxu0
  %v11545 = vadd.f32 %v11506, %v11544
  %v11546 = vpop.f32.mrf.mxu0
  %v11547 = vadd.f32 %v11508, %v11546
  %11548 = vmatmul.bf16.gmra.mxu0 %v9984
  %v11549 = vpop.f32.mrf.mxu0
  %v11550 = vadd.f32 %v11511, %v11549
  %v11551 = vpop.f32.mrf.mxu0
  %v11552 = vadd.f32 %v11513, %v11551
  %11553 = vmatmul.bf16.gmra.mxu0 %v9986
  %v11554 = vpop.f32.mrf.mxu0
  %v11555 = vadd.f32 %v11516, %v11554
  %v11556 = vpop.f32.mrf.mxu0
  %v11557 = vadd.f32 %v11518, %v11556
  %11558 = vdwg.mxu0
  %11559 = vmatpush.bf16.msra.mxu0 %v9750
  %11560 = vmatpush.bf16.msra.mxu0 %v9620
  %11561 = vmatpush.bf16.msra.mxu0 %v9749
  %11562 = vmatpush.bf16.msra.mxu0 %v9619
  %11563 = vmatpush.bf16.msra.mxu0 %v9444
  %11564 = vmatpush.bf16.msra.mxu0 %v9314
  %11565 = vmatpush.bf16.msra.mxu0 %v9443
  %11566 = vmatpush.bf16.msra.mxu0 %v9313
  %11567 = vmatmul.bf16.gmra.mxu0 %v9975
  %v11568 = vpop.f32.mrf.mxu0
  %v11569 = vadd.f32 0.0, %v11568
  %v11570 = vpop.f32.mrf.mxu0
  %v11571 = vadd.f32 0.0, %v11570
  %11572 = vmatmul.bf16.gmra.mxu0 %v9977
  %v11573 = vpop.f32.mrf.mxu0
  %v11574 = vadd.f32 0.0, %v11573
  %v11575 = vpop.f32.mrf.mxu0
  %v11576 = vadd.f32 0.0, %v11575
  %11577 = vmatmul.bf16.gmra.mxu0 %v9979
  %v11578 = vpop.f32.mrf.mxu0
  %v11579 = vadd.f32 0.0, %v11578
  %v11580 = vpop.f32.mrf.mxu0
  %v11581 = vadd.f32 0.0, %v11580
  %11582 = vmatmul.bf16.gmra.mxu0 %v9981
  %v11583 = vpop.f32.mrf.mxu0
  %v11584 = vadd.f32 0.0, %v11583
  %v11585 = vpop.f32.mrf.mxu0
  %v11586 = vadd.f32 0.0, %v11585
  %11587 = vmatmul.bf16.gmra.mxu0 %v9983
  %v11588 = vpop.f32.mrf.mxu0
  %v11589 = vadd.f32 0.0, %v11588
  %v11590 = vpop.f32.mrf.mxu0
  %v11591 = vadd.f32 0.0, %v11590
  %11592 = vmatmul.bf16.gmra.mxu0 %v9985
  %v11593 = vpop.f32.mrf.mxu0
  %v11594 = vadd.f32 0.0, %v11593
  %v11595 = vpop.f32.mrf.mxu0
  %v11596 = vadd.f32 0.0, %v11595
  %11597 = vdwg.mxu0
  %11598 = vmatpush.bf16.msra.mxu0 %v9908
  %11599 = vmatpush.bf16.msra.mxu0 %v9882
  %11600 = vmatpush.bf16.msra.mxu0 %v9907
  %11601 = vmatpush.bf16.msra.mxu0 %v9881
  %11602 = vmatpush.bf16.msra.mxu0 %v9846
  %11603 = vmatpush.bf16.msra.mxu0 %v9820
  %11604 = vmatpush.bf16.msra.mxu0 %v9845
  %11605 = vmatpush.bf16.msra.mxu0 %v9819
  %11606 = vmatmul.bf16.gmra.mxu0 %v9976
  %v11607 = vpop.f32.mrf.mxu0
  %v11608 = vadd.f32 %v11569, %v11607
  %v11609 = vpop.f32.mrf.mxu0
  %v11610 = vadd.f32 %v11571, %v11609
  %11611 = vmatmul.bf16.gmra.mxu0 %v9978
  %v11612 = vpop.f32.mrf.mxu0
  %v11613 = vadd.f32 %v11574, %v11612
  %v11614 = vpop.f32.mrf.mxu0
  %v11615 = vadd.f32 %v11576, %v11614
  %11616 = vmatmul.bf16.gmra.mxu0 %v9980
  %v11617 = vpop.f32.mrf.mxu0
  %v11618 = vadd.f32 %v11579, %v11617
  %v11619 = vpop.f32.mrf.mxu0
  %v11620 = vadd.f32 %v11581, %v11619
  %11621 = vmatmul.bf16.gmra.mxu0 %v9982
  %v11622 = vpop.f32.mrf.mxu0
  %v11623 = vadd.f32 %v11584, %v11622
  %v11624 = vpop.f32.mrf.mxu0
  %v11625 = vadd.f32 %v11586, %v11624
  %11626 = vmatmul.bf16.gmra.mxu0 %v9984
  %v11627 = vpop.f32.mrf.mxu0
  %v11628 = vadd.f32 %v11589, %v11627
  %v11629 = vpop.f32.mrf.mxu0
  %v11630 = vadd.f32 %v11591, %v11629
  %11631 = vmatmul.bf16.gmra.mxu0 %v9986
  %v11632 = vpop.f32.mrf.mxu0
  %v11633 = vadd.f32 %v11594, %v11632
  %v11634 = vpop.f32.mrf.mxu0
  %v11635 = vadd.f32 %v11596, %v11634
  %11636 = vdwg.mxu0
  %11637 = vmatpush.bf16.msra.mxu0 %v9751
  %11638 = vmatpush.bf16.msra.mxu0 %v9621
  %11639 = vmatpush.bf16.msra.mxu0 %v9750
  %11640 = vmatpush.bf16.msra.mxu0 %v9620
  %11641 = vmatpush.bf16.msra.mxu0 %v9445
  %11642 = vmatpush.bf16.msra.mxu0 %v9315
  %11643 = vmatpush.bf16.msra.mxu0 %v9444
  %11644 = vmatpush.bf16.msra.mxu0 %v9314
  %11645 = vmatmul.bf16.gmra.mxu0 %v9975
  %v11646 = vpop.f32.mrf.mxu0
  %v11647 = vadd.f32 0.0, %v11646
  %v11648 = vpop.f32.mrf.mxu0
  %v11649 = vadd.f32 0.0, %v11648
  %11650 = vmatmul.bf16.gmra.mxu0 %v9977
  %v11651 = vpop.f32.mrf.mxu0
  %v11652 = vadd.f32 0.0, %v11651
  %v11653 = vpop.f32.mrf.mxu0
  %v11654 = vadd.f32 0.0, %v11653
  %11655 = vmatmul.bf16.gmra.mxu0 %v9979
  %v11656 = vpop.f32.mrf.mxu0
  %v11657 = vadd.f32 0.0, %v11656
  %v11658 = vpop.f32.mrf.mxu0
  %v11659 = vadd.f32 0.0, %v11658
  %11660 = vmatmul.bf16.gmra.mxu0 %v9981
  %v11661 = vpop.f32.mrf.mxu0
  %v11662 = vadd.f32 0.0, %v11661
  %v11663 = vpop.f32.mrf.mxu0
  %v11664 = vadd.f32 0.0, %v11663
  %11665 = vmatmul.bf16.gmra.mxu0 %v9983
  %v11666 = vpop.f32.mrf.mxu0
  %v11667 = vadd.f32 0.0, %v11666
  %v11668 = vpop.f32.mrf.mxu0
  %v11669 = vadd.f32 0.0, %v11668
  %11670 = vmatmul.bf16.gmra.mxu0 %v9985
  %v11671 = vpop.f32.mrf.mxu0
  %v11672 = vadd.f32 0.0, %v11671
  %v11673 = vpop.f32.mrf.mxu0
  %v11674 = vadd.f32 0.0, %v11673
  %11675 = vdwg.mxu0
  %11676 = vmatpush.bf16.msra.mxu0 %v9909
  %11677 = vmatpush.bf16.msra.mxu0 %v9883
  %11678 = vmatpush.bf16.msra.mxu0 %v9908
  %11679 = vmatpush.bf16.msra.mxu0 %v9882
  %11680 = vmatpush.bf16.msra.mxu0 %v9847
  %11681 = vmatpush.bf16.msra.mxu0 %v9821
  %11682 = vmatpush.bf16.msra.mxu0 %v9846
  %11683 = vmatpush.bf16.msra.mxu0 %v9820
  %11684 = vmatmul.bf16.gmra.mxu0 %v9976
  %v11685 = vpop.f32.mrf.mxu0
  %v11686 = vadd.f32 %v11647, %v11685
  %v11687 = vpop.f32.mrf.mxu0
  %v11688 = vadd.f32 %v11649, %v11687
  %11689 = vmatmul.bf16.gmra.mxu0 %v9978
  %v11690 = vpop.f32.mrf.mxu0
  %v11691 = vadd.f32 %v11652, %v11690
  %v11692 = vpop.f32.mrf.mxu0
  %v11693 = vadd.f32 %v11654, %v11692
  %11694 = vmatmul.bf16.gmra.mxu0 %v9980
  %v11695 = vpop.f32.mrf.mxu0
  %v11696 = vadd.f32 %v11657, %v11695
  %v11697 = vpop.f32.mrf.mxu0
  %v11698 = vadd.f32 %v11659, %v11697
  %11699 = vmatmul.bf16.gmra.mxu0 %v9982
  %v11700 = vpop.f32.mrf.mxu0
  %v11701 = vadd.f32 %v11662, %v11700
  %v11702 = vpop.f32.mrf.mxu0
  %v11703 = vadd.f32 %v11664, %v11702
  %11704 = vmatmul.bf16.gmra.mxu0 %v9984
  %v11705 = vpop.f32.mrf.mxu0
  %v11706 = vadd.f32 %v11667, %v11705
  %v11707 = vpop.f32.mrf.mxu0
  %v11708 = vadd.f32 %v11669, %v11707
  %11709 = vmatmul.bf16.gmra.mxu0 %v9986
  %v11710 = vpop.f32.mrf.mxu0
  %v11711 = vadd.f32 %v11672, %v11710
  %v11712 = vpop.f32.mrf.mxu0
  %v11713 = vadd.f32 %v11674, %v11712
  %11714 = vdwg.mxu0
  %11715 = vmatpush.bf16.msra.mxu0 %v9752
  %11716 = vmatpush.bf16.msra.mxu0 %v9622
  %11717 = vmatpush.bf16.msra.mxu0 %v9751
  %11718 = vmatpush.bf16.msra.mxu0 %v9621
  %11719 = vmatpush.bf16.msra.mxu0 %v9446
  %11720 = vmatpush.bf16.msra.mxu0 %v9316
  %11721 = vmatpush.bf16.msra.mxu0 %v9445
  %11722 = vmatpush.bf16.msra.mxu0 %v9315
  %11723 = vmatmul.bf16.gmra.mxu0 %v9975
  %v11724 = vpop.f32.mrf.mxu0
  %v11725 = vadd.f32 0.0, %v11724
  %v11726 = vpop.f32.mrf.mxu0
  %v11727 = vadd.f32 0.0, %v11726
  %11728 = vmatmul.bf16.gmra.mxu0 %v9977
  %v11729 = vpop.f32.mrf.mxu0
  %v11730 = vadd.f32 0.0, %v11729
  %v11731 = vpop.f32.mrf.mxu0
  %v11732 = vadd.f32 0.0, %v11731
  %11733 = vmatmul.bf16.gmra.mxu0 %v9979
  %v11734 = vpop.f32.mrf.mxu0
  %v11735 = vadd.f32 0.0, %v11734
  %v11736 = vpop.f32.mrf.mxu0
  %v11737 = vadd.f32 0.0, %v11736
  %11738 = vmatmul.bf16.gmra.mxu0 %v9981
  %v11739 = vpop.f32.mrf.mxu0
  %v11740 = vadd.f32 0.0, %v11739
  %v11741 = vpop.f32.mrf.mxu0
  %v11742 = vadd.f32 0.0, %v11741
  %11743 = vmatmul.bf16.gmra.mxu0 %v9983
  %v11744 = vpop.f32.mrf.mxu0
  %v11745 = vadd.f32 0.0, %v11744
  %v11746 = vpop.f32.mrf.mxu0
  %v11747 = vadd.f32 0.0, %v11746
  %11748 = vmatmul.bf16.gmra.mxu0 %v9985
  %v11749 = vpop.f32.mrf.mxu0
  %v11750 = vadd.f32 0.0, %v11749
  %v11751 = vpop.f32.mrf.mxu0
  %v11752 = vadd.f32 0.0, %v11751
  %11753 = vdwg.mxu0
  %11754 = vmatpush.bf16.msra.mxu0 %v9910
  %11755 = vmatpush.bf16.msra.mxu0 %v9884
  %11756 = vmatpush.bf16.msra.mxu0 %v9909
  %11757 = vmatpush.bf16.msra.mxu0 %v9883
  %11758 = vmatpush.bf16.msra.mxu0 %v9848
  %11759 = vmatpush.bf16.msra.mxu0 %v9822
  %11760 = vmatpush.bf16.msra.mxu0 %v9847
  %11761 = vmatpush.bf16.msra.mxu0 %v9821
  %11762 = vmatmul.bf16.gmra.mxu0 %v9976
  %v11763 = vpop.f32.mrf.mxu0
  %v11764 = vadd.f32 %v11725, %v11763
  %v11765 = vpop.f32.mrf.mxu0
  %v11766 = vadd.f32 %v11727, %v11765
  %11767 = vmatmul.bf16.gmra.mxu0 %v9978
  %v11768 = vpop.f32.mrf.mxu0
  %v11769 = vadd.f32 %v11730, %v11768
  %v11770 = vpop.f32.mrf.mxu0
  %v11771 = vadd.f32 %v11732, %v11770
  %11772 = vmatmul.bf16.gmra.mxu0 %v9980
  %v11773 = vpop.f32.mrf.mxu0
  %v11774 = vadd.f32 %v11735, %v11773
  %v11775 = vpop.f32.mrf.mxu0
  %v11776 = vadd.f32 %v11737, %v11775
  %11777 = vmatmul.bf16.gmra.mxu0 %v9982
  %v11778 = vpop.f32.mrf.mxu0
  %v11779 = vadd.f32 %v11740, %v11778
  %v11780 = vpop.f32.mrf.mxu0
  %v11781 = vadd.f32 %v11742, %v11780
  %11782 = vmatmul.bf16.gmra.mxu0 %v9984
  %v11783 = vpop.f32.mrf.mxu0
  %v11784 = vadd.f32 %v11745, %v11783
  %v11785 = vpop.f32.mrf.mxu0
  %v11786 = vadd.f32 %v11747, %v11785
  %11787 = vmatmul.bf16.gmra.mxu0 %v9986
  %v11788 = vpop.f32.mrf.mxu0
  %v11789 = vadd.f32 %v11750, %v11788
  %v11790 = vpop.f32.mrf.mxu0
  %v11791 = vadd.f32 %v11752, %v11790
  %11792 = vdwg.mxu0
  %11793 = vmatpush.bf16.msra.mxu0 %v9753
  %11794 = vmatpush.bf16.msra.mxu0 %v9623
  %11795 = vmatpush.bf16.msra.mxu0 %v9752
  %11796 = vmatpush.bf16.msra.mxu0 %v9622
  %11797 = vmatpush.bf16.msra.mxu0 %v9447
  %11798 = vmatpush.bf16.msra.mxu0 %v9317
  %11799 = vmatpush.bf16.msra.mxu0 %v9446
  %11800 = vmatpush.bf16.msra.mxu0 %v9316
  %11801 = vmatmul.bf16.gmra.mxu0 %v9975
  %v11802 = vpop.f32.mrf.mxu0
  %v11803 = vadd.f32 0.0, %v11802
  %v11804 = vpop.f32.mrf.mxu0
  %v11805 = vadd.f32 0.0, %v11804
  %11806 = vmatmul.bf16.gmra.mxu0 %v9977
  %v11807 = vpop.f32.mrf.mxu0
  %v11808 = vadd.f32 0.0, %v11807
  %v11809 = vpop.f32.mrf.mxu0
  %v11810 = vadd.f32 0.0, %v11809
  %11811 = vmatmul.bf16.gmra.mxu0 %v9979
  %v11812 = vpop.f32.mrf.mxu0
  %v11813 = vadd.f32 0.0, %v11812
  %v11814 = vpop.f32.mrf.mxu0
  %v11815 = vadd.f32 0.0, %v11814
  %11816 = vmatmul.bf16.gmra.mxu0 %v9981
  %v11817 = vpop.f32.mrf.mxu0
  %v11818 = vadd.f32 0.0, %v11817
  %v11819 = vpop.f32.mrf.mxu0
  %v11820 = vadd.f32 0.0, %v11819
  %11821 = vmatmul.bf16.gmra.mxu0 %v9983
  %v11822 = vpop.f32.mrf.mxu0
  %v11823 = vadd.f32 0.0, %v11822
  %v11824 = vpop.f32.mrf.mxu0
  %v11825 = vadd.f32 0.0, %v11824
  %11826 = vmatmul.bf16.gmra.mxu0 %v9985
  %v11827 = vpop.f32.mrf.mxu0
  %v11828 = vadd.f32 0.0, %v11827
  %v11829 = vpop.f32.mrf.mxu0
  %v11830 = vadd.f32 0.0, %v11829
  %11831 = vdwg.mxu0
  %11832 = vmatpush.bf16.msra.mxu0 %v9911
  %11833 = vmatpush.bf16.msra.mxu0 %v9885
  %11834 = vmatpush.bf16.msra.mxu0 %v9910
  %11835 = vmatpush.bf16.msra.mxu0 %v9884
  %11836 = vmatpush.bf16.msra.mxu0 %v9849
  %11837 = vmatpush.bf16.msra.mxu0 %v9823
  %11838 = vmatpush.bf16.msra.mxu0 %v9848
  %11839 = vmatpush.bf16.msra.mxu0 %v9822
  %11840 = vmatmul.bf16.gmra.mxu0 %v9976
  %v11841 = vpop.f32.mrf.mxu0
  %v11842 = vadd.f32 %v11803, %v11841
  %v11843 = vpop.f32.mrf.mxu0
  %v11844 = vadd.f32 %v11805, %v11843
  %11845 = vmatmul.bf16.gmra.mxu0 %v9978
  %v11846 = vpop.f32.mrf.mxu0
  %v11847 = vadd.f32 %v11808, %v11846
  %v11848 = vpop.f32.mrf.mxu0
  %v11849 = vadd.f32 %v11810, %v11848
  %11850 = vmatmul.bf16.gmra.mxu0 %v9980
  %v11851 = vpop.f32.mrf.mxu0
  %v11852 = vadd.f32 %v11813, %v11851
  %v11853 = vpop.f32.mrf.mxu0
  %v11854 = vadd.f32 %v11815, %v11853
  %11855 = vmatmul.bf16.gmra.mxu0 %v9982
  %v11856 = vpop.f32.mrf.mxu0
  %v11857 = vadd.f32 %v11818, %v11856
  %v11858 = vpop.f32.mrf.mxu0
  %v11859 = vadd.f32 %v11820, %v11858
  %11860 = vmatmul.bf16.gmra.mxu0 %v9984
  %v11861 = vpop.f32.mrf.mxu0
  %v11862 = vadd.f32 %v11823, %v11861
  %v11863 = vpop.f32.mrf.mxu0
  %v11864 = vadd.f32 %v11825, %v11863
  %11865 = vmatmul.bf16.gmra.mxu0 %v9986
  %v11866 = vpop.f32.mrf.mxu0
  %v11867 = vadd.f32 %v11828, %v11866
  %v11868 = vpop.f32.mrf.mxu0
  %v11869 = vadd.f32 %v11830, %v11868
  %11870 = vdwg.mxu0
  %11871 = vmatpush.bf16.msra.mxu0 %v9803
  %11872 = vmatpush.bf16.msra.mxu0 %v9783
  %11873 = vmatpush.bf16.msra.mxu0 %v9753
  %11874 = vmatpush.bf16.msra.mxu0 %v9623
  %11875 = vmatpush.bf16.msra.mxu0 %v9497
  %11876 = vmatpush.bf16.msra.mxu0 %v9475
  %11877 = vmatpush.bf16.msra.mxu0 %v9447
  %11878 = vmatpush.bf16.msra.mxu0 %v9317
  %11879 = vmatmul.bf16.gmra.mxu0 %v9975
  %v11880 = vpop.f32.mrf.mxu0
  %v11881 = vadd.f32 0.0, %v11880
  %v11882 = vpop.f32.mrf.mxu0
  %v11883 = vadd.f32 0.0, %v11882
  %11884 = vmatmul.bf16.gmra.mxu0 %v9977
  %v11885 = vpop.f32.mrf.mxu0
  %v11886 = vadd.f32 0.0, %v11885
  %v11887 = vpop.f32.mrf.mxu0
  %v11888 = vadd.f32 0.0, %v11887
  %11889 = vmatmul.bf16.gmra.mxu0 %v9979
  %v11890 = vpop.f32.mrf.mxu0
  %v11891 = vadd.f32 0.0, %v11890
  %v11892 = vpop.f32.mrf.mxu0
  %v11893 = vadd.f32 0.0, %v11892
  %11894 = vmatmul.bf16.gmra.mxu0 %v9981
  %v11895 = vpop.f32.mrf.mxu0
  %v11896 = vadd.f32 0.0, %v11895
  %v11897 = vpop.f32.mrf.mxu0
  %v11898 = vadd.f32 0.0, %v11897
  %11899 = vmatmul.bf16.gmra.mxu0 %v9983
  %v11900 = vpop.f32.mrf.mxu0
  %v11901 = vadd.f32 0.0, %v11900
  %v11902 = vpop.f32.mrf.mxu0
  %v11903 = vadd.f32 0.0, %v11902
  %11904 = vmatmul.bf16.gmra.mxu0 %v9985
  %v11905 = vpop.f32.mrf.mxu0
  %v11906 = vadd.f32 0.0, %v11905
  %v11907 = vpop.f32.mrf.mxu0
  %v11908 = vadd.f32 0.0, %v11907
  %11909 = vdwg.mxu0
  %11910 = vmatpush.bf16.msra.mxu0 %v9925
  %11911 = vmatpush.bf16.msra.mxu0 %v9919
  %11912 = vmatpush.bf16.msra.mxu0 %v9911
  %11913 = vmatpush.bf16.msra.mxu0 %v9885
  %11914 = vmatpush.bf16.msra.mxu0 %v9863
  %11915 = vmatpush.bf16.msra.mxu0 %v9859
  %11916 = vmatpush.bf16.msra.mxu0 %v9849
  %11917 = vmatpush.bf16.msra.mxu0 %v9823
  %11918 = vmatmul.bf16.gmra.mxu0 %v9976
  %v11919 = vpop.f32.mrf.mxu0
  %v11920 = vadd.f32 %v11881, %v11919
  %v11921 = vpop.f32.mrf.mxu0
  %v11922 = vadd.f32 %v11883, %v11921
  %11923 = vmatmul.bf16.gmra.mxu0 %v9978
  %v11924 = vpop.f32.mrf.mxu0
  %v11925 = vadd.f32 %v11886, %v11924
  %v11926 = vpop.f32.mrf.mxu0
  %v11927 = vadd.f32 %v11888, %v11926
  %11928 = vmatmul.bf16.gmra.mxu0 %v9980
  %v11929 = vpop.f32.mrf.mxu0
  %v11930 = vadd.f32 %v11891, %v11929
  %v11931 = vpop.f32.mrf.mxu0
  %v11932 = vadd.f32 %v11893, %v11931
  %11933 = vmatmul.bf16.gmra.mxu0 %v9982
  %v11934 = vpop.f32.mrf.mxu0
  %v11935 = vadd.f32 %v11896, %v11934
  %v11936 = vpop.f32.mrf.mxu0
  %v11937 = vadd.f32 %v11898, %v11936
  %11938 = vmatmul.bf16.gmra.mxu0 %v9984
  %v11939 = vpop.f32.mrf.mxu0
  %v11940 = vadd.f32 %v11901, %v11939
  %v11941 = vpop.f32.mrf.mxu0
  %v11942 = vadd.f32 %v11903, %v11941
  %11943 = vmatmul.bf16.gmra.mxu0 %v9986
  %v11944 = vpop.f32.mrf.mxu0
  %v11945 = vadd.f32 %v11906, %v11944
  %v11946 = vpop.f32.mrf.mxu0
  %v11947 = vadd.f32 %v11908, %v11946
  %11948 = vdwg.mxu0
  %v11949 = vmax.f32 %v10048, %v10055
  %v11950 = vmax.f32 %v10126, %v10133
  %v11951 = vmax.f32 %v10204, %v10211
  %v11952 = vmax.f32 %v10282, %v10289
  %v11953 = vmax.f32 %v10360, %v10367
  %v11954 = vmax.f32 %v10438, %v10445
  %v11955 = vmax.f32 %v10516, %v10523
  %v11956 = vmax.f32 %v10594, %v10601
  %v11957 = vmax.f32 %v10672, %v10679
  %v11958 = vmax.f32 %v10750, %v10757
  %v11959 = vmax.f32 %v10828, %v10835
  %v11960 = vmax.f32 %v10906, %v10913
  %v11961 = vmax.f32 %v10984, %v10991
  %v11962 = vmax.f32 %v11062, %v11069
  %v11963 = vmax.f32 %v11140, %v11147
  %v11964 = vmax.f32 %v11218, %v11225
  %v11965 = vmax.f32 %v11296, %v11303
  %v11966 = vmax.f32 %v11374, %v11381
  %v11967 = vmax.f32 %v11452, %v11459
  %v11968 = vmax.f32 %v11530, %v11537
  %v11969 = vmax.f32 %v11608, %v11615
  %v11970 = vmax.f32 %v11686, %v11693
  %v11971 = vmax.f32 %v11764, %v11771
  %v11972 = vmax.f32 %v11842, %v11849
  %v11973 = vmax.f32 %v11920, %v11927
  %v11974 = vmax.f32 %v10050, %v10058
  %v11975 = vmax.f32 %v10128, %v10136
  %v11976 = vmax.f32 %v10206, %v10214
  %v11977 = vmax.f32 %v10284, %v10292
  %v11978 = vmax.f32 %v10362, %v10370
  %v11979 = vmax.f32 %v10440, %v10448
  %v11980 = vmax.f32 %v10518, %v10526
  %v11981 = vmax.f32 %v10596, %v10604
  %v11982 = vmax.f32 %v10674, %v10682
  %v11983 = vmax.f32 %v10752, %v10760
  %v11984 = vmax.f32 %v10830, %v10838
  %v11985 = vmax.f32 %v10908, %v10916
  %v11986 = vmax.f32 %v10986, %v10994
  %v11987 = vmax.f32 %v11064, %v11072
  %v11988 = vmax.f32 %v11142, %v11150
  %v11989 = vmax.f32 %v11220, %v11228
  %v11990 = vmax.f32 %v11298, %v11306
  %v11991 = vmax.f32 %v11376, %v11384
  %v11992 = vmax.f32 %v11454, %v11462
  %v11993 = vmax.f32 %v11532, %v11540
  %v11994 = vmax.f32 %v11610, %v11618
  %v11995 = vmax.f32 %v11688, %v11696
  %v11996 = vmax.f32 %v11766, %v11774
  %v11997 = vmax.f32 %v11844, %v11852
  %v11998 = vmax.f32 %v11922, %v11930
  %v11999 = vmax.f32 %v10053, %v10060
  %v12000 = vmax.f32 %v10131, %v10138
  %v12001 = vmax.f32 %v10209, %v10216
  %v12002 = vmax.f32 %v10287, %v10294
  %v12003 = vmax.f32 %v10365, %v10372
  %v12004 = vmax.f32 %v10443, %v10450
  %v12005 = vmax.f32 %v10521, %v10528
  %v12006 = vmax.f32 %v10599, %v10606
  %v12007 = vmax.f32 %v10677, %v10684
  %v12008 = vmax.f32 %v10755, %v10762
  %v12009 = vmax.f32 %v10833, %v10840
  %v12010 = vmax.f32 %v10911, %v10918
  %v12011 = vmax.f32 %v10989, %v10996
  %v12012 = vmax.f32 %v11067, %v11074
  %v12013 = vmax.f32 %v11145, %v11152
  %v12014 = vmax.f32 %v11223, %v11230
  %v12015 = vmax.f32 %v11301, %v11308
  %v12016 = vmax.f32 %v11379, %v11386
  %v12017 = vmax.f32 %v11457, %v11464
  %v12018 = vmax.f32 %v11535, %v11542
  %v12019 = vmax.f32 %v11613, %v11620
  %v12020 = vmax.f32 %v11691, %v11698
  %v12021 = vmax.f32 %v11769, %v11776
  %v12022 = vmax.f32 %v11847, %v11854
  %v12023 = vmax.f32 %v11925, %v11932
  %v12024 = vmax.f32 %v10063, %v10070
  %v12025 = vmax.f32 %v10141, %v10148
  %v12026 = vmax.f32 %v10219, %v10226
  %v12027 = vmax.f32 %v10297, %v10304
  %v12028 = vmax.f32 %v10375, %v10382
  %v12029 = vmax.f32 %v10453, %v10460
  %v12030 = vmax.f32 %v10531, %v10538
  %v12031 = vmax.f32 %v10609, %v10616
  %v12032 = vmax.f32 %v10687, %v10694
  %v12033 = vmax.f32 %v10765, %v10772
  %v12034 = vmax.f32 %v10843, %v10850
  %v12035 = vmax.f32 %v10921, %v10928
  %v12036 = vmax.f32 %v10999, %v11006
  %v12037 = vmax.f32 %v11077, %v11084
  %v12038 = vmax.f32 %v11155, %v11162
  %v12039 = vmax.f32 %v11233, %v11240
  %v12040 = vmax.f32 %v11311, %v11318
  %v12041 = vmax.f32 %v11389, %v11396
  %v12042 = vmax.f32 %v11467, %v11474
  %v12043 = vmax.f32 %v11545, %v11552
  %v12044 = vmax.f32 %v11623, %v11630
  %v12045 = vmax.f32 %v11701, %v11708
  %v12046 = vmax.f32 %v11779, %v11786
  %v12047 = vmax.f32 %v11857, %v11864
  %v12048 = vmax.f32 %v11935, %v11942
  %v12049 = vmax.f32 %v10065, %v10073
  %v12050 = vmax.f32 %v10143, %v10151
  %v12051 = vmax.f32 %v10221, %v10229
  %v12052 = vmax.f32 %v10299, %v10307
  %v12053 = vmax.f32 %v10377, %v10385
  %v12054 = vmax.f32 %v10455, %v10463
  %v12055 = vmax.f32 %v10533, %v10541
  %v12056 = vmax.f32 %v10611, %v10619
  %v12057 = vmax.f32 %v10689, %v10697
  %v12058 = vmax.f32 %v10767, %v10775
  %v12059 = vmax.f32 %v10845, %v10853
  %v12060 = vmax.f32 %v10923, %v10931
  %v12061 = vmax.f32 %v11001, %v11009
  %v12062 = vmax.f32 %v11079, %v11087
  %v12063 = vmax.f32 %v11157, %v11165
  %v12064 = vmax.f32 %v11235, %v11243
  %v12065 = vmax.f32 %v11313, %v11321
  %v12066 = vmax.f32 %v11391, %v11399
  %v12067 = vmax.f32 %v11469, %v11477
  %v12068 = vmax.f32 %v11547, %v11555
  %v12069 = vmax.f32 %v11625, %v11633
  %v12070 = vmax.f32 %v11703, %v11711
  %v12071 = vmax.f32 %v11781, %v11789
  %v12072 = vmax.f32 %v11859, %v11867
  %v12073 = vmax.f32 %v11937, %v11945
  %v12074 = vmax.f32 %v10068, %v10075
  %v12075 = vmax.f32 %v10146, %v10153
  %v12076 = vmax.f32 %v10224, %v10231
  %v12077 = vmax.f32 %v10302, %v10309
  %v12078 = vmax.f32 %v10380, %v10387
  %v12079 = vmax.f32 %v10458, %v10465
  %v12080 = vmax.f32 %v10536, %v10543
  %v12081 = vmax.f32 %v10614, %v10621
  %v12082 = vmax.f32 %v10692, %v10699
  %v12083 = vmax.f32 %v10770, %v10777
  %v12084 = vmax.f32 %v10848, %v10855
  %v12085 = vmax.f32 %v10926, %v10933
  %v12086 = vmax.f32 %v11004, %v11011
  %v12087 = vmax.f32 %v11082, %v11089
  %v12088 = vmax.f32 %v11160, %v11167
  %v12089 = vmax.f32 %v11238, %v11245
  %v12090 = vmax.f32 %v11316, %v11323
  %v12091 = vmax.f32 %v11394, %v11401
  %v12092 = vmax.f32 %v11472, %v11479
  %v12093 = vmax.f32 %v11550, %v11557
  %v12094 = vmax.f32 %v11628, %v11635
  %v12095 = vmax.f32 %v11706, %v11713
  %v12096 = vmax.f32 %v11784, %v11791
  %v12097 = vmax.f32 %v11862, %v11869
  %v12098 = vmax.f32 %v11940, %v11947
  %v12099 = vmax.f32 %v11949, %v12024
  %v12100 = vmax.f32 %v11950, %v12025
  %v12101 = vmax.f32 %v11951, %v12026
  %v12102 = vmax.f32 %v11952, %v12027
  %v12103 = vmax.f32 %v11953, %v12028
  %v12104 = vmax.f32 %v11954, %v12029
  %v12105 = vmax.f32 %v11955, %v12030
  %v12106 = vmax.f32 %v11956, %v12031
  %v12107 = vmax.f32 %v11957, %v12032
  %v12108 = vmax.f32 %v11958, %v12033
  %v12109 = vmax.f32 %v11959, %v12034
  %v12110 = vmax.f32 %v11960, %v12035
  %v12111 = vmax.f32 %v11961, %v12036
  %v12112 = vmax.f32 %v11962, %v12037
  %v12113 = vmax.f32 %v11963, %v12038
  %v12114 = vmax.f32 %v11964, %v12039
  %v12115 = vmax.f32 %v11965, %v12040
  %v12116 = vmax.f32 %v11966, %v12041
  %v12117 = vmax.f32 %v11967, %v12042
  %v12118 = vmax.f32 %v11968, %v12043
  %v12119 = vmax.f32 %v11969, %v12044
  %v12120 = vmax.f32 %v11970, %v12045
  %v12121 = vmax.f32 %v11971, %v12046
  %v12122 = vmax.f32 %v11972, %v12047
  %v12123 = vmax.f32 %v11973, %v12048
  %v12124 = vmax.f32 %v11974, %v12049
  %v12125 = vmax.f32 %v11975, %v12050
  %v12126 = vmax.f32 %v11976, %v12051
  %v12127 = vmax.f32 %v11977, %v12052
  %v12128 = vmax.f32 %v11978, %v12053
  %v12129 = vmax.f32 %v11979, %v12054
  %v12130 = vmax.f32 %v11980, %v12055
  %v12131 = vmax.f32 %v11981, %v12056
  %v12132 = vmax.f32 %v11982, %v12057
  %v12133 = vmax.f32 %v11983, %v12058
  %v12134 = vmax.f32 %v11984, %v12059
  %v12135 = vmax.f32 %v11985, %v12060
  %v12136 = vmax.f32 %v11986, %v12061
  %v12137 = vmax.f32 %v11987, %v12062
  %v12138 = vmax.f32 %v11988, %v12063
  %v12139 = vmax.f32 %v11989, %v12064
  %v12140 = vmax.f32 %v11990, %v12065
  %v12141 = vmax.f32 %v11991, %v12066
  %v12142 = vmax.f32 %v11992, %v12067
  %v12143 = vmax.f32 %v11993, %v12068
  %v12144 = vmax.f32 %v11994, %v12069
  %v12145 = vmax.f32 %v11995, %v12070
  %v12146 = vmax.f32 %v11996, %v12071
  %v12147 = vmax.f32 %v11997, %v12072
  %v12148 = vmax.f32 %v11998, %v12073
  %v12149 = vmax.f32 %v11999, %v12074
  %v12150 = vmax.f32 %v12000, %v12075
  %v12151 = vmax.f32 %v12001, %v12076
  %v12152 = vmax.f32 %v12002, %v12077
  %v12153 = vmax.f32 %v12003, %v12078
  %v12154 = vmax.f32 %v12004, %v12079
  %v12155 = vmax.f32 %v12005, %v12080
  %v12156 = vmax.f32 %v12006, %v12081
  %v12157 = vmax.f32 %v12007, %v12082
  %v12158 = vmax.f32 %v12008, %v12083
  %v12159 = vmax.f32 %v12009, %v12084
  %v12160 = vmax.f32 %v12010, %v12085
  %v12161 = vmax.f32 %v12011, %v12086
  %v12162 = vmax.f32 %v12012, %v12087
  %v12163 = vmax.f32 %v12013, %v12088
  %v12164 = vmax.f32 %v12014, %v12089
  %v12165 = vmax.f32 %v12015, %v12090
  %v12166 = vmax.f32 %v12016, %v12091
  %v12167 = vmax.f32 %v12017, %v12092
  %v12168 = vmax.f32 %v12018, %v12093
  %v12169 = vmax.f32 %v12019, %v12094
  %v12170 = vmax.f32 %v12020, %v12095
  %v12171 = vmax.f32 %v12021, %v12096
  %v12172 = vmax.f32 %v12022, %v12097
  %v12173 = vmax.f32 %v12023, %v12098
  %v12174 = vld [vmem:[%s4] sm:$0xff]
  %v12175 = vld [vmem:[%s4 + $0x8] sm:$0xff]
  %v12176 = vld [vmem:[%s4 + $0x10] sm:$0xff]
  %12178 = vset.pattern.permute.xlu0 0
  %12179 = vperm.xlu0 %12178, %v12174
  %v12180 = vpop.permute.xlu0 %12179
  %12183 = vset.pattern.permute.xlu0 0
  %12184 = vperm.xlu0 %12183, %v12175
  %v12185 = vpop.permute.xlu0 %12184
  %12188 = vset.pattern.permute.xlu0 0
  %12189 = vperm.xlu0 %12188, %v12176
  %v12190 = vpop.permute.xlu0 %12189
  %v12192 = vadd.f32 %v12099, %v12180
  %v12193 = vadd.f32 %v12100, %v12180
  %v12194 = vadd.f32 %v12101, %v12180
  %v12195 = vadd.f32 %v12102, %v12180
  %v12196 = vadd.f32 %v12103, %v12180
  %v12197 = vadd.f32 %v12104, %v12180
  %v12198 = vadd.f32 %v12105, %v12180
  %v12199 = vadd.f32 %v12106, %v12180
  %v12200 = vadd.f32 %v12107, %v12180
  %v12201 = vadd.f32 %v12108, %v12180
  %v12202 = vadd.f32 %v12109, %v12180
  %v12203 = vadd.f32 %v12110, %v12180
  %v12204 = vadd.f32 %v12111, %v12180
  %v12205 = vadd.f32 %v12112, %v12180
  %v12206 = vadd.f32 %v12113, %v12180
  %v12207 = vadd.f32 %v12114, %v12180
  %v12208 = vadd.f32 %v12115, %v12180
  %v12209 = vadd.f32 %v12116, %v12180
  %v12210 = vadd.f32 %v12117, %v12180
  %v12211 = vadd.f32 %v12118, %v12180
  %v12212 = vadd.f32 %v12119, %v12180
  %v12213 = vadd.f32 %v12120, %v12180
  %v12214 = vadd.f32 %v12121, %v12180
  %v12215 = vadd.f32 %v12122, %v12180
  %v12216 = vadd.f32 %v12123, %v12180
  %v12217 = vadd.f32 %v12124, %v12185
  %v12218 = vadd.f32 %v12125, %v12185
  %v12219 = vadd.f32 %v12126, %v12185
  %v12220 = vadd.f32 %v12127, %v12185
  %v12221 = vadd.f32 %v12128, %v12185
  %v12222 = vadd.f32 %v12129, %v12185
  %v12223 = vadd.f32 %v12130, %v12185
  %v12224 = vadd.f32 %v12131, %v12185
  %v12225 = vadd.f32 %v12132, %v12185
  %v12226 = vadd.f32 %v12133, %v12185
  %v12227 = vadd.f32 %v12134, %v12185
  %v12228 = vadd.f32 %v12135, %v12185
  %v12229 = vadd.f32 %v12136, %v12185
  %v12230 = vadd.f32 %v12137, %v12185
  %v12231 = vadd.f32 %v12138, %v12185
  %v12232 = vadd.f32 %v12139, %v12185
  %v12233 = vadd.f32 %v12140, %v12185
  %v12234 = vadd.f32 %v12141, %v12185
  %v12235 = vadd.f32 %v12142, %v12185
  %v12236 = vadd.f32 %v12143, %v12185
  %v12237 = vadd.f32 %v12144, %v12185
  %v12238 = vadd.f32 %v12145, %v12185
  %v12239 = vadd.f32 %v12146, %v12185
  %v12240 = vadd.f32 %v12147, %v12185
  %v12241 = vadd.f32 %v12148, %v12185
  %v12242 = vadd.f32 %v12149, %v12190
  %v12243 = vadd.f32 %v12150, %v12190
  %v12244 = vadd.f32 %v12151, %v12190
  %v12245 = vadd.f32 %v12152, %v12190
  %v12246 = vadd.f32 %v12153, %v12190
  %v12247 = vadd.f32 %v12154, %v12190
  %v12248 = vadd.f32 %v12155, %v12190
  %v12249 = vadd.f32 %v12156, %v12190
  %v12250 = vadd.f32 %v12157, %v12190
  %v12251 = vadd.f32 %v12158, %v12190
  %v12252 = vadd.f32 %v12159, %v12190
  %v12253 = vadd.f32 %v12160, %v12190
  %v12254 = vadd.f32 %v12161, %v12190
  %v12255 = vadd.f32 %v12162, %v12190
  %v12256 = vadd.f32 %v12163, %v12190
  %v12257 = vadd.f32 %v12164, %v12190
  %v12258 = vadd.f32 %v12165, %v12190
  %v12259 = vadd.f32 %v12166, %v12190
  %v12260 = vadd.f32 %v12167, %v12190
  %v12261 = vadd.f32 %v12168, %v12190
  %v12262 = vadd.f32 %v12169, %v12190
  %v12263 = vadd.f32 %v12170, %v12190
  %v12264 = vadd.f32 %v12171, %v12190
  %v12265 = vadd.f32 %v12172, %v12190
  %v12266 = vadd.f32 %v12173, %v12190
  %v12267 = vmax.f32 %v12192, 0.0
  %v12268 = vmax.f32 %v12193, 0.0
  %v12269 = vmax.f32 %v12194, 0.0
  %v12270 = vmax.f32 %v12195, 0.0
  %v12271 = vmax.f32 %v12196, 0.0
  %v12272 = vmax.f32 %v12197, 0.0
  %v12273 = vmax.f32 %v12198, 0.0
  %v12274 = vmax.f32 %v12199, 0.0
  %v12275 = vmax.f32 %v12200, 0.0
  %v12276 = vmax.f32 %v12201, 0.0
  %v12277 = vmax.f32 %v12202, 0.0
  %v12278 = vmax.f32 %v12203, 0.0
  %v12279 = vmax.f32 %v12204, 0.0
  %v12280 = vmax.f32 %v12205, 0.0
  %v12281 = vmax.f32 %v12206, 0.0
  %v12282 = vmax.f32 %v12207, 0.0
  %v12283 = vmax.f32 %v12208, 0.0
  %v12284 = vmax.f32 %v12209, 0.0
  %v12285 = vmax.f32 %v12210, 0.0
  %v12286 = vmax.f32 %v12211, 0.0
  %v12287 = vmax.f32 %v12212, 0.0
  %v12288 = vmax.f32 %v12213, 0.0
  %v12289 = vmax.f32 %v12214, 0.0
  %v12290 = vmax.f32 %v12215, 0.0
  %v12291 = vmax.f32 %v12216, 0.0
  %v12292 = vmax.f32 %v12217, 0.0
  %v12293 = vmax.f32 %v12218, 0.0
  %v12294 = vmax.f32 %v12219, 0.0
  %v12295 = vmax.f32 %v12220, 0.0
  %v12296 = vmax.f32 %v12221, 0.0
  %v12297 = vmax.f32 %v12222, 0.0
  %v12298 = vmax.f32 %v12223, 0.0
  %v12299 = vmax.f32 %v12224, 0.0
  %v12300 = vmax.f32 %v12225, 0.0
  %v12301 = vmax.f32 %v12226, 0.0
  %v12302 = vmax.f32 %v12227, 0.0
  %v12303 = vmax.f32 %v12228, 0.0
  %v12304 = vmax.f32 %v12229, 0.0
  %v12305 = vmax.f32 %v12230, 0.0
  %v12306 = vmax.f32 %v12231, 0.0
  %v12307 = vmax.f32 %v12232, 0.0
  %v12308 = vmax.f32 %v12233, 0.0
  %v12309 = vmax.f32 %v12234, 0.0
  %v12310 = vmax.f32 %v12235, 0.0
  %v12311 = vmax.f32 %v12236, 0.0
  %v12312 = vmax.f32 %v12237, 0.0
  %v12313 = vmax.f32 %v12238, 0.0
  %v12314 = vmax.f32 %v12239, 0.0
  %v12315 = vmax.f32 %v12240, 0.0
  %v12316 = vmax.f32 %v12241, 0.0
  %v12317 = vmax.f32 %v12242, 0.0
  %v12318 = vmax.f32 %v12243, 0.0
  %v12319 = vmax.f32 %v12244, 0.0
  %v12320 = vmax.f32 %v12245, 0.0
  %v12321 = vmax.f32 %v12246, 0.0
  %v12322 = vmax.f32 %v12247, 0.0
  %v12323 = vmax.f32 %v12248, 0.0
  %v12324 = vmax.f32 %v12249, 0.0
  %v12325 = vmax.f32 %v12250, 0.0
  %v12326 = vmax.f32 %v12251, 0.0
  %v12327 = vmax.f32 %v12252, 0.0
  %v12328 = vmax.f32 %v12253, 0.0
  %v12329 = vmax.f32 %v12254, 0.0
  %v12330 = vmax.f32 %v12255, 0.0
  %v12331 = vmax.f32 %v12256, 0.0
  %v12332 = vmax.f32 %v12257, 0.0
  %v12333 = vmax.f32 %v12258, 0.0
  %v12334 = vmax.f32 %v12259, 0.0
  %v12335 = vmax.f32 %v12260, 0.0
  %v12336 = vmax.f32 %v12261, 0.0
  %v12337 = vmax.f32 %v12262, 0.0
  %v12338 = vmax.f32 %v12263, 0.0
  %v12339 = vmax.f32 %v12264, 0.0
  %v12340 = vmax.f32 %v12265, 0.0
  %v12341 = vmax.f32 %v12266, 0.0
  %v12342 = vpack.c.bf16 %v12268, %v12267
  %v12343 = vpack.c.bf16 %v12270, %v12269
  %v12344 = vpack.c.bf16 %v12272, %v12271
  %v12345 = vpack.c.bf16 %v12274, %v12273
  %v12346 = vpack.c.bf16 %v12276, %v12275
  %v12347 = vpack.c.bf16 %v12278, %v12277
  %v12348 = vpack.c.bf16 %v12280, %v12279
  %v12349 = vpack.c.bf16 %v12282, %v12281
  %v12350 = vpack.c.bf16 %v12284, %v12283
  %v12351 = vpack.c.bf16 %v12286, %v12285
  %v12352 = vpack.c.bf16 %v12288, %v12287
  %v12353 = vpack.c.bf16 %v12290, %v12289
  %v12354 = vpack.c.bf16 %v12291, %v12291
  %v12355 = vpack.c.bf16 %v12293, %v12292
  %v12356 = vpack.c.bf16 %v12295, %v12294
  %v12357 = vpack.c.bf16 %v12297, %v12296
  %v12358 = vpack.c.bf16 %v12299, %v12298
  %v12359 = vpack.c.bf16 %v12301, %v12300
  %v12360 = vpack.c.bf16 %v12303, %v12302
  %v12361 = vpack.c.bf16 %v12305, %v12304
  %v12362 = vpack.c.bf16 %v12307, %v12306
  %v12363 = vpack.c.bf16 %v12309, %v12308
  %v12364 = vpack.c.bf16 %v12311, %v12310
  %v12365 = vpack.c.bf16 %v12313, %v12312
  %v12366 = vpack.c.bf16 %v12315, %v12314
  %v12367 = vpack.c.bf16 %v12316, %v12316
  %v12368 = vpack.c.bf16 %v12318, %v12317
  %v12369 = vpack.c.bf16 %v12320, %v12319
  %v12370 = vpack.c.bf16 %v12322, %v12321
  %v12371 = vpack.c.bf16 %v12324, %v12323
  %v12372 = vpack.c.bf16 %v12326, %v12325
  %v12373 = vpack.c.bf16 %v12328, %v12327
  %v12374 = vpack.c.bf16 %v12330, %v12329
  %v12375 = vpack.c.bf16 %v12332, %v12331
  %v12376 = vpack.c.bf16 %v12334, %v12333
  %v12377 = vpack.c.bf16 %v12336, %v12335
  %v12378 = vpack.c.bf16 %v12338, %v12337
  %v12379 = vpack.c.bf16 %v12340, %v12339
  %v12380 = vpack.c.bf16 %v12341, %v12341
  %v12381 = vld [vmem:[%s5] sm:$0xf]
  %v12382 = vld [vmem:[%s5 + $0x4] sm:$0x1]
  %s12383 = scalar_lea.vmem %s5, 8
  %v12384 = vld [vmem:[%s12383] sm:$0xf]
  %v12385 = vld [vmem:[%s12383 + $0x4] sm:$0x1]
  %v12388 = vunpack.c.l.b16 %v12384
  %v12389 = vunpack.c.l.b16 %v12385
  %v12390 = vpack.c.b16 %v12389, %v12388
  %v12394 = vunpack.c.h.b16 %v12342
  %v12395 = vunpack.c.h.b16 %v12355
  %v12396 = vunpack.c.h.b16 %v12368
  %v12397 = vpack.c.b16 %v12395, %v12394
  %v12398 = vpack.c.b16 %v12396, %v12396
  %vm12400 = vcmask 195584
  %v12402 = vsel %vm12400, %v12390, 0
  %vm12404 = vcmask 1043456
  %v12406 = vsel %vm12404, %v12398, 0
  %12408 = vmatpush.bf16.msra.mxu0 0
  %12409 = vmatpush.bf16.msra.mxu0 0
  %12410 = vmatpush.bf16.msra.mxu0 0
  %12411 = vmatpush.bf16.msra.mxu0 0
  %12412 = vmatpush.bf16.msra.mxu0 0
  %12413 = vmatpush.bf16.msra.mxu0 0
  %12414 = vmatpush.bf16.msra.mxu0 %v12406
  %12415 = vmatpush.bf16.msra.mxu0 %v12397
  %12416 = vmatmul.bf16.gmra.mxu0 %v12402
  %v12417 = vpop.f32.mrf.mxu0
  %v12418 = vadd.f32 0.0, %v12417
  %v12419 = vpop.f32.mrf.mxu0
  %v12420 = vadd.f32 0.0, %v12419
  %12421 = vdwg.mxu0
  %s12422 = scalar_lea.vmem %s5, 16
  %v12423 = vld [vmem:[%s12422] sm:$0xf]
  %v12424 = vld [vmem:[%s12422 + $0x4] sm:$0x1]
  %s12425 = scalar_lea.vmem %s5, 24
  %v12426 = vld [vmem:[%s12425] sm:$0xf]
  %v12427 = vld [vmem:[%s12425 + $0x4] sm:$0x1]
  %v12430 = vunpack.c.l.b16 %v12426
  %v12431 = vunpack.c.l.b16 %v12427
  %v12432 = vpack.c.b16 %v12431, %v12430
  %v12436 = vunpack.c.h.b16 %v12343
  %v12437 = vunpack.c.h.b16 %v12356
  %v12438 = vunpack.c.h.b16 %v12369
  %v12439 = vpack.c.b16 %v12437, %v12436
  %v12440 = vpack.c.b16 %v12438, %v12438
  %v12443 = vsel %vm12400, %v12432, 0
  %v12446 = vsel %vm12404, %v12440, 0
  %12448 = vmatpush.bf16.msra.mxu0 0
  %12449 = vmatpush.bf16.msra.mxu0 0
  %12450 = vmatpush.bf16.msra.mxu0 0
  %12451 = vmatpush.bf16.msra.mxu0 0
  %12452 = vmatpush.bf16.msra.mxu0 0
  %12453 = vmatpush.bf16.msra.mxu0 0
  %12454 = vmatpush.bf16.msra.mxu0 %v12446
  %12455 = vmatpush.bf16.msra.mxu0 %v12439
  %12456 = vmatmul.bf16.gmra.mxu0 %v12443
  %v12457 = vpop.f32.mrf.mxu0
  %v12458 = vadd.f32 0.0, %v12457
  %v12459 = vpop.f32.mrf.mxu0
  %v12460 = vadd.f32 0.0, %v12459
  %12461 = vdwg.mxu0
  %s12462 = scalar_lea.vmem %s5, 32
  %v12463 = vld [vmem:[%s12462] sm:$0xf]
  %v12464 = vld [vmem:[%s12462 + $0x4] sm:$0x1]
  %s12465 = scalar_lea.vmem %s5, 40
  %v12466 = vld [vmem:[%s12465] sm:$0xf]
  %v12467 = vld [vmem:[%s12465 + $0x4] sm:$0x1]
  %v12470 = vunpack.c.l.b16 %v12466
  %v12471 = vunpack.c.l.b16 %v12467
  %v12472 = vpack.c.b16 %v12471, %v12470
  %v12476 = vunpack.c.h.b16 %v12344
  %v12477 = vunpack.c.h.b16 %v12357
  %v12478 = vunpack.c.h.b16 %v12370
  %v12479 = vpack.c.b16 %v12477, %v12476
  %v12480 = vpack.c.b16 %v12478, %v12478
  %v12483 = vsel %vm12400, %v12472, 0
  %v12486 = vsel %vm12404, %v12480, 0
  %12488 = vmatpush.bf16.msra.mxu0 0
  %12489 = vmatpush.bf16.msra.mxu0 0
  %12490 = vmatpush.bf16.msra.mxu0 0
  %12491 = vmatpush.bf16.msra.mxu0 0
  %12492 = vmatpush.bf16.msra.mxu0 0
  %12493 = vmatpush.bf16.msra.mxu0 0
  %12494 = vmatpush.bf16.msra.mxu0 %v12486
  %12495 = vmatpush.bf16.msra.mxu0 %v12479
  %12496 = vmatmul.bf16.gmra.mxu0 %v12483
  %v12497 = vpop.f32.mrf.mxu0
  %v12498 = vadd.f32 0.0, %v12497
  %v12499 = vpop.f32.mrf.mxu0
  %v12500 = vadd.f32 0.0, %v12499
  %12501 = vdwg.mxu0
  %s12502 = scalar_lea.vmem %s5, 48
  %v12503 = vld [vmem:[%s12502] sm:$0xf]
  %v12504 = vld [vmem:[%s12502 + $0x4] sm:$0x1]
  %s12505 = scalar_lea.vmem %s5, 56
  %v12506 = vld [vmem:[%s12505] sm:$0xf]
  %v12507 = vld [vmem:[%s12505 + $0x4] sm:$0x1]
  %v12510 = vunpack.c.l.b16 %v12506
  %v12511 = vunpack.c.l.b16 %v12507
  %v12512 = vpack.c.b16 %v12511, %v12510
  %v12516 = vunpack.c.h.b16 %v12345
  %v12517 = vunpack.c.h.b16 %v12358
  %v12518 = vunpack.c.h.b16 %v12371
  %v12519 = vpack.c.b16 %v12517, %v12516
  %v12520 = vpack.c.b16 %v12518, %v12518
  %v12523 = vsel %vm12400, %v12512, 0
  %v12526 = vsel %vm12404, %v12520, 0
  %12528 = vmatpush.bf16.msra.mxu0 0
  %12529 = vmatpush.bf16.msra.mxu0 0
  %12530 = vmatpush.bf16.msra.mxu0 0
  %12531 = vmatpush.bf16.msra.mxu0 0
  %12532 = vmatpush.bf16.msra.mxu0 0
  %12533 = vmatpush.bf16.msra.mxu0 0
  %12534 = vmatpush.bf16.msra.mxu0 %v12526
  %12535 = vmatpush.bf16.msra.mxu0 %v12519
  %12536 = vmatmul.bf16.gmra.mxu0 %v12523
  %v12537 = vpop.f32.mrf.mxu0
  %v12538 = vadd.f32 0.0, %v12537
  %v12539 = vpop.f32.mrf.mxu0
  %v12540 = vadd.f32 0.0, %v12539
  %12541 = vdwg.mxu0
  %s12542 = scalar_lea.vmem %s5, 64
  %v12543 = vld [vmem:[%s12542] sm:$0xf]
  %v12544 = vld [vmem:[%s12542 + $0x4] sm:$0x1]
  %s12545 = scalar_lea.vmem %s5, 72
  %v12546 = vld [vmem:[%s12545] sm:$0xf]
  %v12547 = vld [vmem:[%s12545 + $0x4] sm:$0x1]
  %v12550 = vunpack.c.l.b16 %v12546
  %v12551 = vunpack.c.l.b16 %v12547
  %v12552 = vpack.c.b16 %v12551, %v12550
  %v12556 = vunpack.c.h.b16 %v12346
  %v12557 = vunpack.c.h.b16 %v12359
  %v12558 = vunpack.c.h.b16 %v12372
  %v12559 = vpack.c.b16 %v12557, %v12556
  %v12560 = vpack.c.b16 %v12558, %v12558
  %v12563 = vsel %vm12400, %v12552, 0
  %v12566 = vsel %vm12404, %v12560, 0
  %12568 = vmatpush.bf16.msra.mxu0 0
  %12569 = vmatpush.bf16.msra.mxu0 0
  %12570 = vmatpush.bf16.msra.mxu0 0
  %12571 = vmatpush.bf16.msra.mxu0 0
  %12572 = vmatpush.bf16.msra.mxu0 0
  %12573 = vmatpush.bf16.msra.mxu0 0
  %12574 = vmatpush.bf16.msra.mxu0 %v12566
  %12575 = vmatpush.bf16.msra.mxu0 %v12559
  %12576 = vmatmul.bf16.gmra.mxu0 %v12563
  %v12577 = vpop.f32.mrf.mxu0
  %v12578 = vadd.f32 0.0, %v12577
  %v12579 = vpop.f32.mrf.mxu0
  %v12580 = vadd.f32 0.0, %v12579
  %12581 = vdwg.mxu0
  %s12582 = scalar_lea.vmem %s5, 80
  %v12583 = vld [vmem:[%s12582] sm:$0xf]
  %v12584 = vld [vmem:[%s12582 + $0x4] sm:$0x1]
  %s12585 = scalar_lea.vmem %s5, 88
  %v12586 = vld [vmem:[%s12585] sm:$0xf]
  %v12587 = vld [vmem:[%s12585 + $0x4] sm:$0x1]
  %v12590 = vunpack.c.l.b16 %v12586
  %v12591 = vunpack.c.l.b16 %v12587
  %v12592 = vpack.c.b16 %v12591, %v12590
  %v12596 = vunpack.c.h.b16 %v12347
  %v12597 = vunpack.c.h.b16 %v12360
  %v12598 = vunpack.c.h.b16 %v12373
  %v12599 = vpack.c.b16 %v12597, %v12596
  %v12600 = vpack.c.b16 %v12598, %v12598
  %v12603 = vsel %vm12400, %v12592, 0
  %v12606 = vsel %vm12404, %v12600, 0
  %12608 = vmatpush.bf16.msra.mxu0 0
  %12609 = vmatpush.bf16.msra.mxu0 0
  %12610 = vmatpush.bf16.msra.mxu0 0
  %12611 = vmatpush.bf16.msra.mxu0 0
  %12612 = vmatpush.bf16.msra.mxu0 0
  %12613 = vmatpush.bf16.msra.mxu0 0
  %12614 = vmatpush.bf16.msra.mxu0 %v12606
  %12615 = vmatpush.bf16.msra.mxu0 %v12599
  %12616 = vmatmul.bf16.gmra.mxu0 %v12603
  %v12617 = vpop.f32.mrf.mxu0
  %v12618 = vadd.f32 0.0, %v12617
  %v12619 = vpop.f32.mrf.mxu0
  %v12620 = vadd.f32 0.0, %v12619
  %12621 = vdwg.mxu0
  %s12622 = scalar_lea.vmem %s5, 96
  %v12623 = vld [vmem:[%s12622] sm:$0xf]
  %v12624 = vld [vmem:[%s12622 + $0x4] sm:$0x1]
  %s12625 = scalar_lea.vmem %s5, 104
  %v12626 = vld [vmem:[%s12625] sm:$0xf]
  %v12627 = vld [vmem:[%s12625 + $0x4] sm:$0x1]
  %v12630 = vunpack.c.l.b16 %v12626
  %v12631 = vunpack.c.l.b16 %v12627
  %v12632 = vpack.c.b16 %v12631, %v12630
  %v12636 = vunpack.c.h.b16 %v12348
  %v12637 = vunpack.c.h.b16 %v12361
  %v12638 = vunpack.c.h.b16 %v12374
  %v12639 = vpack.c.b16 %v12637, %v12636
  %v12640 = vpack.c.b16 %v12638, %v12638
  %v12643 = vsel %vm12400, %v12632, 0
  %v12646 = vsel %vm12404, %v12640, 0
  %12648 = vmatpush.bf16.msra.mxu0 0
  %12649 = vmatpush.bf16.msra.mxu0 0
  %12650 = vmatpush.bf16.msra.mxu0 0
  %12651 = vmatpush.bf16.msra.mxu0 0
  %12652 = vmatpush.bf16.msra.mxu0 0
  %12653 = vmatpush.bf16.msra.mxu0 0
  %12654 = vmatpush.bf16.msra.mxu0 %v12646
  %12655 = vmatpush.bf16.msra.mxu0 %v12639
  %12656 = vmatmul.bf16.gmra.mxu0 %v12643
  %v12657 = vpop.f32.mrf.mxu0
  %v12658 = vadd.f32 0.0, %v12657
  %v12659 = vpop.f32.mrf.mxu0
  %v12660 = vadd.f32 0.0, %v12659
  %12661 = vdwg.mxu0
  %s12662 = scalar_lea.vmem %s5, 112
  %v12663 = vld [vmem:[%s12662] sm:$0xf]
  %v12664 = vld [vmem:[%s12662 + $0x4] sm:$0x1]
  %s12665 = scalar_lea.vmem %s5, 120
  %v12666 = vld [vmem:[%s12665] sm:$0xf]
  %v12667 = vld [vmem:[%s12665 + $0x4] sm:$0x1]
  %v12670 = vunpack.c.l.b16 %v12666
  %v12671 = vunpack.c.l.b16 %v12667
  %v12672 = vpack.c.b16 %v12671, %v12670
  %v12676 = vunpack.c.h.b16 %v12349
  %v12677 = vunpack.c.h.b16 %v12362
  %v12678 = vunpack.c.h.b16 %v12375
  %v12679 = vpack.c.b16 %v12677, %v12676
  %v12680 = vpack.c.b16 %v12678, %v12678
  %v12683 = vsel %vm12400, %v12672, 0
  %v12686 = vsel %vm12404, %v12680, 0
  %12688 = vmatpush.bf16.msra.mxu0 0
  %12689 = vmatpush.bf16.msra.mxu0 0
  %12690 = vmatpush.bf16.msra.mxu0 0
  %12691 = vmatpush.bf16.msra.mxu0 0
  %12692 = vmatpush.bf16.msra.mxu0 0
  %12693 = vmatpush.bf16.msra.mxu0 0
  %12694 = vmatpush.bf16.msra.mxu0 %v12686
  %12695 = vmatpush.bf16.msra.mxu0 %v12679
  %12696 = vmatmul.bf16.gmra.mxu0 %v12683
  %v12697 = vpop.f32.mrf.mxu0
  %v12698 = vadd.f32 0.0, %v12697
  %v12699 = vpop.f32.mrf.mxu0
  %v12700 = vadd.f32 0.0, %v12699
  %12701 = vdwg.mxu0
  %s12702 = scalar_lea.vmem %s5, 128
  %v12703 = vld [vmem:[%s12702] sm:$0xf]
  %v12704 = vld [vmem:[%s12702 + $0x4] sm:$0x1]
  %s12705 = scalar_lea.vmem %s5, 136
  %v12706 = vld [vmem:[%s12705] sm:$0xf]
  %v12707 = vld [vmem:[%s12705 + $0x4] sm:$0x1]
  %v12710 = vunpack.c.l.b16 %v12706
  %v12711 = vunpack.c.l.b16 %v12707
  %v12712 = vpack.c.b16 %v12711, %v12710
  %v12716 = vunpack.c.h.b16 %v12350
  %v12717 = vunpack.c.h.b16 %v12363
  %v12718 = vunpack.c.h.b16 %v12376
  %v12719 = vpack.c.b16 %v12717, %v12716
  %v12720 = vpack.c.b16 %v12718, %v12718
  %v12723 = vsel %vm12400, %v12712, 0
  %v12726 = vsel %vm12404, %v12720, 0
  %12728 = vmatpush.bf16.msra.mxu0 0
  %12729 = vmatpush.bf16.msra.mxu0 0
  %12730 = vmatpush.bf16.msra.mxu0 0
  %12731 = vmatpush.bf16.msra.mxu0 0
  %12732 = vmatpush.bf16.msra.mxu0 0
  %12733 = vmatpush.bf16.msra.mxu0 0
  %12734 = vmatpush.bf16.msra.mxu0 %v12726
  %12735 = vmatpush.bf16.msra.mxu0 %v12719
  %12736 = vmatmul.bf16.gmra.mxu0 %v12723
  %v12737 = vpop.f32.mrf.mxu0
  %v12738 = vadd.f32 0.0, %v12737
  %v12739 = vpop.f32.mrf.mxu0
  %v12740 = vadd.f32 0.0, %v12739
  %12741 = vdwg.mxu0
  %s12742 = scalar_lea.vmem %s5, 144
  %v12743 = vld [vmem:[%s12742] sm:$0xf]
  %v12744 = vld [vmem:[%s12742 + $0x4] sm:$0x1]
  %s12745 = scalar_lea.vmem %s5, 152
  %v12746 = vld [vmem:[%s12745] sm:$0xf]
  %v12747 = vld [vmem:[%s12745 + $0x4] sm:$0x1]
  %v12750 = vunpack.c.l.b16 %v12746
  %v12751 = vunpack.c.l.b16 %v12747
  %v12752 = vpack.c.b16 %v12751, %v12750
  %v12756 = vunpack.c.h.b16 %v12351
  %v12757 = vunpack.c.h.b16 %v12364
  %v12758 = vunpack.c.h.b16 %v12377
  %v12759 = vpack.c.b16 %v12757, %v12756
  %v12760 = vpack.c.b16 %v12758, %v12758
  %v12763 = vsel %vm12400, %v12752, 0
  %v12766 = vsel %vm12404, %v12760, 0
  %12768 = vmatpush.bf16.msra.mxu0 0
  %12769 = vmatpush.bf16.msra.mxu0 0
  %12770 = vmatpush.bf16.msra.mxu0 0
  %12771 = vmatpush.bf16.msra.mxu0 0
  %12772 = vmatpush.bf16.msra.mxu0 0
  %12773 = vmatpush.bf16.msra.mxu0 0
  %12774 = vmatpush.bf16.msra.mxu0 %v12766
  %12775 = vmatpush.bf16.msra.mxu0 %v12759
  %12776 = vmatmul.bf16.gmra.mxu0 %v12763
  %v12777 = vpop.f32.mrf.mxu0
  %v12778 = vadd.f32 0.0, %v12777
  %v12779 = vpop.f32.mrf.mxu0
  %v12780 = vadd.f32 0.0, %v12779
  %12781 = vdwg.mxu0
  %s12782 = scalar_lea.vmem %s5, 160
  %v12783 = vld [vmem:[%s12782] sm:$0xf]
  %v12784 = vld [vmem:[%s12782 + $0x4] sm:$0x1]
  %s12785 = scalar_lea.vmem %s5, 168
  %v12786 = vld [vmem:[%s12785] sm:$0xf]
  %v12787 = vld [vmem:[%s12785 + $0x4] sm:$0x1]
  %v12790 = vunpack.c.l.b16 %v12786
  %v12791 = vunpack.c.l.b16 %v12787
  %v12792 = vpack.c.b16 %v12791, %v12790
  %v12796 = vunpack.c.h.b16 %v12352
  %v12797 = vunpack.c.h.b16 %v12365
  %v12798 = vunpack.c.h.b16 %v12378
  %v12799 = vpack.c.b16 %v12797, %v12796
  %v12800 = vpack.c.b16 %v12798, %v12798
  %v12803 = vsel %vm12400, %v12792, 0
  %v12806 = vsel %vm12404, %v12800, 0
  %12808 = vmatpush.bf16.msra.mxu0 0
  %12809 = vmatpush.bf16.msra.mxu0 0
  %12810 = vmatpush.bf16.msra.mxu0 0
  %12811 = vmatpush.bf16.msra.mxu0 0
  %12812 = vmatpush.bf16.msra.mxu0 0
  %12813 = vmatpush.bf16.msra.mxu0 0
  %12814 = vmatpush.bf16.msra.mxu0 %v12806
  %12815 = vmatpush.bf16.msra.mxu0 %v12799
  %12816 = vmatmul.bf16.gmra.mxu0 %v12803
  %v12817 = vpop.f32.mrf.mxu0
  %v12818 = vadd.f32 0.0, %v12817
  %v12819 = vpop.f32.mrf.mxu0
  %v12820 = vadd.f32 0.0, %v12819
  %12821 = vdwg.mxu0
  %s12822 = scalar_lea.vmem %s5, 176
  %v12823 = vld [vmem:[%s12822] sm:$0xf]
  %v12824 = vld [vmem:[%s12822 + $0x4] sm:$0x1]
  %s12825 = scalar_lea.vmem %s5, 184
  %v12826 = vld [vmem:[%s12825] sm:$0xf]
  %v12827 = vld [vmem:[%s12825 + $0x4] sm:$0x1]
  %v12830 = vunpack.c.l.b16 %v12826
  %v12831 = vunpack.c.l.b16 %v12827
  %v12832 = vpack.c.b16 %v12831, %v12830
  %v12836 = vunpack.c.h.b16 %v12353
  %v12837 = vunpack.c.h.b16 %v12366
  %v12838 = vunpack.c.h.b16 %v12379
  %v12839 = vpack.c.b16 %v12837, %v12836
  %v12840 = vpack.c.b16 %v12838, %v12838
  %v12843 = vsel %vm12400, %v12832, 0
  %v12846 = vsel %vm12404, %v12840, 0
  %12848 = vmatpush.bf16.msra.mxu0 0
  %12849 = vmatpush.bf16.msra.mxu0 0
  %12850 = vmatpush.bf16.msra.mxu0 0
  %12851 = vmatpush.bf16.msra.mxu0 0
  %12852 = vmatpush.bf16.msra.mxu0 0
  %12853 = vmatpush.bf16.msra.mxu0 0
  %12854 = vmatpush.bf16.msra.mxu0 %v12846
  %12855 = vmatpush.bf16.msra.mxu0 %v12839
  %12856 = vmatmul.bf16.gmra.mxu0 %v12843
  %v12857 = vpop.f32.mrf.mxu0
  %v12858 = vadd.f32 0.0, %v12857
  %v12859 = vpop.f32.mrf.mxu0
  %v12860 = vadd.f32 0.0, %v12859
  %12861 = vdwg.mxu0
  %s12862 = scalar_lea.vmem %s5, 192
  %v12863 = vld [vmem:[%s12862] sm:$0xf]
  %v12864 = vld [vmem:[%s12862 + $0x4] sm:$0x1]
  %v12867 = vunpack.c.l.b16 %v12863
  %v12868 = vunpack.c.l.b16 %v12864
  %v12869 = vpack.c.b16 %v12868, %v12867
  %v12873 = vunpack.c.l.b16 %v12354
  %v12874 = vunpack.c.l.b16 %v12367
  %v12875 = vunpack.c.l.b16 %v12380
  %v12876 = vpack.c.b16 %v12874, %v12873
  %v12877 = vpack.c.b16 %v12875, %v12875
  %v12880 = vsel %vm12400, %v12869, 0
  %v12883 = vsel %vm12404, %v12877, 0
  %12885 = vmatpush.bf16.msra.mxu0 0
  %12886 = vmatpush.bf16.msra.mxu0 0
  %12887 = vmatpush.bf16.msra.mxu0 0
  %12888 = vmatpush.bf16.msra.mxu0 0
  %12889 = vmatpush.bf16.msra.mxu0 0
  %12890 = vmatpush.bf16.msra.mxu0 0
  %12891 = vmatpush.bf16.msra.mxu0 %v12883
  %12892 = vmatpush.bf16.msra.mxu0 %v12876
  %12893 = vmatmul.bf16.gmra.mxu0 %v12880
  %v12894 = vpop.f32.mrf.mxu0
  %v12895 = vadd.f32 0.0, %v12894
  %v12896 = vpop.f32.mrf.mxu0
  %v12897 = vadd.f32 0.0, %v12896
  %12898 = vdwg.mxu0
  %v12901 = vunpack.c.l.b16 %v12381
  %v12902 = vunpack.c.l.b16 %v12382
  %v12903 = vpack.c.b16 %v12902, %v12901
  %v12904 = vunpack.c.l.b16 %v12342
  %v12905 = vunpack.c.l.b16 %v12355
  %v12906 = vunpack.c.l.b16 %v12368
  %v12907 = vpack.c.b16 %v12905, %v12904
  %v12908 = vpack.c.b16 %v12906, %v12906
  %v12911 = vsel %vm12400, %v12903, 0
  %v12914 = vsel %vm12404, %v12908, 0
  %12916 = vmatpush.bf16.msra.mxu0 0
  %12917 = vmatpush.bf16.msra.mxu0 0
  %12918 = vmatpush.bf16.msra.mxu0 0
  %12919 = vmatpush.bf16.msra.mxu0 0
  %12920 = vmatpush.bf16.msra.mxu0 0
  %12921 = vmatpush.bf16.msra.mxu0 0
  %12922 = vmatpush.bf16.msra.mxu0 %v12914
  %12923 = vmatpush.bf16.msra.mxu0 %v12907
  %12924 = vmatmul.bf16.gmra.mxu0 %v12911
  %v12925 = vpop.f32.mrf.mxu0
  %v12926 = vadd.f32 %v12418, %v12925
  %v12927 = vpop.f32.mrf.mxu0
  %v12928 = vadd.f32 %v12420, %v12927
  %12929 = vdwg.mxu0
  %v12932 = vunpack.c.l.b16 %v12423
  %v12933 = vunpack.c.l.b16 %v12424
  %v12934 = vpack.c.b16 %v12933, %v12932
  %v12935 = vunpack.c.l.b16 %v12343
  %v12936 = vunpack.c.l.b16 %v12356
  %v12937 = vunpack.c.l.b16 %v12369
  %v12938 = vpack.c.b16 %v12936, %v12935
  %v12939 = vpack.c.b16 %v12937, %v12937
  %v12942 = vsel %vm12400, %v12934, 0
  %v12945 = vsel %vm12404, %v12939, 0
  %12947 = vmatpush.bf16.msra.mxu0 0
  %12948 = vmatpush.bf16.msra.mxu0 0
  %12949 = vmatpush.bf16.msra.mxu0 0
  %12950 = vmatpush.bf16.msra.mxu0 0
  %12951 = vmatpush.bf16.msra.mxu0 0
  %12952 = vmatpush.bf16.msra.mxu0 0
  %12953 = vmatpush.bf16.msra.mxu0 %v12945
  %12954 = vmatpush.bf16.msra.mxu0 %v12938
  %12955 = vmatmul.bf16.gmra.mxu0 %v12942
  %v12956 = vpop.f32.mrf.mxu0
  %v12957 = vadd.f32 %v12458, %v12956
  %v12958 = vpop.f32.mrf.mxu0
  %v12959 = vadd.f32 %v12460, %v12958
  %12960 = vdwg.mxu0
  %v12963 = vunpack.c.l.b16 %v12463
  %v12964 = vunpack.c.l.b16 %v12464
  %v12965 = vpack.c.b16 %v12964, %v12963
  %v12966 = vunpack.c.l.b16 %v12344
  %v12967 = vunpack.c.l.b16 %v12357
  %v12968 = vunpack.c.l.b16 %v12370
  %v12969 = vpack.c.b16 %v12967, %v12966
  %v12970 = vpack.c.b16 %v12968, %v12968
  %v12973 = vsel %vm12400, %v12965, 0
  %v12976 = vsel %vm12404, %v12970, 0
  %12978 = vmatpush.bf16.msra.mxu0 0
  %12979 = vmatpush.bf16.msra.mxu0 0
  %12980 = vmatpush.bf16.msra.mxu0 0
  %12981 = vmatpush.bf16.msra.mxu0 0
  %12982 = vmatpush.bf16.msra.mxu0 0
  %12983 = vmatpush.bf16.msra.mxu0 0
  %12984 = vmatpush.bf16.msra.mxu0 %v12976
  %12985 = vmatpush.bf16.msra.mxu0 %v12969
  %12986 = vmatmul.bf16.gmra.mxu0 %v12973
  %v12987 = vpop.f32.mrf.mxu0
  %v12988 = vadd.f32 %v12498, %v12987
  %v12989 = vpop.f32.mrf.mxu0
  %v12990 = vadd.f32 %v12500, %v12989
  %12991 = vdwg.mxu0
  %v12994 = vunpack.c.l.b16 %v12503
  %v12995 = vunpack.c.l.b16 %v12504
  %v12996 = vpack.c.b16 %v12995, %v12994
  %v12997 = vunpack.c.l.b16 %v12345
  %v12998 = vunpack.c.l.b16 %v12358
  %v12999 = vunpack.c.l.b16 %v12371
  %v13000 = vpack.c.b16 %v12998, %v12997
  %v13001 = vpack.c.b16 %v12999, %v12999
  %v13004 = vsel %vm12400, %v12996, 0
  %v13007 = vsel %vm12404, %v13001, 0
  %13009 = vmatpush.bf16.msra.mxu0 0
  %13010 = vmatpush.bf16.msra.mxu0 0
  %13011 = vmatpush.bf16.msra.mxu0 0
  %13012 = vmatpush.bf16.msra.mxu0 0
  %13013 = vmatpush.bf16.msra.mxu0 0
  %13014 = vmatpush.bf16.msra.mxu0 0
  %13015 = vmatpush.bf16.msra.mxu0 %v13007
  %13016 = vmatpush.bf16.msra.mxu0 %v13000
  %13017 = vmatmul.bf16.gmra.mxu0 %v13004
  %v13018 = vpop.f32.mrf.mxu0
  %v13019 = vadd.f32 %v12538, %v13018
  %v13020 = vpop.f32.mrf.mxu0
  %v13021 = vadd.f32 %v12540, %v13020
  %13022 = vdwg.mxu0
  %v13025 = vunpack.c.l.b16 %v12543
  %v13026 = vunpack.c.l.b16 %v12544
  %v13027 = vpack.c.b16 %v13026, %v13025
  %v13028 = vunpack.c.l.b16 %v12346
  %v13029 = vunpack.c.l.b16 %v12359
  %v13030 = vunpack.c.l.b16 %v12372
  %v13031 = vpack.c.b16 %v13029, %v13028
  %v13032 = vpack.c.b16 %v13030, %v13030
  %v13035 = vsel %vm12400, %v13027, 0
  %v13038 = vsel %vm12404, %v13032, 0
  %13040 = vmatpush.bf16.msra.mxu0 0
  %13041 = vmatpush.bf16.msra.mxu0 0
  %13042 = vmatpush.bf16.msra.mxu0 0
  %13043 = vmatpush.bf16.msra.mxu0 0
  %13044 = vmatpush.bf16.msra.mxu0 0
  %13045 = vmatpush.bf16.msra.mxu0 0
  %13046 = vmatpush.bf16.msra.mxu0 %v13038
  %13047 = vmatpush.bf16.msra.mxu0 %v13031
  %13048 = vmatmul.bf16.gmra.mxu0 %v13035
  %v13049 = vpop.f32.mrf.mxu0
  %v13050 = vadd.f32 %v12578, %v13049
  %v13051 = vpop.f32.mrf.mxu0
  %v13052 = vadd.f32 %v12580, %v13051
  %13053 = vdwg.mxu0
  %v13056 = vunpack.c.l.b16 %v12583
  %v13057 = vunpack.c.l.b16 %v12584
  %v13058 = vpack.c.b16 %v13057, %v13056
  %v13059 = vunpack.c.l.b16 %v12347
  %v13060 = vunpack.c.l.b16 %v12360
  %v13061 = vunpack.c.l.b16 %v12373
  %v13062 = vpack.c.b16 %v13060, %v13059
  %v13063 = vpack.c.b16 %v13061, %v13061
  %v13066 = vsel %vm12400, %v13058, 0
  %v13069 = vsel %vm12404, %v13063, 0
  %13071 = vmatpush.bf16.msra.mxu0 0
  %13072 = vmatpush.bf16.msra.mxu0 0
  %13073 = vmatpush.bf16.msra.mxu0 0
  %13074 = vmatpush.bf16.msra.mxu0 0
  %13075 = vmatpush.bf16.msra.mxu0 0
  %13076 = vmatpush.bf16.msra.mxu0 0
  %13077 = vmatpush.bf16.msra.mxu0 %v13069
  %13078 = vmatpush.bf16.msra.mxu0 %v13062
  %13079 = vmatmul.bf16.gmra.mxu0 %v13066
  %v13080 = vpop.f32.mrf.mxu0
  %v13081 = vadd.f32 %v12618, %v13080
  %v13082 = vpop.f32.mrf.mxu0
  %v13083 = vadd.f32 %v12620, %v13082
  %13084 = vdwg.mxu0
  %v13087 = vunpack.c.l.b16 %v12623
  %v13088 = vunpack.c.l.b16 %v12624
  %v13089 = vpack.c.b16 %v13088, %v13087
  %v13090 = vunpack.c.l.b16 %v12348
  %v13091 = vunpack.c.l.b16 %v12361
  %v13092 = vunpack.c.l.b16 %v12374
  %v13093 = vpack.c.b16 %v13091, %v13090
  %v13094 = vpack.c.b16 %v13092, %v13092
  %v13097 = vsel %vm12400, %v13089, 0
  %v13100 = vsel %vm12404, %v13094, 0
  %13102 = vmatpush.bf16.msra.mxu0 0
  %13103 = vmatpush.bf16.msra.mxu0 0
  %13104 = vmatpush.bf16.msra.mxu0 0
  %13105 = vmatpush.bf16.msra.mxu0 0
  %13106 = vmatpush.bf16.msra.mxu0 0
  %13107 = vmatpush.bf16.msra.mxu0 0
  %13108 = vmatpush.bf16.msra.mxu0 %v13100
  %13109 = vmatpush.bf16.msra.mxu0 %v13093
  %13110 = vmatmul.bf16.gmra.mxu0 %v13097
  %v13111 = vpop.f32.mrf.mxu0
  %v13112 = vadd.f32 %v12658, %v13111
  %v13113 = vpop.f32.mrf.mxu0
  %v13114 = vadd.f32 %v12660, %v13113
  %13115 = vdwg.mxu0
  %v13118 = vunpack.c.l.b16 %v12663
  %v13119 = vunpack.c.l.b16 %v12664
  %v13120 = vpack.c.b16 %v13119, %v13118
  %v13121 = vunpack.c.l.b16 %v12349
  %v13122 = vunpack.c.l.b16 %v12362
  %v13123 = vunpack.c.l.b16 %v12375
  %v13124 = vpack.c.b16 %v13122, %v13121
  %v13125 = vpack.c.b16 %v13123, %v13123
  %v13128 = vsel %vm12400, %v13120, 0
  %v13131 = vsel %vm12404, %v13125, 0
  %13133 = vmatpush.bf16.msra.mxu0 0
  %13134 = vmatpush.bf16.msra.mxu0 0
  %13135 = vmatpush.bf16.msra.mxu0 0
  %13136 = vmatpush.bf16.msra.mxu0 0
  %13137 = vmatpush.bf16.msra.mxu0 0
  %13138 = vmatpush.bf16.msra.mxu0 0
  %13139 = vmatpush.bf16.msra.mxu0 %v13131
  %13140 = vmatpush.bf16.msra.mxu0 %v13124
  %13141 = vmatmul.bf16.gmra.mxu0 %v13128
  %v13142 = vpop.f32.mrf.mxu0
  %v13143 = vadd.f32 %v12698, %v13142
  %v13144 = vpop.f32.mrf.mxu0
  %v13145 = vadd.f32 %v12700, %v13144
  %13146 = vdwg.mxu0
  %v13149 = vunpack.c.l.b16 %v12703
  %v13150 = vunpack.c.l.b16 %v12704
  %v13151 = vpack.c.b16 %v13150, %v13149
  %v13152 = vunpack.c.l.b16 %v12350
  %v13153 = vunpack.c.l.b16 %v12363
  %v13154 = vunpack.c.l.b16 %v12376
  %v13155 = vpack.c.b16 %v13153, %v13152
  %v13156 = vpack.c.b16 %v13154, %v13154
  %v13159 = vsel %vm12400, %v13151, 0
  %v13162 = vsel %vm12404, %v13156, 0
  %13164 = vmatpush.bf16.msra.mxu0 0
  %13165 = vmatpush.bf16.msra.mxu0 0
  %13166 = vmatpush.bf16.msra.mxu0 0
  %13167 = vmatpush.bf16.msra.mxu0 0
  %13168 = vmatpush.bf16.msra.mxu0 0
  %13169 = vmatpush.bf16.msra.mxu0 0
  %13170 = vmatpush.bf16.msra.mxu0 %v13162
  %13171 = vmatpush.bf16.msra.mxu0 %v13155
  %13172 = vmatmul.bf16.gmra.mxu0 %v13159
  %v13173 = vpop.f32.mrf.mxu0
  %v13174 = vadd.f32 %v12738, %v13173
  %v13175 = vpop.f32.mrf.mxu0
  %v13176 = vadd.f32 %v12740, %v13175
  %13177 = vdwg.mxu0
  %v13180 = vunpack.c.l.b16 %v12743
  %v13181 = vunpack.c.l.b16 %v12744
  %v13182 = vpack.c.b16 %v13181, %v13180
  %v13183 = vunpack.c.l.b16 %v12351
  %v13184 = vunpack.c.l.b16 %v12364
  %v13185 = vunpack.c.l.b16 %v12377
  %v13186 = vpack.c.b16 %v13184, %v13183
  %v13187 = vpack.c.b16 %v13185, %v13185
  %v13190 = vsel %vm12400, %v13182, 0
  %v13193 = vsel %vm12404, %v13187, 0
  %13195 = vmatpush.bf16.msra.mxu0 0
  %13196 = vmatpush.bf16.msra.mxu0 0
  %13197 = vmatpush.bf16.msra.mxu0 0
  %13198 = vmatpush.bf16.msra.mxu0 0
  %13199 = vmatpush.bf16.msra.mxu0 0
  %13200 = vmatpush.bf16.msra.mxu0 0
  %13201 = vmatpush.bf16.msra.mxu0 %v13193
  %13202 = vmatpush.bf16.msra.mxu0 %v13186
  %13203 = vmatmul.bf16.gmra.mxu0 %v13190
  %v13204 = vpop.f32.mrf.mxu0
  %v13205 = vadd.f32 %v12778, %v13204
  %v13206 = vpop.f32.mrf.mxu0
  %v13207 = vadd.f32 %v12780, %v13206
  %13208 = vdwg.mxu0
  %v13211 = vunpack.c.l.b16 %v12783
  %v13212 = vunpack.c.l.b16 %v12784
  %v13213 = vpack.c.b16 %v13212, %v13211
  %v13214 = vunpack.c.l.b16 %v12352
  %v13215 = vunpack.c.l.b16 %v12365
  %v13216 = vunpack.c.l.b16 %v12378
  %v13217 = vpack.c.b16 %v13215, %v13214
  %v13218 = vpack.c.b16 %v13216, %v13216
  %v13221 = vsel %vm12400, %v13213, 0
  %v13224 = vsel %vm12404, %v13218, 0
  %13226 = vmatpush.bf16.msra.mxu0 0
  %13227 = vmatpush.bf16.msra.mxu0 0
  %13228 = vmatpush.bf16.msra.mxu0 0
  %13229 = vmatpush.bf16.msra.mxu0 0
  %13230 = vmatpush.bf16.msra.mxu0 0
  %13231 = vmatpush.bf16.msra.mxu0 0
  %13232 = vmatpush.bf16.msra.mxu0 %v13224
  %13233 = vmatpush.bf16.msra.mxu0 %v13217
  %13234 = vmatmul.bf16.gmra.mxu0 %v13221
  %v13235 = vpop.f32.mrf.mxu0
  %v13236 = vadd.f32 %v12818, %v13235
  %v13237 = vpop.f32.mrf.mxu0
  %v13238 = vadd.f32 %v12820, %v13237
  %13239 = vdwg.mxu0
  %v13242 = vunpack.c.l.b16 %v12823
  %v13243 = vunpack.c.l.b16 %v12824
  %v13244 = vpack.c.b16 %v13243, %v13242
  %v13245 = vunpack.c.l.b16 %v12353
  %v13246 = vunpack.c.l.b16 %v12366
  %v13247 = vunpack.c.l.b16 %v12379
  %v13248 = vpack.c.b16 %v13246, %v13245
  %v13249 = vpack.c.b16 %v13247, %v13247
  %v13252 = vsel %vm12400, %v13244, 0
  %v13255 = vsel %vm12404, %v13249, 0
  %13257 = vmatpush.bf16.msra.mxu0 0
  %13258 = vmatpush.bf16.msra.mxu0 0
  %13259 = vmatpush.bf16.msra.mxu0 0
  %13260 = vmatpush.bf16.msra.mxu0 0
  %13261 = vmatpush.bf16.msra.mxu0 0
  %13262 = vmatpush.bf16.msra.mxu0 0
  %13263 = vmatpush.bf16.msra.mxu0 %v13255
  %13264 = vmatpush.bf16.msra.mxu0 %v13248
  %13265 = vmatmul.bf16.gmra.mxu0 %v13252
  %v13266 = vpop.f32.mrf.mxu0
  %v13267 = vadd.f32 %v12858, %v13266
  %v13268 = vpop.f32.mrf.mxu0
  %v13269 = vadd.f32 %v12860, %v13268
  %13270 = vdwg.mxu0
  %v13271 = vadd.f32 %v12926, %v12957
  %v13272 = vadd.f32 %v12928, %v12959
  %v13273 = vadd.f32 %v12988, %v13019
  %v13274 = vadd.f32 %v12990, %v13021
  %v13275 = vadd.f32 %v13050, %v13081
  %v13276 = vadd.f32 %v13052, %v13083
  %v13277 = vadd.f32 %v13112, %v13143
  %v13278 = vadd.f32 %v13114, %v13145
  %v13279 = vadd.f32 %v13174, %v13205
  %v13280 = vadd.f32 %v13176, %v13207
  %v13281 = vadd.f32 %v13236, %v13267
  %v13282 = vadd.f32 %v13238, %v13269
  %v13283 = vadd.f32 %v13271, %v13273
  %v13284 = vadd.f32 %v13272, %v13274
  %v13285 = vadd.f32 %v13275, %v13277
  %v13286 = vadd.f32 %v13276, %v13278
  %v13287 = vadd.f32 %v13279, %v13281
  %v13288 = vadd.f32 %v13280, %v13282
  %v13289 = vadd.f32 %v13283, %v13285
  %v13290 = vadd.f32 %v13284, %v13286
  %v13291 = vadd.f32 %v13287, %v12895
  %v13292 = vadd.f32 %v13288, %v12897
  %v13293 = vadd.f32 %v13289, %v13291
  %v13294 = vadd.f32 %v13290, %v13292
  %v13295 = vld [vmem:[%s6] sm:$0xff]
  %v13296 = vld [vmem:[%s6 + $0x8] sm:$0x3]
  %13298 = vset.pattern.permute.xlu0 0
  %13299 = vperm.xlu0 %13298, %v13295
  %v13300 = vpop.permute.xlu0 %13299
  %13303 = vset.pattern.permute.xlu0 0
  %13304 = vperm.xlu0 %13303, %v13296
  %v13305 = vpop.permute.xlu0 %13304
  %v13307 = vadd.f32 %v13293, %v13300
  %v13308 = vadd.f32 %v13294, %v13305
  %v13309 = vmax.f32 %v13307, 0.0
  %v13310 = vmax.f32 %v13308, 0.0
  %v13311 = vsel %vm2428, %v13310, -inf
  %v13312 = vmax.f32 %v13309, %v13311
  %v13313 = vrot.slane %v13312, 4
  %v13314 = vmax.f32 %v13312, %v13313
  %v13315 = vrot.slane %v13314, 2
  %v13316 = vmax.f32 %v13314, %v13315
  %v13317 = vrot.slane %v13316, 1
  %v13318 = vmax.f32 %v13316, %v13317
  %v13319 = vsub.f32 %v13309, %v13318
  %v13320 = vsub.f32 %v13310, %v13318
  %v13321 = vmul.f32 %v13319, 1.442695
  %v13322 = vpow.pop %v13321
  %v13323 = vmul.f32 %v13320, 1.442695
  %v13324 = vpow.pop %v13323
  %v13325 = vsel %vm2428, %v13324, 0.0
  %v13326 = vadd.f32 %v13322, %v13325
  %v13327 = vrot.slane %v13326, 4
  %v13328 = vadd.f32 %v13326, %v13327
  %v13329 = vrot.slane %v13328, 2
  %v13330 = vadd.f32 %v13328, %v13329
  %v13331 = vrot.slane %v13330, 1
  %v13332 = vadd.f32 %v13330, %v13331
  %v13333 = vlog2.pop %v13332
  %v13334 = vmul.f32 %v13333, 0.6931472
  %v13335 = vsub.f32 %v13319, %v13334
  %v13336 = vsub.f32 %v13320, %v13334
  %13337 = vst [vmem:[%s7] sm:$0xff] %v13335
  %13338 = vst [vmem:[%s7 + $0x8] sm:$0x3] %v13336
  // Predicated region
  $region30: #{net_forward.1} parent=0 // pred_check
    _
  $region31: #{net_forward.1} parent=0 // pred_check_branch
    %13340 = sbr.rel (0) target = $region33
  $region32: #{net_forward.1} parent=0 // pred_region
    _
  $region33: #{net_forward.1} parent=0 // pred_fallthru
    _
  // Predicated region
  $region34: #{net_forward.1} parent=0 // pred_check
    _
  $region35: #{net_forward.1} parent=0 // pred_check_branch
    %13342 = sbr.rel (0) target = $region37
  $region36: #{net_forward.1} parent=0 // pred_region
    _
  $region37: #{net_forward.1} parent=0 // pred_fallthru
    _

</llo_original>
